<compile_context>
chip_gen: v7x
topology: tpu7x:2x2x1
jax: 0.10.0
libtpu: 0.0.40
codegen_flags: <defaults>
</compile_context>

<pallas_src>
import functools

import jax
import jax.numpy as jnp
from jax.experimental import pallas as pl
from jax.experimental.pallas import tpu as pltpu


# ----------------------------------------------------------------------------
# Fused conv (im2col matmul) + folded-BN shift + ReLU + 2x2 max-pool kernel.
# One batch element per grid step; output is the NHWC-flattened pooled map
# (Hh*Wh, cout), written with a single bulk store.
# ----------------------------------------------------------------------------
def _conv_block_kernel(x_ref, w_ref, shift_ref, o_ref, pool_scr,
                       *, H, W, K, cin, cout, prebuilt_patches):
    if prebuilt_patches:
        # x_ref: (1, H*W, K*K*cin) ready-made patch matrix (layer 1, cin=1).
        pmat = x_ref[0]
    else:
        # x_ref: (1, H+K-1, W+K-1, cin) "same"-padded NHWC image.
        # Build the (H*W, K*K*cin) patch matrix with K*K lane-concats so the
        # conv becomes ONE matmul with a wide contraction dim (K*K*cin).
        pieces = []
        for kh in range(K):
            for kw in range(K):
                win = x_ref[0, pl.ds(kh, H), pl.ds(kw, W), :]   # (H, W, cin)
                pieces.append(win.reshape(H * W, cin))
        pmat = jnp.concatenate(pieces, axis=1)                  # (H*W, K*K*cin)

    # Single MXU matmul; BN scale is pre-folded into w, so only a shift remains.
    y = jnp.dot(pmat, w_ref[...], preferred_element_type=jnp.float32)
    y = jnp.maximum(y + shift_ref[...], 0.0)                    # (H*W, cout)

    Hh, Wh = H // 2, W // 2

    # Vertical 2x pool: leading-dim regroup (W % 8 == 0) + elementwise max.
    y4 = y.reshape(Hh, 2, W, cout)
    v = jnp.maximum(y4[:, 0], y4[:, 1]).reshape(Hh * W, cout)

    # Horizontal 2x pool: stride-2 sublane reads from a VMEM scratch
    # (row r = h*W + w is even iff w is even, since W is even).
    pool_scr[...] = v
    even = pool_scr[pl.ds(0, Hh * Wh, stride=2), :]
    odd = pool_scr[pl.ds(1, Hh * Wh, stride=2), :]
    o_ref[0] = jnp.maximum(even, odd).astype(o_ref.dtype)       # one bulk store


def conv_bn_relu_pool(x_nhwc, w_flat, shift, *, K):
    """x_nhwc: (N, H, W, cin); w_flat: (K*K*cin, cout) with BN scale folded in;
    shift: (1, cout). Returns the pooled NHWC activation (N, H//2, W//2, cout)."""
    N, H, W, cin = x_nhwc.shape
    cout = w_flat.shape[1]
    pad = (K - 1) // 2
    Hh, Wh = H // 2, W // 2
    assert H % 2 == 0 and W % 8 == 0, "kernel assumes even H and W % 8 == 0"

    if cin == 1:
        # Layer 1: the patch matrix is built in the wrapper (XLA). Pure layout
        # plumbing; the kernel still does all the math (matmul/BN/ReLU/pool).
        xp = jnp.pad(x_nhwc[..., 0], ((0, 0), (pad, pad), (pad, pad)))
        cols = [xp[:, kh:kh + H, kw:kw + W]
                for kh in range(K) for kw in range(K)]
        x_in = jnp.stack(cols, axis=-1).reshape(N, H * W, K * K)
        in_spec0 = pl.BlockSpec((1, H * W, K * K), lambda n: (n, 0, 0))
        prebuilt = True
    else:
        x_in = jnp.pad(x_nhwc, ((0, 0), (pad, pad), (pad, pad), (0, 0)))
        Hp, Wp = H + 2 * pad, W + 2 * pad
        in_spec0 = pl.BlockSpec((1, Hp, Wp, cin), lambda n: (n, 0, 0, 0))
        prebuilt = False

    kern = functools.partial(_conv_block_kernel, H=H, W=W, K=K, cin=cin,
                             cout=cout, prebuilt_patches=prebuilt)
    out = pl.pallas_call(
        kern,
        out_shape=jax.ShapeDtypeStruct((N, Hh * Wh, cout), jnp.float32),
        grid=(N,),
        in_specs=[in_spec0,
                  pl.BlockSpec((K * K * cin, cout), lambda n: (0, 0)),
                  pl.BlockSpec((1, cout), lambda n: (0, 0))],
        out_specs=pl.BlockSpec((1, Hh * Wh, cout), lambda n: (n, 0, 0)),
        scratch_shapes=[pltpu.VMEM((Hh * W, cout), jnp.float32)],
        compiler_params=pltpu.CompilerParams(
            dimension_semantics=("parallel",),   # v7x: batch across both TCs
            vmem_limit_bytes=48 * 1024 * 1024),  # headroom for the 96x96 size
    )(x_in, w_flat, shift)
    return out.reshape(N, Hh, Wh, cout)


# ----------------------------------------------------------------------------
# Fused FC head: relu(x @ w1 + b1) (dropout = identity at inference) @ w2 + b2,
# K-tiled over the fc1 input dim with a VMEM accumulator.
# ----------------------------------------------------------------------------
def _fc_fused_kernel(x_ref, w1_ref, b1_ref, w2_ref, b2_ref, o_ref, acc_ref):
    k = pl.program_id(0)

    @pl.when(k == 0)
    def _init():
        acc_ref[...] = jnp.zeros_like(acc_ref)

    acc_ref[...] += jnp.dot(x_ref[...], w1_ref[...],
                            preferred_element_type=jnp.float32)

    @pl.when(k == pl.num_programs(0) - 1)
    def _finalize():
        h = jnp.maximum(acc_ref[...] + b1_ref[...], 0.0)
        # TODO(synk): Dropout(p=0.4) is identity in eval/inference mode;
        # training-mode stochastic masking is not implemented here.
        o_ref[...] = (jnp.dot(h, w2_ref[...], preferred_element_type=jnp.float32)
                      + b2_ref[...]).astype(o_ref.dtype)


def fc_head(x, w1, b1, w2, b2):
    N, Din = x.shape
    Dh = w1.shape[1]
    Dout = w2.shape[1]
    tk = 1024
    while Din % tk != 0:
        tk //= 2
    nk = Din // tk
    return pl.pallas_call(
        _fc_fused_kernel,
        out_shape=jax.ShapeDtypeStruct((N, Dout), jnp.float32),
        grid=(nk,),
        in_specs=[pl.BlockSpec((N, tk), lambda k: (0, k)),
                  pl.BlockSpec((tk, Dh), lambda k: (k, 0)),
                  pl.BlockSpec((1, Dh), lambda k: (0, 0)),
                  pl.BlockSpec((Dh, Dout), lambda k: (0, 0)),
                  pl.BlockSpec((1, Dout), lambda k: (0, 0))],
        out_specs=pl.BlockSpec((N, Dout), lambda k: (0, 0)),
        scratch_shapes=[pltpu.VMEM((N, Dh), jnp.float32)],
        compiler_params=pltpu.CompilerParams(
            dimension_semantics=("arbitrary",)),
    )(x, w1, b1, w2, b2)


# ----------------------------------------------------------------------------
# Parameter construction (deterministic, synthetic) and forward pass.
# ----------------------------------------------------------------------------
def _fold_bn_into_conv(w_hwio, bias, gamma, beta, mean, var, eps=1e-5):
    """Inference BN folding: scale into the conv weights, the rest into a shift."""
    scale = gamma / jnp.sqrt(var + eps)                      # (cout,)
    K, _, cin, cout = w_hwio.shape
    w_folded = (w_hwio * scale).reshape(K * K * cin, cout)
    shift = (beta + (bias - mean) * scale).reshape(1, cout)
    return w_folded.astype(jnp.float32), shift.astype(jnp.float32)


def init_params(key, spatial):
    ks = jax.random.split(key, 24)

    def normal(k, shape, s=0.1):
        return (s * jax.random.normal(k, shape)).astype(jnp.float32)

    params = {}
    conv_cfg = [(1, 32, 5), (32, 64, 3), (64, 128, 3)]
    ki = 0
    for idx, (cin, cout, K) in enumerate(conv_cfg, start=1):
        w = normal(ks[ki], (K, K, cin, cout)); ki += 1            # HWIO
        b = normal(ks[ki], (cout,)); ki += 1
        gamma = 1.0 + normal(ks[ki], (cout,)); ki += 1
        beta = normal(ks[ki], (cout,)); ki += 1
        mean = normal(ks[ki], (cout,)); ki += 1
        var = 0.5 + jnp.abs(normal(ks[ki], (cout,), s=0.5)); ki += 1
        wf, sh = _fold_bn_into_conv(w, b, gamma, beta, mean, var)
        params[f"conv{idx}_w"] = wf
        params[f"conv{idx}_shift"] = sh

    # fc sizing mirrors _compute_fc_input_size: three 2x2 pools -> spatial/8,
    # 128 channels.  fc1 is generated in PyTorch NCHW-flatten row order, then
    # row-permuted so it consumes the kernel's NHWC flatten directly (this
    # folds the `x.view(N, -1)` layout into the weight; no runtime transpose).
    C, Hf, Wf = 128, spatial // 8, spatial // 8
    fc_in = C * Hf * Wf
    w1_nchw = normal(ks[ki], (fc_in, 512), s=0.02); ki += 1
    w1_nhwc = (w1_nchw.reshape(C, Hf, Wf, 512)
               .transpose(1, 2, 0, 3).reshape(fc_in, 512))
    params["fc1_w"] = w1_nhwc
    params["fc1_b"] = normal(ks[ki], (1, 512), s=0.02); ki += 1
    params["fc2_w"] = normal(ks[ki], (512, 136), s=0.02); ki += 1
    params["fc2_b"] = normal(ks[ki], (1, 136), s=0.02); ki += 1
    return params


def net_forward(params, x_nchw):
    # NCHW -> NHWC (C=1, so this is effectively a free reshape).
    x = jnp.transpose(x_nchw, (0, 2, 3, 1))
    x = conv_bn_relu_pool(x, params["conv1_w"], params["conv1_shift"], K=5)
    x = conv_bn_relu_pool(x, params["conv2_w"], params["conv2_shift"], K=3)
    x = conv_bn_relu_pool(x, params["conv3_w"], params["conv3_shift"], K=3)
    # NHWC flatten; fc1_w rows were pre-permuted at init so this matches
    # PyTorch's NCHW x.view(N, -1) semantics without a runtime transpose.
    x = x.reshape(x.shape[0], -1)
    return fc_head(x, params["fc1_w"], params["fc1_b"],
                   params["fc2_w"], params["fc2_b"])


if __name__ == "__main__":
    key = jax.random.PRNGKey(0)
    k_x, k_p = jax.random.split(key)

    # Small shapes consistent with the module: NCHW, 1 input channel, spatial
    # divisible by 8 (original uses 96x96 -> fc_in 18432; here 32x32 -> 2048).
    N, C, S = 2, 1, 32
    x = jax.random.normal(k_x, (N, C, S, S), dtype=jnp.float32)
    params = init_params(k_p, spatial=S)

    fwd = jax.jit(net_forward)
    out = jax.block_until_ready(fwd(params, x))
    assert out.shape == (N, 136), out.shape
    assert out.dtype == jnp.float32
    print("KERNEL_OK")
</pallas_src>

<mosaic_0001>
module attributes {stable_mosaic.version = 11 : i64} {
  func.func @_conv_block_kernel(%arg0: i32, %arg1: memref<1x1024x25xf32, #tpu.memory_space<vmem>>, %arg2: memref<25x32xf32, #tpu.memory_space<vmem>>, %arg3: memref<1x32xf32, #tpu.memory_space<vmem>>, %arg4: memref<1x256x32xf32, #tpu.memory_space<vmem>>, %arg5: memref<512x32xf32, #tpu.memory_space<vmem>>) attributes {dimension_semantics = [#tpu.dimension_semantics<parallel>], iteration_bounds = array<i64: 2>, scalar_prefetch = 0 : i64, scratch_operands = 1 : i64, tpu.core_type = #tpu.core_type<tc>, window_params = [{transform_indices = @transform_0, window_bounds = array<i64: 1, 1024, 25>}, {pipeline_mode = #tpu.pipeline_mode<synchronous>, transform_indices = @transform_1, window_bounds = array<i64: 25, 32>}, {pipeline_mode = #tpu.pipeline_mode<synchronous>, transform_indices = @transform_2, window_bounds = array<i64: 1, 32>}, {transform_indices = @transform_3, window_bounds = array<i64: 1, 256, 32>}]} {
    %c0 = arith.constant 0 : index
    %c0_0 = arith.constant 0 : index
    %c0_1 = arith.constant 0 : index
    %0 = vector.load %arg1[%c0, %c0_0, %c0_1] : memref<1x1024x25xf32, #tpu.memory_space<vmem>>, vector<1x1024x25xf32>
    %1 = vector.shape_cast %0 : vector<1x1024x25xf32> to vector<1024x25xf32>
    %c0_2 = arith.constant 0 : index
    %c0_3 = arith.constant 0 : index
    %2 = vector.load %arg2[%c0_2, %c0_3] : memref<25x32xf32, #tpu.memory_space<vmem>>, vector<25x32xf32>
    %cst = arith.constant dense<0.000000e+00> : vector<1024x32xf32>
    %3 = tpu.matmul %1, %2, %cst {dimension_numbers = #tpu.dot_dimension_numbers<[1], [0], [0], [1], [0, 0, 1, 1], [], []>} : vector<1024x25xf32>, vector<25x32xf32>, vector<1024x32xf32> -> vector<1024x32xf32>
    %c0_4 = arith.constant 0 : index
    %c0_5 = arith.constant 0 : index
    %4 = vector.load %arg3[%c0_4, %c0_5] : memref<1x32xf32, #tpu.memory_space<vmem>>, vector<1x32xf32>
    %5 = vector.broadcast %4 : vector<1x32xf32> to vector<1024x32xf32>
    %6 = arith.addf %3, %5 : vector<1024x32xf32>
    %cst_6 = arith.constant 0.000000e+00 : f32
    %7 = vector.broadcast %cst_6 : f32 to vector<1024x32xf32>
    %8 = arith.maximumf %6, %7 : vector<1024x32xf32>
    %9 = vector.shape_cast %8 : vector<1024x32xf32> to vector<16x2x32x32xf32>
    %10 = vector.extract_strided_slice %9 {offsets = [0, 0, 0, 0], sizes = [16, 1, 32, 32], strides = [1, 1, 1, 1]} : vector<16x2x32x32xf32> to vector<16x1x32x32xf32>
    %11 = vector.shape_cast %10 : vector<16x1x32x32xf32> to vector<16x32x32xf32>
    %12 = vector.extract_strided_slice %9 {offsets = [0, 1, 0, 0], sizes = [16, 1, 32, 32], strides = [1, 1, 1, 1]} : vector<16x2x32x32xf32> to vector<16x1x32x32xf32>
    %13 = vector.shape_cast %12 : vector<16x1x32x32xf32> to vector<16x32x32xf32>
    %14 = arith.maximumf %11, %13 : vector<16x32x32xf32>
    %15 = vector.shape_cast %14 : vector<16x32x32xf32> to vector<512x32xf32>
    %c0_7 = arith.constant 0 : index
    %c0_8 = arith.constant 0 : index
    %16 = vector.load %arg5[%c0_7, %c0_8] : memref<512x32xf32, #tpu.memory_space<vmem>>, vector<512x32xf32>
    tpu.vector_store %arg5[%c0_7, %c0_8], %15 {strides = array<i32>} : memref<512x32xf32, #tpu.memory_space<vmem>>, vector<512x32xf32>,
    %c0_9 = arith.constant 0 : index
    %c0_10 = arith.constant 0 : index
    %17 = tpu.strided_load %arg5[%c0_9, %c0_10] {strides = array<i32: 2, 1>} : memref<512x32xf32, #tpu.memory_space<vmem>>, vector<256x32xf32>
    %c1 = arith.constant 1 : index
    %c0_11 = arith.constant 0 : index
    %18 = tpu.strided_load %arg5[%c1, %c0_11] {strides = array<i32: 2, 1>} : memref<512x32xf32, #tpu.memory_space<vmem>>, vector<256x32xf32>
    %19 = arith.maximumf %17, %18 : vector<256x32xf32>
    %c0_12 = arith.constant 0 : index
    %c0_13 = arith.constant 0 : index
    %c0_14 = arith.constant 0 : index
    %20 = vector.load %arg4[%c0_12, %c0_13, %c0_14] : memref<1x256x32xf32, #tpu.memory_space<vmem>>, vector<1x256x32xf32>
    %21 = vector.shape_cast %20 : vector<1x256x32xf32> to vector<256x32xf32>
    %22 = vector.shape_cast %19 : vector<256x32xf32> to vector<1x256x32xf32>
    tpu.vector_store %arg4[%c0_12, %c0_13, %c0_14], %22 {strides = array<i32>} : memref<1x256x32xf32, #tpu.memory_space<vmem>>, vector<1x256x32xf32>,
    return
  }
  func.func @transform_0(%arg0: i32) -> (i32, i32, i32) {
    %c0_i32 = arith.constant 0 : i32
    %c0_i32_0 = arith.constant 0 : i32
    %c0_i32_1 = arith.constant 0 : i32
    return %arg0, %c0_i32, %c0_i32_0 : i32, i32, i32
  }
  func.func @transform_1(%arg0: i32) -> (i32, i32) {
    %c0_i32 = arith.constant 0 : i32
    %c0_i32_0 = arith.constant 0 : i32
    %c0_i32_1 = arith.constant 0 : i32
    return %c0_i32, %c0_i32_0 : i32, i32
  }
  func.func @transform_2(%arg0: i32) -> (i32, i32) {
    %c0_i32 = arith.constant 0 : i32
    %c0_i32_0 = arith.constant 0 : i32
    %c0_i32_1 = arith.constant 0 : i32
    return %c0_i32, %c0_i32_0 : i32, i32
  }
  func.func @transform_3(%arg0: i32) -> (i32, i32, i32) {
    %c0_i32 = arith.constant 0 : i32
    %c0_i32_0 = arith.constant 0 : i32
    %c0_i32_1 = arith.constant 0 : i32
    return %arg0, %c0_i32, %c0_i32_0 : i32, i32, i32
  }
}

module attributes {stable_mosaic.version = 11 : i64} {
  func.func @_conv_block_kernel(%arg0: i32, %arg1: memref<1x18x18x32xf32, #tpu.memory_space<vmem>>, %arg2: memref<288x64xf32, #tpu.memory_space<vmem>>, %arg3: memref<1x64xf32, #tpu.memory_space<vmem>>, %arg4: memref<1x64x64xf32, #tpu.memory_space<vmem>>, %arg5: memref<128x64xf32, #tpu.memory_space<vmem>>) attributes {dimension_semantics = [#tpu.dimension_semantics<parallel>], iteration_bounds = array<i64: 2>, scalar_prefetch = 0 : i64, scratch_operands = 1 : i64, tpu.core_type = #tpu.core_type<tc>, window_params = [{transform_indices = @transform_0, window_bounds = array<i64: 1, 18, 18, 32>}, {pipeline_mode = #tpu.pipeline_mode<synchronous>, transform_indices = @transform_1, window_bounds = array<i64: 288, 64>}, {pipeline_mode = #tpu.pipeline_mode<synchronous>, transform_indices = @transform_2, window_bounds = array<i64: 1, 64>}, {transform_indices = @transform_3, window_bounds = array<i64: 1, 64, 64>}]} {
    %c0 = arith.constant 0 : index
    %c0_0 = arith.constant 0 : index
    %c0_1 = arith.constant 0 : index
    %c0_2 = arith.constant 0 : index
    %0 = vector.load %arg1[%c0, %c0_0, %c0_1, %c0_2] : memref<1x18x18x32xf32, #tpu.memory_space<vmem>>, vector<1x16x16x32xf32>
    %1 = vector.shape_cast %0 : vector<1x16x16x32xf32> to vector<16x16x32xf32>
    %2 = vector.shape_cast %1 : vector<16x16x32xf32> to vector<256x32xf32>
    %c0_3 = arith.constant 0 : index
    %c0_4 = arith.constant 0 : index
    %c1 = arith.constant 1 : index
    %c0_5 = arith.constant 0 : index
    %3 = vector.load %arg1[%c0_3, %c0_4, %c1, %c0_5] : memref<1x18x18x32xf32, #tpu.memory_space<vmem>>, vector<1x16x16x32xf32>
    %4 = vector.shape_cast %3 : vector<1x16x16x32xf32> to vector<16x16x32xf32>
    %5 = vector.shape_cast %4 : vector<16x16x32xf32> to vector<256x32xf32>
    %c0_6 = arith.constant 0 : index
    %c0_7 = arith.constant 0 : index
    %c2 = arith.constant 2 : index
    %c0_8 = arith.constant 0 : index
    %6 = vector.load %arg1[%c0_6, %c0_7, %c2, %c0_8] : memref<1x18x18x32xf32, #tpu.memory_space<vmem>>, vector<1x16x16x32xf32>
    %7 = vector.shape_cast %6 : vector<1x16x16x32xf32> to vector<16x16x32xf32>
    %8 = vector.shape_cast %7 : vector<16x16x32xf32> to vector<256x32xf32>
    %c0_9 = arith.constant 0 : index
    %c1_10 = arith.constant 1 : index
    %c0_11 = arith.constant 0 : index
    %c0_12 = arith.constant 0 : index
    %9 = vector.load %arg1[%c0_9, %c1_10, %c0_11, %c0_12] : memref<1x18x18x32xf32, #tpu.memory_space<vmem>>, vector<1x16x16x32xf32>
    %10 = vector.shape_cast %9 : vector<1x16x16x32xf32> to vector<16x16x32xf32>
    %11 = vector.shape_cast %10 : vector<16x16x32xf32> to vector<256x32xf32>
    %c0_13 = arith.constant 0 : index
    %c1_14 = arith.constant 1 : index
    %c1_15 = arith.constant 1 : index
    %c0_16 = arith.constant 0 : index
    %12 = vector.load %arg1[%c0_13, %c1_14, %c1_15, %c0_16] : memref<1x18x18x32xf32, #tpu.memory_space<vmem>>, vector<1x16x16x32xf32>
    %13 = vector.shape_cast %12 : vector<1x16x16x32xf32> to vector<16x16x32xf32>
    %14 = vector.shape_cast %13 : vector<16x16x32xf32> to vector<256x32xf32>
    %c0_17 = arith.constant 0 : index
    %c1_18 = arith.constant 1 : index
    %c2_19 = arith.constant 2 : index
    %c0_20 = arith.constant 0 : index
    %15 = vector.load %arg1[%c0_17, %c1_18, %c2_19, %c0_20] : memref<1x18x18x32xf32, #tpu.memory_space<vmem>>, vector<1x16x16x32xf32>
    %16 = vector.shape_cast %15 : vector<1x16x16x32xf32> to vector<16x16x32xf32>
    %17 = vector.shape_cast %16 : vector<16x16x32xf32> to vector<256x32xf32>
    %c0_21 = arith.constant 0 : index
    %c2_22 = arith.constant 2 : index
    %c0_23 = arith.constant 0 : index
    %c0_24 = arith.constant 0 : index
    %18 = vector.load %arg1[%c0_21, %c2_22, %c0_23, %c0_24] : memref<1x18x18x32xf32, #tpu.memory_space<vmem>>, vector<1x16x16x32xf32>
    %19 = vector.shape_cast %18 : vector<1x16x16x32xf32> to vector<16x16x32xf32>
    %20 = vector.shape_cast %19 : vector<16x16x32xf32> to vector<256x32xf32>
    %c0_25 = arith.constant 0 : index
    %c2_26 = arith.constant 2 : index
    %c1_27 = arith.constant 1 : index
    %c0_28 = arith.constant 0 : index
    %21 = vector.load %arg1[%c0_25, %c2_26, %c1_27, %c0_28] : memref<1x18x18x32xf32, #tpu.memory_space<vmem>>, vector<1x16x16x32xf32>
    %22 = vector.shape_cast %21 : vector<1x16x16x32xf32> to vector<16x16x32xf32>
    %23 = vector.shape_cast %22 : vector<16x16x32xf32> to vector<256x32xf32>
    %c0_29 = arith.constant 0 : index
    %c2_30 = arith.constant 2 : index
    %c2_31 = arith.constant 2 : index
    %c0_32 = arith.constant 0 : index
    %24 = vector.load %arg1[%c0_29, %c2_30, %c2_31, %c0_32] : memref<1x18x18x32xf32, #tpu.memory_space<vmem>>, vector<1x16x16x32xf32>
    %25 = vector.shape_cast %24 : vector<1x16x16x32xf32> to vector<16x16x32xf32>
    %26 = vector.shape_cast %25 : vector<16x16x32xf32> to vector<256x32xf32>
    %27 = tpu.concatenate %2, %5, %8, %11, %14, %17, %20, %23, %26 in 1 : vector<256x32xf32>, vector<256x32xf32>, vector<256x32xf32>, vector<256x32xf32>, vector<256x32xf32>, vector<256x32xf32>, vector<256x32xf32>, vector<256x32xf32>, vector<256x32xf32> -> vector<256x288xf32>
    %c0_33 = arith.constant 0 : index
    %c0_34 = arith.constant 0 : index
    %28 = vector.load %arg2[%c0_33, %c0_34] : memref<288x64xf32, #tpu.memory_space<vmem>>, vector<288x64xf32>
    %cst = arith.constant dense<0.000000e+00> : vector<256x64xf32>
    %29 = tpu.matmul %27, %28, %cst {dimension_numbers = #tpu.dot_dimension_numbers<[1], [0], [0], [1], [0, 0, 1, 1], [], []>} : vector<256x288xf32>, vector<288x64xf32>, vector<256x64xf32> -> vector<256x64xf32>
    %c0_35 = arith.constant 0 : index
    %c0_36 = arith.constant 0 : index
    %30 = vector.load %arg3[%c0_35, %c0_36] : memref<1x64xf32, #tpu.memory_space<vmem>>, vector<1x64xf32>
    %31 = vector.broadcast %30 : vector<1x64xf32> to vector<256x64xf32>
    %32 = arith.addf %29, %31 : vector<256x64xf32>
    %cst_37 = arith.constant 0.000000e+00 : f32
    %33 = vector.broadcast %cst_37 : f32 to vector<256x64xf32>
    %34 = arith.maximumf %32, %33 : vector<256x64xf32>
    %35 = vector.shape_cast %34 : vector<256x64xf32> to vector<8x2x16x64xf32>
    %36 = vector.extract_strided_slice %35 {offsets = [0, 0, 0, 0], sizes = [8, 1, 16, 64], strides = [1, 1, 1, 1]} : vector<8x2x16x64xf32> to vector<8x1x16x64xf32>
    %37 = vector.shape_cast %36 : vector<8x1x16x64xf32> to vector<8x16x64xf32>
    %38 = vector.extract_strided_slice %35 {offsets = [0, 1, 0, 0], sizes = [8, 1, 16, 64], strides = [1, 1, 1, 1]} : vector<8x2x16x64xf32> to vector<8x1x16x64xf32>
    %39 = vector.shape_cast %38 : vector<8x1x16x64xf32> to vector<8x16x64xf32>
    %40 = arith.maximumf %37, %39 : vector<8x16x64xf32>
    %41 = vector.shape_cast %40 : vector<8x16x64xf32> to vector<128x64xf32>
    %c0_38 = arith.constant 0 : index
    %c0_39 = arith.constant 0 : index
    %42 = vector.load %arg5[%c0_38, %c0_39] : memref<128x64xf32, #tpu.memory_space<vmem>>, vector<128x64xf32>
    tpu.vector_store %arg5[%c0_38, %c0_39], %41 {strides = array<i32>} : memref<128x64xf32, #tpu.memory_space<vmem>>, vector<128x64xf32>,
    %c0_40 = arith.constant 0 : index
    %c0_41 = arith.constant 0 : index
    %43 = tpu.strided_load %arg5[%c0_40, %c0_41] {strides = array<i32: 2, 1>} : memref<128x64xf32, #tpu.memory_space<vmem>>, vector<64x64xf32>
    %c1_42 = arith.constant 1 : index
    %c0_43 = arith.constant 0 : index
    %44 = tpu.strided_load %arg5[%c1_42, %c0_43] {strides = array<i32: 2, 1>} : memref<128x64xf32, #tpu.memory_space<vmem>>, vector<64x64xf32>
    %45 = arith.maximumf %43, %44 : vector<64x64xf32>
    %c0_44 = arith.constant 0 : index
    %c0_45 = arith.constant 0 : index
    %c0_46 = arith.constant 0 : index
    %46 = vector.load %arg4[%c0_44, %c0_45, %c0_46] : memref<1x64x64xf32, #tpu.memory_space<vmem>>, vector<1x64x64xf32>
    %47 = vector.shape_cast %46 : vector<1x64x64xf32> to vector<64x64xf32>
    %48 = vector.shape_cast %45 : vector<64x64xf32> to vector<1x64x64xf32>
    tpu.vector_store %arg4[%c0_44, %c0_45, %c0_46], %48 {strides = array<i32>} : memref<1x64x64xf32, #tpu.memory_space<vmem>>, vector<1x64x64xf32>,
    return
  }
  func.func @transform_0(%arg0: i32) -> (i32, i32, i32, i32) {
    %c0_i32 = arith.constant 0 : i32
    %c0_i32_0 = arith.constant 0 : i32
    %c0_i32_1 = arith.constant 0 : i32
    %c0_i32_2 = arith.constant 0 : i32
    return %arg0, %c0_i32, %c0_i32_0, %c0_i32_1 : i32, i32, i32, i32
  }
  func.func @transform_1(%arg0: i32) -> (i32, i32) {
    %c0_i32 = arith.constant 0 : i32
    %c0_i32_0 = arith.constant 0 : i32
    %c0_i32_1 = arith.constant 0 : i32
    return %c0_i32, %c0_i32_0 : i32, i32
  }
  func.func @transform_2(%arg0: i32) -> (i32, i32) {
    %c0_i32 = arith.constant 0 : i32
    %c0_i32_0 = arith.constant 0 : i32
    %c0_i32_1 = arith.constant 0 : i32
    return %c0_i32, %c0_i32_0 : i32, i32
  }
  func.func @transform_3(%arg0: i32) -> (i32, i32, i32) {
    %c0_i32 = arith.constant 0 : i32
    %c0_i32_0 = arith.constant 0 : i32
    %c0_i32_1 = arith.constant 0 : i32
    return %arg0, %c0_i32, %c0_i32_0 : i32, i32, i32
  }
}

module attributes {stable_mosaic.version = 11 : i64} {
  func.func @_conv_block_kernel(%arg0: i32, %arg1: memref<1x10x10x64xf32, #tpu.memory_space<vmem>>, %arg2: memref<576x128xf32, #tpu.memory_space<vmem>>, %arg3: memref<1x128xf32, #tpu.memory_space<vmem>>, %arg4: memref<1x16x128xf32, #tpu.memory_space<vmem>>, %arg5: memref<32x128xf32, #tpu.memory_space<vmem>>) attributes {dimension_semantics = [#tpu.dimension_semantics<parallel>], iteration_bounds = array<i64: 2>, scalar_prefetch = 0 : i64, scratch_operands = 1 : i64, tpu.core_type = #tpu.core_type<tc>, window_params = [{transform_indices = @transform_0, window_bounds = array<i64: 1, 10, 10, 64>}, {pipeline_mode = #tpu.pipeline_mode<synchronous>, transform_indices = @transform_1, window_bounds = array<i64: 576, 128>}, {pipeline_mode = #tpu.pipeline_mode<synchronous>, transform_indices = @transform_2, window_bounds = array<i64: 1, 128>}, {transform_indices = @transform_3, window_bounds = array<i64: 1, 16, 128>}]} {
    %c0 = arith.constant 0 : index
    %c0_0 = arith.constant 0 : index
    %c0_1 = arith.constant 0 : index
    %c0_2 = arith.constant 0 : index
    %0 = vector.load %arg1[%c0, %c0_0, %c0_1, %c0_2] : memref<1x10x10x64xf32, #tpu.memory_space<vmem>>, vector<1x8x8x64xf32>
    %1 = vector.shape_cast %0 : vector<1x8x8x64xf32> to vector<8x8x64xf32>
    %2 = vector.shape_cast %1 : vector<8x8x64xf32> to vector<64x64xf32>
    %c0_3 = arith.constant 0 : index
    %c0_4 = arith.constant 0 : index
    %c1 = arith.constant 1 : index
    %c0_5 = arith.constant 0 : index
    %3 = vector.load %arg1[%c0_3, %c0_4, %c1, %c0_5] : memref<1x10x10x64xf32, #tpu.memory_space<vmem>>, vector<1x8x8x64xf32>
    %4 = vector.shape_cast %3 : vector<1x8x8x64xf32> to vector<8x8x64xf32>
    %5 = vector.shape_cast %4 : vector<8x8x64xf32> to vector<64x64xf32>
    %c0_6 = arith.constant 0 : index
    %c0_7 = arith.constant 0 : index
    %c2 = arith.constant 2 : index
    %c0_8 = arith.constant 0 : index
    %6 = vector.load %arg1[%c0_6, %c0_7, %c2, %c0_8] : memref<1x10x10x64xf32, #tpu.memory_space<vmem>>, vector<1x8x8x64xf32>
    %7 = vector.shape_cast %6 : vector<1x8x8x64xf32> to vector<8x8x64xf32>
    %8 = vector.shape_cast %7 : vector<8x8x64xf32> to vector<64x64xf32>
    %c0_9 = arith.constant 0 : index
    %c1_10 = arith.constant 1 : index
    %c0_11 = arith.constant 0 : index
    %c0_12 = arith.constant 0 : index
    %9 = vector.load %arg1[%c0_9, %c1_10, %c0_11, %c0_12] : memref<1x10x10x64xf32, #tpu.memory_space<vmem>>, vector<1x8x8x64xf32>
    %10 = vector.shape_cast %9 : vector<1x8x8x64xf32> to vector<8x8x64xf32>
    %11 = vector.shape_cast %10 : vector<8x8x64xf32> to vector<64x64xf32>
    %c0_13 = arith.constant 0 : index
    %c1_14 = arith.constant 1 : index
    %c1_15 = arith.constant 1 : index
    %c0_16 = arith.constant 0 : index
    %12 = vector.load %arg1[%c0_13, %c1_14, %c1_15, %c0_16] : memref<1x10x10x64xf32, #tpu.memory_space<vmem>>, vector<1x8x8x64xf32>
    %13 = vector.shape_cast %12 : vector<1x8x8x64xf32> to vector<8x8x64xf32>
    %14 = vector.shape_cast %13 : vector<8x8x64xf32> to vector<64x64xf32>
    %c0_17 = arith.constant 0 : index
    %c1_18 = arith.constant 1 : index
    %c2_19 = arith.constant 2 : index
    %c0_20 = arith.constant 0 : index
    %15 = vector.load %arg1[%c0_17, %c1_18, %c2_19, %c0_20] : memref<1x10x10x64xf32, #tpu.memory_space<vmem>>, vector<1x8x8x64xf32>
    %16 = vector.shape_cast %15 : vector<1x8x8x64xf32> to vector<8x8x64xf32>
    %17 = vector.shape_cast %16 : vector<8x8x64xf32> to vector<64x64xf32>
    %c0_21 = arith.constant 0 : index
    %c2_22 = arith.constant 2 : index
    %c0_23 = arith.constant 0 : index
    %c0_24 = arith.constant 0 : index
    %18 = vector.load %arg1[%c0_21, %c2_22, %c0_23, %c0_24] : memref<1x10x10x64xf32, #tpu.memory_space<vmem>>, vector<1x8x8x64xf32>
    %19 = vector.shape_cast %18 : vector<1x8x8x64xf32> to vector<8x8x64xf32>
    %20 = vector.shape_cast %19 : vector<8x8x64xf32> to vector<64x64xf32>
    %c0_25 = arith.constant 0 : index
    %c2_26 = arith.constant 2 : index
    %c1_27 = arith.constant 1 : index
    %c0_28 = arith.constant 0 : index
    %21 = vector.load %arg1[%c0_25, %c2_26, %c1_27, %c0_28] : memref<1x10x10x64xf32, #tpu.memory_space<vmem>>, vector<1x8x8x64xf32>
    %22 = vector.shape_cast %21 : vector<1x8x8x64xf32> to vector<8x8x64xf32>
    %23 = vector.shape_cast %22 : vector<8x8x64xf32> to vector<64x64xf32>
    %c0_29 = arith.constant 0 : index
    %c2_30 = arith.constant 2 : index
    %c2_31 = arith.constant 2 : index
    %c0_32 = arith.constant 0 : index
    %24 = vector.load %arg1[%c0_29, %c2_30, %c2_31, %c0_32] : memref<1x10x10x64xf32, #tpu.memory_space<vmem>>, vector<1x8x8x64xf32>
    %25 = vector.shape_cast %24 : vector<1x8x8x64xf32> to vector<8x8x64xf32>
    %26 = vector.shape_cast %25 : vector<8x8x64xf32> to vector<64x64xf32>
    %27 = tpu.concatenate %2, %5, %8, %11, %14, %17, %20, %23, %26 in 1 : vector<64x64xf32>, vector<64x64xf32>, vector<64x64xf32>, vector<64x64xf32>, vector<64x64xf32>, vector<64x64xf32>, vector<64x64xf32>, vector<64x64xf32>, vector<64x64xf32> -> vector<64x576xf32>
    %c0_33 = arith.constant 0 : index
    %c0_34 = arith.constant 0 : index
    %28 = vector.load %arg2[%c0_33, %c0_34] : memref<576x128xf32, #tpu.memory_space<vmem>>, vector<576x128xf32>
    %cst = arith.constant dense<0.000000e+00> : vector<64x128xf32>
    %29 = tpu.matmul %27, %28, %cst {dimension_numbers = #tpu.dot_dimension_numbers<[1], [0], [0], [1], [0, 0, 1, 1], [], []>} : vector<64x576xf32>, vector<576x128xf32>, vector<64x128xf32> -> vector<64x128xf32>
    %c0_35 = arith.constant 0 : index
    %c0_36 = arith.constant 0 : index
    %30 = vector.load %arg3[%c0_35, %c0_36] : memref<1x128xf32, #tpu.memory_space<vmem>>, vector<1x128xf32>
    %31 = vector.broadcast %30 : vector<1x128xf32> to vector<64x128xf32>
    %32 = arith.addf %29, %31 : vector<64x128xf32>
    %cst_37 = arith.constant 0.000000e+00 : f32
    %33 = vector.broadcast %cst_37 : f32 to vector<64x128xf32>
    %34 = arith.maximumf %32, %33 : vector<64x128xf32>
    %35 = vector.shape_cast %34 : vector<64x128xf32> to vector<4x2x8x128xf32>
    %36 = vector.extract_strided_slice %35 {offsets = [0, 0, 0, 0], sizes = [4, 1, 8, 128], strides = [1, 1, 1, 1]} : vector<4x2x8x128xf32> to vector<4x1x8x128xf32>
    %37 = vector.shape_cast %36 : vector<4x1x8x128xf32> to vector<4x8x128xf32>
    %38 = vector.extract_strided_slice %35 {offsets = [0, 1, 0, 0], sizes = [4, 1, 8, 128], strides = [1, 1, 1, 1]} : vector<4x2x8x128xf32> to vector<4x1x8x128xf32>
    %39 = vector.shape_cast %38 : vector<4x1x8x128xf32> to vector<4x8x128xf32>
    %40 = arith.maximumf %37, %39 : vector<4x8x128xf32>
    %41 = vector.shape_cast %40 : vector<4x8x128xf32> to vector<32x128xf32>
    %c0_38 = arith.constant 0 : index
    %c0_39 = arith.constant 0 : index
    %42 = vector.load %arg5[%c0_38, %c0_39] : memref<32x128xf32, #tpu.memory_space<vmem>>, vector<32x128xf32>
    tpu.vector_store %arg5[%c0_38, %c0_39], %41 {strides = array<i32>} : memref<32x128xf32, #tpu.memory_space<vmem>>, vector<32x128xf32>,
    %c0_40 = arith.constant 0 : index
    %c0_41 = arith.constant 0 : index
    %43 = tpu.strided_load %arg5[%c0_40, %c0_41] {strides = array<i32: 2, 1>} : memref<32x128xf32, #tpu.memory_space<vmem>>, vector<16x128xf32>
    %c1_42 = arith.constant 1 : index
    %c0_43 = arith.constant 0 : index
    %44 = tpu.strided_load %arg5[%c1_42, %c0_43] {strides = array<i32: 2, 1>} : memref<32x128xf32, #tpu.memory_space<vmem>>, vector<16x128xf32>
    %45 = arith.maximumf %43, %44 : vector<16x128xf32>
    %c0_44 = arith.constant 0 : index
    %c0_45 = arith.constant 0 : index
    %c0_46 = arith.constant 0 : index
    %46 = vector.load %arg4[%c0_44, %c0_45, %c0_46] : memref<1x16x128xf32, #tpu.memory_space<vmem>>, vector<1x16x128xf32>
    %47 = vector.shape_cast %46 : vector<1x16x128xf32> to vector<16x128xf32>
    %48 = vector.shape_cast %45 : vector<16x128xf32> to vector<1x16x128xf32>
    tpu.vector_store %arg4[%c0_44, %c0_45, %c0_46], %48 {strides = array<i32>} : memref<1x16x128xf32, #tpu.memory_space<vmem>>, vector<1x16x128xf32>,
    return
  }
  func.func @transform_0(%arg0: i32) -> (i32, i32, i32, i32) {
    %c0_i32 = arith.constant 0 : i32
    %c0_i32_0 = arith.constant 0 : i32
    %c0_i32_1 = arith.constant 0 : i32
    %c0_i32_2 = arith.constant 0 : i32
    return %arg0, %c0_i32, %c0_i32_0, %c0_i32_1 : i32, i32, i32, i32
  }
  func.func @transform_1(%arg0: i32) -> (i32, i32) {
    %c0_i32 = arith.constant 0 : i32
    %c0_i32_0 = arith.constant 0 : i32
    %c0_i32_1 = arith.constant 0 : i32
    return %c0_i32, %c0_i32_0 : i32, i32
  }
  func.func @transform_2(%arg0: i32) -> (i32, i32) {
    %c0_i32 = arith.constant 0 : i32
    %c0_i32_0 = arith.constant 0 : i32
    %c0_i32_1 = arith.constant 0 : i32
    return %c0_i32, %c0_i32_0 : i32, i32
  }
  func.func @transform_3(%arg0: i32) -> (i32, i32, i32) {
    %c0_i32 = arith.constant 0 : i32
    %c0_i32_0 = arith.constant 0 : i32
    %c0_i32_1 = arith.constant 0 : i32
    return %arg0, %c0_i32, %c0_i32_0 : i32, i32, i32
  }
}

module attributes {stable_mosaic.version = 11 : i64} {
  func.func @_fc_fused_kernel(%arg0: i32, %arg1: memref<2x1024xf32, #tpu.memory_space<vmem>>, %arg2: memref<1024x512xf32, #tpu.memory_space<vmem>>, %arg3: memref<1x512xf32, #tpu.memory_space<vmem>>, %arg4: memref<512x136xf32, #tpu.memory_space<vmem>>, %arg5: memref<1x136xf32, #tpu.memory_space<vmem>>, %arg6: memref<2x136xf32, #tpu.memory_space<vmem>>, %arg7: memref<2x512xf32, #tpu.memory_space<vmem>>) attributes {dimension_semantics = [#tpu.dimension_semantics<arbitrary>], iteration_bounds = array<i64: 2>, scalar_prefetch = 0 : i64, scratch_operands = 1 : i64, tpu.core_type = #tpu.core_type<tc>, window_params = [{transform_indices = @transform_0, window_bounds = array<i64: 2, 1024>}, {transform_indices = @transform_1, window_bounds = array<i64: 1024, 512>}, {pipeline_mode = #tpu.pipeline_mode<synchronous>, transform_indices = @transform_2, window_bounds = array<i64: 1, 512>}, {pipeline_mode = #tpu.pipeline_mode<synchronous>, transform_indices = @transform_3, window_bounds = array<i64: 512, 136>}, {pipeline_mode = #tpu.pipeline_mode<synchronous>, transform_indices = @transform_4, window_bounds = array<i64: 1, 136>}, {pipeline_mode = #tpu.pipeline_mode<synchronous>, transform_indices = @transform_5, window_bounds = array<i64: 2, 136>}]} {
    %c0_i32 = arith.constant 0 : i32
    %0 = arith.cmpi eq, %arg0, %c0_i32 : i32
    %1 = arith.extui %0 : i1 to i32
    %c0_i32_0 = arith.constant 0 : i32
    %2 = arith.cmpi ne, %1, %c0_i32_0 : i32
    scf.if %2 {
      %cst_9 = arith.constant 0.000000e+00 : f32
      %12 = vector.broadcast %cst_9 : f32 to vector<2x512xf32>
      %c0_10 = arith.constant 0 : index
      %c0_11 = arith.constant 0 : index
      %13 = vector.load %arg7[%c0_10, %c0_11] : memref<2x512xf32, #tpu.memory_space<vmem>>, vector<2x512xf32>
      tpu.vector_store %arg7[%c0_10, %c0_11], %12 {strides = array<i32>} : memref<2x512xf32, #tpu.memory_space<vmem>>, vector<2x512xf32>,
    } else {
    }
    %c0 = arith.constant 0 : index
    %c0_1 = arith.constant 0 : index
    %3 = vector.load %arg7[%c0, %c0_1] : memref<2x512xf32, #tpu.memory_space<vmem>>, vector<2x512xf32>
    %c0_2 = arith.constant 0 : index
    %c0_3 = arith.constant 0 : index
    %4 = vector.load %arg1[%c0_2, %c0_3] : memref<2x1024xf32, #tpu.memory_space<vmem>>, vector<2x1024xf32>
    %c0_4 = arith.constant 0 : index
    %c0_5 = arith.constant 0 : index
    %5 = vector.load %arg2[%c0_4, %c0_5] : memref<1024x512xf32, #tpu.memory_space<vmem>>, vector<1024x512xf32>
    %cst = arith.constant dense<0.000000e+00> : vector<2x512xf32>
    %6 = tpu.matmul %4, %5, %cst {dimension_numbers = #tpu.dot_dimension_numbers<[1], [0], [0], [1], [0, 0, 1, 1], [], []>} : vector<2x1024xf32>, vector<1024x512xf32>, vector<2x512xf32> -> vector<2x512xf32>
    %7 = arith.addf %3, %6 : vector<2x512xf32>
    %c0_6 = arith.constant 0 : index
    %c0_7 = arith.constant 0 : index
    %8 = vector.load %arg7[%c0_6, %c0_7] : memref<2x512xf32, #tpu.memory_space<vmem>>, vector<2x512xf32>
    tpu.vector_store %arg7[%c0_6, %c0_7], %7 {strides = array<i32>} : memref<2x512xf32, #tpu.memory_space<vmem>>, vector<2x512xf32>,
    %c1_i32 = arith.constant 1 : i32
    %9 = arith.cmpi eq, %arg0, %c1_i32 : i32
    %10 = arith.extui %9 : i1 to i32
    %c0_i32_8 = arith.constant 0 : i32
    %11 = arith.cmpi ne, %10, %c0_i32_8 : i32
    scf.if %11 {
      %c0_9 = arith.constant 0 : index
      %c0_10 = arith.constant 0 : index
      %12 = vector.load %arg7[%c0_9, %c0_10] : memref<2x512xf32, #tpu.memory_space<vmem>>, vector<2x512xf32>
      %c0_11 = arith.constant 0 : index
      %c0_12 = arith.constant 0 : index
      %13 = vector.load %arg3[%c0_11, %c0_12] : memref<1x512xf32, #tpu.memory_space<vmem>>, vector<1x512xf32>
      %14 = vector.broadcast %13 : vector<1x512xf32> to vector<2x512xf32>
      %15 = arith.addf %12, %14 : vector<2x512xf32>
      %cst_13 = arith.constant 0.000000e+00 : f32
      %16 = vector.broadcast %cst_13 : f32 to vector<2x512xf32>
      %17 = arith.maximumf %15, %16 : vector<2x512xf32>
      %c0_14 = arith.constant 0 : index
      %c0_15 = arith.constant 0 : index
      %18 = vector.load %arg4[%c0_14, %c0_15] : memref<512x136xf32, #tpu.memory_space<vmem>>, vector<512x136xf32>
      %cst_16 = arith.constant dense<0.000000e+00> : vector<2x136xf32>
      %19 = tpu.matmul %17, %18, %cst_16 {dimension_numbers = #tpu.dot_dimension_numbers<[1], [0], [0], [1], [0, 0, 1, 1], [], []>} : vector<2x512xf32>, vector<512x136xf32>, vector<2x136xf32> -> vector<2x136xf32>
      %c0_17 = arith.constant 0 : index
      %c0_18 = arith.constant 0 : index
      %20 = vector.load %arg5[%c0_17, %c0_18] : memref<1x136xf32, #tpu.memory_space<vmem>>, vector<1x136xf32>
      %21 = vector.broadcast %20 : vector<1x136xf32> to vector<2x136xf32>
      %22 = arith.addf %19, %21 : vector<2x136xf32>
      %c0_19 = arith.constant 0 : index
      %c0_20 = arith.constant 0 : index
      %23 = vector.load %arg6[%c0_19, %c0_20] : memref<2x136xf32, #tpu.memory_space<vmem>>, vector<2x136xf32>
      tpu.vector_store %arg6[%c0_19, %c0_20], %22 {strides = array<i32>} : memref<2x136xf32, #tpu.memory_space<vmem>>, vector<2x136xf32>,
    } else {
    }
    return
  }
  func.func @transform_0(%arg0: i32) -> (i32, i32) {
    %c0_i32 = arith.constant 0 : i32
    %c0_i32_0 = arith.constant 0 : i32
    return %c0_i32, %arg0 : i32, i32
  }
  func.func @transform_1(%arg0: i32) -> (i32, i32) {
    %c0_i32 = arith.constant 0 : i32
    %c0_i32_0 = arith.constant 0 : i32
    return %arg0, %c0_i32 : i32, i32
  }
  func.func @transform_2(%arg0: i32) -> (i32, i32) {
    %c0_i32 = arith.constant 0 : i32
    %c0_i32_0 = arith.constant 0 : i32
    %c0_i32_1 = arith.constant 0 : i32
    return %c0_i32, %c0_i32_0 : i32, i32
  }
  func.func @transform_3(%arg0: i32) -> (i32, i32) {
    %c0_i32 = arith.constant 0 : i32
    %c0_i32_0 = arith.constant 0 : i32
    %c0_i32_1 = arith.constant 0 : i32
    return %c0_i32, %c0_i32_0 : i32, i32
  }
  func.func @transform_4(%arg0: i32) -> (i32, i32) {
    %c0_i32 = arith.constant 0 : i32
    %c0_i32_0 = arith.constant 0 : i32
    %c0_i32_1 = arith.constant 0 : i32
    return %c0_i32, %c0_i32_0 : i32, i32
  }
  func.func @transform_5(%arg0: i32) -> (i32, i32) {
    %c0_i32 = arith.constant 0 : i32
    %c0_i32_0 = arith.constant 0 : i32
    %c0_i32_1 = arith.constant 0 : i32
    return %c0_i32, %c0_i32_0 : i32, i32
  }
}

</mosaic_0001>

<llo_original>
// kernel: net_forward.4
$region0: #{net_forward.4}
  #allocation0 [shape = 'u32[]', space=smem, size = 0x4, offset = 0x4, fixed_abs, tag = 'smem constant byte address 0x4 - core index']
  #allocation1 [shape = 'u32[144,128]{1,0:T(1,128)}', space=vmem, size = 0x12000, scoped, tag = 'internal scratch']
  #allocation2 [shape = 'f32[512,32]{1,0:T(8,128)}', space=vmem, size = 0x40000, scoped, tag = 'scratch operand']
  %s0 = inlined_call_operand.vmem [shape: f32[2,1024,25], index: 0, kind: input, shape index: {}]
  %s1 = inlined_call_operand.hbm [shape: f32[25,32], index: 1, kind: input, shape index: {}]
  %s2 = inlined_call_operand.hbm [shape: f32[1,32], index: 2, kind: input, shape index: {}]
  %s3 = inlined_call_operand.vmem [shape: f32[2,256,32], index: 3, kind: output, shape index: {}]
  %s4 = sld [smem:[#allocation0]]
  $region53: #{net_forward.4} parent=0
    _
  %s6 = ssub.s32 1, %s4
  %s7 = scalar_select 0, %s6, %s4
  $region1: #{net_forward.4} parent=0
    #allocation3 [shape = 'u8[16384]{0}', space=vmem, size = 0x4000, scoped, tag = 'input window, operand 1, single buffered']
    #allocation4 [shape = 's32[2]{0}', space=sflag, size = 0x8, scoped, tag = 'scoped memory for net_forward.4']
    #allocation5 [shape = 'u8[512]{0}', space=vmem, size = 0x400, scoped, tag = 'input window, operand 2, single buffered']
    #allocation6 [shape = 's32[1]{0}', space=sflag, size = 0x4, scoped, tag = 'scoped memory for net_forward.4']
    %8 = vsyncpa [#allocation4], 0
    %9 = vsyncpa [#allocation6], 0
    loop: start=0, step=1, limit=4
    $region2: #{net_forward.4} parent=1 // loop_pre_header
      _
    $region3: #{net_forward.4} parent=1 // loop_header
      %s11 = sphi 0, %s15
      %p12 = scmp.ge.s32.totalorder %s11, 4
      %s21 = sphi 0, %s23
      %s24 = sphi 0, %s21
      %s25 = sphi 0, %s24
      %s41 = sphi 0, %s25
      %s45 = sphi 0, %s45
      %s47 = sphi 0, %s45
      %s48 = sphi 0, %s47
      %s62 = sphi 0, %s48
      %s66 = sphi 0, %s66
      %s68 = sphi 0, %s66
      %s69 = sphi 0, %s68
      %s83 = sphi 0, %s69
      %s89 = sphi 0, %s91
      %s92 = sphi 0, %s89
      %s93 = sphi 0, %s92
      %s109 = sphi 0, %s93
    $region4: #{net_forward.4} parent=1 // loop_header_branch
      %14 = sbr.rel (%p12) target = $region8
    $region5: #{net_forward.4} parent=1 // loop_body
      %s16 = ssub.s32 %s11, 1
      %s17 = ssub.s32 %s11, 2
      %s18 = sadd.s32 %s11, 1
      %s19 = ssub.s32 %s11, %s18
      %p20 = scmp.eq.s32.totalorder %s19, 0
      %s22 = sadd.s32 %s21, 1
      %s23 = scalar_select %p20, %s21, %s22
      %p26 = pneg %p20
      %p27 = scmp.eq.s32.totalorder %s11, 1
      %p28 = por %p26, %p27
      %p29 = scmp.ne.s32.totalorder %s21, %s24
      %p30 = scmp.eq.s32.totalorder %s11, 0
      %p31 = por %p29, %p30
      %p32 = scmp.ne.s32.totalorder %s21, %s24
      %p33 = scmp.eq.s32.totalorder %s16, 1
      %p34 = por %p32, %p33
      %p35 = scmp.ne.s32.totalorder %s24, %s25
      %p36 = scmp.eq.s32.totalorder %s16, 0
      %p37 = por %p35, %p36
      %p38 = scmp.ne.s32.totalorder %s24, %s25
      %p39 = scmp.eq.s32.totalorder %s17, 1
      %p40 = por %p38, %p39
      %p42 = scmp.ne.s32.totalorder %s25, %s41
      %p43 = scmp.eq.s32.totalorder %s17, 0
      %p44 = por %p42, %p43
      %s46 = sadd.s32 %s45, 1
      %p49 = scmp.eq.s32.totalorder %s11, 1
      %p50 = scmp.ne.s32.totalorder %s45, %s47
      %p51 = scmp.eq.s32.totalorder %s11, 0
      %p52 = por %p50, %p51
      %p53 = scmp.ne.s32.totalorder %s45, %s47
      %p54 = scmp.eq.s32.totalorder %s16, 1
      %p55 = por %p53, %p54
      %p56 = scmp.ne.s32.totalorder %s47, %s48
      %p57 = scmp.eq.s32.totalorder %s16, 0
      %p58 = por %p56, %p57
      %p59 = scmp.ne.s32.totalorder %s47, %s48
      %p60 = scmp.eq.s32.totalorder %s17, 1
      %p61 = por %p59, %p60
      %p63 = scmp.ne.s32.totalorder %s48, %s62
      %p64 = scmp.eq.s32.totalorder %s17, 0
      %p65 = por %p63, %p64
      %s67 = sadd.s32 %s66, 1
      %p70 = scmp.eq.s32.totalorder %s11, 1
      %p71 = scmp.ne.s32.totalorder %s66, %s68
      %p72 = scmp.eq.s32.totalorder %s11, 0
      %p73 = por %p71, %p72
      %p74 = scmp.ne.s32.totalorder %s66, %s68
      %p75 = scmp.eq.s32.totalorder %s16, 1
      %p76 = por %p74, %p75
      %p77 = scmp.ne.s32.totalorder %s68, %s69
      %p78 = scmp.eq.s32.totalorder %s16, 0
      %p79 = por %p77, %p78
      %p80 = scmp.ne.s32.totalorder %s68, %s69
      %p81 = scmp.eq.s32.totalorder %s17, 1
      %p82 = por %p80, %p81
      %p84 = scmp.ne.s32.totalorder %s69, %s83
      %p85 = scmp.eq.s32.totalorder %s17, 0
      %p86 = por %p84, %p85
      %s87 = ssub.s32 %s11, %s18
      %p88 = scmp.eq.s32.totalorder %s87, 0
      %s90 = sadd.s32 %s89, 1
      %s91 = scalar_select %p88, %s89, %s90
      %p94 = pneg %p88
      %p95 = scmp.eq.s32.totalorder %s11, 1
      %p96 = por %p94, %p95
      %p97 = scmp.ne.s32.totalorder %s89, %s92
      %p98 = scmp.eq.s32.totalorder %s11, 0
      %p99 = por %p97, %p98
      %p100 = scmp.ne.s32.totalorder %s89, %s92
      %p101 = scmp.eq.s32.totalorder %s16, 1
      %p102 = por %p100, %p101
      %p103 = scmp.ne.s32.totalorder %s92, %s93
      %p104 = scmp.eq.s32.totalorder %s16, 0
      %p105 = por %p103, %p104
      %p106 = scmp.ne.s32.totalorder %s92, %s93
      %p107 = scmp.eq.s32.totalorder %s17, 1
      %p108 = por %p106, %p107
      %p110 = scmp.ne.s32.totalorder %s93, %s109
      %p111 = scmp.eq.s32.totalorder %s17, 0
      %p112 = por %p110, %p111
      %p113 = scmp.le.s32.totalorder 1, %s11
      %p114 = scmp.lt.s32.totalorder %s11, 3
      %p115 = pnand %p113, %p114
      %p116 = pneg %p115
      // Predicated region
      $region9: #{net_forward.4} parent=5 // pred_check
        _
      $region10: #{net_forward.4} parent=5 // pred_check_branch
        %118 = sbr.rel (%p115) target = $region12
      $region11: #{net_forward.4} parent=5 // pred_region
        %s119 = ssub.s32 %s11, 1
        // Predicated region
        $region13: #{net_forward.4} parent=11 // pred_check
          %p120 = pneg %p58
        $region14: #{net_forward.4} parent=11 // pred_check_branch
          %122 = sbr.rel (%p120) target = $region16
        $region15: #{net_forward.4} parent=11 // pred_region
          %s124 = ssub.s32 512, 512
          %125 = vsyncadd [#allocation4], %s124
          %s126 = sshll.u32 [#allocation3], 4
          %s127 = int_to_ptr.vmem [resolvable:$true] %s126
          %132 = dma.hbm_to_vmem [thread:$0]  %s1, 512, %s127, [#allocation4], 128, 128, 8
        $region16: #{net_forward.4} parent=11 // pred_fallthru
          _
        // Predicated region
        $region17: #{net_forward.4} parent=11 // pred_check
          %p133 = pneg %p79
        $region18: #{net_forward.4} parent=11 // pred_check_branch
          %135 = sbr.rel (%p133) target = $region20
        $region19: #{net_forward.4} parent=11 // pred_region
          %s137 = ssub.s32 16, 16
          %138 = vsyncadd [#allocation6], %s137
          %s140 = sshll.u32 [#allocation5], 4
          %s141 = int_to_ptr.vmem [resolvable:$true] %s140
          %143 = dma.hbm_to_vmem [thread:$0]  %s2, 16, %s141, [#allocation6]
        $region20: #{net_forward.4} parent=11 // pred_fallthru
          _
      $region12: #{net_forward.4} parent=5 // pred_fallthru
        _
      %p144 = scmp.lt.s32.totalorder %s11, 2
      // Predicated region
      $region21: #{net_forward.4} parent=5 // pred_check
        %p145 = pneg %p144
      $region22: #{net_forward.4} parent=5 // pred_check_branch
        %147 = sbr.rel (%p145) target = $region24
      $region23: #{net_forward.4} parent=5 // pred_region
        // Predicated region
        $region25: #{net_forward.4} parent=23 // pred_check
          %p148 = pneg %p31
        $region26: #{net_forward.4} parent=23 // pred_check_branch
          %150 = sbr.rel (%p148) target = $region28
        $region27: #{net_forward.4} parent=23 // pred_region
          %p151 = scmp.lt.s32.totalorder %s11, 1
          %s152 = scalar_select %p151, %s11, 1
          %s153 = smul.addr %s152, 128
          %s154 = smul.addr %s153, 8
          %s155 = scalar_lea.vmem %s0, %s154
        $region28: #{net_forward.4} parent=23 // pred_fallthru
          _
      $region24: #{net_forward.4} parent=5 // pred_fallthru
        _
      %p156 = scmp.le.s32.totalorder 1, %s11
      %p157 = scmp.lt.s32.totalorder %s11, 3
      %p158 = pnand %p156, %p157
      %p159 = pneg %p158
      // Predicated region
      $region29: #{net_forward.4} parent=5 // pred_check
        _
      $region30: #{net_forward.4} parent=5 // pred_check_branch
        %161 = sbr.rel (%p158) target = $region32
      $region31: #{net_forward.4} parent=5 // pred_region
        %s162 = ssub.s32 %s11, 1
        // Predicated region
        $region33: #{net_forward.4} parent=31 // pred_check
          %p163 = pneg %p58
        $region34: #{net_forward.4} parent=31 // pred_check_branch
          %165 = sbr.rel (%p163) target = $region36
        $region35: #{net_forward.4} parent=31 // pred_region
          %166 = dma.done [#allocation4], 512
        $region36: #{net_forward.4} parent=31 // pred_fallthru
          _
        // Predicated region
        $region37: #{net_forward.4} parent=31 // pred_check
          %p167 = pneg %p79
        $region38: #{net_forward.4} parent=31 // pred_check_branch
          %169 = sbr.rel (%p167) target = $region40
        $region39: #{net_forward.4} parent=31 // pred_region
          %170 = dma.done [#allocation6], 16
        $region40: #{net_forward.4} parent=31 // pred_fallthru
          _
        %p171 = scmp.lt.s32.totalorder %s16, 1
        %s172 = scalar_select %p171, %s16, 1
        %s173 = smul.addr %s172, 128
        %s174 = smul.addr %s173, 8
        %s175 = scalar_lea.vmem %s0, %s174
        %p176 = pneg %p37
        %p177 = pneg %p34
        %p178 = pneg %p58
        %p179 = pneg %p55
        %p180 = pneg %p79
        %p181 = pneg %p76
        %p182 = pneg %p105
        %p183 = pneg %p102
        %p184 = scmp.lt.s32.totalorder %s16, 1
        %s185 = scalar_select %p184, %s16, 1
        %s186 = smul.addr %s185, 32
        %s187 = smul.addr %s186, 8
        %s188 = scalar_lea.vmem %s3, %s187
        %p189 = scmp.lt.s32.totalorder %s16, 1
        %s190 = scalar_select %p189, %s16, 1
        %s191 = smul.addr %s190, 128
        %s192 = smul.addr %s191, 8
        %s193 = scalar_lea.vmem %s0, %s192
        %p194 = scmp.lt.s32.totalorder %s16, 1
        %s195 = scalar_select %p194, %s16, 1
        %s196 = smul.addr %s195, 32
        %s197 = smul.addr %s196, 8
        %s198 = scalar_lea.vmem %s3, %s197
        %v199 = vld [vmem:[%s193] sm:$0xff]
        %v200 = vld [vmem:[%s193 + $0x8] sm:$0xff]
        %v201 = vld [vmem:[%s193 + $0x10] sm:$0xff]
        %v202 = vld [vmem:[%s193 + $0x18] sm:$0xff]
        %v203 = vld [vmem:[%s193 + $0x20] sm:$0xff]
        %v204 = vld [vmem:[%s193 + $0x28] sm:$0xff]
        %v205 = vld [vmem:[%s193 + $0x30] sm:$0xff]
        %v206 = vld [vmem:[%s193 + $0x38] sm:$0xff]
        %v207 = vld [vmem:[%s193 + $0x40] sm:$0xff]
        %v208 = vld [vmem:[%s193 + $0x48] sm:$0xff]
        %v209 = vld [vmem:[%s193 + $0x50] sm:$0xff]
        %v210 = vld [vmem:[%s193 + $0x58] sm:$0xff]
        %v211 = vld [vmem:[%s193 + $0x60] sm:$0xff]
        %v212 = vld [vmem:[%s193 + $0x68] sm:$0xff]
        %v213 = vld [vmem:[%s193 + $0x70] sm:$0xff]
        %v214 = vld [vmem:[%s193 + $0x78] sm:$0xff]
        %v215 = vld [vmem:[%s193 + $0x80] sm:$0xff]
        %v216 = vld [vmem:[%s193 + $0x88] sm:$0xff]
        %v217 = vld [vmem:[%s193 + $0x90] sm:$0xff]
        %v218 = vld [vmem:[%s193 + $0x98] sm:$0xff]
        %v219 = vld [vmem:[%s193 + $0xa0] sm:$0xff]
        %v220 = vld [vmem:[%s193 + $0xa8] sm:$0xff]
        %v221 = vld [vmem:[%s193 + $0xb0] sm:$0xff]
        %v222 = vld [vmem:[%s193 + $0xb8] sm:$0xff]
        %v223 = vld [vmem:[%s193 + $0xc0] sm:$0xff]
        %v224 = vld [vmem:[%s193 + $0xc8] sm:$0xff]
        %v225 = vld [vmem:[%s193 + $0xd0] sm:$0xff]
        %v226 = vld [vmem:[%s193 + $0xd8] sm:$0xff]
        %v227 = vld [vmem:[%s193 + $0xe0] sm:$0xff]
        %v228 = vld [vmem:[%s193 + $0xe8] sm:$0xff]
        %v229 = vld [vmem:[%s193 + $0xf0] sm:$0xff]
        %v230 = vld [vmem:[%s193 + $0xf8] sm:$0xff]
        %v231 = vld [vmem:[%s193 + $0x100] sm:$0xff]
        %v232 = vld [vmem:[%s193 + $0x108] sm:$0xff]
        %v233 = vld [vmem:[%s193 + $0x110] sm:$0xff]
        %v234 = vld [vmem:[%s193 + $0x118] sm:$0xff]
        %v235 = vld [vmem:[%s193 + $0x120] sm:$0xff]
        %v236 = vld [vmem:[%s193 + $0x128] sm:$0xff]
        %v237 = vld [vmem:[%s193 + $0x130] sm:$0xff]
        %v238 = vld [vmem:[%s193 + $0x138] sm:$0xff]
        %v239 = vld [vmem:[%s193 + $0x140] sm:$0xff]
        %v240 = vld [vmem:[%s193 + $0x148] sm:$0xff]
        %v241 = vld [vmem:[%s193 + $0x150] sm:$0xff]
        %v242 = vld [vmem:[%s193 + $0x158] sm:$0xff]
        %v243 = vld [vmem:[%s193 + $0x160] sm:$0xff]
        %v244 = vld [vmem:[%s193 + $0x168] sm:$0xff]
        %v245 = vld [vmem:[%s193 + $0x170] sm:$0xff]
        %v246 = vld [vmem:[%s193 + $0x178] sm:$0xff]
        %v247 = vld [vmem:[%s193 + $0x180] sm:$0xff]
        %v248 = vld [vmem:[%s193 + $0x188] sm:$0xff]
        %v249 = vld [vmem:[%s193 + $0x190] sm:$0xff]
        %v250 = vld [vmem:[%s193 + $0x198] sm:$0xff]
        %v251 = vld [vmem:[%s193 + $0x1a0] sm:$0xff]
        %v252 = vld [vmem:[%s193 + $0x1a8] sm:$0xff]
        %v253 = vld [vmem:[%s193 + $0x1b0] sm:$0xff]
        %v254 = vld [vmem:[%s193 + $0x1b8] sm:$0xff]
        %v255 = vld [vmem:[%s193 + $0x1c0] sm:$0xff]
        %v256 = vld [vmem:[%s193 + $0x1c8] sm:$0xff]
        %v257 = vld [vmem:[%s193 + $0x1d0] sm:$0xff]
        %v258 = vld [vmem:[%s193 + $0x1d8] sm:$0xff]
        %v259 = vld [vmem:[%s193 + $0x1e0] sm:$0xff]
        %v260 = vld [vmem:[%s193 + $0x1e8] sm:$0xff]
        %v261 = vld [vmem:[%s193 + $0x1f0] sm:$0xff]
        %v262 = vld [vmem:[%s193 + $0x1f8] sm:$0xff]
        %v263 = vld [vmem:[%s193 + $0x200] sm:$0xff]
        %v264 = vld [vmem:[%s193 + $0x208] sm:$0xff]
        %v265 = vld [vmem:[%s193 + $0x210] sm:$0xff]
        %v266 = vld [vmem:[%s193 + $0x218] sm:$0xff]
        %v267 = vld [vmem:[%s193 + $0x220] sm:$0xff]
        %v268 = vld [vmem:[%s193 + $0x228] sm:$0xff]
        %v269 = vld [vmem:[%s193 + $0x230] sm:$0xff]
        %v270 = vld [vmem:[%s193 + $0x238] sm:$0xff]
        %v271 = vld [vmem:[%s193 + $0x240] sm:$0xff]
        %v272 = vld [vmem:[%s193 + $0x248] sm:$0xff]
        %v273 = vld [vmem:[%s193 + $0x250] sm:$0xff]
        %v274 = vld [vmem:[%s193 + $0x258] sm:$0xff]
        %v275 = vld [vmem:[%s193 + $0x260] sm:$0xff]
        %v276 = vld [vmem:[%s193 + $0x268] sm:$0xff]
        %v277 = vld [vmem:[%s193 + $0x270] sm:$0xff]
        %v278 = vld [vmem:[%s193 + $0x278] sm:$0xff]
        %v279 = vld [vmem:[%s193 + $0x280] sm:$0xff]
        %v280 = vld [vmem:[%s193 + $0x288] sm:$0xff]
        %v281 = vld [vmem:[%s193 + $0x290] sm:$0xff]
        %v282 = vld [vmem:[%s193 + $0x298] sm:$0xff]
        %v283 = vld [vmem:[%s193 + $0x2a0] sm:$0xff]
        %v284 = vld [vmem:[%s193 + $0x2a8] sm:$0xff]
        %v285 = vld [vmem:[%s193 + $0x2b0] sm:$0xff]
        %v286 = vld [vmem:[%s193 + $0x2b8] sm:$0xff]
        %v287 = vld [vmem:[%s193 + $0x2c0] sm:$0xff]
        %v288 = vld [vmem:[%s193 + $0x2c8] sm:$0xff]
        %v289 = vld [vmem:[%s193 + $0x2d0] sm:$0xff]
        %v290 = vld [vmem:[%s193 + $0x2d8] sm:$0xff]
        %v291 = vld [vmem:[%s193 + $0x2e0] sm:$0xff]
        %v292 = vld [vmem:[%s193 + $0x2e8] sm:$0xff]
        %v293 = vld [vmem:[%s193 + $0x2f0] sm:$0xff]
        %v294 = vld [vmem:[%s193 + $0x2f8] sm:$0xff]
        %v295 = vld [vmem:[%s193 + $0x300] sm:$0xff]
        %v296 = vld [vmem:[%s193 + $0x308] sm:$0xff]
        %v297 = vld [vmem:[%s193 + $0x310] sm:$0xff]
        %v298 = vld [vmem:[%s193 + $0x318] sm:$0xff]
        %v299 = vld [vmem:[%s193 + $0x320] sm:$0xff]
        %v300 = vld [vmem:[%s193 + $0x328] sm:$0xff]
        %v301 = vld [vmem:[%s193 + $0x330] sm:$0xff]
        %v302 = vld [vmem:[%s193 + $0x338] sm:$0xff]
        %v303 = vld [vmem:[%s193 + $0x340] sm:$0xff]
        %v304 = vld [vmem:[%s193 + $0x348] sm:$0xff]
        %v305 = vld [vmem:[%s193 + $0x350] sm:$0xff]
        %v306 = vld [vmem:[%s193 + $0x358] sm:$0xff]
        %v307 = vld [vmem:[%s193 + $0x360] sm:$0xff]
        %v308 = vld [vmem:[%s193 + $0x368] sm:$0xff]
        %v309 = vld [vmem:[%s193 + $0x370] sm:$0xff]
        %v310 = vld [vmem:[%s193 + $0x378] sm:$0xff]
        %v311 = vld [vmem:[%s193 + $0x380] sm:$0xff]
        %v312 = vld [vmem:[%s193 + $0x388] sm:$0xff]
        %v313 = vld [vmem:[%s193 + $0x390] sm:$0xff]
        %v314 = vld [vmem:[%s193 + $0x398] sm:$0xff]
        %v315 = vld [vmem:[%s193 + $0x3a0] sm:$0xff]
        %v316 = vld [vmem:[%s193 + $0x3a8] sm:$0xff]
        %v317 = vld [vmem:[%s193 + $0x3b0] sm:$0xff]
        %v318 = vld [vmem:[%s193 + $0x3b8] sm:$0xff]
        %v319 = vld [vmem:[%s193 + $0x3c0] sm:$0xff]
        %v320 = vld [vmem:[%s193 + $0x3c8] sm:$0xff]
        %v321 = vld [vmem:[%s193 + $0x3d0] sm:$0xff]
        %v322 = vld [vmem:[%s193 + $0x3d8] sm:$0xff]
        %v323 = vld [vmem:[%s193 + $0x3e0] sm:$0xff]
        %v324 = vld [vmem:[%s193 + $0x3e8] sm:$0xff]
        %v325 = vld [vmem:[%s193 + $0x3f0] sm:$0xff]
        %v326 = vld [vmem:[%s193 + $0x3f8] sm:$0xff]
        %v327 = vld [vmem:[#allocation3] sm:$0xff]
        %v328 = vld [vmem:[#allocation3 + $0x8] sm:$0xff]
        %v329 = vld [vmem:[#allocation3 + $0x10] sm:$0xff]
        %v330 = vld [vmem:[#allocation3 + $0x18] sm:$0x1]
        %v331 = vld [vmem:[#allocation5] sm:$0x1]
        %v333 = vlaneseq
        %v334 = vshrl.u32 %v333, 7
        %v335 = vsub.s32 0, %v334
        %v336 = vrot.slane %v331, %v335
        %vm338 = vcmask 203776
        %v340 = vsel %vm338, %v199, 0
        %v343 = vsel %vm338, %v200, 0
        %v346 = vsel %vm338, %v201, 0
        %v349 = vsel %vm338, %v202, 0
        %v352 = vsel %vm338, %v203, 0
        %v355 = vsel %vm338, %v204, 0
        %v358 = vsel %vm338, %v205, 0
        %v361 = vsel %vm338, %v206, 0
        %v364 = vsel %vm338, %v207, 0
        %v367 = vsel %vm338, %v208, 0
        %v370 = vsel %vm338, %v209, 0
        %v373 = vsel %vm338, %v210, 0
        %v376 = vsel %vm338, %v211, 0
        %v379 = vsel %vm338, %v212, 0
        %v382 = vsel %vm338, %v213, 0
        %v385 = vsel %vm338, %v214, 0
        %v388 = vsel %vm338, %v215, 0
        %v391 = vsel %vm338, %v216, 0
        %v394 = vsel %vm338, %v217, 0
        %v397 = vsel %vm338, %v218, 0
        %v400 = vsel %vm338, %v219, 0
        %v403 = vsel %vm338, %v220, 0
        %v406 = vsel %vm338, %v221, 0
        %v409 = vsel %vm338, %v222, 0
        %v412 = vsel %vm338, %v223, 0
        %v415 = vsel %vm338, %v224, 0
        %v418 = vsel %vm338, %v225, 0
        %v421 = vsel %vm338, %v226, 0
        %v424 = vsel %vm338, %v227, 0
        %v427 = vsel %vm338, %v228, 0
        %v430 = vsel %vm338, %v229, 0
        %v433 = vsel %vm338, %v230, 0
        %v436 = vsel %vm338, %v231, 0
        %v439 = vsel %vm338, %v232, 0
        %v442 = vsel %vm338, %v233, 0
        %v445 = vsel %vm338, %v234, 0
        %v448 = vsel %vm338, %v235, 0
        %v451 = vsel %vm338, %v236, 0
        %v454 = vsel %vm338, %v237, 0
        %v457 = vsel %vm338, %v238, 0
        %v460 = vsel %vm338, %v239, 0
        %v463 = vsel %vm338, %v240, 0
        %v466 = vsel %vm338, %v241, 0
        %v469 = vsel %vm338, %v242, 0
        %v472 = vsel %vm338, %v243, 0
        %v475 = vsel %vm338, %v244, 0
        %v478 = vsel %vm338, %v245, 0
        %v481 = vsel %vm338, %v246, 0
        %v484 = vsel %vm338, %v247, 0
        %v487 = vsel %vm338, %v248, 0
        %v490 = vsel %vm338, %v249, 0
        %v493 = vsel %vm338, %v250, 0
        %v496 = vsel %vm338, %v251, 0
        %v499 = vsel %vm338, %v252, 0
        %v502 = vsel %vm338, %v253, 0
        %v505 = vsel %vm338, %v254, 0
        %v508 = vsel %vm338, %v255, 0
        %v511 = vsel %vm338, %v256, 0
        %v514 = vsel %vm338, %v257, 0
        %v517 = vsel %vm338, %v258, 0
        %v520 = vsel %vm338, %v259, 0
        %v523 = vsel %vm338, %v260, 0
        %v526 = vsel %vm338, %v261, 0
        %v529 = vsel %vm338, %v262, 0
        %v532 = vsel %vm338, %v263, 0
        %v535 = vsel %vm338, %v264, 0
        %v538 = vsel %vm338, %v265, 0
        %v541 = vsel %vm338, %v266, 0
        %v544 = vsel %vm338, %v267, 0
        %v547 = vsel %vm338, %v268, 0
        %v550 = vsel %vm338, %v269, 0
        %v553 = vsel %vm338, %v270, 0
        %v556 = vsel %vm338, %v271, 0
        %v559 = vsel %vm338, %v272, 0
        %v562 = vsel %vm338, %v273, 0
        %v565 = vsel %vm338, %v274, 0
        %v568 = vsel %vm338, %v275, 0
        %v571 = vsel %vm338, %v276, 0
        %v574 = vsel %vm338, %v277, 0
        %v577 = vsel %vm338, %v278, 0
        %v580 = vsel %vm338, %v279, 0
        %v583 = vsel %vm338, %v280, 0
        %v586 = vsel %vm338, %v281, 0
        %v589 = vsel %vm338, %v282, 0
        %v592 = vsel %vm338, %v283, 0
        %v595 = vsel %vm338, %v284, 0
        %v598 = vsel %vm338, %v285, 0
        %v601 = vsel %vm338, %v286, 0
        %v604 = vsel %vm338, %v287, 0
        %v607 = vsel %vm338, %v288, 0
        %v610 = vsel %vm338, %v289, 0
        %v613 = vsel %vm338, %v290, 0
        %v616 = vsel %vm338, %v291, 0
        %v619 = vsel %vm338, %v292, 0
        %v622 = vsel %vm338, %v293, 0
        %v625 = vsel %vm338, %v294, 0
        %v628 = vsel %vm338, %v295, 0
        %v631 = vsel %vm338, %v296, 0
        %v634 = vsel %vm338, %v297, 0
        %v637 = vsel %vm338, %v298, 0
        %v640 = vsel %vm338, %v299, 0
        %v643 = vsel %vm338, %v300, 0
        %v646 = vsel %vm338, %v301, 0
        %v649 = vsel %vm338, %v302, 0
        %v652 = vsel %vm338, %v303, 0
        %v655 = vsel %vm338, %v304, 0
        %v658 = vsel %vm338, %v305, 0
        %v661 = vsel %vm338, %v306, 0
        %v664 = vsel %vm338, %v307, 0
        %v667 = vsel %vm338, %v308, 0
        %v670 = vsel %vm338, %v309, 0
        %v673 = vsel %vm338, %v310, 0
        %v676 = vsel %vm338, %v311, 0
        %v679 = vsel %vm338, %v312, 0
        %v682 = vsel %vm338, %v313, 0
        %v685 = vsel %vm338, %v314, 0
        %v688 = vsel %vm338, %v315, 0
        %v691 = vsel %vm338, %v316, 0
        %v694 = vsel %vm338, %v317, 0
        %v697 = vsel %vm338, %v318, 0
        %v700 = vsel %vm338, %v319, 0
        %v703 = vsel %vm338, %v320, 0
        %v706 = vsel %vm338, %v321, 0
        %v709 = vsel %vm338, %v322, 0
        %v712 = vsel %vm338, %v323, 0
        %v715 = vsel %vm338, %v324, 0
        %v718 = vsel %vm338, %v325, 0
        %v721 = vsel %vm338, %v326, 0
        %vm723 = vcmask 1040384
        %v725 = vsel %vm723, %v330, 0
        %727 = vmatprep.subr.mxu0 0.0
        %728 = vmatpush1.msra.mxu0 %v327
        %729 = vmatprep.subr.mxu0 0.0
        %730 = vmatpush1.msra.mxu0 %v328
        %731 = vmatprep.subr.mxu0 0.0
        %732 = vmatpush1.msra.mxu0 %v329
        %733 = vmatprep.subr.mxu0 0.0
        %734 = vmatpush1.msra.mxu0 %v725
        %735 = vmatprep.subr.mxu0 0.0
        %736 = vmatpush1.msra.mxu0 0.0
        %737 = vmatprep.subr.mxu0 0.0
        %738 = vmatpush1.msra.mxu0 0.0
        %739 = vmatprep.subr.mxu0 0.0
        %740 = vmatpush1.msra.mxu0 0.0
        %741 = vmatprep.subr.mxu0 0.0
        %742 = vmatpush1.msra.mxu0 0.0
        %743 = vmatprep.subr.mxu0 0.0
        %744 = vmatpush1.msra.mxu0 0.0
        %745 = vmatprep.subr.mxu0 0.0
        %746 = vmatpush1.msra.mxu0 0.0
        %747 = vmatprep.subr.mxu0 0.0
        %748 = vmatpush1.msra.mxu0 0.0
        %749 = vmatprep.subr.mxu0 0.0
        %750 = vmatpush1.msra.mxu0 0.0
        %751 = vmatprep.subr.mxu0 0.0
        %752 = vmatpush1.msra.mxu0 0.0
        %753 = vmatprep.subr.mxu0 0.0
        %754 = vmatpush1.msra.mxu0 0.0
        %755 = vmatprep.subr.mxu0 0.0
        %756 = vmatpush1.msra.mxu0 0.0
        %757 = vmatprep.subr.mxu0 0.0
        %758 = vmatpush1.msra.mxu0 0.0
        %759 = vmatprep.subr.mxu0 0.0
        %760 = vmatpush1.msra.mxu0 0.0
        %761 = vmatprep.subr.mxu0 0.0
        %762 = vmatpush1.msra.mxu0 0.0
        %763 = vmatprep.subr.mxu0 0.0
        %764 = vmatpush1.msra.mxu0 0.0
        %765 = vmatprep.subr.mxu0 0.0
        %766 = vmatpush1.msra.mxu0 0.0
        %767 = vmatprep.subr.mxu0 0.0
        %768 = vmatpush1.msra.mxu0 0.0
        %769 = vmatprep.subr.mxu0 0.0
        %770 = vmatpush1.msra.mxu0 0.0
        %771 = vmatprep.subr.mxu0 0.0
        %772 = vmatpush1.msra.mxu0 0.0
        %773 = vmatprep.subr.mxu0 0.0
        %774 = vmatpush1.msra.mxu0 0.0
        %775 = vmatprep.subr.mxu0 0.0
        %776 = vmatpush1.msra.mxu0 0.0
        %777 = vmatprep.subr.mxu0 0.0
        %778 = vmatpush1.msra.mxu0 0.0
        %779 = vmatprep.subr.mxu0 0.0
        %780 = vmatpush1.msra.mxu0 0.0
        %781 = vmatprep.subr.mxu0 0.0
        %782 = vmatpush1.msra.mxu0 0.0
        %783 = vmatprep.subr.mxu0 0.0
        %784 = vmatpush1.msra.mxu0 0.0
        %785 = vmatprep.subr.mxu0 0.0
        %786 = vmatpush1.msra.mxu0 0.0
        %787 = vmatprep.subr.mxu0 0.0
        %788 = vmatpush1.msra.mxu0 0.0
        %789 = vmatprep.subr.mxu0 0.0
        %790 = vmatpush1.msra.mxu0 0.0
        %791 = vmatprep.mubr.f32.mxu0 0.0
        %792 = vmatmul.mubr.f32.gmra.mrb[0].mxu0 %v340
        %v793 = vpop.f32.mrb[0].mxu0
        %v794 = vadd.f32 %v336, %v793
        %v795 = vpop.f32.mrb[0].mxu0
        %796 = vmatprep.mubr.f32.mxu0 0.0
        %797 = vmatmul.mubr.f32.gmra.mrb[0].mxu0 %v343
        %v798 = vpop.f32.mrb[0].mxu0
        %v799 = vadd.f32 %v336, %v798
        %v800 = vpop.f32.mrb[0].mxu0
        %801 = vmatprep.mubr.f32.mxu0 0.0
        %802 = vmatmul.mubr.f32.gmra.mrb[0].mxu0 %v346
        %v803 = vpop.f32.mrb[0].mxu0
        %v804 = vadd.f32 %v336, %v803
        %v805 = vpop.f32.mrb[0].mxu0
        %806 = vmatprep.mubr.f32.mxu0 0.0
        %807 = vmatmul.mubr.f32.gmra.mrb[0].mxu0 %v349
        %v808 = vpop.f32.mrb[0].mxu0
        %v809 = vadd.f32 %v336, %v808
        %v810 = vpop.f32.mrb[0].mxu0
        %811 = vmatprep.mubr.f32.mxu0 0.0
        %812 = vmatmul.mubr.f32.gmra.mrb[0].mxu0 %v352
        %v813 = vpop.f32.mrb[0].mxu0
        %v814 = vadd.f32 %v336, %v813
        %v815 = vpop.f32.mrb[0].mxu0
        %816 = vmatprep.mubr.f32.mxu0 0.0
        %817 = vmatmul.mubr.f32.gmra.mrb[0].mxu0 %v355
        %v818 = vpop.f32.mrb[0].mxu0
        %v819 = vadd.f32 %v336, %v818
        %v820 = vpop.f32.mrb[0].mxu0
        %821 = vmatprep.mubr.f32.mxu0 0.0
        %822 = vmatmul.mubr.f32.gmra.mrb[0].mxu0 %v358
        %v823 = vpop.f32.mrb[0].mxu0
        %v824 = vadd.f32 %v336, %v823
        %v825 = vpop.f32.mrb[0].mxu0
        %826 = vmatprep.mubr.f32.mxu0 0.0
        %827 = vmatmul.mubr.f32.gmra.mrb[0].mxu0 %v361
        %v828 = vpop.f32.mrb[0].mxu0
        %v829 = vadd.f32 %v336, %v828
        %v830 = vpop.f32.mrb[0].mxu0
        %831 = vmatprep.mubr.f32.mxu0 0.0
        %832 = vmatmul.mubr.f32.gmra.mrb[0].mxu0 %v364
        %v833 = vpop.f32.mrb[0].mxu0
        %v834 = vadd.f32 %v336, %v833
        %v835 = vpop.f32.mrb[0].mxu0
        %836 = vmatprep.mubr.f32.mxu0 0.0
        %837 = vmatmul.mubr.f32.gmra.mrb[0].mxu0 %v367
        %v838 = vpop.f32.mrb[0].mxu0
        %v839 = vadd.f32 %v336, %v838
        %v840 = vpop.f32.mrb[0].mxu0
        %841 = vmatprep.mubr.f32.mxu0 0.0
        %842 = vmatmul.mubr.f32.gmra.mrb[0].mxu0 %v370
        %v843 = vpop.f32.mrb[0].mxu0
        %v844 = vadd.f32 %v336, %v843
        %v845 = vpop.f32.mrb[0].mxu0
        %846 = vmatprep.mubr.f32.mxu0 0.0
        %847 = vmatmul.mubr.f32.gmra.mrb[0].mxu0 %v373
        %v848 = vpop.f32.mrb[0].mxu0
        %v849 = vadd.f32 %v336, %v848
        %v850 = vpop.f32.mrb[0].mxu0
        %851 = vmatprep.mubr.f32.mxu0 0.0
        %852 = vmatmul.mubr.f32.gmra.mrb[0].mxu0 %v376
        %v853 = vpop.f32.mrb[0].mxu0
        %v854 = vadd.f32 %v336, %v853
        %v855 = vpop.f32.mrb[0].mxu0
        %856 = vmatprep.mubr.f32.mxu0 0.0
        %857 = vmatmul.mubr.f32.gmra.mrb[0].mxu0 %v379
        %v858 = vpop.f32.mrb[0].mxu0
        %v859 = vadd.f32 %v336, %v858
        %v860 = vpop.f32.mrb[0].mxu0
        %861 = vmatprep.mubr.f32.mxu0 0.0
        %862 = vmatmul.mubr.f32.gmra.mrb[0].mxu0 %v382
        %v863 = vpop.f32.mrb[0].mxu0
        %v864 = vadd.f32 %v336, %v863
        %v865 = vpop.f32.mrb[0].mxu0
        %866 = vmatprep.mubr.f32.mxu0 0.0
        %867 = vmatmul.mubr.f32.gmra.mrb[0].mxu0 %v385
        %v868 = vpop.f32.mrb[0].mxu0
        %v869 = vadd.f32 %v336, %v868
        %v870 = vpop.f32.mrb[0].mxu0
        %871 = vmatprep.mubr.f32.mxu0 0.0
        %872 = vmatmul.mubr.f32.gmra.mrb[0].mxu0 %v388
        %v873 = vpop.f32.mrb[0].mxu0
        %v874 = vadd.f32 %v336, %v873
        %v875 = vpop.f32.mrb[0].mxu0
        %876 = vmatprep.mubr.f32.mxu0 0.0
        %877 = vmatmul.mubr.f32.gmra.mrb[0].mxu0 %v391
        %v878 = vpop.f32.mrb[0].mxu0
        %v879 = vadd.f32 %v336, %v878
        %v880 = vpop.f32.mrb[0].mxu0
        %881 = vmatprep.mubr.f32.mxu0 0.0
        %882 = vmatmul.mubr.f32.gmra.mrb[0].mxu0 %v394
        %v883 = vpop.f32.mrb[0].mxu0
        %v884 = vadd.f32 %v336, %v883
        %v885 = vpop.f32.mrb[0].mxu0
        %886 = vmatprep.mubr.f32.mxu0 0.0
        %887 = vmatmul.mubr.f32.gmra.mrb[0].mxu0 %v397
        %v888 = vpop.f32.mrb[0].mxu0
        %v889 = vadd.f32 %v336, %v888
        %v890 = vpop.f32.mrb[0].mxu0
        %891 = vmatprep.mubr.f32.mxu0 0.0
        %892 = vmatmul.mubr.f32.gmra.mrb[0].mxu0 %v400
        %v893 = vpop.f32.mrb[0].mxu0
        %v894 = vadd.f32 %v336, %v893
        %v895 = vpop.f32.mrb[0].mxu0
        %896 = vmatprep.mubr.f32.mxu0 0.0
        %897 = vmatmul.mubr.f32.gmra.mrb[0].mxu0 %v403
        %v898 = vpop.f32.mrb[0].mxu0
        %v899 = vadd.f32 %v336, %v898
        %v900 = vpop.f32.mrb[0].mxu0
        %901 = vmatprep.mubr.f32.mxu0 0.0
        %902 = vmatmul.mubr.f32.gmra.mrb[0].mxu0 %v406
        %v903 = vpop.f32.mrb[0].mxu0
        %v904 = vadd.f32 %v336, %v903
        %v905 = vpop.f32.mrb[0].mxu0
        %906 = vmatprep.mubr.f32.mxu0 0.0
        %907 = vmatmul.mubr.f32.gmra.mrb[0].mxu0 %v409
        %v908 = vpop.f32.mrb[0].mxu0
        %v909 = vadd.f32 %v336, %v908
        %v910 = vpop.f32.mrb[0].mxu0
        %911 = vmatprep.mubr.f32.mxu0 0.0
        %912 = vmatmul.mubr.f32.gmra.mrb[0].mxu0 %v412
        %v913 = vpop.f32.mrb[0].mxu0
        %v914 = vadd.f32 %v336, %v913
        %v915 = vpop.f32.mrb[0].mxu0
        %916 = vmatprep.mubr.f32.mxu0 0.0
        %917 = vmatmul.mubr.f32.gmra.mrb[0].mxu0 %v415
        %v918 = vpop.f32.mrb[0].mxu0
        %v919 = vadd.f32 %v336, %v918
        %v920 = vpop.f32.mrb[0].mxu0
        %921 = vmatprep.mubr.f32.mxu0 0.0
        %922 = vmatmul.mubr.f32.gmra.mrb[0].mxu0 %v418
        %v923 = vpop.f32.mrb[0].mxu0
        %v924 = vadd.f32 %v336, %v923
        %v925 = vpop.f32.mrb[0].mxu0
        %926 = vmatprep.mubr.f32.mxu0 0.0
        %927 = vmatmul.mubr.f32.gmra.mrb[0].mxu0 %v421
        %v928 = vpop.f32.mrb[0].mxu0
        %v929 = vadd.f32 %v336, %v928
        %v930 = vpop.f32.mrb[0].mxu0
        %931 = vmatprep.mubr.f32.mxu0 0.0
        %932 = vmatmul.mubr.f32.gmra.mrb[0].mxu0 %v424
        %v933 = vpop.f32.mrb[0].mxu0
        %v934 = vadd.f32 %v336, %v933
        %v935 = vpop.f32.mrb[0].mxu0
        %936 = vmatprep.mubr.f32.mxu0 0.0
        %937 = vmatmul.mubr.f32.gmra.mrb[0].mxu0 %v427
        %v938 = vpop.f32.mrb[0].mxu0
        %v939 = vadd.f32 %v336, %v938
        %v940 = vpop.f32.mrb[0].mxu0
        %941 = vmatprep.mubr.f32.mxu0 0.0
        %942 = vmatmul.mubr.f32.gmra.mrb[0].mxu0 %v430
        %v943 = vpop.f32.mrb[0].mxu0
        %v944 = vadd.f32 %v336, %v943
        %v945 = vpop.f32.mrb[0].mxu0
        %946 = vmatprep.mubr.f32.mxu0 0.0
        %947 = vmatmul.mubr.f32.gmra.mrb[0].mxu0 %v433
        %v948 = vpop.f32.mrb[0].mxu0
        %v949 = vadd.f32 %v336, %v948
        %v950 = vpop.f32.mrb[0].mxu0
        %951 = vmatprep.mubr.f32.mxu0 0.0
        %952 = vmatmul.mubr.f32.gmra.mrb[0].mxu0 %v436
        %v953 = vpop.f32.mrb[0].mxu0
        %v954 = vadd.f32 %v336, %v953
        %v955 = vpop.f32.mrb[0].mxu0
        %956 = vmatprep.mubr.f32.mxu0 0.0
        %957 = vmatmul.mubr.f32.gmra.mrb[0].mxu0 %v439
        %v958 = vpop.f32.mrb[0].mxu0
        %v959 = vadd.f32 %v336, %v958
        %v960 = vpop.f32.mrb[0].mxu0
        %961 = vmatprep.mubr.f32.mxu0 0.0
        %962 = vmatmul.mubr.f32.gmra.mrb[0].mxu0 %v442
        %v963 = vpop.f32.mrb[0].mxu0
        %v964 = vadd.f32 %v336, %v963
        %v965 = vpop.f32.mrb[0].mxu0
        %966 = vmatprep.mubr.f32.mxu0 0.0
        %967 = vmatmul.mubr.f32.gmra.mrb[0].mxu0 %v445
        %v968 = vpop.f32.mrb[0].mxu0
        %v969 = vadd.f32 %v336, %v968
        %v970 = vpop.f32.mrb[0].mxu0
        %971 = vmatprep.mubr.f32.mxu0 0.0
        %972 = vmatmul.mubr.f32.gmra.mrb[0].mxu0 %v448
        %v973 = vpop.f32.mrb[0].mxu0
        %v974 = vadd.f32 %v336, %v973
        %v975 = vpop.f32.mrb[0].mxu0
        %976 = vmatprep.mubr.f32.mxu0 0.0
        %977 = vmatmul.mubr.f32.gmra.mrb[0].mxu0 %v451
        %v978 = vpop.f32.mrb[0].mxu0
        %v979 = vadd.f32 %v336, %v978
        %v980 = vpop.f32.mrb[0].mxu0
        %981 = vmatprep.mubr.f32.mxu0 0.0
        %982 = vmatmul.mubr.f32.gmra.mrb[0].mxu0 %v454
        %v983 = vpop.f32.mrb[0].mxu0
        %v984 = vadd.f32 %v336, %v983
        %v985 = vpop.f32.mrb[0].mxu0
        %986 = vmatprep.mubr.f32.mxu0 0.0
        %987 = vmatmul.mubr.f32.gmra.mrb[0].mxu0 %v457
        %v988 = vpop.f32.mrb[0].mxu0
        %v989 = vadd.f32 %v336, %v988
        %v990 = vpop.f32.mrb[0].mxu0
        %991 = vmatprep.mubr.f32.mxu0 0.0
        %992 = vmatmul.mubr.f32.gmra.mrb[0].mxu0 %v460
        %v993 = vpop.f32.mrb[0].mxu0
        %v994 = vadd.f32 %v336, %v993
        %v995 = vpop.f32.mrb[0].mxu0
        %996 = vmatprep.mubr.f32.mxu0 0.0
        %997 = vmatmul.mubr.f32.gmra.mrb[0].mxu0 %v463
        %v998 = vpop.f32.mrb[0].mxu0
        %v999 = vadd.f32 %v336, %v998
        %v1000 = vpop.f32.mrb[0].mxu0
        %1001 = vmatprep.mubr.f32.mxu0 0.0
        %1002 = vmatmul.mubr.f32.gmra.mrb[0].mxu0 %v466
        %v1003 = vpop.f32.mrb[0].mxu0
        %v1004 = vadd.f32 %v336, %v1003
        %v1005 = vpop.f32.mrb[0].mxu0
        %1006 = vmatprep.mubr.f32.mxu0 0.0
        %1007 = vmatmul.mubr.f32.gmra.mrb[0].mxu0 %v469
        %v1008 = vpop.f32.mrb[0].mxu0
        %v1009 = vadd.f32 %v336, %v1008
        %v1010 = vpop.f32.mrb[0].mxu0
        %1011 = vmatprep.mubr.f32.mxu0 0.0
        %1012 = vmatmul.mubr.f32.gmra.mrb[0].mxu0 %v472
        %v1013 = vpop.f32.mrb[0].mxu0
        %v1014 = vadd.f32 %v336, %v1013
        %v1015 = vpop.f32.mrb[0].mxu0
        %1016 = vmatprep.mubr.f32.mxu0 0.0
        %1017 = vmatmul.mubr.f32.gmra.mrb[0].mxu0 %v475
        %v1018 = vpop.f32.mrb[0].mxu0
        %v1019 = vadd.f32 %v336, %v1018
        %v1020 = vpop.f32.mrb[0].mxu0
        %1021 = vmatprep.mubr.f32.mxu0 0.0
        %1022 = vmatmul.mubr.f32.gmra.mrb[0].mxu0 %v478
        %v1023 = vpop.f32.mrb[0].mxu0
        %v1024 = vadd.f32 %v336, %v1023
        %v1025 = vpop.f32.mrb[0].mxu0
        %1026 = vmatprep.mubr.f32.mxu0 0.0
        %1027 = vmatmul.mubr.f32.gmra.mrb[0].mxu0 %v481
        %v1028 = vpop.f32.mrb[0].mxu0
        %v1029 = vadd.f32 %v336, %v1028
        %v1030 = vpop.f32.mrb[0].mxu0
        %1031 = vmatprep.mubr.f32.mxu0 0.0
        %1032 = vmatmul.mubr.f32.gmra.mrb[0].mxu0 %v484
        %v1033 = vpop.f32.mrb[0].mxu0
        %v1034 = vadd.f32 %v336, %v1033
        %v1035 = vpop.f32.mrb[0].mxu0
        %1036 = vmatprep.mubr.f32.mxu0 0.0
        %1037 = vmatmul.mubr.f32.gmra.mrb[0].mxu0 %v487
        %v1038 = vpop.f32.mrb[0].mxu0
        %v1039 = vadd.f32 %v336, %v1038
        %v1040 = vpop.f32.mrb[0].mxu0
        %1041 = vmatprep.mubr.f32.mxu0 0.0
        %1042 = vmatmul.mubr.f32.gmra.mrb[0].mxu0 %v490
        %v1043 = vpop.f32.mrb[0].mxu0
        %v1044 = vadd.f32 %v336, %v1043
        %v1045 = vpop.f32.mrb[0].mxu0
        %1046 = vmatprep.mubr.f32.mxu0 0.0
        %1047 = vmatmul.mubr.f32.gmra.mrb[0].mxu0 %v493
        %v1048 = vpop.f32.mrb[0].mxu0
        %v1049 = vadd.f32 %v336, %v1048
        %v1050 = vpop.f32.mrb[0].mxu0
        %1051 = vmatprep.mubr.f32.mxu0 0.0
        %1052 = vmatmul.mubr.f32.gmra.mrb[0].mxu0 %v496
        %v1053 = vpop.f32.mrb[0].mxu0
        %v1054 = vadd.f32 %v336, %v1053
        %v1055 = vpop.f32.mrb[0].mxu0
        %1056 = vmatprep.mubr.f32.mxu0 0.0
        %1057 = vmatmul.mubr.f32.gmra.mrb[0].mxu0 %v499
        %v1058 = vpop.f32.mrb[0].mxu0
        %v1059 = vadd.f32 %v336, %v1058
        %v1060 = vpop.f32.mrb[0].mxu0
        %1061 = vmatprep.mubr.f32.mxu0 0.0
        %1062 = vmatmul.mubr.f32.gmra.mrb[0].mxu0 %v502
        %v1063 = vpop.f32.mrb[0].mxu0
        %v1064 = vadd.f32 %v336, %v1063
        %v1065 = vpop.f32.mrb[0].mxu0
        %1066 = vmatprep.mubr.f32.mxu0 0.0
        %1067 = vmatmul.mubr.f32.gmra.mrb[0].mxu0 %v505
        %v1068 = vpop.f32.mrb[0].mxu0
        %v1069 = vadd.f32 %v336, %v1068
        %v1070 = vpop.f32.mrb[0].mxu0
        %1071 = vmatprep.mubr.f32.mxu0 0.0
        %1072 = vmatmul.mubr.f32.gmra.mrb[0].mxu0 %v508
        %v1073 = vpop.f32.mrb[0].mxu0
        %v1074 = vadd.f32 %v336, %v1073
        %v1075 = vpop.f32.mrb[0].mxu0
        %1076 = vmatprep.mubr.f32.mxu0 0.0
        %1077 = vmatmul.mubr.f32.gmra.mrb[0].mxu0 %v511
        %v1078 = vpop.f32.mrb[0].mxu0
        %v1079 = vadd.f32 %v336, %v1078
        %v1080 = vpop.f32.mrb[0].mxu0
        %1081 = vmatprep.mubr.f32.mxu0 0.0
        %1082 = vmatmul.mubr.f32.gmra.mrb[0].mxu0 %v514
        %v1083 = vpop.f32.mrb[0].mxu0
        %v1084 = vadd.f32 %v336, %v1083
        %v1085 = vpop.f32.mrb[0].mxu0
        %1086 = vmatprep.mubr.f32.mxu0 0.0
        %1087 = vmatmul.mubr.f32.gmra.mrb[0].mxu0 %v517
        %v1088 = vpop.f32.mrb[0].mxu0
        %v1089 = vadd.f32 %v336, %v1088
        %v1090 = vpop.f32.mrb[0].mxu0
        %1091 = vmatprep.mubr.f32.mxu0 0.0
        %1092 = vmatmul.mubr.f32.gmra.mrb[0].mxu0 %v520
        %v1093 = vpop.f32.mrb[0].mxu0
        %v1094 = vadd.f32 %v336, %v1093
        %v1095 = vpop.f32.mrb[0].mxu0
        %1096 = vmatprep.mubr.f32.mxu0 0.0
        %1097 = vmatmul.mubr.f32.gmra.mrb[0].mxu0 %v523
        %v1098 = vpop.f32.mrb[0].mxu0
        %v1099 = vadd.f32 %v336, %v1098
        %v1100 = vpop.f32.mrb[0].mxu0
        %1101 = vmatprep.mubr.f32.mxu0 0.0
        %1102 = vmatmul.mubr.f32.gmra.mrb[0].mxu0 %v526
        %v1103 = vpop.f32.mrb[0].mxu0
        %v1104 = vadd.f32 %v336, %v1103
        %v1105 = vpop.f32.mrb[0].mxu0
        %1106 = vmatprep.mubr.f32.mxu0 0.0
        %1107 = vmatmul.mubr.f32.gmra.mrb[0].mxu0 %v529
        %v1108 = vpop.f32.mrb[0].mxu0
        %v1109 = vadd.f32 %v336, %v1108
        %v1110 = vpop.f32.mrb[0].mxu0
        %1111 = vmatprep.mubr.f32.mxu0 0.0
        %1112 = vmatmul.mubr.f32.gmra.mrb[0].mxu0 %v532
        %v1113 = vpop.f32.mrb[0].mxu0
        %v1114 = vadd.f32 %v336, %v1113
        %v1115 = vpop.f32.mrb[0].mxu0
        %1116 = vmatprep.mubr.f32.mxu0 0.0
        %1117 = vmatmul.mubr.f32.gmra.mrb[0].mxu0 %v535
        %v1118 = vpop.f32.mrb[0].mxu0
        %v1119 = vadd.f32 %v336, %v1118
        %v1120 = vpop.f32.mrb[0].mxu0
        %1121 = vmatprep.mubr.f32.mxu0 0.0
        %1122 = vmatmul.mubr.f32.gmra.mrb[0].mxu0 %v538
        %v1123 = vpop.f32.mrb[0].mxu0
        %v1124 = vadd.f32 %v336, %v1123
        %v1125 = vpop.f32.mrb[0].mxu0
        %1126 = vmatprep.mubr.f32.mxu0 0.0
        %1127 = vmatmul.mubr.f32.gmra.mrb[0].mxu0 %v541
        %v1128 = vpop.f32.mrb[0].mxu0
        %v1129 = vadd.f32 %v336, %v1128
        %v1130 = vpop.f32.mrb[0].mxu0
        %1131 = vmatprep.mubr.f32.mxu0 0.0
        %1132 = vmatmul.mubr.f32.gmra.mrb[0].mxu0 %v544
        %v1133 = vpop.f32.mrb[0].mxu0
        %v1134 = vadd.f32 %v336, %v1133
        %v1135 = vpop.f32.mrb[0].mxu0
        %1136 = vmatprep.mubr.f32.mxu0 0.0
        %1137 = vmatmul.mubr.f32.gmra.mrb[0].mxu0 %v547
        %v1138 = vpop.f32.mrb[0].mxu0
        %v1139 = vadd.f32 %v336, %v1138
        %v1140 = vpop.f32.mrb[0].mxu0
        %1141 = vmatprep.mubr.f32.mxu0 0.0
        %1142 = vmatmul.mubr.f32.gmra.mrb[0].mxu0 %v550
        %v1143 = vpop.f32.mrb[0].mxu0
        %v1144 = vadd.f32 %v336, %v1143
        %v1145 = vpop.f32.mrb[0].mxu0
        %1146 = vmatprep.mubr.f32.mxu0 0.0
        %1147 = vmatmul.mubr.f32.gmra.mrb[0].mxu0 %v553
        %v1148 = vpop.f32.mrb[0].mxu0
        %v1149 = vadd.f32 %v336, %v1148
        %v1150 = vpop.f32.mrb[0].mxu0
        %1151 = vmatprep.mubr.f32.mxu0 0.0
        %1152 = vmatmul.mubr.f32.gmra.mrb[0].mxu0 %v556
        %v1153 = vpop.f32.mrb[0].mxu0
        %v1154 = vadd.f32 %v336, %v1153
        %v1155 = vpop.f32.mrb[0].mxu0
        %1156 = vmatprep.mubr.f32.mxu0 0.0
        %1157 = vmatmul.mubr.f32.gmra.mrb[0].mxu0 %v559
        %v1158 = vpop.f32.mrb[0].mxu0
        %v1159 = vadd.f32 %v336, %v1158
        %v1160 = vpop.f32.mrb[0].mxu0
        %1161 = vmatprep.mubr.f32.mxu0 0.0
        %1162 = vmatmul.mubr.f32.gmra.mrb[0].mxu0 %v562
        %v1163 = vpop.f32.mrb[0].mxu0
        %v1164 = vadd.f32 %v336, %v1163
        %v1165 = vpop.f32.mrb[0].mxu0
        %1166 = vmatprep.mubr.f32.mxu0 0.0
        %1167 = vmatmul.mubr.f32.gmra.mrb[0].mxu0 %v565
        %v1168 = vpop.f32.mrb[0].mxu0
        %v1169 = vadd.f32 %v336, %v1168
        %v1170 = vpop.f32.mrb[0].mxu0
        %1171 = vmatprep.mubr.f32.mxu0 0.0
        %1172 = vmatmul.mubr.f32.gmra.mrb[0].mxu0 %v568
        %v1173 = vpop.f32.mrb[0].mxu0
        %v1174 = vadd.f32 %v336, %v1173
        %v1175 = vpop.f32.mrb[0].mxu0
        %1176 = vmatprep.mubr.f32.mxu0 0.0
        %1177 = vmatmul.mubr.f32.gmra.mrb[0].mxu0 %v571
        %v1178 = vpop.f32.mrb[0].mxu0
        %v1179 = vadd.f32 %v336, %v1178
        %v1180 = vpop.f32.mrb[0].mxu0
        %1181 = vmatprep.mubr.f32.mxu0 0.0
        %1182 = vmatmul.mubr.f32.gmra.mrb[0].mxu0 %v574
        %v1183 = vpop.f32.mrb[0].mxu0
        %v1184 = vadd.f32 %v336, %v1183
        %v1185 = vpop.f32.mrb[0].mxu0
        %1186 = vmatprep.mubr.f32.mxu0 0.0
        %1187 = vmatmul.mubr.f32.gmra.mrb[0].mxu0 %v577
        %v1188 = vpop.f32.mrb[0].mxu0
        %v1189 = vadd.f32 %v336, %v1188
        %v1190 = vpop.f32.mrb[0].mxu0
        %1191 = vmatprep.mubr.f32.mxu0 0.0
        %1192 = vmatmul.mubr.f32.gmra.mrb[0].mxu0 %v580
        %v1193 = vpop.f32.mrb[0].mxu0
        %v1194 = vadd.f32 %v336, %v1193
        %v1195 = vpop.f32.mrb[0].mxu0
        %1196 = vmatprep.mubr.f32.mxu0 0.0
        %1197 = vmatmul.mubr.f32.gmra.mrb[0].mxu0 %v583
        %v1198 = vpop.f32.mrb[0].mxu0
        %v1199 = vadd.f32 %v336, %v1198
        %v1200 = vpop.f32.mrb[0].mxu0
        %1201 = vmatprep.mubr.f32.mxu0 0.0
        %1202 = vmatmul.mubr.f32.gmra.mrb[0].mxu0 %v586
        %v1203 = vpop.f32.mrb[0].mxu0
        %v1204 = vadd.f32 %v336, %v1203
        %v1205 = vpop.f32.mrb[0].mxu0
        %1206 = vmatprep.mubr.f32.mxu0 0.0
        %1207 = vmatmul.mubr.f32.gmra.mrb[0].mxu0 %v589
        %v1208 = vpop.f32.mrb[0].mxu0
        %v1209 = vadd.f32 %v336, %v1208
        %v1210 = vpop.f32.mrb[0].mxu0
        %1211 = vmatprep.mubr.f32.mxu0 0.0
        %1212 = vmatmul.mubr.f32.gmra.mrb[0].mxu0 %v592
        %v1213 = vpop.f32.mrb[0].mxu0
        %v1214 = vadd.f32 %v336, %v1213
        %v1215 = vpop.f32.mrb[0].mxu0
        %1216 = vmatprep.mubr.f32.mxu0 0.0
        %1217 = vmatmul.mubr.f32.gmra.mrb[0].mxu0 %v595
        %v1218 = vpop.f32.mrb[0].mxu0
        %v1219 = vadd.f32 %v336, %v1218
        %v1220 = vpop.f32.mrb[0].mxu0
        %1221 = vmatprep.mubr.f32.mxu0 0.0
        %1222 = vmatmul.mubr.f32.gmra.mrb[0].mxu0 %v598
        %v1223 = vpop.f32.mrb[0].mxu0
        %v1224 = vadd.f32 %v336, %v1223
        %v1225 = vpop.f32.mrb[0].mxu0
        %1226 = vmatprep.mubr.f32.mxu0 0.0
        %1227 = vmatmul.mubr.f32.gmra.mrb[0].mxu0 %v601
        %v1228 = vpop.f32.mrb[0].mxu0
        %v1229 = vadd.f32 %v336, %v1228
        %v1230 = vpop.f32.mrb[0].mxu0
        %1231 = vmatprep.mubr.f32.mxu0 0.0
        %1232 = vmatmul.mubr.f32.gmra.mrb[0].mxu0 %v604
        %v1233 = vpop.f32.mrb[0].mxu0
        %v1234 = vadd.f32 %v336, %v1233
        %v1235 = vpop.f32.mrb[0].mxu0
        %1236 = vmatprep.mubr.f32.mxu0 0.0
        %1237 = vmatmul.mubr.f32.gmra.mrb[0].mxu0 %v607
        %v1238 = vpop.f32.mrb[0].mxu0
        %v1239 = vadd.f32 %v336, %v1238
        %v1240 = vpop.f32.mrb[0].mxu0
        %1241 = vmatprep.mubr.f32.mxu0 0.0
        %1242 = vmatmul.mubr.f32.gmra.mrb[0].mxu0 %v610
        %v1243 = vpop.f32.mrb[0].mxu0
        %v1244 = vadd.f32 %v336, %v1243
        %v1245 = vpop.f32.mrb[0].mxu0
        %1246 = vmatprep.mubr.f32.mxu0 0.0
        %1247 = vmatmul.mubr.f32.gmra.mrb[0].mxu0 %v613
        %v1248 = vpop.f32.mrb[0].mxu0
        %v1249 = vadd.f32 %v336, %v1248
        %v1250 = vpop.f32.mrb[0].mxu0
        %1251 = vmatprep.mubr.f32.mxu0 0.0
        %1252 = vmatmul.mubr.f32.gmra.mrb[0].mxu0 %v616
        %v1253 = vpop.f32.mrb[0].mxu0
        %v1254 = vadd.f32 %v336, %v1253
        %v1255 = vpop.f32.mrb[0].mxu0
        %1256 = vmatprep.mubr.f32.mxu0 0.0
        %1257 = vmatmul.mubr.f32.gmra.mrb[0].mxu0 %v619
        %v1258 = vpop.f32.mrb[0].mxu0
        %v1259 = vadd.f32 %v336, %v1258
        %v1260 = vpop.f32.mrb[0].mxu0
        %1261 = vmatprep.mubr.f32.mxu0 0.0
        %1262 = vmatmul.mubr.f32.gmra.mrb[0].mxu0 %v622
        %v1263 = vpop.f32.mrb[0].mxu0
        %v1264 = vadd.f32 %v336, %v1263
        %v1265 = vpop.f32.mrb[0].mxu0
        %1266 = vmatprep.mubr.f32.mxu0 0.0
        %1267 = vmatmul.mubr.f32.gmra.mrb[0].mxu0 %v625
        %v1268 = vpop.f32.mrb[0].mxu0
        %v1269 = vadd.f32 %v336, %v1268
        %v1270 = vpop.f32.mrb[0].mxu0
        %1271 = vmatprep.mubr.f32.mxu0 0.0
        %1272 = vmatmul.mubr.f32.gmra.mrb[0].mxu0 %v628
        %v1273 = vpop.f32.mrb[0].mxu0
        %v1274 = vadd.f32 %v336, %v1273
        %v1275 = vpop.f32.mrb[0].mxu0
        %1276 = vmatprep.mubr.f32.mxu0 0.0
        %1277 = vmatmul.mubr.f32.gmra.mrb[0].mxu0 %v631
        %v1278 = vpop.f32.mrb[0].mxu0
        %v1279 = vadd.f32 %v336, %v1278
        %v1280 = vpop.f32.mrb[0].mxu0
        %1281 = vmatprep.mubr.f32.mxu0 0.0
        %1282 = vmatmul.mubr.f32.gmra.mrb[0].mxu0 %v634
        %v1283 = vpop.f32.mrb[0].mxu0
        %v1284 = vadd.f32 %v336, %v1283
        %v1285 = vpop.f32.mrb[0].mxu0
        %1286 = vmatprep.mubr.f32.mxu0 0.0
        %1287 = vmatmul.mubr.f32.gmra.mrb[0].mxu0 %v637
        %v1288 = vpop.f32.mrb[0].mxu0
        %v1289 = vadd.f32 %v336, %v1288
        %v1290 = vpop.f32.mrb[0].mxu0
        %1291 = vmatprep.mubr.f32.mxu0 0.0
        %1292 = vmatmul.mubr.f32.gmra.mrb[0].mxu0 %v640
        %v1293 = vpop.f32.mrb[0].mxu0
        %v1294 = vadd.f32 %v336, %v1293
        %v1295 = vpop.f32.mrb[0].mxu0
        %1296 = vmatprep.mubr.f32.mxu0 0.0
        %1297 = vmatmul.mubr.f32.gmra.mrb[0].mxu0 %v643
        %v1298 = vpop.f32.mrb[0].mxu0
        %v1299 = vadd.f32 %v336, %v1298
        %v1300 = vpop.f32.mrb[0].mxu0
        %1301 = vmatprep.mubr.f32.mxu0 0.0
        %1302 = vmatmul.mubr.f32.gmra.mrb[0].mxu0 %v646
        %v1303 = vpop.f32.mrb[0].mxu0
        %v1304 = vadd.f32 %v336, %v1303
        %v1305 = vpop.f32.mrb[0].mxu0
        %1306 = vmatprep.mubr.f32.mxu0 0.0
        %1307 = vmatmul.mubr.f32.gmra.mrb[0].mxu0 %v649
        %v1308 = vpop.f32.mrb[0].mxu0
        %v1309 = vadd.f32 %v336, %v1308
        %v1310 = vpop.f32.mrb[0].mxu0
        %1311 = vmatprep.mubr.f32.mxu0 0.0
        %1312 = vmatmul.mubr.f32.gmra.mrb[0].mxu0 %v652
        %v1313 = vpop.f32.mrb[0].mxu0
        %v1314 = vadd.f32 %v336, %v1313
        %v1315 = vpop.f32.mrb[0].mxu0
        %1316 = vmatprep.mubr.f32.mxu0 0.0
        %1317 = vmatmul.mubr.f32.gmra.mrb[0].mxu0 %v655
        %v1318 = vpop.f32.mrb[0].mxu0
        %v1319 = vadd.f32 %v336, %v1318
        %v1320 = vpop.f32.mrb[0].mxu0
        %1321 = vmatprep.mubr.f32.mxu0 0.0
        %1322 = vmatmul.mubr.f32.gmra.mrb[0].mxu0 %v658
        %v1323 = vpop.f32.mrb[0].mxu0
        %v1324 = vadd.f32 %v336, %v1323
        %v1325 = vpop.f32.mrb[0].mxu0
        %1326 = vmatprep.mubr.f32.mxu0 0.0
        %1327 = vmatmul.mubr.f32.gmra.mrb[0].mxu0 %v661
        %v1328 = vpop.f32.mrb[0].mxu0
        %v1329 = vadd.f32 %v336, %v1328
        %v1330 = vpop.f32.mrb[0].mxu0
        %1331 = vmatprep.mubr.f32.mxu0 0.0
        %1332 = vmatmul.mubr.f32.gmra.mrb[0].mxu0 %v664
        %v1333 = vpop.f32.mrb[0].mxu0
        %v1334 = vadd.f32 %v336, %v1333
        %v1335 = vpop.f32.mrb[0].mxu0
        %1336 = vmatprep.mubr.f32.mxu0 0.0
        %1337 = vmatmul.mubr.f32.gmra.mrb[0].mxu0 %v667
        %v1338 = vpop.f32.mrb[0].mxu0
        %v1339 = vadd.f32 %v336, %v1338
        %v1340 = vpop.f32.mrb[0].mxu0
        %1341 = vmatprep.mubr.f32.mxu0 0.0
        %1342 = vmatmul.mubr.f32.gmra.mrb[0].mxu0 %v670
        %v1343 = vpop.f32.mrb[0].mxu0
        %v1344 = vadd.f32 %v336, %v1343
        %v1345 = vpop.f32.mrb[0].mxu0
        %1346 = vmatprep.mubr.f32.mxu0 0.0
        %1347 = vmatmul.mubr.f32.gmra.mrb[0].mxu0 %v673
        %v1348 = vpop.f32.mrb[0].mxu0
        %v1349 = vadd.f32 %v336, %v1348
        %v1350 = vpop.f32.mrb[0].mxu0
        %1351 = vmatprep.mubr.f32.mxu0 0.0
        %1352 = vmatmul.mubr.f32.gmra.mrb[0].mxu0 %v676
        %v1353 = vpop.f32.mrb[0].mxu0
        %v1354 = vadd.f32 %v336, %v1353
        %v1355 = vpop.f32.mrb[0].mxu0
        %1356 = vmatprep.mubr.f32.mxu0 0.0
        %1357 = vmatmul.mubr.f32.gmra.mrb[0].mxu0 %v679
        %v1358 = vpop.f32.mrb[0].mxu0
        %v1359 = vadd.f32 %v336, %v1358
        %v1360 = vpop.f32.mrb[0].mxu0
        %1361 = vmatprep.mubr.f32.mxu0 0.0
        %1362 = vmatmul.mubr.f32.gmra.mrb[0].mxu0 %v682
        %v1363 = vpop.f32.mrb[0].mxu0
        %v1364 = vadd.f32 %v336, %v1363
        %v1365 = vpop.f32.mrb[0].mxu0
        %1366 = vmatprep.mubr.f32.mxu0 0.0
        %1367 = vmatmul.mubr.f32.gmra.mrb[0].mxu0 %v685
        %v1368 = vpop.f32.mrb[0].mxu0
        %v1369 = vadd.f32 %v336, %v1368
        %v1370 = vpop.f32.mrb[0].mxu0
        %1371 = vmatprep.mubr.f32.mxu0 0.0
        %1372 = vmatmul.mubr.f32.gmra.mrb[0].mxu0 %v688
        %v1373 = vpop.f32.mrb[0].mxu0
        %v1374 = vadd.f32 %v336, %v1373
        %v1375 = vpop.f32.mrb[0].mxu0
        %1376 = vmatprep.mubr.f32.mxu0 0.0
        %1377 = vmatmul.mubr.f32.gmra.mrb[0].mxu0 %v691
        %v1378 = vpop.f32.mrb[0].mxu0
        %v1379 = vadd.f32 %v336, %v1378
        %v1380 = vpop.f32.mrb[0].mxu0
        %1381 = vmatprep.mubr.f32.mxu0 0.0
        %1382 = vmatmul.mubr.f32.gmra.mrb[0].mxu0 %v694
        %v1383 = vpop.f32.mrb[0].mxu0
        %v1384 = vadd.f32 %v336, %v1383
        %v1385 = vpop.f32.mrb[0].mxu0
        %1386 = vmatprep.mubr.f32.mxu0 0.0
        %1387 = vmatmul.mubr.f32.gmra.mrb[0].mxu0 %v697
        %v1388 = vpop.f32.mrb[0].mxu0
        %v1389 = vadd.f32 %v336, %v1388
        %v1390 = vpop.f32.mrb[0].mxu0
        %1391 = vmatprep.mubr.f32.mxu0 0.0
        %1392 = vmatmul.mubr.f32.gmra.mrb[0].mxu0 %v700
        %v1393 = vpop.f32.mrb[0].mxu0
        %v1394 = vadd.f32 %v336, %v1393
        %v1395 = vpop.f32.mrb[0].mxu0
        %1396 = vmatprep.mubr.f32.mxu0 0.0
        %1397 = vmatmul.mubr.f32.gmra.mrb[0].mxu0 %v703
        %v1398 = vpop.f32.mrb[0].mxu0
        %v1399 = vadd.f32 %v336, %v1398
        %v1400 = vpop.f32.mrb[0].mxu0
        %1401 = vmatprep.mubr.f32.mxu0 0.0
        %1402 = vmatmul.mubr.f32.gmra.mrb[0].mxu0 %v706
        %v1403 = vpop.f32.mrb[0].mxu0
        %v1404 = vadd.f32 %v336, %v1403
        %v1405 = vpop.f32.mrb[0].mxu0
        %1406 = vmatprep.mubr.f32.mxu0 0.0
        %1407 = vmatmul.mubr.f32.gmra.mrb[0].mxu0 %v709
        %v1408 = vpop.f32.mrb[0].mxu0
        %v1409 = vadd.f32 %v336, %v1408
        %v1410 = vpop.f32.mrb[0].mxu0
        %1411 = vmatprep.mubr.f32.mxu0 0.0
        %1412 = vmatmul.mubr.f32.gmra.mrb[0].mxu0 %v712
        %v1413 = vpop.f32.mrb[0].mxu0
        %v1414 = vadd.f32 %v336, %v1413
        %v1415 = vpop.f32.mrb[0].mxu0
        %1416 = vmatprep.mubr.f32.mxu0 0.0
        %1417 = vmatmul.mubr.f32.gmra.mrb[0].mxu0 %v715
        %v1418 = vpop.f32.mrb[0].mxu0
        %v1419 = vadd.f32 %v336, %v1418
        %v1420 = vpop.f32.mrb[0].mxu0
        %1421 = vmatprep.mubr.f32.mxu0 0.0
        %1422 = vmatmul.mubr.f32.gmra.mrb[0].mxu0 %v718
        %v1423 = vpop.f32.mrb[0].mxu0
        %v1424 = vadd.f32 %v336, %v1423
        %v1425 = vpop.f32.mrb[0].mxu0
        %1426 = vmatprep.mubr.f32.mxu0 0.0
        %1427 = vmatmul.mubr.f32.gmra.mrb[0].mxu0 %v721
        %v1428 = vpop.f32.mrb[0].mxu0
        %v1429 = vadd.f32 %v336, %v1428
        %v1430 = vpop.f32.mrb[0].mxu0
        %1431 = vdwg.mxu0
        %v1432 = vmax.f32 %v794, 0.0
        %v1433 = vmax.f32 %v799, 0.0
        %v1434 = vmax.f32 %v804, 0.0
        %v1435 = vmax.f32 %v809, 0.0
        %v1436 = vmax.f32 %v814, 0.0
        %v1437 = vmax.f32 %v819, 0.0
        %v1438 = vmax.f32 %v824, 0.0
        %v1439 = vmax.f32 %v829, 0.0
        %v1440 = vmax.f32 %v834, 0.0
        %v1441 = vmax.f32 %v839, 0.0
        %v1442 = vmax.f32 %v844, 0.0
        %v1443 = vmax.f32 %v849, 0.0
        %v1444 = vmax.f32 %v854, 0.0
        %v1445 = vmax.f32 %v859, 0.0
        %v1446 = vmax.f32 %v864, 0.0
        %v1447 = vmax.f32 %v869, 0.0
        %v1448 = vmax.f32 %v874, 0.0
        %v1449 = vmax.f32 %v879, 0.0
        %v1450 = vmax.f32 %v884, 0.0
        %v1451 = vmax.f32 %v889, 0.0
        %v1452 = vmax.f32 %v894, 0.0
        %v1453 = vmax.f32 %v899, 0.0
        %v1454 = vmax.f32 %v904, 0.0
        %v1455 = vmax.f32 %v909, 0.0
        %v1456 = vmax.f32 %v914, 0.0
        %v1457 = vmax.f32 %v919, 0.0
        %v1458 = vmax.f32 %v924, 0.0
        %v1459 = vmax.f32 %v929, 0.0
        %v1460 = vmax.f32 %v934, 0.0
        %v1461 = vmax.f32 %v939, 0.0
        %v1462 = vmax.f32 %v944, 0.0
        %v1463 = vmax.f32 %v949, 0.0
        %v1464 = vmax.f32 %v954, 0.0
        %v1465 = vmax.f32 %v959, 0.0
        %v1466 = vmax.f32 %v964, 0.0
        %v1467 = vmax.f32 %v969, 0.0
        %v1468 = vmax.f32 %v974, 0.0
        %v1469 = vmax.f32 %v979, 0.0
        %v1470 = vmax.f32 %v984, 0.0
        %v1471 = vmax.f32 %v989, 0.0
        %v1472 = vmax.f32 %v994, 0.0
        %v1473 = vmax.f32 %v999, 0.0
        %v1474 = vmax.f32 %v1004, 0.0
        %v1475 = vmax.f32 %v1009, 0.0
        %v1476 = vmax.f32 %v1014, 0.0
        %v1477 = vmax.f32 %v1019, 0.0
        %v1478 = vmax.f32 %v1024, 0.0
        %v1479 = vmax.f32 %v1029, 0.0
        %v1480 = vmax.f32 %v1034, 0.0
        %v1481 = vmax.f32 %v1039, 0.0
        %v1482 = vmax.f32 %v1044, 0.0
        %v1483 = vmax.f32 %v1049, 0.0
        %v1484 = vmax.f32 %v1054, 0.0
        %v1485 = vmax.f32 %v1059, 0.0
        %v1486 = vmax.f32 %v1064, 0.0
        %v1487 = vmax.f32 %v1069, 0.0
        %v1488 = vmax.f32 %v1074, 0.0
        %v1489 = vmax.f32 %v1079, 0.0
        %v1490 = vmax.f32 %v1084, 0.0
        %v1491 = vmax.f32 %v1089, 0.0
        %v1492 = vmax.f32 %v1094, 0.0
        %v1493 = vmax.f32 %v1099, 0.0
        %v1494 = vmax.f32 %v1104, 0.0
        %v1495 = vmax.f32 %v1109, 0.0
        %v1496 = vmax.f32 %v1114, 0.0
        %v1497 = vmax.f32 %v1119, 0.0
        %v1498 = vmax.f32 %v1124, 0.0
        %v1499 = vmax.f32 %v1129, 0.0
        %v1500 = vmax.f32 %v1134, 0.0
        %v1501 = vmax.f32 %v1139, 0.0
        %v1502 = vmax.f32 %v1144, 0.0
        %v1503 = vmax.f32 %v1149, 0.0
        %v1504 = vmax.f32 %v1154, 0.0
        %v1505 = vmax.f32 %v1159, 0.0
        %v1506 = vmax.f32 %v1164, 0.0
        %v1507 = vmax.f32 %v1169, 0.0
        %v1508 = vmax.f32 %v1174, 0.0
        %v1509 = vmax.f32 %v1179, 0.0
        %v1510 = vmax.f32 %v1184, 0.0
        %v1511 = vmax.f32 %v1189, 0.0
        %v1512 = vmax.f32 %v1194, 0.0
        %v1513 = vmax.f32 %v1199, 0.0
        %v1514 = vmax.f32 %v1204, 0.0
        %v1515 = vmax.f32 %v1209, 0.0
        %v1516 = vmax.f32 %v1214, 0.0
        %v1517 = vmax.f32 %v1219, 0.0
        %v1518 = vmax.f32 %v1224, 0.0
        %v1519 = vmax.f32 %v1229, 0.0
        %v1520 = vmax.f32 %v1234, 0.0
        %v1521 = vmax.f32 %v1239, 0.0
        %v1522 = vmax.f32 %v1244, 0.0
        %v1523 = vmax.f32 %v1249, 0.0
        %v1524 = vmax.f32 %v1254, 0.0
        %v1525 = vmax.f32 %v1259, 0.0
        %v1526 = vmax.f32 %v1264, 0.0
        %v1527 = vmax.f32 %v1269, 0.0
        %v1528 = vmax.f32 %v1274, 0.0
        %v1529 = vmax.f32 %v1279, 0.0
        %v1530 = vmax.f32 %v1284, 0.0
        %v1531 = vmax.f32 %v1289, 0.0
        %v1532 = vmax.f32 %v1294, 0.0
        %v1533 = vmax.f32 %v1299, 0.0
        %v1534 = vmax.f32 %v1304, 0.0
        %v1535 = vmax.f32 %v1309, 0.0
        %v1536 = vmax.f32 %v1314, 0.0
        %v1537 = vmax.f32 %v1319, 0.0
        %v1538 = vmax.f32 %v1324, 0.0
        %v1539 = vmax.f32 %v1329, 0.0
        %v1540 = vmax.f32 %v1334, 0.0
        %v1541 = vmax.f32 %v1339, 0.0
        %v1542 = vmax.f32 %v1344, 0.0
        %v1543 = vmax.f32 %v1349, 0.0
        %v1544 = vmax.f32 %v1354, 0.0
        %v1545 = vmax.f32 %v1359, 0.0
        %v1546 = vmax.f32 %v1364, 0.0
        %v1547 = vmax.f32 %v1369, 0.0
        %v1548 = vmax.f32 %v1374, 0.0
        %v1549 = vmax.f32 %v1379, 0.0
        %v1550 = vmax.f32 %v1384, 0.0
        %v1551 = vmax.f32 %v1389, 0.0
        %v1552 = vmax.f32 %v1394, 0.0
        %v1553 = vmax.f32 %v1399, 0.0
        %v1554 = vmax.f32 %v1404, 0.0
        %v1555 = vmax.f32 %v1409, 0.0
        %v1556 = vmax.f32 %v1414, 0.0
        %v1557 = vmax.f32 %v1419, 0.0
        %v1558 = vmax.f32 %v1424, 0.0
        %v1559 = vmax.f32 %v1429, 0.0
        %v1560 = vmax.f32 %v1432, %v1436
        %v1561 = vmax.f32 %v1433, %v1437
        %v1562 = vmax.f32 %v1434, %v1438
        %v1563 = vmax.f32 %v1435, %v1439
        %v1564 = vmax.f32 %v1440, %v1444
        %v1565 = vmax.f32 %v1441, %v1445
        %v1566 = vmax.f32 %v1442, %v1446
        %v1567 = vmax.f32 %v1443, %v1447
        %v1568 = vmax.f32 %v1448, %v1452
        %v1569 = vmax.f32 %v1449, %v1453
        %v1570 = vmax.f32 %v1450, %v1454
        %v1571 = vmax.f32 %v1451, %v1455
        %v1572 = vmax.f32 %v1456, %v1460
        %v1573 = vmax.f32 %v1457, %v1461
        %v1574 = vmax.f32 %v1458, %v1462
        %v1575 = vmax.f32 %v1459, %v1463
        %v1576 = vmax.f32 %v1464, %v1468
        %v1577 = vmax.f32 %v1465, %v1469
        %v1578 = vmax.f32 %v1466, %v1470
        %v1579 = vmax.f32 %v1467, %v1471
        %v1580 = vmax.f32 %v1472, %v1476
        %v1581 = vmax.f32 %v1473, %v1477
        %v1582 = vmax.f32 %v1474, %v1478
        %v1583 = vmax.f32 %v1475, %v1479
        %v1584 = vmax.f32 %v1480, %v1484
        %v1585 = vmax.f32 %v1481, %v1485
        %v1586 = vmax.f32 %v1482, %v1486
        %v1587 = vmax.f32 %v1483, %v1487
        %v1588 = vmax.f32 %v1488, %v1492
        %v1589 = vmax.f32 %v1489, %v1493
        %v1590 = vmax.f32 %v1490, %v1494
        %v1591 = vmax.f32 %v1491, %v1495
        %v1592 = vmax.f32 %v1496, %v1500
        %v1593 = vmax.f32 %v1497, %v1501
        %v1594 = vmax.f32 %v1498, %v1502
        %v1595 = vmax.f32 %v1499, %v1503
        %v1596 = vmax.f32 %v1504, %v1508
        %v1597 = vmax.f32 %v1505, %v1509
        %v1598 = vmax.f32 %v1506, %v1510
        %v1599 = vmax.f32 %v1507, %v1511
        %v1600 = vmax.f32 %v1512, %v1516
        %v1601 = vmax.f32 %v1513, %v1517
        %v1602 = vmax.f32 %v1514, %v1518
        %v1603 = vmax.f32 %v1515, %v1519
        %v1604 = vmax.f32 %v1520, %v1524
        %v1605 = vmax.f32 %v1521, %v1525
        %v1606 = vmax.f32 %v1522, %v1526
        %v1607 = vmax.f32 %v1523, %v1527
        %v1608 = vmax.f32 %v1528, %v1532
        %v1609 = vmax.f32 %v1529, %v1533
        %v1610 = vmax.f32 %v1530, %v1534
        %v1611 = vmax.f32 %v1531, %v1535
        %v1612 = vmax.f32 %v1536, %v1540
        %v1613 = vmax.f32 %v1537, %v1541
        %v1614 = vmax.f32 %v1538, %v1542
        %v1615 = vmax.f32 %v1539, %v1543
        %v1616 = vmax.f32 %v1544, %v1548
        %v1617 = vmax.f32 %v1545, %v1549
        %v1618 = vmax.f32 %v1546, %v1550
        %v1619 = vmax.f32 %v1547, %v1551
        %v1620 = vmax.f32 %v1552, %v1556
        %v1621 = vmax.f32 %v1553, %v1557
        %v1622 = vmax.f32 %v1554, %v1558
        %v1623 = vmax.f32 %v1555, %v1559
        %vm1624 = vcmask 261120
        %1625 = vst.msk [vmem:[#allocation2] sm:$0xff] %vm1624, %v1560
        %1626 = vst.msk [vmem:[#allocation2 + $0x8] sm:$0xff] %vm1624, %v1561
        %1627 = vst.msk [vmem:[#allocation2 + $0x10] sm:$0xff] %vm1624, %v1562
        %1628 = vst.msk [vmem:[#allocation2 + $0x18] sm:$0xff] %vm1624, %v1563
        %1629 = vst.msk [vmem:[#allocation2 + $0x20] sm:$0xff] %vm1624, %v1564
        %1630 = vst.msk [vmem:[#allocation2 + $0x28] sm:$0xff] %vm1624, %v1565
        %1631 = vst.msk [vmem:[#allocation2 + $0x30] sm:$0xff] %vm1624, %v1566
        %1632 = vst.msk [vmem:[#allocation2 + $0x38] sm:$0xff] %vm1624, %v1567
        %1633 = vst.msk [vmem:[#allocation2 + $0x40] sm:$0xff] %vm1624, %v1568
        %1634 = vst.msk [vmem:[#allocation2 + $0x48] sm:$0xff] %vm1624, %v1569
        %1635 = vst.msk [vmem:[#allocation2 + $0x50] sm:$0xff] %vm1624, %v1570
        %1636 = vst.msk [vmem:[#allocation2 + $0x58] sm:$0xff] %vm1624, %v1571
        %1637 = vst.msk [vmem:[#allocation2 + $0x60] sm:$0xff] %vm1624, %v1572
        %1638 = vst.msk [vmem:[#allocation2 + $0x68] sm:$0xff] %vm1624, %v1573
        %1639 = vst.msk [vmem:[#allocation2 + $0x70] sm:$0xff] %vm1624, %v1574
        %1640 = vst.msk [vmem:[#allocation2 + $0x78] sm:$0xff] %vm1624, %v1575
        %1641 = vst.msk [vmem:[#allocation2 + $0x80] sm:$0xff] %vm1624, %v1576
        %1642 = vst.msk [vmem:[#allocation2 + $0x88] sm:$0xff] %vm1624, %v1577
        %1643 = vst.msk [vmem:[#allocation2 + $0x90] sm:$0xff] %vm1624, %v1578
        %1644 = vst.msk [vmem:[#allocation2 + $0x98] sm:$0xff] %vm1624, %v1579
        %1645 = vst.msk [vmem:[#allocation2 + $0xa0] sm:$0xff] %vm1624, %v1580
        %1646 = vst.msk [vmem:[#allocation2 + $0xa8] sm:$0xff] %vm1624, %v1581
        %1647 = vst.msk [vmem:[#allocation2 + $0xb0] sm:$0xff] %vm1624, %v1582
        %1648 = vst.msk [vmem:[#allocation2 + $0xb8] sm:$0xff] %vm1624, %v1583
        %1649 = vst.msk [vmem:[#allocation2 + $0xc0] sm:$0xff] %vm1624, %v1584
        %1650 = vst.msk [vmem:[#allocation2 + $0xc8] sm:$0xff] %vm1624, %v1585
        %1651 = vst.msk [vmem:[#allocation2 + $0xd0] sm:$0xff] %vm1624, %v1586
        %1652 = vst.msk [vmem:[#allocation2 + $0xd8] sm:$0xff] %vm1624, %v1587
        %1653 = vst.msk [vmem:[#allocation2 + $0xe0] sm:$0xff] %vm1624, %v1588
        %1654 = vst.msk [vmem:[#allocation2 + $0xe8] sm:$0xff] %vm1624, %v1589
        %1655 = vst.msk [vmem:[#allocation2 + $0xf0] sm:$0xff] %vm1624, %v1590
        %1656 = vst.msk [vmem:[#allocation2 + $0xf8] sm:$0xff] %vm1624, %v1591
        %1657 = vst.msk [vmem:[#allocation2 + $0x100] sm:$0xff] %vm1624, %v1592
        %1658 = vst.msk [vmem:[#allocation2 + $0x108] sm:$0xff] %vm1624, %v1593
        %1659 = vst.msk [vmem:[#allocation2 + $0x110] sm:$0xff] %vm1624, %v1594
        %1660 = vst.msk [vmem:[#allocation2 + $0x118] sm:$0xff] %vm1624, %v1595
        %1661 = vst.msk [vmem:[#allocation2 + $0x120] sm:$0xff] %vm1624, %v1596
        %1662 = vst.msk [vmem:[#allocation2 + $0x128] sm:$0xff] %vm1624, %v1597
        %1663 = vst.msk [vmem:[#allocation2 + $0x130] sm:$0xff] %vm1624, %v1598
        %1664 = vst.msk [vmem:[#allocation2 + $0x138] sm:$0xff] %vm1624, %v1599
        %1665 = vst.msk [vmem:[#allocation2 + $0x140] sm:$0xff] %vm1624, %v1600
        %1666 = vst.msk [vmem:[#allocation2 + $0x148] sm:$0xff] %vm1624, %v1601
        %1667 = vst.msk [vmem:[#allocation2 + $0x150] sm:$0xff] %vm1624, %v1602
        %1668 = vst.msk [vmem:[#allocation2 + $0x158] sm:$0xff] %vm1624, %v1603
        %1669 = vst.msk [vmem:[#allocation2 + $0x160] sm:$0xff] %vm1624, %v1604
        %1670 = vst.msk [vmem:[#allocation2 + $0x168] sm:$0xff] %vm1624, %v1605
        %1671 = vst.msk [vmem:[#allocation2 + $0x170] sm:$0xff] %vm1624, %v1606
        %1672 = vst.msk [vmem:[#allocation2 + $0x178] sm:$0xff] %vm1624, %v1607
        %1673 = vst.msk [vmem:[#allocation2 + $0x180] sm:$0xff] %vm1624, %v1608
        %1674 = vst.msk [vmem:[#allocation2 + $0x188] sm:$0xff] %vm1624, %v1609
        %1675 = vst.msk [vmem:[#allocation2 + $0x190] sm:$0xff] %vm1624, %v1610
        %1676 = vst.msk [vmem:[#allocation2 + $0x198] sm:$0xff] %vm1624, %v1611
        %1677 = vst.msk [vmem:[#allocation2 + $0x1a0] sm:$0xff] %vm1624, %v1612
        %1678 = vst.msk [vmem:[#allocation2 + $0x1a8] sm:$0xff] %vm1624, %v1613
        %1679 = vst.msk [vmem:[#allocation2 + $0x1b0] sm:$0xff] %vm1624, %v1614
        %1680 = vst.msk [vmem:[#allocation2 + $0x1b8] sm:$0xff] %vm1624, %v1615
        %1681 = vst.msk [vmem:[#allocation2 + $0x1c0] sm:$0xff] %vm1624, %v1616
        %1682 = vst.msk [vmem:[#allocation2 + $0x1c8] sm:$0xff] %vm1624, %v1617
        %1683 = vst.msk [vmem:[#allocation2 + $0x1d0] sm:$0xff] %vm1624, %v1618
        %1684 = vst.msk [vmem:[#allocation2 + $0x1d8] sm:$0xff] %vm1624, %v1619
        %1685 = vst.msk [vmem:[#allocation2 + $0x1e0] sm:$0xff] %vm1624, %v1620
        %1686 = vst.msk [vmem:[#allocation2 + $0x1e8] sm:$0xff] %vm1624, %v1621
        %1687 = vst.msk [vmem:[#allocation2 + $0x1f0] sm:$0xff] %vm1624, %v1622
        %1688 = vst.msk [vmem:[#allocation2 + $0x1f8] sm:$0xff] %vm1624, %v1623
        %v1689 = vld [vmem:[#allocation2] ss:$2 sm:$0xff]
        %s1690 = scalar_lea.vmem [#allocation2], 16
        %v1691 = vld [vmem:[%s1690] ss:$2 sm:$0xff]
        %s1692 = scalar_lea.vmem [#allocation2], 32
        %v1693 = vld [vmem:[%s1692] ss:$2 sm:$0xff]
        %s1694 = scalar_lea.vmem [#allocation2], 48
        %v1695 = vld [vmem:[%s1694] ss:$2 sm:$0xff]
        %s1696 = scalar_lea.vmem [#allocation2], 64
        %v1697 = vld [vmem:[%s1696] ss:$2 sm:$0xff]
        %s1698 = scalar_lea.vmem [#allocation2], 80
        %v1699 = vld [vmem:[%s1698] ss:$2 sm:$0xff]
        %s1700 = scalar_lea.vmem [#allocation2], 96
        %v1701 = vld [vmem:[%s1700] ss:$2 sm:$0xff]
        %s1702 = scalar_lea.vmem [#allocation2], 112
        %v1703 = vld [vmem:[%s1702] ss:$2 sm:$0xff]
        %s1704 = scalar_lea.vmem [#allocation2], 128
        %v1705 = vld [vmem:[%s1704] ss:$2 sm:$0xff]
        %s1706 = scalar_lea.vmem [#allocation2], 144
        %v1707 = vld [vmem:[%s1706] ss:$2 sm:$0xff]
        %s1708 = scalar_lea.vmem [#allocation2], 160
        %v1709 = vld [vmem:[%s1708] ss:$2 sm:$0xff]
        %s1710 = scalar_lea.vmem [#allocation2], 176
        %v1711 = vld [vmem:[%s1710] ss:$2 sm:$0xff]
        %s1712 = scalar_lea.vmem [#allocation2], 192
        %v1713 = vld [vmem:[%s1712] ss:$2 sm:$0xff]
        %s1714 = scalar_lea.vmem [#allocation2], 208
        %v1715 = vld [vmem:[%s1714] ss:$2 sm:$0xff]
        %s1716 = scalar_lea.vmem [#allocation2], 224
        %v1717 = vld [vmem:[%s1716] ss:$2 sm:$0xff]
        %s1718 = scalar_lea.vmem [#allocation2], 240
        %v1719 = vld [vmem:[%s1718] ss:$2 sm:$0xff]
        %s1720 = scalar_lea.vmem [#allocation2], 256
        %v1721 = vld [vmem:[%s1720] ss:$2 sm:$0xff]
        %s1722 = scalar_lea.vmem [#allocation2], 272
        %v1723 = vld [vmem:[%s1722] ss:$2 sm:$0xff]
        %s1724 = scalar_lea.vmem [#allocation2], 288
        %v1725 = vld [vmem:[%s1724] ss:$2 sm:$0xff]
        %s1726 = scalar_lea.vmem [#allocation2], 304
        %v1727 = vld [vmem:[%s1726] ss:$2 sm:$0xff]
        %s1728 = scalar_lea.vmem [#allocation2], 320
        %v1729 = vld [vmem:[%s1728] ss:$2 sm:$0xff]
        %s1730 = scalar_lea.vmem [#allocation2], 336
        %v1731 = vld [vmem:[%s1730] ss:$2 sm:$0xff]
        %s1732 = scalar_lea.vmem [#allocation2], 352
        %v1733 = vld [vmem:[%s1732] ss:$2 sm:$0xff]
        %s1734 = scalar_lea.vmem [#allocation2], 368
        %v1735 = vld [vmem:[%s1734] ss:$2 sm:$0xff]
        %s1736 = scalar_lea.vmem [#allocation2], 384
        %v1737 = vld [vmem:[%s1736] ss:$2 sm:$0xff]
        %s1738 = scalar_lea.vmem [#allocation2], 400
        %v1739 = vld [vmem:[%s1738] ss:$2 sm:$0xff]
        %s1740 = scalar_lea.vmem [#allocation2], 416
        %v1741 = vld [vmem:[%s1740] ss:$2 sm:$0xff]
        %s1742 = scalar_lea.vmem [#allocation2], 432
        %v1743 = vld [vmem:[%s1742] ss:$2 sm:$0xff]
        %s1744 = scalar_lea.vmem [#allocation2], 448
        %v1745 = vld [vmem:[%s1744] ss:$2 sm:$0xff]
        %s1746 = scalar_lea.vmem [#allocation2], 464
        %v1747 = vld [vmem:[%s1746] ss:$2 sm:$0xff]
        %s1748 = scalar_lea.vmem [#allocation2], 480
        %v1749 = vld [vmem:[%s1748] ss:$2 sm:$0xff]
        %s1750 = scalar_lea.vmem [#allocation2], 496
        %v1751 = vld [vmem:[%s1750] ss:$2 sm:$0xff]
        %s1752 = scalar_lea.vmem [#allocation2], 1
        %v1753 = vld [vmem:[%s1752] ss:$2 sm:$0xff]
        %s1754 = scalar_lea.vmem [#allocation2], 17
        %v1755 = vld [vmem:[%s1754] ss:$2 sm:$0xff]
        %s1756 = scalar_lea.vmem [#allocation2], 33
        %v1757 = vld [vmem:[%s1756] ss:$2 sm:$0xff]
        %s1758 = scalar_lea.vmem [#allocation2], 49
        %v1759 = vld [vmem:[%s1758] ss:$2 sm:$0xff]
        %s1760 = scalar_lea.vmem [#allocation2], 65
        %v1761 = vld [vmem:[%s1760] ss:$2 sm:$0xff]
        %s1762 = scalar_lea.vmem [#allocation2], 81
        %v1763 = vld [vmem:[%s1762] ss:$2 sm:$0xff]
        %s1764 = scalar_lea.vmem [#allocation2], 97
        %v1765 = vld [vmem:[%s1764] ss:$2 sm:$0xff]
        %s1766 = scalar_lea.vmem [#allocation2], 113
        %v1767 = vld [vmem:[%s1766] ss:$2 sm:$0xff]
        %s1768 = scalar_lea.vmem [#allocation2], 129
        %v1769 = vld [vmem:[%s1768] ss:$2 sm:$0xff]
        %s1770 = scalar_lea.vmem [#allocation2], 145
        %v1771 = vld [vmem:[%s1770] ss:$2 sm:$0xff]
        %s1772 = scalar_lea.vmem [#allocation2], 161
        %v1773 = vld [vmem:[%s1772] ss:$2 sm:$0xff]
        %s1774 = scalar_lea.vmem [#allocation2], 177
        %v1775 = vld [vmem:[%s1774] ss:$2 sm:$0xff]
        %s1776 = scalar_lea.vmem [#allocation2], 193
        %v1777 = vld [vmem:[%s1776] ss:$2 sm:$0xff]
        %s1778 = scalar_lea.vmem [#allocation2], 209
        %v1779 = vld [vmem:[%s1778] ss:$2 sm:$0xff]
        %s1780 = scalar_lea.vmem [#allocation2], 225
        %v1781 = vld [vmem:[%s1780] ss:$2 sm:$0xff]
        %s1782 = scalar_lea.vmem [#allocation2], 241
        %v1783 = vld [vmem:[%s1782] ss:$2 sm:$0xff]
        %s1784 = scalar_lea.vmem [#allocation2], 257
        %v1785 = vld [vmem:[%s1784] ss:$2 sm:$0xff]
        %s1786 = scalar_lea.vmem [#allocation2], 273
        %v1787 = vld [vmem:[%s1786] ss:$2 sm:$0xff]
        %s1788 = scalar_lea.vmem [#allocation2], 289
        %v1789 = vld [vmem:[%s1788] ss:$2 sm:$0xff]
        %s1790 = scalar_lea.vmem [#allocation2], 305
        %v1791 = vld [vmem:[%s1790] ss:$2 sm:$0xff]
        %s1792 = scalar_lea.vmem [#allocation2], 321
        %v1793 = vld [vmem:[%s1792] ss:$2 sm:$0xff]
        %s1794 = scalar_lea.vmem [#allocation2], 337
        %v1795 = vld [vmem:[%s1794] ss:$2 sm:$0xff]
        %s1796 = scalar_lea.vmem [#allocation2], 353
        %v1797 = vld [vmem:[%s1796] ss:$2 sm:$0xff]
        %s1798 = scalar_lea.vmem [#allocation2], 369
        %v1799 = vld [vmem:[%s1798] ss:$2 sm:$0xff]
        %s1800 = scalar_lea.vmem [#allocation2], 385
        %v1801 = vld [vmem:[%s1800] ss:$2 sm:$0xff]
        %s1802 = scalar_lea.vmem [#allocation2], 401
        %v1803 = vld [vmem:[%s1802] ss:$2 sm:$0xff]
        %s1804 = scalar_lea.vmem [#allocation2], 417
        %v1805 = vld [vmem:[%s1804] ss:$2 sm:$0xff]
        %s1806 = scalar_lea.vmem [#allocation2], 433
        %v1807 = vld [vmem:[%s1806] ss:$2 sm:$0xff]
        %s1808 = scalar_lea.vmem [#allocation2], 449
        %v1809 = vld [vmem:[%s1808] ss:$2 sm:$0xff]
        %s1810 = scalar_lea.vmem [#allocation2], 465
        %v1811 = vld [vmem:[%s1810] ss:$2 sm:$0xff]
        %s1812 = scalar_lea.vmem [#allocation2], 481
        %v1813 = vld [vmem:[%s1812] ss:$2 sm:$0xff]
        %s1814 = scalar_lea.vmem [#allocation2], 497
        %v1815 = vld [vmem:[%s1814] ss:$2 sm:$0xff]
        %v1816 = vmax.f32 %v1689, %v1753
        %v1817 = vmax.f32 %v1691, %v1755
        %v1818 = vmax.f32 %v1693, %v1757
        %v1819 = vmax.f32 %v1695, %v1759
        %v1820 = vmax.f32 %v1697, %v1761
        %v1821 = vmax.f32 %v1699, %v1763
        %v1822 = vmax.f32 %v1701, %v1765
        %v1823 = vmax.f32 %v1703, %v1767
        %v1824 = vmax.f32 %v1705, %v1769
        %v1825 = vmax.f32 %v1707, %v1771
        %v1826 = vmax.f32 %v1709, %v1773
        %v1827 = vmax.f32 %v1711, %v1775
        %v1828 = vmax.f32 %v1713, %v1777
        %v1829 = vmax.f32 %v1715, %v1779
        %v1830 = vmax.f32 %v1717, %v1781
        %v1831 = vmax.f32 %v1719, %v1783
        %v1832 = vmax.f32 %v1721, %v1785
        %v1833 = vmax.f32 %v1723, %v1787
        %v1834 = vmax.f32 %v1725, %v1789
        %v1835 = vmax.f32 %v1727, %v1791
        %v1836 = vmax.f32 %v1729, %v1793
        %v1837 = vmax.f32 %v1731, %v1795
        %v1838 = vmax.f32 %v1733, %v1797
        %v1839 = vmax.f32 %v1735, %v1799
        %v1840 = vmax.f32 %v1737, %v1801
        %v1841 = vmax.f32 %v1739, %v1803
        %v1842 = vmax.f32 %v1741, %v1805
        %v1843 = vmax.f32 %v1743, %v1807
        %v1844 = vmax.f32 %v1745, %v1809
        %v1845 = vmax.f32 %v1747, %v1811
        %v1846 = vmax.f32 %v1749, %v1813
        %v1847 = vmax.f32 %v1751, %v1815
        %1848 = vst.msk [vmem:[%s198] sm:$0xff] %vm1624, %v1816
        %1849 = vst.msk [vmem:[%s198 + $0x8] sm:$0xff] %vm1624, %v1817
        %1850 = vst.msk [vmem:[%s198 + $0x10] sm:$0xff] %vm1624, %v1818
        %1851 = vst.msk [vmem:[%s198 + $0x18] sm:$0xff] %vm1624, %v1819
        %1852 = vst.msk [vmem:[%s198 + $0x20] sm:$0xff] %vm1624, %v1820
        %1853 = vst.msk [vmem:[%s198 + $0x28] sm:$0xff] %vm1624, %v1821
        %1854 = vst.msk [vmem:[%s198 + $0x30] sm:$0xff] %vm1624, %v1822
        %1855 = vst.msk [vmem:[%s198 + $0x38] sm:$0xff] %vm1624, %v1823
        %1856 = vst.msk [vmem:[%s198 + $0x40] sm:$0xff] %vm1624, %v1824
        %1857 = vst.msk [vmem:[%s198 + $0x48] sm:$0xff] %vm1624, %v1825
        %1858 = vst.msk [vmem:[%s198 + $0x50] sm:$0xff] %vm1624, %v1826
        %1859 = vst.msk [vmem:[%s198 + $0x58] sm:$0xff] %vm1624, %v1827
        %1860 = vst.msk [vmem:[%s198 + $0x60] sm:$0xff] %vm1624, %v1828
        %1861 = vst.msk [vmem:[%s198 + $0x68] sm:$0xff] %vm1624, %v1829
        %1862 = vst.msk [vmem:[%s198 + $0x70] sm:$0xff] %vm1624, %v1830
        %1863 = vst.msk [vmem:[%s198 + $0x78] sm:$0xff] %vm1624, %v1831
        %1864 = vst.msk [vmem:[%s198 + $0x80] sm:$0xff] %vm1624, %v1832
        %1865 = vst.msk [vmem:[%s198 + $0x88] sm:$0xff] %vm1624, %v1833
        %1866 = vst.msk [vmem:[%s198 + $0x90] sm:$0xff] %vm1624, %v1834
        %1867 = vst.msk [vmem:[%s198 + $0x98] sm:$0xff] %vm1624, %v1835
        %1868 = vst.msk [vmem:[%s198 + $0xa0] sm:$0xff] %vm1624, %v1836
        %1869 = vst.msk [vmem:[%s198 + $0xa8] sm:$0xff] %vm1624, %v1837
        %1870 = vst.msk [vmem:[%s198 + $0xb0] sm:$0xff] %vm1624, %v1838
        %1871 = vst.msk [vmem:[%s198 + $0xb8] sm:$0xff] %vm1624, %v1839
        %1872 = vst.msk [vmem:[%s198 + $0xc0] sm:$0xff] %vm1624, %v1840
        %1873 = vst.msk [vmem:[%s198 + $0xc8] sm:$0xff] %vm1624, %v1841
        %1874 = vst.msk [vmem:[%s198 + $0xd0] sm:$0xff] %vm1624, %v1842
        %1875 = vst.msk [vmem:[%s198 + $0xd8] sm:$0xff] %vm1624, %v1843
        %1876 = vst.msk [vmem:[%s198 + $0xe0] sm:$0xff] %vm1624, %v1844
        %1877 = vst.msk [vmem:[%s198 + $0xe8] sm:$0xff] %vm1624, %v1845
        %1878 = vst.msk [vmem:[%s198 + $0xf0] sm:$0xff] %vm1624, %v1846
        %1879 = vst.msk [vmem:[%s198 + $0xf8] sm:$0xff] %vm1624, %v1847
        %p1880 = scmp.lt.s32.totalorder %s16, 1
        %s1881 = scalar_select %p1880, %s16, 1
        %s1882 = smul.addr %s1881, 32
        %s1883 = smul.addr %s1882, 8
        %s1884 = scalar_lea.vmem %s3, %s1883
        // Predicated region
        $region41: #{net_forward.4} parent=31 // pred_check
          %p1885 = pneg %p102
        $region42: #{net_forward.4} parent=31 // pred_check_branch
          %1887 = sbr.rel (%p1885) target = $region44
        $region43: #{net_forward.4} parent=31 // pred_region
          _
        $region44: #{net_forward.4} parent=31 // pred_fallthru
          _
      $region32: #{net_forward.4} parent=5 // pred_fallthru
        _
      %p1888 = scmp.le.s32.totalorder 2, %s11
      // Predicated region
      $region45: #{net_forward.4} parent=5 // pred_check
        %p1889 = pneg %p1888
      $region46: #{net_forward.4} parent=5 // pred_check_branch
        %1891 = sbr.rel (%p1889) target = $region48
      $region47: #{net_forward.4} parent=5 // pred_region
        %s1892 = ssub.s32 %s11, 2
        // Predicated region
        $region49: #{net_forward.4} parent=47 // pred_check
          %p1893 = pneg %p108
        $region50: #{net_forward.4} parent=47 // pred_check_branch
          %1895 = sbr.rel (%p1893) target = $region52
        $region51: #{net_forward.4} parent=47 // pred_region
          %p1896 = scmp.lt.s32.totalorder %s17, 1
          %s1897 = scalar_select %p1896, %s17, 1
          %s1898 = smul.addr %s1897, 32
          %s1899 = smul.addr %s1898, 8
          %s1900 = scalar_lea.vmem %s3, %s1899
        $region52: #{net_forward.4} parent=47 // pred_fallthru
          _
      $region48: #{net_forward.4} parent=5 // pred_fallthru
        _
    $region6: #{net_forward.4} parent=1 // loop_footer
      %s15 = sadd.s32 1, %s11
    $region7: #{net_forward.4} parent=1 // loop_footer_branch
      %10 = sbr.rel target = $region3
    $region8: #{net_forward.4} parent=1 // loop_exit
      _
    %1901 = vsyncpa [#allocation4], 1
    %s1902 = scalar_lea.sflag [#allocation4], 1
    %1903 = vsyncpa %s1902, 1
    %1904 = vsyncpa [#allocation6], 1

// kernel: net_forward.6
$region0: #{net_forward.6}
  #allocation0 [shape = 'u32[]', space=smem, size = 0x4, offset = 0x4, fixed_abs, tag = 'smem constant byte address 0x4 - core index']
  #allocation1 [shape = 'u32[144,128]{1,0:T(1,128)}', space=vmem, size = 0x12000, scoped, tag = 'internal scratch']
  #allocation2 [shape = 'f32[32,128]{1,0:T(8,128)}', space=vmem, size = 0x4000, scoped, tag = 'scratch operand']
  %s0 = inlined_call_operand.vmem [shape: f32[2,10,10,64], index: 0, kind: input, shape index: {}]
  %s1 = inlined_call_operand.vmem [shape: f32[576,128], index: 1, kind: input, shape index: {}]
  %s2 = inlined_call_operand.vmem [shape: f32[1,128], index: 2, kind: input, shape index: {}]
  %s3 = inlined_call_operand.vmem [shape: f32[2,16,128], index: 3, kind: output, shape index: {}]
  %s4 = sld [smem:[#allocation0]]
  $region45: #{net_forward.6} parent=0
    _
  %s6 = ssub.s32 1, %s4
  %s7 = scalar_select 0, %s6, %s4
  loop: start=0, step=1, limit=4
  $region2: #{net_forward.6} parent=0 // loop_pre_header
    _
  $region3: #{net_forward.6} parent=0 // loop_header
    %s9 = sphi 0, %s13
    %p10 = scmp.ge.s32.totalorder %s9, 4
    %s19 = sphi 0, %s21
    %s22 = sphi 0, %s19
    %s23 = sphi 0, %s22
    %s39 = sphi 0, %s23
    %s43 = sphi 0, %s43
    %s45 = sphi 0, %s43
    %s46 = sphi 0, %s45
    %s60 = sphi 0, %s46
    %s64 = sphi 0, %s64
    %s66 = sphi 0, %s64
    %s67 = sphi 0, %s66
    %s81 = sphi 0, %s67
    %s87 = sphi 0, %s89
    %s90 = sphi 0, %s87
    %s91 = sphi 0, %s90
    %s107 = sphi 0, %s91
  $region4: #{net_forward.6} parent=0 // loop_header_branch
    %12 = sbr.rel (%p10) target = $region8
  $region5: #{net_forward.6} parent=0 // loop_body
    %s14 = ssub.s32 %s9, 1
    %s15 = ssub.s32 %s9, 2
    %s16 = sadd.s32 %s9, 1
    %s17 = ssub.s32 %s9, %s16
    %p18 = scmp.eq.s32.totalorder %s17, 0
    %s20 = sadd.s32 %s19, 1
    %s21 = scalar_select %p18, %s19, %s20
    %p24 = pneg %p18
    %p25 = scmp.eq.s32.totalorder %s9, 1
    %p26 = por %p24, %p25
    %p27 = scmp.ne.s32.totalorder %s19, %s22
    %p28 = scmp.eq.s32.totalorder %s9, 0
    %p29 = por %p27, %p28
    %p30 = scmp.ne.s32.totalorder %s19, %s22
    %p31 = scmp.eq.s32.totalorder %s14, 1
    %p32 = por %p30, %p31
    %p33 = scmp.ne.s32.totalorder %s22, %s23
    %p34 = scmp.eq.s32.totalorder %s14, 0
    %p35 = por %p33, %p34
    %p36 = scmp.ne.s32.totalorder %s22, %s23
    %p37 = scmp.eq.s32.totalorder %s15, 1
    %p38 = por %p36, %p37
    %p40 = scmp.ne.s32.totalorder %s23, %s39
    %p41 = scmp.eq.s32.totalorder %s15, 0
    %p42 = por %p40, %p41
    %s44 = sadd.s32 %s43, 1
    %p47 = scmp.eq.s32.totalorder %s9, 1
    %p48 = scmp.ne.s32.totalorder %s43, %s45
    %p49 = scmp.eq.s32.totalorder %s9, 0
    %p50 = por %p48, %p49
    %p51 = scmp.ne.s32.totalorder %s43, %s45
    %p52 = scmp.eq.s32.totalorder %s14, 1
    %p53 = por %p51, %p52
    %p54 = scmp.ne.s32.totalorder %s45, %s46
    %p55 = scmp.eq.s32.totalorder %s14, 0
    %p56 = por %p54, %p55
    %p57 = scmp.ne.s32.totalorder %s45, %s46
    %p58 = scmp.eq.s32.totalorder %s15, 1
    %p59 = por %p57, %p58
    %p61 = scmp.ne.s32.totalorder %s46, %s60
    %p62 = scmp.eq.s32.totalorder %s15, 0
    %p63 = por %p61, %p62
    %s65 = sadd.s32 %s64, 1
    %p68 = scmp.eq.s32.totalorder %s9, 1
    %p69 = scmp.ne.s32.totalorder %s64, %s66
    %p70 = scmp.eq.s32.totalorder %s9, 0
    %p71 = por %p69, %p70
    %p72 = scmp.ne.s32.totalorder %s64, %s66
    %p73 = scmp.eq.s32.totalorder %s14, 1
    %p74 = por %p72, %p73
    %p75 = scmp.ne.s32.totalorder %s66, %s67
    %p76 = scmp.eq.s32.totalorder %s14, 0
    %p77 = por %p75, %p76
    %p78 = scmp.ne.s32.totalorder %s66, %s67
    %p79 = scmp.eq.s32.totalorder %s15, 1
    %p80 = por %p78, %p79
    %p82 = scmp.ne.s32.totalorder %s67, %s81
    %p83 = scmp.eq.s32.totalorder %s15, 0
    %p84 = por %p82, %p83
    %s85 = ssub.s32 %s9, %s16
    %p86 = scmp.eq.s32.totalorder %s85, 0
    %s88 = sadd.s32 %s87, 1
    %s89 = scalar_select %p86, %s87, %s88
    %p92 = pneg %p86
    %p93 = scmp.eq.s32.totalorder %s9, 1
    %p94 = por %p92, %p93
    %p95 = scmp.ne.s32.totalorder %s87, %s90
    %p96 = scmp.eq.s32.totalorder %s9, 0
    %p97 = por %p95, %p96
    %p98 = scmp.ne.s32.totalorder %s87, %s90
    %p99 = scmp.eq.s32.totalorder %s14, 1
    %p100 = por %p98, %p99
    %p101 = scmp.ne.s32.totalorder %s90, %s91
    %p102 = scmp.eq.s32.totalorder %s14, 0
    %p103 = por %p101, %p102
    %p104 = scmp.ne.s32.totalorder %s90, %s91
    %p105 = scmp.eq.s32.totalorder %s15, 1
    %p106 = por %p104, %p105
    %p108 = scmp.ne.s32.totalorder %s91, %s107
    %p109 = scmp.eq.s32.totalorder %s15, 0
    %p110 = por %p108, %p109
    %p111 = scmp.le.s32.totalorder 1, %s9
    %p112 = scmp.lt.s32.totalorder %s9, 3
    %p113 = pnand %p111, %p112
    %p114 = pneg %p113
    // Predicated region
    $region9: #{net_forward.6} parent=5 // pred_check
      _
    $region10: #{net_forward.6} parent=5 // pred_check_branch
      %116 = sbr.rel (%p113) target = $region12
    $region11: #{net_forward.6} parent=5 // pred_region
      %s117 = ssub.s32 %s9, 1
      // Predicated region
      $region13: #{net_forward.6} parent=11 // pred_check
        %p118 = pneg %p56
      $region14: #{net_forward.6} parent=11 // pred_check_branch
        %120 = sbr.rel (%p118) target = $region16
      $region15: #{net_forward.6} parent=11 // pred_region
        _
      $region16: #{net_forward.6} parent=11 // pred_fallthru
        _
      // Predicated region
      $region17: #{net_forward.6} parent=11 // pred_check
        %p121 = pneg %p77
      $region18: #{net_forward.6} parent=11 // pred_check_branch
        %123 = sbr.rel (%p121) target = $region20
      $region19: #{net_forward.6} parent=11 // pred_region
        _
      $region20: #{net_forward.6} parent=11 // pred_fallthru
        _
    $region12: #{net_forward.6} parent=5 // pred_fallthru
      _
    %p124 = scmp.lt.s32.totalorder %s9, 2
    // Predicated region
    $region21: #{net_forward.6} parent=5 // pred_check
      %p125 = pneg %p124
    $region22: #{net_forward.6} parent=5 // pred_check_branch
      %127 = sbr.rel (%p125) target = $region24
    $region23: #{net_forward.6} parent=5 // pred_region
      // Predicated region
      $region25: #{net_forward.6} parent=23 // pred_check
        %p128 = pneg %p29
      $region26: #{net_forward.6} parent=23 // pred_check_branch
        %130 = sbr.rel (%p128) target = $region28
      $region27: #{net_forward.6} parent=23 // pred_region
        %p131 = scmp.lt.s32.totalorder %s9, 1
        %s132 = scalar_select %p131, %s9, 1
        %s133 = smul.addr %s132, 20
        %s134 = smul.addr %s133, 8
        %s135 = scalar_lea.vmem %s0, %s134
      $region28: #{net_forward.6} parent=23 // pred_fallthru
        _
    $region24: #{net_forward.6} parent=5 // pred_fallthru
      _
    %p136 = scmp.le.s32.totalorder 1, %s9
    %p137 = scmp.lt.s32.totalorder %s9, 3
    %p138 = pnand %p136, %p137
    %p139 = pneg %p138
    // Predicated region
    $region29: #{net_forward.6} parent=5 // pred_check
      _
    $region30: #{net_forward.6} parent=5 // pred_check_branch
      %141 = sbr.rel (%p138) target = $region32
    $region31: #{net_forward.6} parent=5 // pred_region
      %s142 = ssub.s32 %s9, 1
      %p143 = scmp.lt.s32.totalorder %s14, 1
      %s144 = scalar_select %p143, %s14, 1
      %s145 = smul.addr %s144, 20
      %s146 = smul.addr %s145, 8
      %s147 = scalar_lea.vmem %s0, %s146
      %p148 = pneg %p35
      %p149 = pneg %p32
      %p150 = pneg %p56
      %p151 = pneg %p53
      %p152 = pneg %p77
      %p153 = pneg %p74
      %p154 = pneg %p103
      %p155 = pneg %p100
      %p156 = scmp.lt.s32.totalorder %s14, 1
      %s157 = scalar_select %p156, %s14, 1
      %s158 = smul.addr %s157, 2
      %s159 = smul.addr %s158, 8
      %s160 = scalar_lea.vmem %s3, %s159
      %p161 = scmp.lt.s32.totalorder %s14, 1
      %s162 = scalar_select %p161, %s14, 1
      %s163 = smul.addr %s162, 20
      %s164 = smul.addr %s163, 8
      %s165 = scalar_lea.vmem %s0, %s164
      %p166 = scmp.lt.s32.totalorder %s14, 1
      %s167 = scalar_select %p166, %s14, 1
      %s168 = smul.addr %s167, 2
      %s169 = smul.addr %s168, 8
      %s170 = scalar_lea.vmem %s3, %s169
      %v171 = vld [vmem:[%s165] sm:$0xff]
      %v172 = vld [vmem:[%s165 + $0x10] sm:$0xff]
      %v173 = vld [vmem:[%s165 + $0x20] sm:$0xff]
      %v174 = vld [vmem:[%s165 + $0x30] sm:$0xff]
      %v175 = vld [vmem:[%s165 + $0x40] sm:$0xff]
      %v176 = vld [vmem:[%s165 + $0x50] sm:$0xff]
      %v177 = vld [vmem:[%s165 + $0x60] sm:$0xff]
      %v178 = vld [vmem:[%s165 + $0x70] sm:$0xff]
      %v179 = vld [vmem:[%s165 + $0x1] sm:$0xff]
      %v180 = vld [vmem:[%s165 + $0x11] sm:$0xff]
      %v181 = vld [vmem:[%s165 + $0x21] sm:$0xff]
      %v182 = vld [vmem:[%s165 + $0x31] sm:$0xff]
      %v183 = vld [vmem:[%s165 + $0x41] sm:$0xff]
      %v184 = vld [vmem:[%s165 + $0x51] sm:$0xff]
      %v185 = vld [vmem:[%s165 + $0x61] sm:$0xff]
      %v186 = vld [vmem:[%s165 + $0x71] sm:$0xff]
      %v187 = vld [vmem:[%s165 + $0x2] sm:$0xff]
      %v188 = vld [vmem:[%s165 + $0x12] sm:$0xff]
      %v189 = vld [vmem:[%s165 + $0x22] sm:$0xff]
      %v190 = vld [vmem:[%s165 + $0x32] sm:$0xff]
      %v191 = vld [vmem:[%s165 + $0x42] sm:$0xff]
      %v192 = vld [vmem:[%s165 + $0x52] sm:$0xff]
      %v193 = vld [vmem:[%s165 + $0x62] sm:$0xff]
      %v194 = vld [vmem:[%s165 + $0x72] sm:$0xff]
      %s195 = scalar_lea.vmem %s165, 16
      %v196 = vld [vmem:[%s195] sm:$0xff]
      %v197 = vld [vmem:[%s195 + $0x10] sm:$0xff]
      %v198 = vld [vmem:[%s195 + $0x20] sm:$0xff]
      %v199 = vld [vmem:[%s195 + $0x30] sm:$0xff]
      %v200 = vld [vmem:[%s195 + $0x40] sm:$0xff]
      %v201 = vld [vmem:[%s195 + $0x50] sm:$0xff]
      %v202 = vld [vmem:[%s195 + $0x60] sm:$0xff]
      %v203 = vld [vmem:[%s195 + $0x70] sm:$0xff]
      %v204 = vld [vmem:[%s195 + $0x1] sm:$0xff]
      %v205 = vld [vmem:[%s195 + $0x11] sm:$0xff]
      %v206 = vld [vmem:[%s195 + $0x21] sm:$0xff]
      %v207 = vld [vmem:[%s195 + $0x31] sm:$0xff]
      %v208 = vld [vmem:[%s195 + $0x41] sm:$0xff]
      %v209 = vld [vmem:[%s195 + $0x51] sm:$0xff]
      %v210 = vld [vmem:[%s195 + $0x61] sm:$0xff]
      %v211 = vld [vmem:[%s195 + $0x71] sm:$0xff]
      %v212 = vld [vmem:[%s195 + $0x2] sm:$0xff]
      %v213 = vld [vmem:[%s195 + $0x12] sm:$0xff]
      %v214 = vld [vmem:[%s195 + $0x22] sm:$0xff]
      %v215 = vld [vmem:[%s195 + $0x32] sm:$0xff]
      %v216 = vld [vmem:[%s195 + $0x42] sm:$0xff]
      %v217 = vld [vmem:[%s195 + $0x52] sm:$0xff]
      %v218 = vld [vmem:[%s195 + $0x62] sm:$0xff]
      %v219 = vld [vmem:[%s195 + $0x72] sm:$0xff]
      %s220 = scalar_lea.vmem %s165, 32
      %v221 = vld [vmem:[%s220] sm:$0xff]
      %v222 = vld [vmem:[%s220 + $0x10] sm:$0xff]
      %v223 = vld [vmem:[%s220 + $0x20] sm:$0xff]
      %v224 = vld [vmem:[%s220 + $0x30] sm:$0xff]
      %v225 = vld [vmem:[%s220 + $0x40] sm:$0xff]
      %v226 = vld [vmem:[%s220 + $0x50] sm:$0xff]
      %v227 = vld [vmem:[%s220 + $0x60] sm:$0xff]
      %v228 = vld [vmem:[%s220 + $0x70] sm:$0xff]
      %v229 = vld [vmem:[%s220 + $0x1] sm:$0xff]
      %v230 = vld [vmem:[%s220 + $0x11] sm:$0xff]
      %v231 = vld [vmem:[%s220 + $0x21] sm:$0xff]
      %v232 = vld [vmem:[%s220 + $0x31] sm:$0xff]
      %v233 = vld [vmem:[%s220 + $0x41] sm:$0xff]
      %v234 = vld [vmem:[%s220 + $0x51] sm:$0xff]
      %v235 = vld [vmem:[%s220 + $0x61] sm:$0xff]
      %v236 = vld [vmem:[%s220 + $0x71] sm:$0xff]
      %v237 = vld [vmem:[%s220 + $0x2] sm:$0xff]
      %v238 = vld [vmem:[%s220 + $0x12] sm:$0xff]
      %v239 = vld [vmem:[%s220 + $0x22] sm:$0xff]
      %v240 = vld [vmem:[%s220 + $0x32] sm:$0xff]
      %v241 = vld [vmem:[%s220 + $0x42] sm:$0xff]
      %v242 = vld [vmem:[%s220 + $0x52] sm:$0xff]
      %v243 = vld [vmem:[%s220 + $0x62] sm:$0xff]
      %v244 = vld [vmem:[%s220 + $0x72] sm:$0xff]
      %253 = vrot.lane.b32.xlu0 %v179, 64
      %v254 = vpop.permute.xlu0 %253
      %255 = vrot.lane.b32.xlu0 %v180, 64
      %v256 = vpop.permute.xlu0 %255
      %257 = vrot.lane.b32.xlu0 %v181, 64
      %v258 = vpop.permute.xlu0 %257
      %259 = vrot.lane.b32.xlu0 %v182, 64
      %v260 = vpop.permute.xlu0 %259
      %261 = vrot.lane.b32.xlu0 %v183, 64
      %v262 = vpop.permute.xlu0 %261
      %263 = vrot.lane.b32.xlu0 %v184, 64
      %v264 = vpop.permute.xlu0 %263
      %265 = vrot.lane.b32.xlu0 %v185, 64
      %v266 = vpop.permute.xlu0 %265
      %267 = vrot.lane.b32.xlu0 %v186, 64
      %v268 = vpop.permute.xlu0 %267
      %285 = vrot.lane.b32.xlu0 %v196, 64
      %v286 = vpop.permute.xlu0 %285
      %287 = vrot.lane.b32.xlu0 %v197, 64
      %v288 = vpop.permute.xlu0 %287
      %289 = vrot.lane.b32.xlu0 %v198, 64
      %v290 = vpop.permute.xlu0 %289
      %291 = vrot.lane.b32.xlu0 %v199, 64
      %v292 = vpop.permute.xlu0 %291
      %293 = vrot.lane.b32.xlu0 %v200, 64
      %v294 = vpop.permute.xlu0 %293
      %295 = vrot.lane.b32.xlu0 %v201, 64
      %v296 = vpop.permute.xlu0 %295
      %297 = vrot.lane.b32.xlu0 %v202, 64
      %v298 = vpop.permute.xlu0 %297
      %299 = vrot.lane.b32.xlu0 %v203, 64
      %v300 = vpop.permute.xlu0 %299
      %317 = vrot.lane.b32.xlu0 %v212, 64
      %v318 = vpop.permute.xlu0 %317
      %319 = vrot.lane.b32.xlu0 %v213, 64
      %v320 = vpop.permute.xlu0 %319
      %321 = vrot.lane.b32.xlu0 %v214, 64
      %v322 = vpop.permute.xlu0 %321
      %323 = vrot.lane.b32.xlu0 %v215, 64
      %v324 = vpop.permute.xlu0 %323
      %325 = vrot.lane.b32.xlu0 %v216, 64
      %v326 = vpop.permute.xlu0 %325
      %327 = vrot.lane.b32.xlu0 %v217, 64
      %v328 = vpop.permute.xlu0 %327
      %329 = vrot.lane.b32.xlu0 %v218, 64
      %v330 = vpop.permute.xlu0 %329
      %331 = vrot.lane.b32.xlu0 %v219, 64
      %v332 = vpop.permute.xlu0 %331
      %349 = vrot.lane.b32.xlu0 %v229, 64
      %v350 = vpop.permute.xlu0 %349
      %351 = vrot.lane.b32.xlu0 %v230, 64
      %v352 = vpop.permute.xlu0 %351
      %353 = vrot.lane.b32.xlu0 %v231, 64
      %v354 = vpop.permute.xlu0 %353
      %355 = vrot.lane.b32.xlu0 %v232, 64
      %v356 = vpop.permute.xlu0 %355
      %357 = vrot.lane.b32.xlu0 %v233, 64
      %v358 = vpop.permute.xlu0 %357
      %359 = vrot.lane.b32.xlu0 %v234, 64
      %v360 = vpop.permute.xlu0 %359
      %361 = vrot.lane.b32.xlu0 %v235, 64
      %v362 = vpop.permute.xlu0 %361
      %363 = vrot.lane.b32.xlu0 %v236, 64
      %v364 = vpop.permute.xlu0 %363
      %vm373 = vcmask 523264
      %v374 = vsel %vm373, %v171, %v254
      %v375 = vsel %vm373, %v172, %v256
      %v376 = vsel %vm373, %v173, %v258
      %v377 = vsel %vm373, %v174, %v260
      %v378 = vsel %vm373, %v175, %v262
      %v379 = vsel %vm373, %v176, %v264
      %v380 = vsel %vm373, %v177, %v266
      %v381 = vsel %vm373, %v178, %v268
      %v382 = vsel %vm373, %v187, %v286
      %v383 = vsel %vm373, %v188, %v288
      %v384 = vsel %vm373, %v189, %v290
      %v385 = vsel %vm373, %v190, %v292
      %v386 = vsel %vm373, %v191, %v294
      %v387 = vsel %vm373, %v192, %v296
      %v388 = vsel %vm373, %v193, %v298
      %v389 = vsel %vm373, %v194, %v300
      %v390 = vsel %vm373, %v204, %v318
      %v391 = vsel %vm373, %v205, %v320
      %v392 = vsel %vm373, %v206, %v322
      %v393 = vsel %vm373, %v207, %v324
      %v394 = vsel %vm373, %v208, %v326
      %v395 = vsel %vm373, %v209, %v328
      %v396 = vsel %vm373, %v210, %v330
      %v397 = vsel %vm373, %v211, %v332
      %v398 = vsel %vm373, %v221, %v350
      %v399 = vsel %vm373, %v222, %v352
      %v400 = vsel %vm373, %v223, %v354
      %v401 = vsel %vm373, %v224, %v356
      %v402 = vsel %vm373, %v225, %v358
      %v403 = vsel %vm373, %v226, %v360
      %v404 = vsel %vm373, %v227, %v362
      %v405 = vsel %vm373, %v228, %v364
      %v406 = vld [vmem:[%s1] sm:$0xff]
      %v407 = vld [vmem:[%s1 + $0x8] sm:$0xff]
      %v408 = vld [vmem:[%s1 + $0x10] sm:$0xff]
      %v409 = vld [vmem:[%s1 + $0x18] sm:$0xff]
      %v410 = vld [vmem:[%s1 + $0x20] sm:$0xff]
      %v411 = vld [vmem:[%s1 + $0x28] sm:$0xff]
      %v412 = vld [vmem:[%s1 + $0x30] sm:$0xff]
      %v413 = vld [vmem:[%s1 + $0x38] sm:$0xff]
      %v414 = vld [vmem:[%s1 + $0x40] sm:$0xff]
      %v415 = vld [vmem:[%s1 + $0x48] sm:$0xff]
      %v416 = vld [vmem:[%s1 + $0x50] sm:$0xff]
      %v417 = vld [vmem:[%s1 + $0x58] sm:$0xff]
      %v418 = vld [vmem:[%s1 + $0x60] sm:$0xff]
      %v419 = vld [vmem:[%s1 + $0x68] sm:$0xff]
      %v420 = vld [vmem:[%s1 + $0x70] sm:$0xff]
      %v421 = vld [vmem:[%s1 + $0x78] sm:$0xff]
      %v422 = vld [vmem:[%s1 + $0x80] sm:$0xff]
      %v423 = vld [vmem:[%s1 + $0x88] sm:$0xff]
      %v424 = vld [vmem:[%s1 + $0x90] sm:$0xff]
      %v425 = vld [vmem:[%s1 + $0x98] sm:$0xff]
      %v426 = vld [vmem:[%s1 + $0xa0] sm:$0xff]
      %v427 = vld [vmem:[%s1 + $0xa8] sm:$0xff]
      %v428 = vld [vmem:[%s1 + $0xb0] sm:$0xff]
      %v429 = vld [vmem:[%s1 + $0xb8] sm:$0xff]
      %v430 = vld [vmem:[%s1 + $0xc0] sm:$0xff]
      %v431 = vld [vmem:[%s1 + $0xc8] sm:$0xff]
      %v432 = vld [vmem:[%s1 + $0xd0] sm:$0xff]
      %v433 = vld [vmem:[%s1 + $0xd8] sm:$0xff]
      %v434 = vld [vmem:[%s1 + $0xe0] sm:$0xff]
      %v435 = vld [vmem:[%s1 + $0xe8] sm:$0xff]
      %v436 = vld [vmem:[%s1 + $0xf0] sm:$0xff]
      %v437 = vld [vmem:[%s1 + $0xf8] sm:$0xff]
      %v438 = vld [vmem:[%s1 + $0x100] sm:$0xff]
      %v439 = vld [vmem:[%s1 + $0x108] sm:$0xff]
      %v440 = vld [vmem:[%s1 + $0x110] sm:$0xff]
      %v441 = vld [vmem:[%s1 + $0x118] sm:$0xff]
      %v442 = vld [vmem:[%s1 + $0x120] sm:$0xff]
      %v443 = vld [vmem:[%s1 + $0x128] sm:$0xff]
      %v444 = vld [vmem:[%s1 + $0x130] sm:$0xff]
      %v445 = vld [vmem:[%s1 + $0x138] sm:$0xff]
      %v446 = vld [vmem:[%s1 + $0x140] sm:$0xff]
      %v447 = vld [vmem:[%s1 + $0x148] sm:$0xff]
      %v448 = vld [vmem:[%s1 + $0x150] sm:$0xff]
      %v449 = vld [vmem:[%s1 + $0x158] sm:$0xff]
      %v450 = vld [vmem:[%s1 + $0x160] sm:$0xff]
      %v451 = vld [vmem:[%s1 + $0x168] sm:$0xff]
      %v452 = vld [vmem:[%s1 + $0x170] sm:$0xff]
      %v453 = vld [vmem:[%s1 + $0x178] sm:$0xff]
      %v454 = vld [vmem:[%s1 + $0x180] sm:$0xff]
      %v455 = vld [vmem:[%s1 + $0x188] sm:$0xff]
      %v456 = vld [vmem:[%s1 + $0x190] sm:$0xff]
      %v457 = vld [vmem:[%s1 + $0x198] sm:$0xff]
      %v458 = vld [vmem:[%s1 + $0x1a0] sm:$0xff]
      %v459 = vld [vmem:[%s1 + $0x1a8] sm:$0xff]
      %v460 = vld [vmem:[%s1 + $0x1b0] sm:$0xff]
      %v461 = vld [vmem:[%s1 + $0x1b8] sm:$0xff]
      %v462 = vld [vmem:[%s1 + $0x1c0] sm:$0xff]
      %v463 = vld [vmem:[%s1 + $0x1c8] sm:$0xff]
      %v464 = vld [vmem:[%s1 + $0x1d0] sm:$0xff]
      %v465 = vld [vmem:[%s1 + $0x1d8] sm:$0xff]
      %v466 = vld [vmem:[%s1 + $0x1e0] sm:$0xff]
      %v467 = vld [vmem:[%s1 + $0x1e8] sm:$0xff]
      %v468 = vld [vmem:[%s1 + $0x1f0] sm:$0xff]
      %v469 = vld [vmem:[%s1 + $0x1f8] sm:$0xff]
      %v470 = vld [vmem:[%s1 + $0x200] sm:$0xff]
      %v471 = vld [vmem:[%s1 + $0x208] sm:$0xff]
      %v472 = vld [vmem:[%s1 + $0x210] sm:$0xff]
      %v473 = vld [vmem:[%s1 + $0x218] sm:$0xff]
      %v474 = vld [vmem:[%s1 + $0x220] sm:$0xff]
      %v475 = vld [vmem:[%s1 + $0x228] sm:$0xff]
      %v476 = vld [vmem:[%s1 + $0x230] sm:$0xff]
      %v477 = vld [vmem:[%s1 + $0x238] sm:$0xff]
      %v478 = vld [vmem:[%s2] sm:$0x1]
      %v480 = vlaneseq
      %v481 = vshrl.u32 %v480, 7
      %v482 = vsub.s32 0, %v481
      %v483 = vrot.slane %v478, %v482
      %v486 = vsel %vm373, %v237, 0
      %v489 = vsel %vm373, %v238, 0
      %v492 = vsel %vm373, %v239, 0
      %v495 = vsel %vm373, %v240, 0
      %v498 = vsel %vm373, %v241, 0
      %v501 = vsel %vm373, %v242, 0
      %v504 = vsel %vm373, %v243, 0
      %v507 = vsel %vm373, %v244, 0
      %509 = vmatprep.subr.mxu0 0.0
      %510 = vmatpush1.msra.mxu0 %v406
      %511 = vmatprep.subr.mxu0 0.0
      %512 = vmatpush1.msra.mxu0 %v407
      %513 = vmatprep.subr.mxu0 0.0
      %514 = vmatpush1.msra.mxu0 %v408
      %515 = vmatprep.subr.mxu0 0.0
      %516 = vmatpush1.msra.mxu0 %v409
      %517 = vmatprep.subr.mxu0 0.0
      %518 = vmatpush1.msra.mxu0 %v410
      %519 = vmatprep.subr.mxu0 0.0
      %520 = vmatpush1.msra.mxu0 %v411
      %521 = vmatprep.subr.mxu0 0.0
      %522 = vmatpush1.msra.mxu0 %v412
      %523 = vmatprep.subr.mxu0 0.0
      %524 = vmatpush1.msra.mxu0 %v413
      %525 = vmatprep.subr.mxu0 0.0
      %526 = vmatpush1.msra.mxu0 %v414
      %527 = vmatprep.subr.mxu0 0.0
      %528 = vmatpush1.msra.mxu0 %v415
      %529 = vmatprep.subr.mxu0 0.0
      %530 = vmatpush1.msra.mxu0 %v416
      %531 = vmatprep.subr.mxu0 0.0
      %532 = vmatpush1.msra.mxu0 %v417
      %533 = vmatprep.subr.mxu0 0.0
      %534 = vmatpush1.msra.mxu0 %v418
      %535 = vmatprep.subr.mxu0 0.0
      %536 = vmatpush1.msra.mxu0 %v419
      %537 = vmatprep.subr.mxu0 0.0
      %538 = vmatpush1.msra.mxu0 %v420
      %539 = vmatprep.subr.mxu0 0.0
      %540 = vmatpush1.msra.mxu0 %v421
      %541 = vmatprep.subr.mxu0 0.0
      %542 = vmatpush1.msra.mxu0 %v422
      %543 = vmatprep.subr.mxu0 0.0
      %544 = vmatpush1.msra.mxu0 %v423
      %545 = vmatprep.subr.mxu0 0.0
      %546 = vmatpush1.msra.mxu0 %v424
      %547 = vmatprep.subr.mxu0 0.0
      %548 = vmatpush1.msra.mxu0 %v425
      %549 = vmatprep.subr.mxu0 0.0
      %550 = vmatpush1.msra.mxu0 %v426
      %551 = vmatprep.subr.mxu0 0.0
      %552 = vmatpush1.msra.mxu0 %v427
      %553 = vmatprep.subr.mxu0 0.0
      %554 = vmatpush1.msra.mxu0 %v428
      %555 = vmatprep.subr.mxu0 0.0
      %556 = vmatpush1.msra.mxu0 %v429
      %557 = vmatprep.subr.mxu0 0.0
      %558 = vmatpush1.msra.mxu0 %v430
      %559 = vmatprep.subr.mxu0 0.0
      %560 = vmatpush1.msra.mxu0 %v431
      %561 = vmatprep.subr.mxu0 0.0
      %562 = vmatpush1.msra.mxu0 %v432
      %563 = vmatprep.subr.mxu0 0.0
      %564 = vmatpush1.msra.mxu0 %v433
      %565 = vmatprep.subr.mxu0 0.0
      %566 = vmatpush1.msra.mxu0 %v434
      %567 = vmatprep.subr.mxu0 0.0
      %568 = vmatpush1.msra.mxu0 %v435
      %569 = vmatprep.subr.mxu0 0.0
      %570 = vmatpush1.msra.mxu0 %v436
      %571 = vmatprep.subr.mxu0 0.0
      %572 = vmatpush1.msra.mxu0 %v437
      %573 = vmatprep.mubr.f32.mxu0 %v382
      %574 = vmatmul.mubr.f32.gmra.mrb[0].mxu0 %v374
      %v575 = vpop.f32.mrb[0].mxu0
      %v576 = vadd.f32 %v483, %v575
      %v577 = vpop.f32.mrb[0].mxu0
      %578 = vmatprep.mubr.f32.mxu0 %v383
      %579 = vmatmul.mubr.f32.gmra.mrb[0].mxu0 %v375
      %v580 = vpop.f32.mrb[0].mxu0
      %v581 = vadd.f32 %v483, %v580
      %v582 = vpop.f32.mrb[0].mxu0
      %583 = vmatprep.mubr.f32.mxu0 %v384
      %584 = vmatmul.mubr.f32.gmra.mrb[0].mxu0 %v376
      %v585 = vpop.f32.mrb[0].mxu0
      %v586 = vadd.f32 %v483, %v585
      %v587 = vpop.f32.mrb[0].mxu0
      %588 = vmatprep.mubr.f32.mxu0 %v385
      %589 = vmatmul.mubr.f32.gmra.mrb[0].mxu0 %v377
      %v590 = vpop.f32.mrb[0].mxu0
      %v591 = vadd.f32 %v483, %v590
      %v592 = vpop.f32.mrb[0].mxu0
      %593 = vmatprep.mubr.f32.mxu0 %v386
      %594 = vmatmul.mubr.f32.gmra.mrb[0].mxu0 %v378
      %v595 = vpop.f32.mrb[0].mxu0
      %v596 = vadd.f32 %v483, %v595
      %v597 = vpop.f32.mrb[0].mxu0
      %598 = vmatprep.mubr.f32.mxu0 %v387
      %599 = vmatmul.mubr.f32.gmra.mrb[0].mxu0 %v379
      %v600 = vpop.f32.mrb[0].mxu0
      %v601 = vadd.f32 %v483, %v600
      %v602 = vpop.f32.mrb[0].mxu0
      %603 = vmatprep.mubr.f32.mxu0 %v388
      %604 = vmatmul.mubr.f32.gmra.mrb[0].mxu0 %v380
      %v605 = vpop.f32.mrb[0].mxu0
      %v606 = vadd.f32 %v483, %v605
      %v607 = vpop.f32.mrb[0].mxu0
      %608 = vmatprep.mubr.f32.mxu0 %v389
      %609 = vmatmul.mubr.f32.gmra.mrb[0].mxu0 %v381
      %v610 = vpop.f32.mrb[0].mxu0
      %v611 = vadd.f32 %v483, %v610
      %v612 = vpop.f32.mrb[0].mxu0
      %613 = vdwg.mxu0
      %614 = vmatprep.subr.mxu0 0.0
      %615 = vmatpush1.msra.mxu0 %v438
      %616 = vmatprep.subr.mxu0 0.0
      %617 = vmatpush1.msra.mxu0 %v439
      %618 = vmatprep.subr.mxu0 0.0
      %619 = vmatpush1.msra.mxu0 %v440
      %620 = vmatprep.subr.mxu0 0.0
      %621 = vmatpush1.msra.mxu0 %v441
      %622 = vmatprep.subr.mxu0 0.0
      %623 = vmatpush1.msra.mxu0 %v442
      %624 = vmatprep.subr.mxu0 0.0
      %625 = vmatpush1.msra.mxu0 %v443
      %626 = vmatprep.subr.mxu0 0.0
      %627 = vmatpush1.msra.mxu0 %v444
      %628 = vmatprep.subr.mxu0 0.0
      %629 = vmatpush1.msra.mxu0 %v445
      %630 = vmatprep.subr.mxu0 0.0
      %631 = vmatpush1.msra.mxu0 %v446
      %632 = vmatprep.subr.mxu0 0.0
      %633 = vmatpush1.msra.mxu0 %v447
      %634 = vmatprep.subr.mxu0 0.0
      %635 = vmatpush1.msra.mxu0 %v448
      %636 = vmatprep.subr.mxu0 0.0
      %637 = vmatpush1.msra.mxu0 %v449
      %638 = vmatprep.subr.mxu0 0.0
      %639 = vmatpush1.msra.mxu0 %v450
      %640 = vmatprep.subr.mxu0 0.0
      %641 = vmatpush1.msra.mxu0 %v451
      %642 = vmatprep.subr.mxu0 0.0
      %643 = vmatpush1.msra.mxu0 %v452
      %644 = vmatprep.subr.mxu0 0.0
      %645 = vmatpush1.msra.mxu0 %v453
      %646 = vmatprep.subr.mxu0 0.0
      %647 = vmatpush1.msra.mxu0 %v454
      %648 = vmatprep.subr.mxu0 0.0
      %649 = vmatpush1.msra.mxu0 %v455
      %650 = vmatprep.subr.mxu0 0.0
      %651 = vmatpush1.msra.mxu0 %v456
      %652 = vmatprep.subr.mxu0 0.0
      %653 = vmatpush1.msra.mxu0 %v457
      %654 = vmatprep.subr.mxu0 0.0
      %655 = vmatpush1.msra.mxu0 %v458
      %656 = vmatprep.subr.mxu0 0.0
      %657 = vmatpush1.msra.mxu0 %v459
      %658 = vmatprep.subr.mxu0 0.0
      %659 = vmatpush1.msra.mxu0 %v460
      %660 = vmatprep.subr.mxu0 0.0
      %661 = vmatpush1.msra.mxu0 %v461
      %662 = vmatprep.subr.mxu0 0.0
      %663 = vmatpush1.msra.mxu0 %v462
      %664 = vmatprep.subr.mxu0 0.0
      %665 = vmatpush1.msra.mxu0 %v463
      %666 = vmatprep.subr.mxu0 0.0
      %667 = vmatpush1.msra.mxu0 %v464
      %668 = vmatprep.subr.mxu0 0.0
      %669 = vmatpush1.msra.mxu0 %v465
      %670 = vmatprep.subr.mxu0 0.0
      %671 = vmatpush1.msra.mxu0 %v466
      %672 = vmatprep.subr.mxu0 0.0
      %673 = vmatpush1.msra.mxu0 %v467
      %674 = vmatprep.subr.mxu0 0.0
      %675 = vmatpush1.msra.mxu0 %v468
      %676 = vmatprep.subr.mxu0 0.0
      %677 = vmatpush1.msra.mxu0 %v469
      %678 = vmatprep.mubr.f32.mxu0 %v398
      %679 = vmatmul.mubr.f32.gmra.mrb[0].mxu0 %v390
      %v680 = vpop.f32.mrb[0].mxu0
      %v681 = vadd.f32 %v576, %v680
      %v682 = vpop.f32.mrb[0].mxu0
      %683 = vmatprep.mubr.f32.mxu0 %v399
      %684 = vmatmul.mubr.f32.gmra.mrb[0].mxu0 %v391
      %v685 = vpop.f32.mrb[0].mxu0
      %v686 = vadd.f32 %v581, %v685
      %v687 = vpop.f32.mrb[0].mxu0
      %688 = vmatprep.mubr.f32.mxu0 %v400
      %689 = vmatmul.mubr.f32.gmra.mrb[0].mxu0 %v392
      %v690 = vpop.f32.mrb[0].mxu0
      %v691 = vadd.f32 %v586, %v690
      %v692 = vpop.f32.mrb[0].mxu0
      %693 = vmatprep.mubr.f32.mxu0 %v401
      %694 = vmatmul.mubr.f32.gmra.mrb[0].mxu0 %v393
      %v695 = vpop.f32.mrb[0].mxu0
      %v696 = vadd.f32 %v591, %v695
      %v697 = vpop.f32.mrb[0].mxu0
      %698 = vmatprep.mubr.f32.mxu0 %v402
      %699 = vmatmul.mubr.f32.gmra.mrb[0].mxu0 %v394
      %v700 = vpop.f32.mrb[0].mxu0
      %v701 = vadd.f32 %v596, %v700
      %v702 = vpop.f32.mrb[0].mxu0
      %703 = vmatprep.mubr.f32.mxu0 %v403
      %704 = vmatmul.mubr.f32.gmra.mrb[0].mxu0 %v395
      %v705 = vpop.f32.mrb[0].mxu0
      %v706 = vadd.f32 %v601, %v705
      %v707 = vpop.f32.mrb[0].mxu0
      %708 = vmatprep.mubr.f32.mxu0 %v404
      %709 = vmatmul.mubr.f32.gmra.mrb[0].mxu0 %v396
      %v710 = vpop.f32.mrb[0].mxu0
      %v711 = vadd.f32 %v606, %v710
      %v712 = vpop.f32.mrb[0].mxu0
      %713 = vmatprep.mubr.f32.mxu0 %v405
      %714 = vmatmul.mubr.f32.gmra.mrb[0].mxu0 %v397
      %v715 = vpop.f32.mrb[0].mxu0
      %v716 = vadd.f32 %v611, %v715
      %v717 = vpop.f32.mrb[0].mxu0
      %718 = vdwg.mxu0
      %719 = vmatprep.subr.mxu0 0.0
      %720 = vmatpush1.msra.mxu0 %v470
      %721 = vmatprep.subr.mxu0 0.0
      %722 = vmatpush1.msra.mxu0 %v471
      %723 = vmatprep.subr.mxu0 0.0
      %724 = vmatpush1.msra.mxu0 %v472
      %725 = vmatprep.subr.mxu0 0.0
      %726 = vmatpush1.msra.mxu0 %v473
      %727 = vmatprep.subr.mxu0 0.0
      %728 = vmatpush1.msra.mxu0 %v474
      %729 = vmatprep.subr.mxu0 0.0
      %730 = vmatpush1.msra.mxu0 %v475
      %731 = vmatprep.subr.mxu0 0.0
      %732 = vmatpush1.msra.mxu0 %v476
      %733 = vmatprep.subr.mxu0 0.0
      %734 = vmatpush1.msra.mxu0 %v477
      %735 = vmatprep.subr.mxu0 0.0
      %736 = vmatpush1.msra.mxu0 0.0
      %737 = vmatprep.subr.mxu0 0.0
      %738 = vmatpush1.msra.mxu0 0.0
      %739 = vmatprep.subr.mxu0 0.0
      %740 = vmatpush1.msra.mxu0 0.0
      %741 = vmatprep.subr.mxu0 0.0
      %742 = vmatpush1.msra.mxu0 0.0
      %743 = vmatprep.subr.mxu0 0.0
      %744 = vmatpush1.msra.mxu0 0.0
      %745 = vmatprep.subr.mxu0 0.0
      %746 = vmatpush1.msra.mxu0 0.0
      %747 = vmatprep.subr.mxu0 0.0
      %748 = vmatpush1.msra.mxu0 0.0
      %749 = vmatprep.subr.mxu0 0.0
      %750 = vmatpush1.msra.mxu0 0.0
      %751 = vmatprep.subr.mxu0 0.0
      %752 = vmatpush1.msra.mxu0 0.0
      %753 = vmatprep.subr.mxu0 0.0
      %754 = vmatpush1.msra.mxu0 0.0
      %755 = vmatprep.subr.mxu0 0.0
      %756 = vmatpush1.msra.mxu0 0.0
      %757 = vmatprep.subr.mxu0 0.0
      %758 = vmatpush1.msra.mxu0 0.0
      %759 = vmatprep.subr.mxu0 0.0
      %760 = vmatpush1.msra.mxu0 0.0
      %761 = vmatprep.subr.mxu0 0.0
      %762 = vmatpush1.msra.mxu0 0.0
      %763 = vmatprep.subr.mxu0 0.0
      %764 = vmatpush1.msra.mxu0 0.0
      %765 = vmatprep.subr.mxu0 0.0
      %766 = vmatpush1.msra.mxu0 0.0
      %767 = vmatprep.subr.mxu0 0.0
      %768 = vmatpush1.msra.mxu0 0.0
      %769 = vmatprep.subr.mxu0 0.0
      %770 = vmatpush1.msra.mxu0 0.0
      %771 = vmatprep.subr.mxu0 0.0
      %772 = vmatpush1.msra.mxu0 0.0
      %773 = vmatprep.subr.mxu0 0.0
      %774 = vmatpush1.msra.mxu0 0.0
      %775 = vmatprep.subr.mxu0 0.0
      %776 = vmatpush1.msra.mxu0 0.0
      %777 = vmatprep.subr.mxu0 0.0
      %778 = vmatpush1.msra.mxu0 0.0
      %779 = vmatprep.subr.mxu0 0.0
      %780 = vmatpush1.msra.mxu0 0.0
      %781 = vmatprep.subr.mxu0 0.0
      %782 = vmatpush1.msra.mxu0 0.0
      %783 = vmatprep.mubr.f32.mxu0 0.0
      %784 = vmatmul.mubr.f32.gmra.mrb[0].mxu0 %v486
      %v785 = vpop.f32.mrb[0].mxu0
      %v786 = vadd.f32 %v681, %v785
      %v787 = vpop.f32.mrb[0].mxu0
      %788 = vmatprep.mubr.f32.mxu0 0.0
      %789 = vmatmul.mubr.f32.gmra.mrb[0].mxu0 %v489
      %v790 = vpop.f32.mrb[0].mxu0
      %v791 = vadd.f32 %v686, %v790
      %v792 = vpop.f32.mrb[0].mxu0
      %793 = vmatprep.mubr.f32.mxu0 0.0
      %794 = vmatmul.mubr.f32.gmra.mrb[0].mxu0 %v492
      %v795 = vpop.f32.mrb[0].mxu0
      %v796 = vadd.f32 %v691, %v795
      %v797 = vpop.f32.mrb[0].mxu0
      %798 = vmatprep.mubr.f32.mxu0 0.0
      %799 = vmatmul.mubr.f32.gmra.mrb[0].mxu0 %v495
      %v800 = vpop.f32.mrb[0].mxu0
      %v801 = vadd.f32 %v696, %v800
      %v802 = vpop.f32.mrb[0].mxu0
      %803 = vmatprep.mubr.f32.mxu0 0.0
      %804 = vmatmul.mubr.f32.gmra.mrb[0].mxu0 %v498
      %v805 = vpop.f32.mrb[0].mxu0
      %v806 = vadd.f32 %v701, %v805
      %v807 = vpop.f32.mrb[0].mxu0
      %808 = vmatprep.mubr.f32.mxu0 0.0
      %809 = vmatmul.mubr.f32.gmra.mrb[0].mxu0 %v501
      %v810 = vpop.f32.mrb[0].mxu0
      %v811 = vadd.f32 %v706, %v810
      %v812 = vpop.f32.mrb[0].mxu0
      %813 = vmatprep.mubr.f32.mxu0 0.0
      %814 = vmatmul.mubr.f32.gmra.mrb[0].mxu0 %v504
      %v815 = vpop.f32.mrb[0].mxu0
      %v816 = vadd.f32 %v711, %v815
      %v817 = vpop.f32.mrb[0].mxu0
      %818 = vmatprep.mubr.f32.mxu0 0.0
      %819 = vmatmul.mubr.f32.gmra.mrb[0].mxu0 %v507
      %v820 = vpop.f32.mrb[0].mxu0
      %v821 = vadd.f32 %v716, %v820
      %v822 = vpop.f32.mrb[0].mxu0
      %823 = vdwg.mxu0
      %v824 = vmax.f32 %v786, 0.0
      %v825 = vmax.f32 %v791, 0.0
      %v826 = vmax.f32 %v796, 0.0
      %v827 = vmax.f32 %v801, 0.0
      %v828 = vmax.f32 %v806, 0.0
      %v829 = vmax.f32 %v811, 0.0
      %v830 = vmax.f32 %v816, 0.0
      %v831 = vmax.f32 %v821, 0.0
      %v832 = vmax.f32 %v824, %v825
      %v833 = vmax.f32 %v826, %v827
      %v834 = vmax.f32 %v828, %v829
      %v835 = vmax.f32 %v830, %v831
      %836 = vst [vmem:[#allocation2] sm:$0xff] %v832
      %837 = vst [vmem:[#allocation2 + $0x8] sm:$0xff] %v833
      %838 = vst [vmem:[#allocation2 + $0x10] sm:$0xff] %v834
      %839 = vst [vmem:[#allocation2 + $0x18] sm:$0xff] %v835
      %v840 = vld [vmem:[#allocation2] ss:$2 sm:$0xff]
      %s841 = scalar_lea.vmem [#allocation2], 16
      %v842 = vld [vmem:[%s841] ss:$2 sm:$0xff]
      %s843 = scalar_lea.vmem [#allocation2], 1
      %v844 = vld [vmem:[%s843] ss:$2 sm:$0xff]
      %s845 = scalar_lea.vmem [#allocation2], 17
      %v846 = vld [vmem:[%s845] ss:$2 sm:$0xff]
      %v847 = vmax.f32 %v840, %v844
      %v848 = vmax.f32 %v842, %v846
      %849 = vst [vmem:[%s170] sm:$0xff] %v847
      %850 = vst [vmem:[%s170 + $0x8] sm:$0xff] %v848
      %p851 = scmp.lt.s32.totalorder %s14, 1
      %s852 = scalar_select %p851, %s14, 1
      %s853 = smul.addr %s852, 2
      %s854 = smul.addr %s853, 8
      %s855 = scalar_lea.vmem %s3, %s854
      // Predicated region
      $region33: #{net_forward.6} parent=31 // pred_check
        %p856 = pneg %p100
      $region34: #{net_forward.6} parent=31 // pred_check_branch
        %858 = sbr.rel (%p856) target = $region36
      $region35: #{net_forward.6} parent=31 // pred_region
        _
      $region36: #{net_forward.6} parent=31 // pred_fallthru
        _
    $region32: #{net_forward.6} parent=5 // pred_fallthru
      _
    %p859 = scmp.le.s32.totalorder 2, %s9
    // Predicated region
    $region37: #{net_forward.6} parent=5 // pred_check
      %p860 = pneg %p859
    $region38: #{net_forward.6} parent=5 // pred_check_branch
      %862 = sbr.rel (%p860) target = $region40
    $region39: #{net_forward.6} parent=5 // pred_region
      %s863 = ssub.s32 %s9, 2
      // Predicated region
      $region41: #{net_forward.6} parent=39 // pred_check
        %p864 = pneg %p106
      $region42: #{net_forward.6} parent=39 // pred_check_branch
        %866 = sbr.rel (%p864) target = $region44
      $region43: #{net_forward.6} parent=39 // pred_region
        %p867 = scmp.lt.s32.totalorder %s15, 1
        %s868 = scalar_select %p867, %s15, 1
        %s869 = smul.addr %s868, 2
        %s870 = smul.addr %s869, 8
        %s871 = scalar_lea.vmem %s3, %s870
      $region44: #{net_forward.6} parent=39 // pred_fallthru
        _
    $region40: #{net_forward.6} parent=5 // pred_fallthru
      _
  $region6: #{net_forward.6} parent=0 // loop_footer
    %s13 = sadd.s32 1, %s9
  $region7: #{net_forward.6} parent=0 // loop_footer_branch
    %8 = sbr.rel target = $region3
  $region8: #{net_forward.6} parent=0 // loop_exit
    _

// kernel: net_forward.5
$region0: #{net_forward.5}
  #allocation0 [shape = 'u32[]', space=smem, size = 0x4, offset = 0x4, fixed_abs, tag = 'smem constant byte address 0x4 - core index']
  #allocation1 [shape = 'u32[144,128]{1,0:T(1,128)}', space=vmem, size = 0x12000, scoped, tag = 'internal scratch']
  #allocation2 [shape = 'f32[128,64]{1,0:T(8,128)}', space=vmem, size = 0x10000, scoped, tag = 'scratch operand']
  %s0 = inlined_call_operand.vmem [shape: f32[2,18,18,32], index: 0, kind: input, shape index: {}]
  %s1 = inlined_call_operand.vmem [shape: f32[288,64], index: 1, kind: input, shape index: {}]
  %s2 = inlined_call_operand.vmem [shape: f32[1,64], index: 2, kind: input, shape index: {}]
  %s3 = inlined_call_operand.vmem [shape: f32[2,64,64], index: 3, kind: output, shape index: {}]
  %s4 = sld [smem:[#allocation0]]
  $region45: #{net_forward.5} parent=0
    _
  %s6 = ssub.s32 1, %s4
  %s7 = scalar_select 0, %s6, %s4
  loop: start=0, step=1, limit=4
  $region2: #{net_forward.5} parent=0 // loop_pre_header
    _
  $region3: #{net_forward.5} parent=0 // loop_header
    %s9 = sphi 0, %s13
    %p10 = scmp.ge.s32.totalorder %s9, 4
    %s19 = sphi 0, %s21
    %s22 = sphi 0, %s19
    %s23 = sphi 0, %s22
    %s39 = sphi 0, %s23
    %s43 = sphi 0, %s43
    %s45 = sphi 0, %s43
    %s46 = sphi 0, %s45
    %s60 = sphi 0, %s46
    %s64 = sphi 0, %s64
    %s66 = sphi 0, %s64
    %s67 = sphi 0, %s66
    %s81 = sphi 0, %s67
    %s87 = sphi 0, %s89
    %s90 = sphi 0, %s87
    %s91 = sphi 0, %s90
    %s107 = sphi 0, %s91
  $region4: #{net_forward.5} parent=0 // loop_header_branch
    %12 = sbr.rel (%p10) target = $region8
  $region5: #{net_forward.5} parent=0 // loop_body
    %s14 = ssub.s32 %s9, 1
    %s15 = ssub.s32 %s9, 2
    %s16 = sadd.s32 %s9, 1
    %s17 = ssub.s32 %s9, %s16
    %p18 = scmp.eq.s32.totalorder %s17, 0
    %s20 = sadd.s32 %s19, 1
    %s21 = scalar_select %p18, %s19, %s20
    %p24 = pneg %p18
    %p25 = scmp.eq.s32.totalorder %s9, 1
    %p26 = por %p24, %p25
    %p27 = scmp.ne.s32.totalorder %s19, %s22
    %p28 = scmp.eq.s32.totalorder %s9, 0
    %p29 = por %p27, %p28
    %p30 = scmp.ne.s32.totalorder %s19, %s22
    %p31 = scmp.eq.s32.totalorder %s14, 1
    %p32 = por %p30, %p31
    %p33 = scmp.ne.s32.totalorder %s22, %s23
    %p34 = scmp.eq.s32.totalorder %s14, 0
    %p35 = por %p33, %p34
    %p36 = scmp.ne.s32.totalorder %s22, %s23
    %p37 = scmp.eq.s32.totalorder %s15, 1
    %p38 = por %p36, %p37
    %p40 = scmp.ne.s32.totalorder %s23, %s39
    %p41 = scmp.eq.s32.totalorder %s15, 0
    %p42 = por %p40, %p41
    %s44 = sadd.s32 %s43, 1
    %p47 = scmp.eq.s32.totalorder %s9, 1
    %p48 = scmp.ne.s32.totalorder %s43, %s45
    %p49 = scmp.eq.s32.totalorder %s9, 0
    %p50 = por %p48, %p49
    %p51 = scmp.ne.s32.totalorder %s43, %s45
    %p52 = scmp.eq.s32.totalorder %s14, 1
    %p53 = por %p51, %p52
    %p54 = scmp.ne.s32.totalorder %s45, %s46
    %p55 = scmp.eq.s32.totalorder %s14, 0
    %p56 = por %p54, %p55
    %p57 = scmp.ne.s32.totalorder %s45, %s46
    %p58 = scmp.eq.s32.totalorder %s15, 1
    %p59 = por %p57, %p58
    %p61 = scmp.ne.s32.totalorder %s46, %s60
    %p62 = scmp.eq.s32.totalorder %s15, 0
    %p63 = por %p61, %p62
    %s65 = sadd.s32 %s64, 1
    %p68 = scmp.eq.s32.totalorder %s9, 1
    %p69 = scmp.ne.s32.totalorder %s64, %s66
    %p70 = scmp.eq.s32.totalorder %s9, 0
    %p71 = por %p69, %p70
    %p72 = scmp.ne.s32.totalorder %s64, %s66
    %p73 = scmp.eq.s32.totalorder %s14, 1
    %p74 = por %p72, %p73
    %p75 = scmp.ne.s32.totalorder %s66, %s67
    %p76 = scmp.eq.s32.totalorder %s14, 0
    %p77 = por %p75, %p76
    %p78 = scmp.ne.s32.totalorder %s66, %s67
    %p79 = scmp.eq.s32.totalorder %s15, 1
    %p80 = por %p78, %p79
    %p82 = scmp.ne.s32.totalorder %s67, %s81
    %p83 = scmp.eq.s32.totalorder %s15, 0
    %p84 = por %p82, %p83
    %s85 = ssub.s32 %s9, %s16
    %p86 = scmp.eq.s32.totalorder %s85, 0
    %s88 = sadd.s32 %s87, 1
    %s89 = scalar_select %p86, %s87, %s88
    %p92 = pneg %p86
    %p93 = scmp.eq.s32.totalorder %s9, 1
    %p94 = por %p92, %p93
    %p95 = scmp.ne.s32.totalorder %s87, %s90
    %p96 = scmp.eq.s32.totalorder %s9, 0
    %p97 = por %p95, %p96
    %p98 = scmp.ne.s32.totalorder %s87, %s90
    %p99 = scmp.eq.s32.totalorder %s14, 1
    %p100 = por %p98, %p99
    %p101 = scmp.ne.s32.totalorder %s90, %s91
    %p102 = scmp.eq.s32.totalorder %s14, 0
    %p103 = por %p101, %p102
    %p104 = scmp.ne.s32.totalorder %s90, %s91
    %p105 = scmp.eq.s32.totalorder %s15, 1
    %p106 = por %p104, %p105
    %p108 = scmp.ne.s32.totalorder %s91, %s107
    %p109 = scmp.eq.s32.totalorder %s15, 0
    %p110 = por %p108, %p109
    %p111 = scmp.le.s32.totalorder 1, %s9
    %p112 = scmp.lt.s32.totalorder %s9, 3
    %p113 = pnand %p111, %p112
    %p114 = pneg %p113
    // Predicated region
    $region9: #{net_forward.5} parent=5 // pred_check
      _
    $region10: #{net_forward.5} parent=5 // pred_check_branch
      %116 = sbr.rel (%p113) target = $region12
    $region11: #{net_forward.5} parent=5 // pred_region
      %s117 = ssub.s32 %s9, 1
      // Predicated region
      $region13: #{net_forward.5} parent=11 // pred_check
        %p118 = pneg %p56
      $region14: #{net_forward.5} parent=11 // pred_check_branch
        %120 = sbr.rel (%p118) target = $region16
      $region15: #{net_forward.5} parent=11 // pred_region
        _
      $region16: #{net_forward.5} parent=11 // pred_fallthru
        _
      // Predicated region
      $region17: #{net_forward.5} parent=11 // pred_check
        %p121 = pneg %p77
      $region18: #{net_forward.5} parent=11 // pred_check_branch
        %123 = sbr.rel (%p121) target = $region20
      $region19: #{net_forward.5} parent=11 // pred_region
        _
      $region20: #{net_forward.5} parent=11 // pred_fallthru
        _
    $region12: #{net_forward.5} parent=5 // pred_fallthru
      _
    %p124 = scmp.lt.s32.totalorder %s9, 2
    // Predicated region
    $region21: #{net_forward.5} parent=5 // pred_check
      %p125 = pneg %p124
    $region22: #{net_forward.5} parent=5 // pred_check_branch
      %127 = sbr.rel (%p125) target = $region24
    $region23: #{net_forward.5} parent=5 // pred_region
      // Predicated region
      $region25: #{net_forward.5} parent=23 // pred_check
        %p128 = pneg %p29
      $region26: #{net_forward.5} parent=23 // pred_check_branch
        %130 = sbr.rel (%p128) target = $region28
      $region27: #{net_forward.5} parent=23 // pred_region
        %p131 = scmp.lt.s32.totalorder %s9, 1
        %s132 = scalar_select %p131, %s9, 1
        %s133 = smul.addr %s132, 54
        %s134 = smul.addr %s133, 8
        %s135 = scalar_lea.vmem %s0, %s134
      $region28: #{net_forward.5} parent=23 // pred_fallthru
        _
    $region24: #{net_forward.5} parent=5 // pred_fallthru
      _
    %p136 = scmp.le.s32.totalorder 1, %s9
    %p137 = scmp.lt.s32.totalorder %s9, 3
    %p138 = pnand %p136, %p137
    %p139 = pneg %p138
    // Predicated region
    $region29: #{net_forward.5} parent=5 // pred_check
      _
    $region30: #{net_forward.5} parent=5 // pred_check_branch
      %141 = sbr.rel (%p138) target = $region32
    $region31: #{net_forward.5} parent=5 // pred_region
      %s142 = ssub.s32 %s9, 1
      %p143 = scmp.lt.s32.totalorder %s14, 1
      %s144 = scalar_select %p143, %s14, 1
      %s145 = smul.addr %s144, 54
      %s146 = smul.addr %s145, 8
      %s147 = scalar_lea.vmem %s0, %s146
      %p148 = pneg %p35
      %p149 = pneg %p32
      %p150 = pneg %p56
      %p151 = pneg %p53
      %p152 = pneg %p77
      %p153 = pneg %p74
      %p154 = pneg %p103
      %p155 = pneg %p100
      %p156 = scmp.lt.s32.totalorder %s14, 1
      %s157 = scalar_select %p156, %s14, 1
      %s158 = smul.addr %s157, 8
      %s159 = smul.addr %s158, 8
      %s160 = scalar_lea.vmem %s3, %s159
      %p161 = scmp.lt.s32.totalorder %s14, 1
      %s162 = scalar_select %p161, %s14, 1
      %s163 = smul.addr %s162, 54
      %s164 = smul.addr %s163, 8
      %s165 = scalar_lea.vmem %s0, %s164
      %p166 = scmp.lt.s32.totalorder %s14, 1
      %s167 = scalar_select %p166, %s14, 1
      %s168 = smul.addr %s167, 8
      %s169 = smul.addr %s168, 8
      %s170 = scalar_lea.vmem %s3, %s169
      %v171 = vld [vmem:[%s165] sm:$0xff]
      %v172 = vld [vmem:[%s165 + $0x8] sm:$0xff]
      %v173 = vld [vmem:[%s165 + $0x18] sm:$0xff]
      %v174 = vld [vmem:[%s165 + $0x20] sm:$0xff]
      %v175 = vld [vmem:[%s165 + $0x30] sm:$0xff]
      %v176 = vld [vmem:[%s165 + $0x38] sm:$0xff]
      %v177 = vld [vmem:[%s165 + $0x48] sm:$0xff]
      %v178 = vld [vmem:[%s165 + $0x50] sm:$0xff]
      %v179 = vld [vmem:[%s165 + $0x60] sm:$0xff]
      %v180 = vld [vmem:[%s165 + $0x68] sm:$0xff]
      %v181 = vld [vmem:[%s165 + $0x78] sm:$0xff]
      %v182 = vld [vmem:[%s165 + $0x80] sm:$0xff]
      %v183 = vld [vmem:[%s165 + $0x90] sm:$0xff]
      %v184 = vld [vmem:[%s165 + $0x98] sm:$0xff]
      %v185 = vld [vmem:[%s165 + $0xa8] sm:$0xff]
      %v186 = vld [vmem:[%s165 + $0xb0] sm:$0xff]
      %v187 = vld [vmem:[%s165 + $0xc0] sm:$0xff]
      %v188 = vld [vmem:[%s165 + $0xc8] sm:$0xff]
      %v189 = vld [vmem:[%s165 + $0xd8] sm:$0xff]
      %v190 = vld [vmem:[%s165 + $0xe0] sm:$0xff]
      %v191 = vld [vmem:[%s165 + $0xf0] sm:$0xff]
      %v192 = vld [vmem:[%s165 + $0xf8] sm:$0xff]
      %v193 = vld [vmem:[%s165 + $0x108] sm:$0xff]
      %v194 = vld [vmem:[%s165 + $0x110] sm:$0xff]
      %v195 = vld [vmem:[%s165 + $0x120] sm:$0xff]
      %v196 = vld [vmem:[%s165 + $0x128] sm:$0xff]
      %v197 = vld [vmem:[%s165 + $0x138] sm:$0xff]
      %v198 = vld [vmem:[%s165 + $0x140] sm:$0xff]
      %v199 = vld [vmem:[%s165 + $0x150] sm:$0xff]
      %v200 = vld [vmem:[%s165 + $0x158] sm:$0xff]
      %v201 = vld [vmem:[%s165 + $0x168] sm:$0xff]
      %v202 = vld [vmem:[%s165 + $0x170] sm:$0xff]
      %v203 = vld [vmem:[%s165 + $0x1] sm:$0xff]
      %v204 = vld [vmem:[%s165 + $0x9] sm:$0xff]
      %v205 = vld [vmem:[%s165 + $0x19] sm:$0xff]
      %v206 = vld [vmem:[%s165 + $0x21] sm:$0xff]
      %v207 = vld [vmem:[%s165 + $0x31] sm:$0xff]
      %v208 = vld [vmem:[%s165 + $0x39] sm:$0xff]
      %v209 = vld [vmem:[%s165 + $0x49] sm:$0xff]
      %v210 = vld [vmem:[%s165 + $0x51] sm:$0xff]
      %v211 = vld [vmem:[%s165 + $0x61] sm:$0xff]
      %v212 = vld [vmem:[%s165 + $0x69] sm:$0xff]
      %v213 = vld [vmem:[%s165 + $0x79] sm:$0xff]
      %v214 = vld [vmem:[%s165 + $0x81] sm:$0xff]
      %v215 = vld [vmem:[%s165 + $0x91] sm:$0xff]
      %v216 = vld [vmem:[%s165 + $0x99] sm:$0xff]
      %v217 = vld [vmem:[%s165 + $0xa9] sm:$0xff]
      %v218 = vld [vmem:[%s165 + $0xb1] sm:$0xff]
      %v219 = vld [vmem:[%s165 + $0xc1] sm:$0xff]
      %v220 = vld [vmem:[%s165 + $0xc9] sm:$0xff]
      %v221 = vld [vmem:[%s165 + $0xd9] sm:$0xff]
      %v222 = vld [vmem:[%s165 + $0xe1] sm:$0xff]
      %v223 = vld [vmem:[%s165 + $0xf1] sm:$0xff]
      %v224 = vld [vmem:[%s165 + $0xf9] sm:$0xff]
      %v225 = vld [vmem:[%s165 + $0x109] sm:$0xff]
      %v226 = vld [vmem:[%s165 + $0x111] sm:$0xff]
      %v227 = vld [vmem:[%s165 + $0x121] sm:$0xff]
      %v228 = vld [vmem:[%s165 + $0x129] sm:$0xff]
      %v229 = vld [vmem:[%s165 + $0x139] sm:$0xff]
      %v230 = vld [vmem:[%s165 + $0x141] sm:$0xff]
      %v231 = vld [vmem:[%s165 + $0x151] sm:$0xff]
      %v232 = vld [vmem:[%s165 + $0x159] sm:$0xff]
      %v233 = vld [vmem:[%s165 + $0x169] sm:$0xff]
      %v234 = vld [vmem:[%s165 + $0x171] sm:$0xff]
      %v235 = vld [vmem:[%s165 + $0x2] sm:$0xff]
      %v236 = vld [vmem:[%s165 + $0xa] sm:$0xff]
      %v237 = vld [vmem:[%s165 + $0x1a] sm:$0xff]
      %v238 = vld [vmem:[%s165 + $0x22] sm:$0xff]
      %v239 = vld [vmem:[%s165 + $0x32] sm:$0xff]
      %v240 = vld [vmem:[%s165 + $0x3a] sm:$0xff]
      %v241 = vld [vmem:[%s165 + $0x4a] sm:$0xff]
      %v242 = vld [vmem:[%s165 + $0x52] sm:$0xff]
      %v243 = vld [vmem:[%s165 + $0x62] sm:$0xff]
      %v244 = vld [vmem:[%s165 + $0x6a] sm:$0xff]
      %v245 = vld [vmem:[%s165 + $0x7a] sm:$0xff]
      %v246 = vld [vmem:[%s165 + $0x82] sm:$0xff]
      %v247 = vld [vmem:[%s165 + $0x92] sm:$0xff]
      %v248 = vld [vmem:[%s165 + $0x9a] sm:$0xff]
      %v249 = vld [vmem:[%s165 + $0xaa] sm:$0xff]
      %v250 = vld [vmem:[%s165 + $0xb2] sm:$0xff]
      %v251 = vld [vmem:[%s165 + $0xc2] sm:$0xff]
      %v252 = vld [vmem:[%s165 + $0xca] sm:$0xff]
      %v253 = vld [vmem:[%s165 + $0xda] sm:$0xff]
      %v254 = vld [vmem:[%s165 + $0xe2] sm:$0xff]
      %v255 = vld [vmem:[%s165 + $0xf2] sm:$0xff]
      %v256 = vld [vmem:[%s165 + $0xfa] sm:$0xff]
      %v257 = vld [vmem:[%s165 + $0x10a] sm:$0xff]
      %v258 = vld [vmem:[%s165 + $0x112] sm:$0xff]
      %v259 = vld [vmem:[%s165 + $0x122] sm:$0xff]
      %v260 = vld [vmem:[%s165 + $0x12a] sm:$0xff]
      %v261 = vld [vmem:[%s165 + $0x13a] sm:$0xff]
      %v262 = vld [vmem:[%s165 + $0x142] sm:$0xff]
      %v263 = vld [vmem:[%s165 + $0x152] sm:$0xff]
      %v264 = vld [vmem:[%s165 + $0x15a] sm:$0xff]
      %v265 = vld [vmem:[%s165 + $0x16a] sm:$0xff]
      %v266 = vld [vmem:[%s165 + $0x172] sm:$0xff]
      %s267 = scalar_lea.vmem %s165, 24
      %v268 = vld [vmem:[%s267] sm:$0xff]
      %v269 = vld [vmem:[%s267 + $0x8] sm:$0xff]
      %v270 = vld [vmem:[%s267 + $0x18] sm:$0xff]
      %v271 = vld [vmem:[%s267 + $0x20] sm:$0xff]
      %v272 = vld [vmem:[%s267 + $0x30] sm:$0xff]
      %v273 = vld [vmem:[%s267 + $0x38] sm:$0xff]
      %v274 = vld [vmem:[%s267 + $0x48] sm:$0xff]
      %v275 = vld [vmem:[%s267 + $0x50] sm:$0xff]
      %v276 = vld [vmem:[%s267 + $0x60] sm:$0xff]
      %v277 = vld [vmem:[%s267 + $0x68] sm:$0xff]
      %v278 = vld [vmem:[%s267 + $0x78] sm:$0xff]
      %v279 = vld [vmem:[%s267 + $0x80] sm:$0xff]
      %v280 = vld [vmem:[%s267 + $0x90] sm:$0xff]
      %v281 = vld [vmem:[%s267 + $0x98] sm:$0xff]
      %v282 = vld [vmem:[%s267 + $0xa8] sm:$0xff]
      %v283 = vld [vmem:[%s267 + $0xb0] sm:$0xff]
      %v284 = vld [vmem:[%s267 + $0xc0] sm:$0xff]
      %v285 = vld [vmem:[%s267 + $0xc8] sm:$0xff]
      %v286 = vld [vmem:[%s267 + $0xd8] sm:$0xff]
      %v287 = vld [vmem:[%s267 + $0xe0] sm:$0xff]
      %v288 = vld [vmem:[%s267 + $0xf0] sm:$0xff]
      %v289 = vld [vmem:[%s267 + $0xf8] sm:$0xff]
      %v290 = vld [vmem:[%s267 + $0x108] sm:$0xff]
      %v291 = vld [vmem:[%s267 + $0x110] sm:$0xff]
      %v292 = vld [vmem:[%s267 + $0x120] sm:$0xff]
      %v293 = vld [vmem:[%s267 + $0x128] sm:$0xff]
      %v294 = vld [vmem:[%s267 + $0x138] sm:$0xff]
      %v295 = vld [vmem:[%s267 + $0x140] sm:$0xff]
      %v296 = vld [vmem:[%s267 + $0x150] sm:$0xff]
      %v297 = vld [vmem:[%s267 + $0x158] sm:$0xff]
      %v298 = vld [vmem:[%s267 + $0x168] sm:$0xff]
      %v299 = vld [vmem:[%s267 + $0x170] sm:$0xff]
      %v300 = vld [vmem:[%s267 + $0x1] sm:$0xff]
      %v301 = vld [vmem:[%s267 + $0x9] sm:$0xff]
      %v302 = vld [vmem:[%s267 + $0x19] sm:$0xff]
      %v303 = vld [vmem:[%s267 + $0x21] sm:$0xff]
      %v304 = vld [vmem:[%s267 + $0x31] sm:$0xff]
      %v305 = vld [vmem:[%s267 + $0x39] sm:$0xff]
      %v306 = vld [vmem:[%s267 + $0x49] sm:$0xff]
      %v307 = vld [vmem:[%s267 + $0x51] sm:$0xff]
      %v308 = vld [vmem:[%s267 + $0x61] sm:$0xff]
      %v309 = vld [vmem:[%s267 + $0x69] sm:$0xff]
      %v310 = vld [vmem:[%s267 + $0x79] sm:$0xff]
      %v311 = vld [vmem:[%s267 + $0x81] sm:$0xff]
      %v312 = vld [vmem:[%s267 + $0x91] sm:$0xff]
      %v313 = vld [vmem:[%s267 + $0x99] sm:$0xff]
      %v314 = vld [vmem:[%s267 + $0xa9] sm:$0xff]
      %v315 = vld [vmem:[%s267 + $0xb1] sm:$0xff]
      %v316 = vld [vmem:[%s267 + $0xc1] sm:$0xff]
      %v317 = vld [vmem:[%s267 + $0xc9] sm:$0xff]
      %v318 = vld [vmem:[%s267 + $0xd9] sm:$0xff]
      %v319 = vld [vmem:[%s267 + $0xe1] sm:$0xff]
      %v320 = vld [vmem:[%s267 + $0xf1] sm:$0xff]
      %v321 = vld [vmem:[%s267 + $0xf9] sm:$0xff]
      %v322 = vld [vmem:[%s267 + $0x109] sm:$0xff]
      %v323 = vld [vmem:[%s267 + $0x111] sm:$0xff]
      %v324 = vld [vmem:[%s267 + $0x121] sm:$0xff]
      %v325 = vld [vmem:[%s267 + $0x129] sm:$0xff]
      %v326 = vld [vmem:[%s267 + $0x139] sm:$0xff]
      %v327 = vld [vmem:[%s267 + $0x141] sm:$0xff]
      %v328 = vld [vmem:[%s267 + $0x151] sm:$0xff]
      %v329 = vld [vmem:[%s267 + $0x159] sm:$0xff]
      %v330 = vld [vmem:[%s267 + $0x169] sm:$0xff]
      %v331 = vld [vmem:[%s267 + $0x171] sm:$0xff]
      %v332 = vld [vmem:[%s267 + $0x2] sm:$0xff]
      %v333 = vld [vmem:[%s267 + $0xa] sm:$0xff]
      %v334 = vld [vmem:[%s267 + $0x1a] sm:$0xff]
      %v335 = vld [vmem:[%s267 + $0x22] sm:$0xff]
      %v336 = vld [vmem:[%s267 + $0x32] sm:$0xff]
      %v337 = vld [vmem:[%s267 + $0x3a] sm:$0xff]
      %v338 = vld [vmem:[%s267 + $0x4a] sm:$0xff]
      %v339 = vld [vmem:[%s267 + $0x52] sm:$0xff]
      %v340 = vld [vmem:[%s267 + $0x62] sm:$0xff]
      %v341 = vld [vmem:[%s267 + $0x6a] sm:$0xff]
      %v342 = vld [vmem:[%s267 + $0x7a] sm:$0xff]
      %v343 = vld [vmem:[%s267 + $0x82] sm:$0xff]
      %v344 = vld [vmem:[%s267 + $0x92] sm:$0xff]
      %v345 = vld [vmem:[%s267 + $0x9a] sm:$0xff]
      %v346 = vld [vmem:[%s267 + $0xaa] sm:$0xff]
      %v347 = vld [vmem:[%s267 + $0xb2] sm:$0xff]
      %v348 = vld [vmem:[%s267 + $0xc2] sm:$0xff]
      %v349 = vld [vmem:[%s267 + $0xca] sm:$0xff]
      %v350 = vld [vmem:[%s267 + $0xda] sm:$0xff]
      %v351 = vld [vmem:[%s267 + $0xe2] sm:$0xff]
      %v352 = vld [vmem:[%s267 + $0xf2] sm:$0xff]
      %v353 = vld [vmem:[%s267 + $0xfa] sm:$0xff]
      %v354 = vld [vmem:[%s267 + $0x10a] sm:$0xff]
      %v355 = vld [vmem:[%s267 + $0x112] sm:$0xff]
      %v356 = vld [vmem:[%s267 + $0x122] sm:$0xff]
      %v357 = vld [vmem:[%s267 + $0x12a] sm:$0xff]
      %v358 = vld [vmem:[%s267 + $0x13a] sm:$0xff]
      %v359 = vld [vmem:[%s267 + $0x142] sm:$0xff]
      %v360 = vld [vmem:[%s267 + $0x152] sm:$0xff]
      %v361 = vld [vmem:[%s267 + $0x15a] sm:$0xff]
      %v362 = vld [vmem:[%s267 + $0x16a] sm:$0xff]
      %v363 = vld [vmem:[%s267 + $0x172] sm:$0xff]
      %s364 = scalar_lea.vmem %s165, 48
      %v365 = vld [vmem:[%s364] sm:$0xff]
      %v366 = vld [vmem:[%s364 + $0x8] sm:$0xff]
      %v367 = vld [vmem:[%s364 + $0x18] sm:$0xff]
      %v368 = vld [vmem:[%s364 + $0x20] sm:$0xff]
      %v369 = vld [vmem:[%s364 + $0x30] sm:$0xff]
      %v370 = vld [vmem:[%s364 + $0x38] sm:$0xff]
      %v371 = vld [vmem:[%s364 + $0x48] sm:$0xff]
      %v372 = vld [vmem:[%s364 + $0x50] sm:$0xff]
      %v373 = vld [vmem:[%s364 + $0x60] sm:$0xff]
      %v374 = vld [vmem:[%s364 + $0x68] sm:$0xff]
      %v375 = vld [vmem:[%s364 + $0x78] sm:$0xff]
      %v376 = vld [vmem:[%s364 + $0x80] sm:$0xff]
      %v377 = vld [vmem:[%s364 + $0x90] sm:$0xff]
      %v378 = vld [vmem:[%s364 + $0x98] sm:$0xff]
      %v379 = vld [vmem:[%s364 + $0xa8] sm:$0xff]
      %v380 = vld [vmem:[%s364 + $0xb0] sm:$0xff]
      %v381 = vld [vmem:[%s364 + $0xc0] sm:$0xff]
      %v382 = vld [vmem:[%s364 + $0xc8] sm:$0xff]
      %v383 = vld [vmem:[%s364 + $0xd8] sm:$0xff]
      %v384 = vld [vmem:[%s364 + $0xe0] sm:$0xff]
      %v385 = vld [vmem:[%s364 + $0xf0] sm:$0xff]
      %v386 = vld [vmem:[%s364 + $0xf8] sm:$0xff]
      %v387 = vld [vmem:[%s364 + $0x108] sm:$0xff]
      %v388 = vld [vmem:[%s364 + $0x110] sm:$0xff]
      %v389 = vld [vmem:[%s364 + $0x120] sm:$0xff]
      %v390 = vld [vmem:[%s364 + $0x128] sm:$0xff]
      %v391 = vld [vmem:[%s364 + $0x138] sm:$0xff]
      %v392 = vld [vmem:[%s364 + $0x140] sm:$0xff]
      %v393 = vld [vmem:[%s364 + $0x150] sm:$0xff]
      %v394 = vld [vmem:[%s364 + $0x158] sm:$0xff]
      %v395 = vld [vmem:[%s364 + $0x168] sm:$0xff]
      %v396 = vld [vmem:[%s364 + $0x170] sm:$0xff]
      %v397 = vld [vmem:[%s364 + $0x1] sm:$0xff]
      %v398 = vld [vmem:[%s364 + $0x9] sm:$0xff]
      %v399 = vld [vmem:[%s364 + $0x19] sm:$0xff]
      %v400 = vld [vmem:[%s364 + $0x21] sm:$0xff]
      %v401 = vld [vmem:[%s364 + $0x31] sm:$0xff]
      %v402 = vld [vmem:[%s364 + $0x39] sm:$0xff]
      %v403 = vld [vmem:[%s364 + $0x49] sm:$0xff]
      %v404 = vld [vmem:[%s364 + $0x51] sm:$0xff]
      %v405 = vld [vmem:[%s364 + $0x61] sm:$0xff]
      %v406 = vld [vmem:[%s364 + $0x69] sm:$0xff]
      %v407 = vld [vmem:[%s364 + $0x79] sm:$0xff]
      %v408 = vld [vmem:[%s364 + $0x81] sm:$0xff]
      %v409 = vld [vmem:[%s364 + $0x91] sm:$0xff]
      %v410 = vld [vmem:[%s364 + $0x99] sm:$0xff]
      %v411 = vld [vmem:[%s364 + $0xa9] sm:$0xff]
      %v412 = vld [vmem:[%s364 + $0xb1] sm:$0xff]
      %v413 = vld [vmem:[%s364 + $0xc1] sm:$0xff]
      %v414 = vld [vmem:[%s364 + $0xc9] sm:$0xff]
      %v415 = vld [vmem:[%s364 + $0xd9] sm:$0xff]
      %v416 = vld [vmem:[%s364 + $0xe1] sm:$0xff]
      %v417 = vld [vmem:[%s364 + $0xf1] sm:$0xff]
      %v418 = vld [vmem:[%s364 + $0xf9] sm:$0xff]
      %v419 = vld [vmem:[%s364 + $0x109] sm:$0xff]
      %v420 = vld [vmem:[%s364 + $0x111] sm:$0xff]
      %v421 = vld [vmem:[%s364 + $0x121] sm:$0xff]
      %v422 = vld [vmem:[%s364 + $0x129] sm:$0xff]
      %v423 = vld [vmem:[%s364 + $0x139] sm:$0xff]
      %v424 = vld [vmem:[%s364 + $0x141] sm:$0xff]
      %v425 = vld [vmem:[%s364 + $0x151] sm:$0xff]
      %v426 = vld [vmem:[%s364 + $0x159] sm:$0xff]
      %v427 = vld [vmem:[%s364 + $0x169] sm:$0xff]
      %v428 = vld [vmem:[%s364 + $0x171] sm:$0xff]
      %v429 = vld [vmem:[%s364 + $0x2] sm:$0xff]
      %v430 = vld [vmem:[%s364 + $0xa] sm:$0xff]
      %v431 = vld [vmem:[%s364 + $0x1a] sm:$0xff]
      %v432 = vld [vmem:[%s364 + $0x22] sm:$0xff]
      %v433 = vld [vmem:[%s364 + $0x32] sm:$0xff]
      %v434 = vld [vmem:[%s364 + $0x3a] sm:$0xff]
      %v435 = vld [vmem:[%s364 + $0x4a] sm:$0xff]
      %v436 = vld [vmem:[%s364 + $0x52] sm:$0xff]
      %v437 = vld [vmem:[%s364 + $0x62] sm:$0xff]
      %v438 = vld [vmem:[%s364 + $0x6a] sm:$0xff]
      %v439 = vld [vmem:[%s364 + $0x7a] sm:$0xff]
      %v440 = vld [vmem:[%s364 + $0x82] sm:$0xff]
      %v441 = vld [vmem:[%s364 + $0x92] sm:$0xff]
      %v442 = vld [vmem:[%s364 + $0x9a] sm:$0xff]
      %v443 = vld [vmem:[%s364 + $0xaa] sm:$0xff]
      %v444 = vld [vmem:[%s364 + $0xb2] sm:$0xff]
      %v445 = vld [vmem:[%s364 + $0xc2] sm:$0xff]
      %v446 = vld [vmem:[%s364 + $0xca] sm:$0xff]
      %v447 = vld [vmem:[%s364 + $0xda] sm:$0xff]
      %v448 = vld [vmem:[%s364 + $0xe2] sm:$0xff]
      %v449 = vld [vmem:[%s364 + $0xf2] sm:$0xff]
      %v450 = vld [vmem:[%s364 + $0xfa] sm:$0xff]
      %v451 = vld [vmem:[%s364 + $0x10a] sm:$0xff]
      %v452 = vld [vmem:[%s364 + $0x112] sm:$0xff]
      %v453 = vld [vmem:[%s364 + $0x122] sm:$0xff]
      %v454 = vld [vmem:[%s364 + $0x12a] sm:$0xff]
      %v455 = vld [vmem:[%s364 + $0x13a] sm:$0xff]
      %v456 = vld [vmem:[%s364 + $0x142] sm:$0xff]
      %v457 = vld [vmem:[%s364 + $0x152] sm:$0xff]
      %v458 = vld [vmem:[%s364 + $0x15a] sm:$0xff]
      %v459 = vld [vmem:[%s364 + $0x16a] sm:$0xff]
      %v460 = vld [vmem:[%s364 + $0x172] sm:$0xff]
      %493 = vrot.lane.b32.xlu0 %v203, 32
      %v494 = vpop.permute.xlu0 %493
      %495 = vrot.lane.b32.xlu0 %v204, 32
      %v496 = vpop.permute.xlu0 %495
      %497 = vrot.lane.b32.xlu0 %v205, 32
      %v498 = vpop.permute.xlu0 %497
      %499 = vrot.lane.b32.xlu0 %v206, 32
      %v500 = vpop.permute.xlu0 %499
      %501 = vrot.lane.b32.xlu0 %v207, 32
      %v502 = vpop.permute.xlu0 %501
      %503 = vrot.lane.b32.xlu0 %v208, 32
      %v504 = vpop.permute.xlu0 %503
      %505 = vrot.lane.b32.xlu0 %v209, 32
      %v506 = vpop.permute.xlu0 %505
      %507 = vrot.lane.b32.xlu0 %v210, 32
      %v508 = vpop.permute.xlu0 %507
      %509 = vrot.lane.b32.xlu0 %v211, 32
      %v510 = vpop.permute.xlu0 %509
      %511 = vrot.lane.b32.xlu0 %v212, 32
      %v512 = vpop.permute.xlu0 %511
      %513 = vrot.lane.b32.xlu0 %v213, 32
      %v514 = vpop.permute.xlu0 %513
      %515 = vrot.lane.b32.xlu0 %v214, 32
      %v516 = vpop.permute.xlu0 %515
      %517 = vrot.lane.b32.xlu0 %v215, 32
      %v518 = vpop.permute.xlu0 %517
      %519 = vrot.lane.b32.xlu0 %v216, 32
      %v520 = vpop.permute.xlu0 %519
      %521 = vrot.lane.b32.xlu0 %v217, 32
      %v522 = vpop.permute.xlu0 %521
      %523 = vrot.lane.b32.xlu0 %v218, 32
      %v524 = vpop.permute.xlu0 %523
      %525 = vrot.lane.b32.xlu0 %v219, 32
      %v526 = vpop.permute.xlu0 %525
      %527 = vrot.lane.b32.xlu0 %v220, 32
      %v528 = vpop.permute.xlu0 %527
      %529 = vrot.lane.b32.xlu0 %v221, 32
      %v530 = vpop.permute.xlu0 %529
      %531 = vrot.lane.b32.xlu0 %v222, 32
      %v532 = vpop.permute.xlu0 %531
      %533 = vrot.lane.b32.xlu0 %v223, 32
      %v534 = vpop.permute.xlu0 %533
      %535 = vrot.lane.b32.xlu0 %v224, 32
      %v536 = vpop.permute.xlu0 %535
      %537 = vrot.lane.b32.xlu0 %v225, 32
      %v538 = vpop.permute.xlu0 %537
      %539 = vrot.lane.b32.xlu0 %v226, 32
      %v540 = vpop.permute.xlu0 %539
      %541 = vrot.lane.b32.xlu0 %v227, 32
      %v542 = vpop.permute.xlu0 %541
      %543 = vrot.lane.b32.xlu0 %v228, 32
      %v544 = vpop.permute.xlu0 %543
      %545 = vrot.lane.b32.xlu0 %v229, 32
      %v546 = vpop.permute.xlu0 %545
      %547 = vrot.lane.b32.xlu0 %v230, 32
      %v548 = vpop.permute.xlu0 %547
      %549 = vrot.lane.b32.xlu0 %v231, 32
      %v550 = vpop.permute.xlu0 %549
      %551 = vrot.lane.b32.xlu0 %v232, 32
      %v552 = vpop.permute.xlu0 %551
      %553 = vrot.lane.b32.xlu0 %v233, 32
      %v554 = vpop.permute.xlu0 %553
      %555 = vrot.lane.b32.xlu0 %v234, 32
      %v556 = vpop.permute.xlu0 %555
      %621 = vrot.lane.b32.xlu0 %v235, 64
      %v622 = vpop.permute.xlu0 %621
      %623 = vrot.lane.b32.xlu0 %v236, 64
      %v624 = vpop.permute.xlu0 %623
      %625 = vrot.lane.b32.xlu0 %v237, 64
      %v626 = vpop.permute.xlu0 %625
      %627 = vrot.lane.b32.xlu0 %v238, 64
      %v628 = vpop.permute.xlu0 %627
      %629 = vrot.lane.b32.xlu0 %v239, 64
      %v630 = vpop.permute.xlu0 %629
      %631 = vrot.lane.b32.xlu0 %v240, 64
      %v632 = vpop.permute.xlu0 %631
      %633 = vrot.lane.b32.xlu0 %v241, 64
      %v634 = vpop.permute.xlu0 %633
      %635 = vrot.lane.b32.xlu0 %v242, 64
      %v636 = vpop.permute.xlu0 %635
      %637 = vrot.lane.b32.xlu0 %v243, 64
      %v638 = vpop.permute.xlu0 %637
      %639 = vrot.lane.b32.xlu0 %v244, 64
      %v640 = vpop.permute.xlu0 %639
      %641 = vrot.lane.b32.xlu0 %v245, 64
      %v642 = vpop.permute.xlu0 %641
      %643 = vrot.lane.b32.xlu0 %v246, 64
      %v644 = vpop.permute.xlu0 %643
      %645 = vrot.lane.b32.xlu0 %v247, 64
      %v646 = vpop.permute.xlu0 %645
      %647 = vrot.lane.b32.xlu0 %v248, 64
      %v648 = vpop.permute.xlu0 %647
      %649 = vrot.lane.b32.xlu0 %v249, 64
      %v650 = vpop.permute.xlu0 %649
      %651 = vrot.lane.b32.xlu0 %v250, 64
      %v652 = vpop.permute.xlu0 %651
      %653 = vrot.lane.b32.xlu0 %v251, 64
      %v654 = vpop.permute.xlu0 %653
      %655 = vrot.lane.b32.xlu0 %v252, 64
      %v656 = vpop.permute.xlu0 %655
      %657 = vrot.lane.b32.xlu0 %v253, 64
      %v658 = vpop.permute.xlu0 %657
      %659 = vrot.lane.b32.xlu0 %v254, 64
      %v660 = vpop.permute.xlu0 %659
      %661 = vrot.lane.b32.xlu0 %v255, 64
      %v662 = vpop.permute.xlu0 %661
      %663 = vrot.lane.b32.xlu0 %v256, 64
      %v664 = vpop.permute.xlu0 %663
      %665 = vrot.lane.b32.xlu0 %v257, 64
      %v666 = vpop.permute.xlu0 %665
      %667 = vrot.lane.b32.xlu0 %v258, 64
      %v668 = vpop.permute.xlu0 %667
      %669 = vrot.lane.b32.xlu0 %v259, 64
      %v670 = vpop.permute.xlu0 %669
      %671 = vrot.lane.b32.xlu0 %v260, 64
      %v672 = vpop.permute.xlu0 %671
      %673 = vrot.lane.b32.xlu0 %v261, 64
      %v674 = vpop.permute.xlu0 %673
      %675 = vrot.lane.b32.xlu0 %v262, 64
      %v676 = vpop.permute.xlu0 %675
      %677 = vrot.lane.b32.xlu0 %v263, 64
      %v678 = vpop.permute.xlu0 %677
      %679 = vrot.lane.b32.xlu0 %v264, 64
      %v680 = vpop.permute.xlu0 %679
      %681 = vrot.lane.b32.xlu0 %v265, 64
      %v682 = vpop.permute.xlu0 %681
      %683 = vrot.lane.b32.xlu0 %v266, 64
      %v684 = vpop.permute.xlu0 %683
      %749 = vrot.lane.b32.xlu0 %v268, 96
      %v750 = vpop.permute.xlu0 %749
      %751 = vrot.lane.b32.xlu0 %v269, 96
      %v752 = vpop.permute.xlu0 %751
      %753 = vrot.lane.b32.xlu0 %v270, 96
      %v754 = vpop.permute.xlu0 %753
      %755 = vrot.lane.b32.xlu0 %v271, 96
      %v756 = vpop.permute.xlu0 %755
      %757 = vrot.lane.b32.xlu0 %v272, 96
      %v758 = vpop.permute.xlu0 %757
      %759 = vrot.lane.b32.xlu0 %v273, 96
      %v760 = vpop.permute.xlu0 %759
      %761 = vrot.lane.b32.xlu0 %v274, 96
      %v762 = vpop.permute.xlu0 %761
      %763 = vrot.lane.b32.xlu0 %v275, 96
      %v764 = vpop.permute.xlu0 %763
      %765 = vrot.lane.b32.xlu0 %v276, 96
      %v766 = vpop.permute.xlu0 %765
      %767 = vrot.lane.b32.xlu0 %v277, 96
      %v768 = vpop.permute.xlu0 %767
      %769 = vrot.lane.b32.xlu0 %v278, 96
      %v770 = vpop.permute.xlu0 %769
      %771 = vrot.lane.b32.xlu0 %v279, 96
      %v772 = vpop.permute.xlu0 %771
      %773 = vrot.lane.b32.xlu0 %v280, 96
      %v774 = vpop.permute.xlu0 %773
      %775 = vrot.lane.b32.xlu0 %v281, 96
      %v776 = vpop.permute.xlu0 %775
      %777 = vrot.lane.b32.xlu0 %v282, 96
      %v778 = vpop.permute.xlu0 %777
      %779 = vrot.lane.b32.xlu0 %v283, 96
      %v780 = vpop.permute.xlu0 %779
      %781 = vrot.lane.b32.xlu0 %v284, 96
      %v782 = vpop.permute.xlu0 %781
      %783 = vrot.lane.b32.xlu0 %v285, 96
      %v784 = vpop.permute.xlu0 %783
      %785 = vrot.lane.b32.xlu0 %v286, 96
      %v786 = vpop.permute.xlu0 %785
      %787 = vrot.lane.b32.xlu0 %v287, 96
      %v788 = vpop.permute.xlu0 %787
      %789 = vrot.lane.b32.xlu0 %v288, 96
      %v790 = vpop.permute.xlu0 %789
      %791 = vrot.lane.b32.xlu0 %v289, 96
      %v792 = vpop.permute.xlu0 %791
      %793 = vrot.lane.b32.xlu0 %v290, 96
      %v794 = vpop.permute.xlu0 %793
      %795 = vrot.lane.b32.xlu0 %v291, 96
      %v796 = vpop.permute.xlu0 %795
      %797 = vrot.lane.b32.xlu0 %v292, 96
      %v798 = vpop.permute.xlu0 %797
      %799 = vrot.lane.b32.xlu0 %v293, 96
      %v800 = vpop.permute.xlu0 %799
      %801 = vrot.lane.b32.xlu0 %v294, 96
      %v802 = vpop.permute.xlu0 %801
      %803 = vrot.lane.b32.xlu0 %v295, 96
      %v804 = vpop.permute.xlu0 %803
      %805 = vrot.lane.b32.xlu0 %v296, 96
      %v806 = vpop.permute.xlu0 %805
      %807 = vrot.lane.b32.xlu0 %v297, 96
      %v808 = vpop.permute.xlu0 %807
      %809 = vrot.lane.b32.xlu0 %v298, 96
      %v810 = vpop.permute.xlu0 %809
      %811 = vrot.lane.b32.xlu0 %v299, 96
      %v812 = vpop.permute.xlu0 %811
      %877 = vrot.lane.b32.xlu0 %v332, 32
      %v878 = vpop.permute.xlu0 %877
      %879 = vrot.lane.b32.xlu0 %v333, 32
      %v880 = vpop.permute.xlu0 %879
      %881 = vrot.lane.b32.xlu0 %v334, 32
      %v882 = vpop.permute.xlu0 %881
      %883 = vrot.lane.b32.xlu0 %v335, 32
      %v884 = vpop.permute.xlu0 %883
      %885 = vrot.lane.b32.xlu0 %v336, 32
      %v886 = vpop.permute.xlu0 %885
      %887 = vrot.lane.b32.xlu0 %v337, 32
      %v888 = vpop.permute.xlu0 %887
      %889 = vrot.lane.b32.xlu0 %v338, 32
      %v890 = vpop.permute.xlu0 %889
      %891 = vrot.lane.b32.xlu0 %v339, 32
      %v892 = vpop.permute.xlu0 %891
      %893 = vrot.lane.b32.xlu0 %v340, 32
      %v894 = vpop.permute.xlu0 %893
      %895 = vrot.lane.b32.xlu0 %v341, 32
      %v896 = vpop.permute.xlu0 %895
      %897 = vrot.lane.b32.xlu0 %v342, 32
      %v898 = vpop.permute.xlu0 %897
      %899 = vrot.lane.b32.xlu0 %v343, 32
      %v900 = vpop.permute.xlu0 %899
      %901 = vrot.lane.b32.xlu0 %v344, 32
      %v902 = vpop.permute.xlu0 %901
      %903 = vrot.lane.b32.xlu0 %v345, 32
      %v904 = vpop.permute.xlu0 %903
      %905 = vrot.lane.b32.xlu0 %v346, 32
      %v906 = vpop.permute.xlu0 %905
      %907 = vrot.lane.b32.xlu0 %v347, 32
      %v908 = vpop.permute.xlu0 %907
      %909 = vrot.lane.b32.xlu0 %v348, 32
      %v910 = vpop.permute.xlu0 %909
      %911 = vrot.lane.b32.xlu0 %v349, 32
      %v912 = vpop.permute.xlu0 %911
      %913 = vrot.lane.b32.xlu0 %v350, 32
      %v914 = vpop.permute.xlu0 %913
      %915 = vrot.lane.b32.xlu0 %v351, 32
      %v916 = vpop.permute.xlu0 %915
      %917 = vrot.lane.b32.xlu0 %v352, 32
      %v918 = vpop.permute.xlu0 %917
      %919 = vrot.lane.b32.xlu0 %v353, 32
      %v920 = vpop.permute.xlu0 %919
      %921 = vrot.lane.b32.xlu0 %v354, 32
      %v922 = vpop.permute.xlu0 %921
      %923 = vrot.lane.b32.xlu0 %v355, 32
      %v924 = vpop.permute.xlu0 %923
      %925 = vrot.lane.b32.xlu0 %v356, 32
      %v926 = vpop.permute.xlu0 %925
      %927 = vrot.lane.b32.xlu0 %v357, 32
      %v928 = vpop.permute.xlu0 %927
      %929 = vrot.lane.b32.xlu0 %v358, 32
      %v930 = vpop.permute.xlu0 %929
      %931 = vrot.lane.b32.xlu0 %v359, 32
      %v932 = vpop.permute.xlu0 %931
      %933 = vrot.lane.b32.xlu0 %v360, 32
      %v934 = vpop.permute.xlu0 %933
      %935 = vrot.lane.b32.xlu0 %v361, 32
      %v936 = vpop.permute.xlu0 %935
      %937 = vrot.lane.b32.xlu0 %v362, 32
      %v938 = vpop.permute.xlu0 %937
      %939 = vrot.lane.b32.xlu0 %v363, 32
      %v940 = vpop.permute.xlu0 %939
      %1005 = vrot.lane.b32.xlu0 %v365, 64
      %v1006 = vpop.permute.xlu0 %1005
      %1007 = vrot.lane.b32.xlu0 %v366, 64
      %v1008 = vpop.permute.xlu0 %1007
      %1009 = vrot.lane.b32.xlu0 %v367, 64
      %v1010 = vpop.permute.xlu0 %1009
      %1011 = vrot.lane.b32.xlu0 %v368, 64
      %v1012 = vpop.permute.xlu0 %1011
      %1013 = vrot.lane.b32.xlu0 %v369, 64
      %v1014 = vpop.permute.xlu0 %1013
      %1015 = vrot.lane.b32.xlu0 %v370, 64
      %v1016 = vpop.permute.xlu0 %1015
      %1017 = vrot.lane.b32.xlu0 %v371, 64
      %v1018 = vpop.permute.xlu0 %1017
      %1019 = vrot.lane.b32.xlu0 %v372, 64
      %v1020 = vpop.permute.xlu0 %1019
      %1021 = vrot.lane.b32.xlu0 %v373, 64
      %v1022 = vpop.permute.xlu0 %1021
      %1023 = vrot.lane.b32.xlu0 %v374, 64
      %v1024 = vpop.permute.xlu0 %1023
      %1025 = vrot.lane.b32.xlu0 %v375, 64
      %v1026 = vpop.permute.xlu0 %1025
      %1027 = vrot.lane.b32.xlu0 %v376, 64
      %v1028 = vpop.permute.xlu0 %1027
      %1029 = vrot.lane.b32.xlu0 %v377, 64
      %v1030 = vpop.permute.xlu0 %1029
      %1031 = vrot.lane.b32.xlu0 %v378, 64
      %v1032 = vpop.permute.xlu0 %1031
      %1033 = vrot.lane.b32.xlu0 %v379, 64
      %v1034 = vpop.permute.xlu0 %1033
      %1035 = vrot.lane.b32.xlu0 %v380, 64
      %v1036 = vpop.permute.xlu0 %1035
      %1037 = vrot.lane.b32.xlu0 %v381, 64
      %v1038 = vpop.permute.xlu0 %1037
      %1039 = vrot.lane.b32.xlu0 %v382, 64
      %v1040 = vpop.permute.xlu0 %1039
      %1041 = vrot.lane.b32.xlu0 %v383, 64
      %v1042 = vpop.permute.xlu0 %1041
      %1043 = vrot.lane.b32.xlu0 %v384, 64
      %v1044 = vpop.permute.xlu0 %1043
      %1045 = vrot.lane.b32.xlu0 %v385, 64
      %v1046 = vpop.permute.xlu0 %1045
      %1047 = vrot.lane.b32.xlu0 %v386, 64
      %v1048 = vpop.permute.xlu0 %1047
      %1049 = vrot.lane.b32.xlu0 %v387, 64
      %v1050 = vpop.permute.xlu0 %1049
      %1051 = vrot.lane.b32.xlu0 %v388, 64
      %v1052 = vpop.permute.xlu0 %1051
      %1053 = vrot.lane.b32.xlu0 %v389, 64
      %v1054 = vpop.permute.xlu0 %1053
      %1055 = vrot.lane.b32.xlu0 %v390, 64
      %v1056 = vpop.permute.xlu0 %1055
      %1057 = vrot.lane.b32.xlu0 %v391, 64
      %v1058 = vpop.permute.xlu0 %1057
      %1059 = vrot.lane.b32.xlu0 %v392, 64
      %v1060 = vpop.permute.xlu0 %1059
      %1061 = vrot.lane.b32.xlu0 %v393, 64
      %v1062 = vpop.permute.xlu0 %1061
      %1063 = vrot.lane.b32.xlu0 %v394, 64
      %v1064 = vpop.permute.xlu0 %1063
      %1065 = vrot.lane.b32.xlu0 %v395, 64
      %v1066 = vpop.permute.xlu0 %1065
      %1067 = vrot.lane.b32.xlu0 %v396, 64
      %v1068 = vpop.permute.xlu0 %1067
      %1133 = vrot.lane.b32.xlu0 %v397, 96
      %v1134 = vpop.permute.xlu0 %1133
      %1135 = vrot.lane.b32.xlu0 %v398, 96
      %v1136 = vpop.permute.xlu0 %1135
      %1137 = vrot.lane.b32.xlu0 %v399, 96
      %v1138 = vpop.permute.xlu0 %1137
      %1139 = vrot.lane.b32.xlu0 %v400, 96
      %v1140 = vpop.permute.xlu0 %1139
      %1141 = vrot.lane.b32.xlu0 %v401, 96
      %v1142 = vpop.permute.xlu0 %1141
      %1143 = vrot.lane.b32.xlu0 %v402, 96
      %v1144 = vpop.permute.xlu0 %1143
      %1145 = vrot.lane.b32.xlu0 %v403, 96
      %v1146 = vpop.permute.xlu0 %1145
      %1147 = vrot.lane.b32.xlu0 %v404, 96
      %v1148 = vpop.permute.xlu0 %1147
      %1149 = vrot.lane.b32.xlu0 %v405, 96
      %v1150 = vpop.permute.xlu0 %1149
      %1151 = vrot.lane.b32.xlu0 %v406, 96
      %v1152 = vpop.permute.xlu0 %1151
      %1153 = vrot.lane.b32.xlu0 %v407, 96
      %v1154 = vpop.permute.xlu0 %1153
      %1155 = vrot.lane.b32.xlu0 %v408, 96
      %v1156 = vpop.permute.xlu0 %1155
      %1157 = vrot.lane.b32.xlu0 %v409, 96
      %v1158 = vpop.permute.xlu0 %1157
      %1159 = vrot.lane.b32.xlu0 %v410, 96
      %v1160 = vpop.permute.xlu0 %1159
      %1161 = vrot.lane.b32.xlu0 %v411, 96
      %v1162 = vpop.permute.xlu0 %1161
      %1163 = vrot.lane.b32.xlu0 %v412, 96
      %v1164 = vpop.permute.xlu0 %1163
      %1165 = vrot.lane.b32.xlu0 %v413, 96
      %v1166 = vpop.permute.xlu0 %1165
      %1167 = vrot.lane.b32.xlu0 %v414, 96
      %v1168 = vpop.permute.xlu0 %1167
      %1169 = vrot.lane.b32.xlu0 %v415, 96
      %v1170 = vpop.permute.xlu0 %1169
      %1171 = vrot.lane.b32.xlu0 %v416, 96
      %v1172 = vpop.permute.xlu0 %1171
      %1173 = vrot.lane.b32.xlu0 %v417, 96
      %v1174 = vpop.permute.xlu0 %1173
      %1175 = vrot.lane.b32.xlu0 %v418, 96
      %v1176 = vpop.permute.xlu0 %1175
      %1177 = vrot.lane.b32.xlu0 %v419, 96
      %v1178 = vpop.permute.xlu0 %1177
      %1179 = vrot.lane.b32.xlu0 %v420, 96
      %v1180 = vpop.permute.xlu0 %1179
      %1181 = vrot.lane.b32.xlu0 %v421, 96
      %v1182 = vpop.permute.xlu0 %1181
      %1183 = vrot.lane.b32.xlu0 %v422, 96
      %v1184 = vpop.permute.xlu0 %1183
      %1185 = vrot.lane.b32.xlu0 %v423, 96
      %v1186 = vpop.permute.xlu0 %1185
      %1187 = vrot.lane.b32.xlu0 %v424, 96
      %v1188 = vpop.permute.xlu0 %1187
      %1189 = vrot.lane.b32.xlu0 %v425, 96
      %v1190 = vpop.permute.xlu0 %1189
      %1191 = vrot.lane.b32.xlu0 %v426, 96
      %v1192 = vpop.permute.xlu0 %1191
      %1193 = vrot.lane.b32.xlu0 %v427, 96
      %v1194 = vpop.permute.xlu0 %1193
      %1195 = vrot.lane.b32.xlu0 %v428, 96
      %v1196 = vpop.permute.xlu0 %1195
      %vm1229 = vcmask 261120
      %v1230 = vsel %vm1229, %v171, %v494
      %v1231 = vsel %vm1229, %v172, %v496
      %v1232 = vsel %vm1229, %v173, %v498
      %v1233 = vsel %vm1229, %v174, %v500
      %v1234 = vsel %vm1229, %v175, %v502
      %v1235 = vsel %vm1229, %v176, %v504
      %v1236 = vsel %vm1229, %v177, %v506
      %v1237 = vsel %vm1229, %v178, %v508
      %v1238 = vsel %vm1229, %v179, %v510
      %v1239 = vsel %vm1229, %v180, %v512
      %v1240 = vsel %vm1229, %v181, %v514
      %v1241 = vsel %vm1229, %v182, %v516
      %v1242 = vsel %vm1229, %v183, %v518
      %v1243 = vsel %vm1229, %v184, %v520
      %v1244 = vsel %vm1229, %v185, %v522
      %v1245 = vsel %vm1229, %v186, %v524
      %v1246 = vsel %vm1229, %v187, %v526
      %v1247 = vsel %vm1229, %v188, %v528
      %v1248 = vsel %vm1229, %v189, %v530
      %v1249 = vsel %vm1229, %v190, %v532
      %v1250 = vsel %vm1229, %v191, %v534
      %v1251 = vsel %vm1229, %v192, %v536
      %v1252 = vsel %vm1229, %v193, %v538
      %v1253 = vsel %vm1229, %v194, %v540
      %v1254 = vsel %vm1229, %v195, %v542
      %v1255 = vsel %vm1229, %v196, %v544
      %v1256 = vsel %vm1229, %v197, %v546
      %v1257 = vsel %vm1229, %v198, %v548
      %v1258 = vsel %vm1229, %v199, %v550
      %v1259 = vsel %vm1229, %v200, %v552
      %v1260 = vsel %vm1229, %v201, %v554
      %v1261 = vsel %vm1229, %v202, %v556
      %vm1262 = vcmask 523264
      %v1263 = vsel %vm1262, %v1230, %v622
      %v1264 = vsel %vm1262, %v1231, %v624
      %v1265 = vsel %vm1262, %v1232, %v626
      %v1266 = vsel %vm1262, %v1233, %v628
      %v1267 = vsel %vm1262, %v1234, %v630
      %v1268 = vsel %vm1262, %v1235, %v632
      %v1269 = vsel %vm1262, %v1236, %v634
      %v1270 = vsel %vm1262, %v1237, %v636
      %v1271 = vsel %vm1262, %v1238, %v638
      %v1272 = vsel %vm1262, %v1239, %v640
      %v1273 = vsel %vm1262, %v1240, %v642
      %v1274 = vsel %vm1262, %v1241, %v644
      %v1275 = vsel %vm1262, %v1242, %v646
      %v1276 = vsel %vm1262, %v1243, %v648
      %v1277 = vsel %vm1262, %v1244, %v650
      %v1278 = vsel %vm1262, %v1245, %v652
      %v1279 = vsel %vm1262, %v1246, %v654
      %v1280 = vsel %vm1262, %v1247, %v656
      %v1281 = vsel %vm1262, %v1248, %v658
      %v1282 = vsel %vm1262, %v1249, %v660
      %v1283 = vsel %vm1262, %v1250, %v662
      %v1284 = vsel %vm1262, %v1251, %v664
      %v1285 = vsel %vm1262, %v1252, %v666
      %v1286 = vsel %vm1262, %v1253, %v668
      %v1287 = vsel %vm1262, %v1254, %v670
      %v1288 = vsel %vm1262, %v1255, %v672
      %v1289 = vsel %vm1262, %v1256, %v674
      %v1290 = vsel %vm1262, %v1257, %v676
      %v1291 = vsel %vm1262, %v1258, %v678
      %v1292 = vsel %vm1262, %v1259, %v680
      %v1293 = vsel %vm1262, %v1260, %v682
      %v1294 = vsel %vm1262, %v1261, %v684
      %vm1295 = vcmask 785408
      %v1296 = vsel %vm1295, %v1263, %v750
      %v1297 = vsel %vm1295, %v1264, %v752
      %v1298 = vsel %vm1295, %v1265, %v754
      %v1299 = vsel %vm1295, %v1266, %v756
      %v1300 = vsel %vm1295, %v1267, %v758
      %v1301 = vsel %vm1295, %v1268, %v760
      %v1302 = vsel %vm1295, %v1269, %v762
      %v1303 = vsel %vm1295, %v1270, %v764
      %v1304 = vsel %vm1295, %v1271, %v766
      %v1305 = vsel %vm1295, %v1272, %v768
      %v1306 = vsel %vm1295, %v1273, %v770
      %v1307 = vsel %vm1295, %v1274, %v772
      %v1308 = vsel %vm1295, %v1275, %v774
      %v1309 = vsel %vm1295, %v1276, %v776
      %v1310 = vsel %vm1295, %v1277, %v778
      %v1311 = vsel %vm1295, %v1278, %v780
      %v1312 = vsel %vm1295, %v1279, %v782
      %v1313 = vsel %vm1295, %v1280, %v784
      %v1314 = vsel %vm1295, %v1281, %v786
      %v1315 = vsel %vm1295, %v1282, %v788
      %v1316 = vsel %vm1295, %v1283, %v790
      %v1317 = vsel %vm1295, %v1284, %v792
      %v1318 = vsel %vm1295, %v1285, %v794
      %v1319 = vsel %vm1295, %v1286, %v796
      %v1320 = vsel %vm1295, %v1287, %v798
      %v1321 = vsel %vm1295, %v1288, %v800
      %v1322 = vsel %vm1295, %v1289, %v802
      %v1323 = vsel %vm1295, %v1290, %v804
      %v1324 = vsel %vm1295, %v1291, %v806
      %v1325 = vsel %vm1295, %v1292, %v808
      %v1326 = vsel %vm1295, %v1293, %v810
      %v1327 = vsel %vm1295, %v1294, %v812
      %v1328 = vsel %vm1229, %v300, %v878
      %v1329 = vsel %vm1229, %v301, %v880
      %v1330 = vsel %vm1229, %v302, %v882
      %v1331 = vsel %vm1229, %v303, %v884
      %v1332 = vsel %vm1229, %v304, %v886
      %v1333 = vsel %vm1229, %v305, %v888
      %v1334 = vsel %vm1229, %v306, %v890
      %v1335 = vsel %vm1229, %v307, %v892
      %v1336 = vsel %vm1229, %v308, %v894
      %v1337 = vsel %vm1229, %v309, %v896
      %v1338 = vsel %vm1229, %v310, %v898
      %v1339 = vsel %vm1229, %v311, %v900
      %v1340 = vsel %vm1229, %v312, %v902
      %v1341 = vsel %vm1229, %v313, %v904
      %v1342 = vsel %vm1229, %v314, %v906
      %v1343 = vsel %vm1229, %v315, %v908
      %v1344 = vsel %vm1229, %v316, %v910
      %v1345 = vsel %vm1229, %v317, %v912
      %v1346 = vsel %vm1229, %v318, %v914
      %v1347 = vsel %vm1229, %v319, %v916
      %v1348 = vsel %vm1229, %v320, %v918
      %v1349 = vsel %vm1229, %v321, %v920
      %v1350 = vsel %vm1229, %v322, %v922
      %v1351 = vsel %vm1229, %v323, %v924
      %v1352 = vsel %vm1229, %v324, %v926
      %v1353 = vsel %vm1229, %v325, %v928
      %v1354 = vsel %vm1229, %v326, %v930
      %v1355 = vsel %vm1229, %v327, %v932
      %v1356 = vsel %vm1229, %v328, %v934
      %v1357 = vsel %vm1229, %v329, %v936
      %v1358 = vsel %vm1229, %v330, %v938
      %v1359 = vsel %vm1229, %v331, %v940
      %v1360 = vsel %vm1262, %v1328, %v1006
      %v1361 = vsel %vm1262, %v1329, %v1008
      %v1362 = vsel %vm1262, %v1330, %v1010
      %v1363 = vsel %vm1262, %v1331, %v1012
      %v1364 = vsel %vm1262, %v1332, %v1014
      %v1365 = vsel %vm1262, %v1333, %v1016
      %v1366 = vsel %vm1262, %v1334, %v1018
      %v1367 = vsel %vm1262, %v1335, %v1020
      %v1368 = vsel %vm1262, %v1336, %v1022
      %v1369 = vsel %vm1262, %v1337, %v1024
      %v1370 = vsel %vm1262, %v1338, %v1026
      %v1371 = vsel %vm1262, %v1339, %v1028
      %v1372 = vsel %vm1262, %v1340, %v1030
      %v1373 = vsel %vm1262, %v1341, %v1032
      %v1374 = vsel %vm1262, %v1342, %v1034
      %v1375 = vsel %vm1262, %v1343, %v1036
      %v1376 = vsel %vm1262, %v1344, %v1038
      %v1377 = vsel %vm1262, %v1345, %v1040
      %v1378 = vsel %vm1262, %v1346, %v1042
      %v1379 = vsel %vm1262, %v1347, %v1044
      %v1380 = vsel %vm1262, %v1348, %v1046
      %v1381 = vsel %vm1262, %v1349, %v1048
      %v1382 = vsel %vm1262, %v1350, %v1050
      %v1383 = vsel %vm1262, %v1351, %v1052
      %v1384 = vsel %vm1262, %v1352, %v1054
      %v1385 = vsel %vm1262, %v1353, %v1056
      %v1386 = vsel %vm1262, %v1354, %v1058
      %v1387 = vsel %vm1262, %v1355, %v1060
      %v1388 = vsel %vm1262, %v1356, %v1062
      %v1389 = vsel %vm1262, %v1357, %v1064
      %v1390 = vsel %vm1262, %v1358, %v1066
      %v1391 = vsel %vm1262, %v1359, %v1068
      %v1392 = vsel %vm1295, %v1360, %v1134
      %v1393 = vsel %vm1295, %v1361, %v1136
      %v1394 = vsel %vm1295, %v1362, %v1138
      %v1395 = vsel %vm1295, %v1363, %v1140
      %v1396 = vsel %vm1295, %v1364, %v1142
      %v1397 = vsel %vm1295, %v1365, %v1144
      %v1398 = vsel %vm1295, %v1366, %v1146
      %v1399 = vsel %vm1295, %v1367, %v1148
      %v1400 = vsel %vm1295, %v1368, %v1150
      %v1401 = vsel %vm1295, %v1369, %v1152
      %v1402 = vsel %vm1295, %v1370, %v1154
      %v1403 = vsel %vm1295, %v1371, %v1156
      %v1404 = vsel %vm1295, %v1372, %v1158
      %v1405 = vsel %vm1295, %v1373, %v1160
      %v1406 = vsel %vm1295, %v1374, %v1162
      %v1407 = vsel %vm1295, %v1375, %v1164
      %v1408 = vsel %vm1295, %v1376, %v1166
      %v1409 = vsel %vm1295, %v1377, %v1168
      %v1410 = vsel %vm1295, %v1378, %v1170
      %v1411 = vsel %vm1295, %v1379, %v1172
      %v1412 = vsel %vm1295, %v1380, %v1174
      %v1413 = vsel %vm1295, %v1381, %v1176
      %v1414 = vsel %vm1295, %v1382, %v1178
      %v1415 = vsel %vm1295, %v1383, %v1180
      %v1416 = vsel %vm1295, %v1384, %v1182
      %v1417 = vsel %vm1295, %v1385, %v1184
      %v1418 = vsel %vm1295, %v1386, %v1186
      %v1419 = vsel %vm1295, %v1387, %v1188
      %v1420 = vsel %vm1295, %v1388, %v1190
      %v1421 = vsel %vm1295, %v1389, %v1192
      %v1422 = vsel %vm1295, %v1390, %v1194
      %v1423 = vsel %vm1295, %v1391, %v1196
      %v1424 = vld [vmem:[%s1] sm:$0xff]
      %v1425 = vld [vmem:[%s1 + $0x8] sm:$0xff]
      %v1426 = vld [vmem:[%s1 + $0x10] sm:$0xff]
      %v1427 = vld [vmem:[%s1 + $0x18] sm:$0xff]
      %v1428 = vld [vmem:[%s1 + $0x20] sm:$0xff]
      %v1429 = vld [vmem:[%s1 + $0x28] sm:$0xff]
      %v1430 = vld [vmem:[%s1 + $0x30] sm:$0xff]
      %v1431 = vld [vmem:[%s1 + $0x38] sm:$0xff]
      %v1432 = vld [vmem:[%s1 + $0x40] sm:$0xff]
      %v1433 = vld [vmem:[%s1 + $0x48] sm:$0xff]
      %v1434 = vld [vmem:[%s1 + $0x50] sm:$0xff]
      %v1435 = vld [vmem:[%s1 + $0x58] sm:$0xff]
      %v1436 = vld [vmem:[%s1 + $0x60] sm:$0xff]
      %v1437 = vld [vmem:[%s1 + $0x68] sm:$0xff]
      %v1438 = vld [vmem:[%s1 + $0x70] sm:$0xff]
      %v1439 = vld [vmem:[%s1 + $0x78] sm:$0xff]
      %v1440 = vld [vmem:[%s1 + $0x80] sm:$0xff]
      %v1441 = vld [vmem:[%s1 + $0x88] sm:$0xff]
      %v1442 = vld [vmem:[%s1 + $0x90] sm:$0xff]
      %v1443 = vld [vmem:[%s1 + $0x98] sm:$0xff]
      %v1444 = vld [vmem:[%s1 + $0xa0] sm:$0xff]
      %v1445 = vld [vmem:[%s1 + $0xa8] sm:$0xff]
      %v1446 = vld [vmem:[%s1 + $0xb0] sm:$0xff]
      %v1447 = vld [vmem:[%s1 + $0xb8] sm:$0xff]
      %v1448 = vld [vmem:[%s1 + $0xc0] sm:$0xff]
      %v1449 = vld [vmem:[%s1 + $0xc8] sm:$0xff]
      %v1450 = vld [vmem:[%s1 + $0xd0] sm:$0xff]
      %v1451 = vld [vmem:[%s1 + $0xd8] sm:$0xff]
      %v1452 = vld [vmem:[%s1 + $0xe0] sm:$0xff]
      %v1453 = vld [vmem:[%s1 + $0xe8] sm:$0xff]
      %v1454 = vld [vmem:[%s1 + $0xf0] sm:$0xff]
      %v1455 = vld [vmem:[%s1 + $0xf8] sm:$0xff]
      %v1456 = vld [vmem:[%s1 + $0x100] sm:$0xff]
      %v1457 = vld [vmem:[%s1 + $0x108] sm:$0xff]
      %v1458 = vld [vmem:[%s1 + $0x110] sm:$0xff]
      %v1459 = vld [vmem:[%s1 + $0x118] sm:$0xff]
      %v1460 = vld [vmem:[%s2] sm:$0x1]
      %v1462 = vlaneseq
      %v1463 = vshrl.u32 %v1462, 7
      %v1464 = vsub.s32 0, %v1463
      %v1465 = vrot.slane %v1460, %v1464
      %v1468 = vsel %vm1229, %v429, 0
      %v1471 = vsel %vm1229, %v430, 0
      %v1474 = vsel %vm1229, %v431, 0
      %v1477 = vsel %vm1229, %v432, 0
      %v1480 = vsel %vm1229, %v433, 0
      %v1483 = vsel %vm1229, %v434, 0
      %v1486 = vsel %vm1229, %v435, 0
      %v1489 = vsel %vm1229, %v436, 0
      %v1492 = vsel %vm1229, %v437, 0
      %v1495 = vsel %vm1229, %v438, 0
      %v1498 = vsel %vm1229, %v439, 0
      %v1501 = vsel %vm1229, %v440, 0
      %v1504 = vsel %vm1229, %v441, 0
      %v1507 = vsel %vm1229, %v442, 0
      %v1510 = vsel %vm1229, %v443, 0
      %v1513 = vsel %vm1229, %v444, 0
      %v1516 = vsel %vm1229, %v445, 0
      %v1519 = vsel %vm1229, %v446, 0
      %v1522 = vsel %vm1229, %v447, 0
      %v1525 = vsel %vm1229, %v448, 0
      %v1528 = vsel %vm1229, %v449, 0
      %v1531 = vsel %vm1229, %v450, 0
      %v1534 = vsel %vm1229, %v451, 0
      %v1537 = vsel %vm1229, %v452, 0
      %v1540 = vsel %vm1229, %v453, 0
      %v1543 = vsel %vm1229, %v454, 0
      %v1546 = vsel %vm1229, %v455, 0
      %v1549 = vsel %vm1229, %v456, 0
      %v1552 = vsel %vm1229, %v457, 0
      %v1555 = vsel %vm1229, %v458, 0
      %v1558 = vsel %vm1229, %v459, 0
      %v1561 = vsel %vm1229, %v460, 0
      %1563 = vmatprep.subr.mxu0 0.0
      %1564 = vmatpush1.msra.mxu0 %v1424
      %1565 = vmatprep.subr.mxu0 0.0
      %1566 = vmatpush1.msra.mxu0 %v1425
      %1567 = vmatprep.subr.mxu0 0.0
      %1568 = vmatpush1.msra.mxu0 %v1426
      %1569 = vmatprep.subr.mxu0 0.0
      %1570 = vmatpush1.msra.mxu0 %v1427
      %1571 = vmatprep.subr.mxu0 0.0
      %1572 = vmatpush1.msra.mxu0 %v1428
      %1573 = vmatprep.subr.mxu0 0.0
      %1574 = vmatpush1.msra.mxu0 %v1429
      %1575 = vmatprep.subr.mxu0 0.0
      %1576 = vmatpush1.msra.mxu0 %v1430
      %1577 = vmatprep.subr.mxu0 0.0
      %1578 = vmatpush1.msra.mxu0 %v1431
      %1579 = vmatprep.subr.mxu0 0.0
      %1580 = vmatpush1.msra.mxu0 %v1432
      %1581 = vmatprep.subr.mxu0 0.0
      %1582 = vmatpush1.msra.mxu0 %v1433
      %1583 = vmatprep.subr.mxu0 0.0
      %1584 = vmatpush1.msra.mxu0 %v1434
      %1585 = vmatprep.subr.mxu0 0.0
      %1586 = vmatpush1.msra.mxu0 %v1435
      %1587 = vmatprep.subr.mxu0 0.0
      %1588 = vmatpush1.msra.mxu0 %v1436
      %1589 = vmatprep.subr.mxu0 0.0
      %1590 = vmatpush1.msra.mxu0 %v1437
      %1591 = vmatprep.subr.mxu0 0.0
      %1592 = vmatpush1.msra.mxu0 %v1438
      %1593 = vmatprep.subr.mxu0 0.0
      %1594 = vmatpush1.msra.mxu0 %v1439
      %1595 = vmatprep.subr.mxu0 0.0
      %1596 = vmatpush1.msra.mxu0 %v1440
      %1597 = vmatprep.subr.mxu0 0.0
      %1598 = vmatpush1.msra.mxu0 %v1441
      %1599 = vmatprep.subr.mxu0 0.0
      %1600 = vmatpush1.msra.mxu0 %v1442
      %1601 = vmatprep.subr.mxu0 0.0
      %1602 = vmatpush1.msra.mxu0 %v1443
      %1603 = vmatprep.subr.mxu0 0.0
      %1604 = vmatpush1.msra.mxu0 %v1444
      %1605 = vmatprep.subr.mxu0 0.0
      %1606 = vmatpush1.msra.mxu0 %v1445
      %1607 = vmatprep.subr.mxu0 0.0
      %1608 = vmatpush1.msra.mxu0 %v1446
      %1609 = vmatprep.subr.mxu0 0.0
      %1610 = vmatpush1.msra.mxu0 %v1447
      %1611 = vmatprep.subr.mxu0 0.0
      %1612 = vmatpush1.msra.mxu0 %v1448
      %1613 = vmatprep.subr.mxu0 0.0
      %1614 = vmatpush1.msra.mxu0 %v1449
      %1615 = vmatprep.subr.mxu0 0.0
      %1616 = vmatpush1.msra.mxu0 %v1450
      %1617 = vmatprep.subr.mxu0 0.0
      %1618 = vmatpush1.msra.mxu0 %v1451
      %1619 = vmatprep.subr.mxu0 0.0
      %1620 = vmatpush1.msra.mxu0 %v1452
      %1621 = vmatprep.subr.mxu0 0.0
      %1622 = vmatpush1.msra.mxu0 %v1453
      %1623 = vmatprep.subr.mxu0 0.0
      %1624 = vmatpush1.msra.mxu0 %v1454
      %1625 = vmatprep.subr.mxu0 0.0
      %1626 = vmatpush1.msra.mxu0 %v1455
      %1627 = vmatprep.mubr.f32.mxu0 %v1392
      %1628 = vmatmul.mubr.f32.gmra.mrb[0].mxu0 %v1296
      %v1629 = vpop.f32.mrb[0].mxu0
      %v1630 = vadd.f32 %v1465, %v1629
      %v1631 = vpop.f32.mrb[0].mxu0
      %1632 = vmatprep.mubr.f32.mxu0 %v1393
      %1633 = vmatmul.mubr.f32.gmra.mrb[0].mxu0 %v1297
      %v1634 = vpop.f32.mrb[0].mxu0
      %v1635 = vadd.f32 %v1465, %v1634
      %v1636 = vpop.f32.mrb[0].mxu0
      %1637 = vmatprep.mubr.f32.mxu0 %v1394
      %1638 = vmatmul.mubr.f32.gmra.mrb[0].mxu0 %v1298
      %v1639 = vpop.f32.mrb[0].mxu0
      %v1640 = vadd.f32 %v1465, %v1639
      %v1641 = vpop.f32.mrb[0].mxu0
      %1642 = vmatprep.mubr.f32.mxu0 %v1395
      %1643 = vmatmul.mubr.f32.gmra.mrb[0].mxu0 %v1299
      %v1644 = vpop.f32.mrb[0].mxu0
      %v1645 = vadd.f32 %v1465, %v1644
      %v1646 = vpop.f32.mrb[0].mxu0
      %1647 = vmatprep.mubr.f32.mxu0 %v1396
      %1648 = vmatmul.mubr.f32.gmra.mrb[0].mxu0 %v1300
      %v1649 = vpop.f32.mrb[0].mxu0
      %v1650 = vadd.f32 %v1465, %v1649
      %v1651 = vpop.f32.mrb[0].mxu0
      %1652 = vmatprep.mubr.f32.mxu0 %v1397
      %1653 = vmatmul.mubr.f32.gmra.mrb[0].mxu0 %v1301
      %v1654 = vpop.f32.mrb[0].mxu0
      %v1655 = vadd.f32 %v1465, %v1654
      %v1656 = vpop.f32.mrb[0].mxu0
      %1657 = vmatprep.mubr.f32.mxu0 %v1398
      %1658 = vmatmul.mubr.f32.gmra.mrb[0].mxu0 %v1302
      %v1659 = vpop.f32.mrb[0].mxu0
      %v1660 = vadd.f32 %v1465, %v1659
      %v1661 = vpop.f32.mrb[0].mxu0
      %1662 = vmatprep.mubr.f32.mxu0 %v1399
      %1663 = vmatmul.mubr.f32.gmra.mrb[0].mxu0 %v1303
      %v1664 = vpop.f32.mrb[0].mxu0
      %v1665 = vadd.f32 %v1465, %v1664
      %v1666 = vpop.f32.mrb[0].mxu0
      %1667 = vmatprep.mubr.f32.mxu0 %v1400
      %1668 = vmatmul.mubr.f32.gmra.mrb[0].mxu0 %v1304
      %v1669 = vpop.f32.mrb[0].mxu0
      %v1670 = vadd.f32 %v1465, %v1669
      %v1671 = vpop.f32.mrb[0].mxu0
      %1672 = vmatprep.mubr.f32.mxu0 %v1401
      %1673 = vmatmul.mubr.f32.gmra.mrb[0].mxu0 %v1305
      %v1674 = vpop.f32.mrb[0].mxu0
      %v1675 = vadd.f32 %v1465, %v1674
      %v1676 = vpop.f32.mrb[0].mxu0
      %1677 = vmatprep.mubr.f32.mxu0 %v1402
      %1678 = vmatmul.mubr.f32.gmra.mrb[0].mxu0 %v1306
      %v1679 = vpop.f32.mrb[0].mxu0
      %v1680 = vadd.f32 %v1465, %v1679
      %v1681 = vpop.f32.mrb[0].mxu0
      %1682 = vmatprep.mubr.f32.mxu0 %v1403
      %1683 = vmatmul.mubr.f32.gmra.mrb[0].mxu0 %v1307
      %v1684 = vpop.f32.mrb[0].mxu0
      %v1685 = vadd.f32 %v1465, %v1684
      %v1686 = vpop.f32.mrb[0].mxu0
      %1687 = vmatprep.mubr.f32.mxu0 %v1404
      %1688 = vmatmul.mubr.f32.gmra.mrb[0].mxu0 %v1308
      %v1689 = vpop.f32.mrb[0].mxu0
      %v1690 = vadd.f32 %v1465, %v1689
      %v1691 = vpop.f32.mrb[0].mxu0
      %1692 = vmatprep.mubr.f32.mxu0 %v1405
      %1693 = vmatmul.mubr.f32.gmra.mrb[0].mxu0 %v1309
      %v1694 = vpop.f32.mrb[0].mxu0
      %v1695 = vadd.f32 %v1465, %v1694
      %v1696 = vpop.f32.mrb[0].mxu0
      %1697 = vmatprep.mubr.f32.mxu0 %v1406
      %1698 = vmatmul.mubr.f32.gmra.mrb[0].mxu0 %v1310
      %v1699 = vpop.f32.mrb[0].mxu0
      %v1700 = vadd.f32 %v1465, %v1699
      %v1701 = vpop.f32.mrb[0].mxu0
      %1702 = vmatprep.mubr.f32.mxu0 %v1407
      %1703 = vmatmul.mubr.f32.gmra.mrb[0].mxu0 %v1311
      %v1704 = vpop.f32.mrb[0].mxu0
      %v1705 = vadd.f32 %v1465, %v1704
      %v1706 = vpop.f32.mrb[0].mxu0
      %1707 = vmatprep.mubr.f32.mxu0 %v1408
      %1708 = vmatmul.mubr.f32.gmra.mrb[0].mxu0 %v1312
      %v1709 = vpop.f32.mrb[0].mxu0
      %v1710 = vadd.f32 %v1465, %v1709
      %v1711 = vpop.f32.mrb[0].mxu0
      %1712 = vmatprep.mubr.f32.mxu0 %v1409
      %1713 = vmatmul.mubr.f32.gmra.mrb[0].mxu0 %v1313
      %v1714 = vpop.f32.mrb[0].mxu0
      %v1715 = vadd.f32 %v1465, %v1714
      %v1716 = vpop.f32.mrb[0].mxu0
      %1717 = vmatprep.mubr.f32.mxu0 %v1410
      %1718 = vmatmul.mubr.f32.gmra.mrb[0].mxu0 %v1314
      %v1719 = vpop.f32.mrb[0].mxu0
      %v1720 = vadd.f32 %v1465, %v1719
      %v1721 = vpop.f32.mrb[0].mxu0
      %1722 = vmatprep.mubr.f32.mxu0 %v1411
      %1723 = vmatmul.mubr.f32.gmra.mrb[0].mxu0 %v1315
      %v1724 = vpop.f32.mrb[0].mxu0
      %v1725 = vadd.f32 %v1465, %v1724
      %v1726 = vpop.f32.mrb[0].mxu0
      %1727 = vmatprep.mubr.f32.mxu0 %v1412
      %1728 = vmatmul.mubr.f32.gmra.mrb[0].mxu0 %v1316
      %v1729 = vpop.f32.mrb[0].mxu0
      %v1730 = vadd.f32 %v1465, %v1729
      %v1731 = vpop.f32.mrb[0].mxu0
      %1732 = vmatprep.mubr.f32.mxu0 %v1413
      %1733 = vmatmul.mubr.f32.gmra.mrb[0].mxu0 %v1317
      %v1734 = vpop.f32.mrb[0].mxu0
      %v1735 = vadd.f32 %v1465, %v1734
      %v1736 = vpop.f32.mrb[0].mxu0
      %1737 = vmatprep.mubr.f32.mxu0 %v1414
      %1738 = vmatmul.mubr.f32.gmra.mrb[0].mxu0 %v1318
      %v1739 = vpop.f32.mrb[0].mxu0
      %v1740 = vadd.f32 %v1465, %v1739
      %v1741 = vpop.f32.mrb[0].mxu0
      %1742 = vmatprep.mubr.f32.mxu0 %v1415
      %1743 = vmatmul.mubr.f32.gmra.mrb[0].mxu0 %v1319
      %v1744 = vpop.f32.mrb[0].mxu0
      %v1745 = vadd.f32 %v1465, %v1744
      %v1746 = vpop.f32.mrb[0].mxu0
      %1747 = vmatprep.mubr.f32.mxu0 %v1416
      %1748 = vmatmul.mubr.f32.gmra.mrb[0].mxu0 %v1320
      %v1749 = vpop.f32.mrb[0].mxu0
      %v1750 = vadd.f32 %v1465, %v1749
      %v1751 = vpop.f32.mrb[0].mxu0
      %1752 = vmatprep.mubr.f32.mxu0 %v1417
      %1753 = vmatmul.mubr.f32.gmra.mrb[0].mxu0 %v1321
      %v1754 = vpop.f32.mrb[0].mxu0
      %v1755 = vadd.f32 %v1465, %v1754
      %v1756 = vpop.f32.mrb[0].mxu0
      %1757 = vmatprep.mubr.f32.mxu0 %v1418
      %1758 = vmatmul.mubr.f32.gmra.mrb[0].mxu0 %v1322
      %v1759 = vpop.f32.mrb[0].mxu0
      %v1760 = vadd.f32 %v1465, %v1759
      %v1761 = vpop.f32.mrb[0].mxu0
      %1762 = vmatprep.mubr.f32.mxu0 %v1419
      %1763 = vmatmul.mubr.f32.gmra.mrb[0].mxu0 %v1323
      %v1764 = vpop.f32.mrb[0].mxu0
      %v1765 = vadd.f32 %v1465, %v1764
      %v1766 = vpop.f32.mrb[0].mxu0
      %1767 = vmatprep.mubr.f32.mxu0 %v1420
      %1768 = vmatmul.mubr.f32.gmra.mrb[0].mxu0 %v1324
      %v1769 = vpop.f32.mrb[0].mxu0
      %v1770 = vadd.f32 %v1465, %v1769
      %v1771 = vpop.f32.mrb[0].mxu0
      %1772 = vmatprep.mubr.f32.mxu0 %v1421
      %1773 = vmatmul.mubr.f32.gmra.mrb[0].mxu0 %v1325
      %v1774 = vpop.f32.mrb[0].mxu0
      %v1775 = vadd.f32 %v1465, %v1774
      %v1776 = vpop.f32.mrb[0].mxu0
      %1777 = vmatprep.mubr.f32.mxu0 %v1422
      %1778 = vmatmul.mubr.f32.gmra.mrb[0].mxu0 %v1326
      %v1779 = vpop.f32.mrb[0].mxu0
      %v1780 = vadd.f32 %v1465, %v1779
      %v1781 = vpop.f32.mrb[0].mxu0
      %1782 = vmatprep.mubr.f32.mxu0 %v1423
      %1783 = vmatmul.mubr.f32.gmra.mrb[0].mxu0 %v1327
      %v1784 = vpop.f32.mrb[0].mxu0
      %v1785 = vadd.f32 %v1465, %v1784
      %v1786 = vpop.f32.mrb[0].mxu0
      %1787 = vdwg.mxu0
      %1788 = vmatprep.subr.mxu0 0.0
      %1789 = vmatpush1.msra.mxu0 %v1456
      %1790 = vmatprep.subr.mxu0 0.0
      %1791 = vmatpush1.msra.mxu0 %v1457
      %1792 = vmatprep.subr.mxu0 0.0
      %1793 = vmatpush1.msra.mxu0 %v1458
      %1794 = vmatprep.subr.mxu0 0.0
      %1795 = vmatpush1.msra.mxu0 %v1459
      %1796 = vmatprep.subr.mxu0 0.0
      %1797 = vmatpush1.msra.mxu0 0.0
      %1798 = vmatprep.subr.mxu0 0.0
      %1799 = vmatpush1.msra.mxu0 0.0
      %1800 = vmatprep.subr.mxu0 0.0
      %1801 = vmatpush1.msra.mxu0 0.0
      %1802 = vmatprep.subr.mxu0 0.0
      %1803 = vmatpush1.msra.mxu0 0.0
      %1804 = vmatprep.subr.mxu0 0.0
      %1805 = vmatpush1.msra.mxu0 0.0
      %1806 = vmatprep.subr.mxu0 0.0
      %1807 = vmatpush1.msra.mxu0 0.0
      %1808 = vmatprep.subr.mxu0 0.0
      %1809 = vmatpush1.msra.mxu0 0.0
      %1810 = vmatprep.subr.mxu0 0.0
      %1811 = vmatpush1.msra.mxu0 0.0
      %1812 = vmatprep.subr.mxu0 0.0
      %1813 = vmatpush1.msra.mxu0 0.0
      %1814 = vmatprep.subr.mxu0 0.0
      %1815 = vmatpush1.msra.mxu0 0.0
      %1816 = vmatprep.subr.mxu0 0.0
      %1817 = vmatpush1.msra.mxu0 0.0
      %1818 = vmatprep.subr.mxu0 0.0
      %1819 = vmatpush1.msra.mxu0 0.0
      %1820 = vmatprep.subr.mxu0 0.0
      %1821 = vmatpush1.msra.mxu0 0.0
      %1822 = vmatprep.subr.mxu0 0.0
      %1823 = vmatpush1.msra.mxu0 0.0
      %1824 = vmatprep.subr.mxu0 0.0
      %1825 = vmatpush1.msra.mxu0 0.0
      %1826 = vmatprep.subr.mxu0 0.0
      %1827 = vmatpush1.msra.mxu0 0.0
      %1828 = vmatprep.subr.mxu0 0.0
      %1829 = vmatpush1.msra.mxu0 0.0
      %1830 = vmatprep.subr.mxu0 0.0
      %1831 = vmatpush1.msra.mxu0 0.0
      %1832 = vmatprep.subr.mxu0 0.0
      %1833 = vmatpush1.msra.mxu0 0.0
      %1834 = vmatprep.subr.mxu0 0.0
      %1835 = vmatpush1.msra.mxu0 0.0
      %1836 = vmatprep.subr.mxu0 0.0
      %1837 = vmatpush1.msra.mxu0 0.0
      %1838 = vmatprep.subr.mxu0 0.0
      %1839 = vmatpush1.msra.mxu0 0.0
      %1840 = vmatprep.subr.mxu0 0.0
      %1841 = vmatpush1.msra.mxu0 0.0
      %1842 = vmatprep.subr.mxu0 0.0
      %1843 = vmatpush1.msra.mxu0 0.0
      %1844 = vmatprep.subr.mxu0 0.0
      %1845 = vmatpush1.msra.mxu0 0.0
      %1846 = vmatprep.subr.mxu0 0.0
      %1847 = vmatpush1.msra.mxu0 0.0
      %1848 = vmatprep.subr.mxu0 0.0
      %1849 = vmatpush1.msra.mxu0 0.0
      %1850 = vmatprep.subr.mxu0 0.0
      %1851 = vmatpush1.msra.mxu0 0.0
      %1852 = vmatprep.mubr.f32.mxu0 0.0
      %1853 = vmatmul.mubr.f32.gmra.mrb[0].mxu0 %v1468
      %v1854 = vpop.f32.mrb[0].mxu0
      %v1855 = vadd.f32 %v1630, %v1854
      %v1856 = vpop.f32.mrb[0].mxu0
      %1857 = vmatprep.mubr.f32.mxu0 0.0
      %1858 = vmatmul.mubr.f32.gmra.mrb[0].mxu0 %v1471
      %v1859 = vpop.f32.mrb[0].mxu0
      %v1860 = vadd.f32 %v1635, %v1859
      %v1861 = vpop.f32.mrb[0].mxu0
      %1862 = vmatprep.mubr.f32.mxu0 0.0
      %1863 = vmatmul.mubr.f32.gmra.mrb[0].mxu0 %v1474
      %v1864 = vpop.f32.mrb[0].mxu0
      %v1865 = vadd.f32 %v1640, %v1864
      %v1866 = vpop.f32.mrb[0].mxu0
      %1867 = vmatprep.mubr.f32.mxu0 0.0
      %1868 = vmatmul.mubr.f32.gmra.mrb[0].mxu0 %v1477
      %v1869 = vpop.f32.mrb[0].mxu0
      %v1870 = vadd.f32 %v1645, %v1869
      %v1871 = vpop.f32.mrb[0].mxu0
      %1872 = vmatprep.mubr.f32.mxu0 0.0
      %1873 = vmatmul.mubr.f32.gmra.mrb[0].mxu0 %v1480
      %v1874 = vpop.f32.mrb[0].mxu0
      %v1875 = vadd.f32 %v1650, %v1874
      %v1876 = vpop.f32.mrb[0].mxu0
      %1877 = vmatprep.mubr.f32.mxu0 0.0
      %1878 = vmatmul.mubr.f32.gmra.mrb[0].mxu0 %v1483
      %v1879 = vpop.f32.mrb[0].mxu0
      %v1880 = vadd.f32 %v1655, %v1879
      %v1881 = vpop.f32.mrb[0].mxu0
      %1882 = vmatprep.mubr.f32.mxu0 0.0
      %1883 = vmatmul.mubr.f32.gmra.mrb[0].mxu0 %v1486
      %v1884 = vpop.f32.mrb[0].mxu0
      %v1885 = vadd.f32 %v1660, %v1884
      %v1886 = vpop.f32.mrb[0].mxu0
      %1887 = vmatprep.mubr.f32.mxu0 0.0
      %1888 = vmatmul.mubr.f32.gmra.mrb[0].mxu0 %v1489
      %v1889 = vpop.f32.mrb[0].mxu0
      %v1890 = vadd.f32 %v1665, %v1889
      %v1891 = vpop.f32.mrb[0].mxu0
      %1892 = vmatprep.mubr.f32.mxu0 0.0
      %1893 = vmatmul.mubr.f32.gmra.mrb[0].mxu0 %v1492
      %v1894 = vpop.f32.mrb[0].mxu0
      %v1895 = vadd.f32 %v1670, %v1894
      %v1896 = vpop.f32.mrb[0].mxu0
      %1897 = vmatprep.mubr.f32.mxu0 0.0
      %1898 = vmatmul.mubr.f32.gmra.mrb[0].mxu0 %v1495
      %v1899 = vpop.f32.mrb[0].mxu0
      %v1900 = vadd.f32 %v1675, %v1899
      %v1901 = vpop.f32.mrb[0].mxu0
      %1902 = vmatprep.mubr.f32.mxu0 0.0
      %1903 = vmatmul.mubr.f32.gmra.mrb[0].mxu0 %v1498
      %v1904 = vpop.f32.mrb[0].mxu0
      %v1905 = vadd.f32 %v1680, %v1904
      %v1906 = vpop.f32.mrb[0].mxu0
      %1907 = vmatprep.mubr.f32.mxu0 0.0
      %1908 = vmatmul.mubr.f32.gmra.mrb[0].mxu0 %v1501
      %v1909 = vpop.f32.mrb[0].mxu0
      %v1910 = vadd.f32 %v1685, %v1909
      %v1911 = vpop.f32.mrb[0].mxu0
      %1912 = vmatprep.mubr.f32.mxu0 0.0
      %1913 = vmatmul.mubr.f32.gmra.mrb[0].mxu0 %v1504
      %v1914 = vpop.f32.mrb[0].mxu0
      %v1915 = vadd.f32 %v1690, %v1914
      %v1916 = vpop.f32.mrb[0].mxu0
      %1917 = vmatprep.mubr.f32.mxu0 0.0
      %1918 = vmatmul.mubr.f32.gmra.mrb[0].mxu0 %v1507
      %v1919 = vpop.f32.mrb[0].mxu0
      %v1920 = vadd.f32 %v1695, %v1919
      %v1921 = vpop.f32.mrb[0].mxu0
      %1922 = vmatprep.mubr.f32.mxu0 0.0
      %1923 = vmatmul.mubr.f32.gmra.mrb[0].mxu0 %v1510
      %v1924 = vpop.f32.mrb[0].mxu0
      %v1925 = vadd.f32 %v1700, %v1924
      %v1926 = vpop.f32.mrb[0].mxu0
      %1927 = vmatprep.mubr.f32.mxu0 0.0
      %1928 = vmatmul.mubr.f32.gmra.mrb[0].mxu0 %v1513
      %v1929 = vpop.f32.mrb[0].mxu0
      %v1930 = vadd.f32 %v1705, %v1929
      %v1931 = vpop.f32.mrb[0].mxu0
      %1932 = vmatprep.mubr.f32.mxu0 0.0
      %1933 = vmatmul.mubr.f32.gmra.mrb[0].mxu0 %v1516
      %v1934 = vpop.f32.mrb[0].mxu0
      %v1935 = vadd.f32 %v1710, %v1934
      %v1936 = vpop.f32.mrb[0].mxu0
      %1937 = vmatprep.mubr.f32.mxu0 0.0
      %1938 = vmatmul.mubr.f32.gmra.mrb[0].mxu0 %v1519
      %v1939 = vpop.f32.mrb[0].mxu0
      %v1940 = vadd.f32 %v1715, %v1939
      %v1941 = vpop.f32.mrb[0].mxu0
      %1942 = vmatprep.mubr.f32.mxu0 0.0
      %1943 = vmatmul.mubr.f32.gmra.mrb[0].mxu0 %v1522
      %v1944 = vpop.f32.mrb[0].mxu0
      %v1945 = vadd.f32 %v1720, %v1944
      %v1946 = vpop.f32.mrb[0].mxu0
      %1947 = vmatprep.mubr.f32.mxu0 0.0
      %1948 = vmatmul.mubr.f32.gmra.mrb[0].mxu0 %v1525
      %v1949 = vpop.f32.mrb[0].mxu0
      %v1950 = vadd.f32 %v1725, %v1949
      %v1951 = vpop.f32.mrb[0].mxu0
      %1952 = vmatprep.mubr.f32.mxu0 0.0
      %1953 = vmatmul.mubr.f32.gmra.mrb[0].mxu0 %v1528
      %v1954 = vpop.f32.mrb[0].mxu0
      %v1955 = vadd.f32 %v1730, %v1954
      %v1956 = vpop.f32.mrb[0].mxu0
      %1957 = vmatprep.mubr.f32.mxu0 0.0
      %1958 = vmatmul.mubr.f32.gmra.mrb[0].mxu0 %v1531
      %v1959 = vpop.f32.mrb[0].mxu0
      %v1960 = vadd.f32 %v1735, %v1959
      %v1961 = vpop.f32.mrb[0].mxu0
      %1962 = vmatprep.mubr.f32.mxu0 0.0
      %1963 = vmatmul.mubr.f32.gmra.mrb[0].mxu0 %v1534
      %v1964 = vpop.f32.mrb[0].mxu0
      %v1965 = vadd.f32 %v1740, %v1964
      %v1966 = vpop.f32.mrb[0].mxu0
      %1967 = vmatprep.mubr.f32.mxu0 0.0
      %1968 = vmatmul.mubr.f32.gmra.mrb[0].mxu0 %v1537
      %v1969 = vpop.f32.mrb[0].mxu0
      %v1970 = vadd.f32 %v1745, %v1969
      %v1971 = vpop.f32.mrb[0].mxu0
      %1972 = vmatprep.mubr.f32.mxu0 0.0
      %1973 = vmatmul.mubr.f32.gmra.mrb[0].mxu0 %v1540
      %v1974 = vpop.f32.mrb[0].mxu0
      %v1975 = vadd.f32 %v1750, %v1974
      %v1976 = vpop.f32.mrb[0].mxu0
      %1977 = vmatprep.mubr.f32.mxu0 0.0
      %1978 = vmatmul.mubr.f32.gmra.mrb[0].mxu0 %v1543
      %v1979 = vpop.f32.mrb[0].mxu0
      %v1980 = vadd.f32 %v1755, %v1979
      %v1981 = vpop.f32.mrb[0].mxu0
      %1982 = vmatprep.mubr.f32.mxu0 0.0
      %1983 = vmatmul.mubr.f32.gmra.mrb[0].mxu0 %v1546
      %v1984 = vpop.f32.mrb[0].mxu0
      %v1985 = vadd.f32 %v1760, %v1984
      %v1986 = vpop.f32.mrb[0].mxu0
      %1987 = vmatprep.mubr.f32.mxu0 0.0
      %1988 = vmatmul.mubr.f32.gmra.mrb[0].mxu0 %v1549
      %v1989 = vpop.f32.mrb[0].mxu0
      %v1990 = vadd.f32 %v1765, %v1989
      %v1991 = vpop.f32.mrb[0].mxu0
      %1992 = vmatprep.mubr.f32.mxu0 0.0
      %1993 = vmatmul.mubr.f32.gmra.mrb[0].mxu0 %v1552
      %v1994 = vpop.f32.mrb[0].mxu0
      %v1995 = vadd.f32 %v1770, %v1994
      %v1996 = vpop.f32.mrb[0].mxu0
      %1997 = vmatprep.mubr.f32.mxu0 0.0
      %1998 = vmatmul.mubr.f32.gmra.mrb[0].mxu0 %v1555
      %v1999 = vpop.f32.mrb[0].mxu0
      %v2000 = vadd.f32 %v1775, %v1999
      %v2001 = vpop.f32.mrb[0].mxu0
      %2002 = vmatprep.mubr.f32.mxu0 0.0
      %2003 = vmatmul.mubr.f32.gmra.mrb[0].mxu0 %v1558
      %v2004 = vpop.f32.mrb[0].mxu0
      %v2005 = vadd.f32 %v1780, %v2004
      %v2006 = vpop.f32.mrb[0].mxu0
      %2007 = vmatprep.mubr.f32.mxu0 0.0
      %2008 = vmatmul.mubr.f32.gmra.mrb[0].mxu0 %v1561
      %v2009 = vpop.f32.mrb[0].mxu0
      %v2010 = vadd.f32 %v1785, %v2009
      %v2011 = vpop.f32.mrb[0].mxu0
      %2012 = vdwg.mxu0
      %v2013 = vmax.f32 %v1855, 0.0
      %v2014 = vmax.f32 %v1860, 0.0
      %v2015 = vmax.f32 %v1865, 0.0
      %v2016 = vmax.f32 %v1870, 0.0
      %v2017 = vmax.f32 %v1875, 0.0
      %v2018 = vmax.f32 %v1880, 0.0
      %v2019 = vmax.f32 %v1885, 0.0
      %v2020 = vmax.f32 %v1890, 0.0
      %v2021 = vmax.f32 %v1895, 0.0
      %v2022 = vmax.f32 %v1900, 0.0
      %v2023 = vmax.f32 %v1905, 0.0
      %v2024 = vmax.f32 %v1910, 0.0
      %v2025 = vmax.f32 %v1915, 0.0
      %v2026 = vmax.f32 %v1920, 0.0
      %v2027 = vmax.f32 %v1925, 0.0
      %v2028 = vmax.f32 %v1930, 0.0
      %v2029 = vmax.f32 %v1935, 0.0
      %v2030 = vmax.f32 %v1940, 0.0
      %v2031 = vmax.f32 %v1945, 0.0
      %v2032 = vmax.f32 %v1950, 0.0
      %v2033 = vmax.f32 %v1955, 0.0
      %v2034 = vmax.f32 %v1960, 0.0
      %v2035 = vmax.f32 %v1965, 0.0
      %v2036 = vmax.f32 %v1970, 0.0
      %v2037 = vmax.f32 %v1975, 0.0
      %v2038 = vmax.f32 %v1980, 0.0
      %v2039 = vmax.f32 %v1985, 0.0
      %v2040 = vmax.f32 %v1990, 0.0
      %v2041 = vmax.f32 %v1995, 0.0
      %v2042 = vmax.f32 %v2000, 0.0
      %v2043 = vmax.f32 %v2005, 0.0
      %v2044 = vmax.f32 %v2010, 0.0
      %v2045 = vmax.f32 %v2013, %v2015
      %v2046 = vmax.f32 %v2014, %v2016
      %v2047 = vmax.f32 %v2017, %v2019
      %v2048 = vmax.f32 %v2018, %v2020
      %v2049 = vmax.f32 %v2021, %v2023
      %v2050 = vmax.f32 %v2022, %v2024
      %v2051 = vmax.f32 %v2025, %v2027
      %v2052 = vmax.f32 %v2026, %v2028
      %v2053 = vmax.f32 %v2029, %v2031
      %v2054 = vmax.f32 %v2030, %v2032
      %v2055 = vmax.f32 %v2033, %v2035
      %v2056 = vmax.f32 %v2034, %v2036
      %v2057 = vmax.f32 %v2037, %v2039
      %v2058 = vmax.f32 %v2038, %v2040
      %v2059 = vmax.f32 %v2041, %v2043
      %v2060 = vmax.f32 %v2042, %v2044
      %2061 = vst.msk [vmem:[#allocation2] sm:$0xff] %vm1262, %v2045
      %2062 = vst.msk [vmem:[#allocation2 + $0x8] sm:$0xff] %vm1262, %v2046
      %2063 = vst.msk [vmem:[#allocation2 + $0x10] sm:$0xff] %vm1262, %v2047
      %2064 = vst.msk [vmem:[#allocation2 + $0x18] sm:$0xff] %vm1262, %v2048
      %2065 = vst.msk [vmem:[#allocation2 + $0x20] sm:$0xff] %vm1262, %v2049
      %2066 = vst.msk [vmem:[#allocation2 + $0x28] sm:$0xff] %vm1262, %v2050
      %2067 = vst.msk [vmem:[#allocation2 + $0x30] sm:$0xff] %vm1262, %v2051
      %2068 = vst.msk [vmem:[#allocation2 + $0x38] sm:$0xff] %vm1262, %v2052
      %2069 = vst.msk [vmem:[#allocation2 + $0x40] sm:$0xff] %vm1262, %v2053
      %2070 = vst.msk [vmem:[#allocation2 + $0x48] sm:$0xff] %vm1262, %v2054
      %2071 = vst.msk [vmem:[#allocation2 + $0x50] sm:$0xff] %vm1262, %v2055
      %2072 = vst.msk [vmem:[#allocation2 + $0x58] sm:$0xff] %vm1262, %v2056
      %2073 = vst.msk [vmem:[#allocation2 + $0x60] sm:$0xff] %vm1262, %v2057
      %2074 = vst.msk [vmem:[#allocation2 + $0x68] sm:$0xff] %vm1262, %v2058
      %2075 = vst.msk [vmem:[#allocation2 + $0x70] sm:$0xff] %vm1262, %v2059
      %2076 = vst.msk [vmem:[#allocation2 + $0x78] sm:$0xff] %vm1262, %v2060
      %v2077 = vld [vmem:[#allocation2] ss:$2 sm:$0xff]
      %s2078 = scalar_lea.vmem [#allocation2], 16
      %v2079 = vld [vmem:[%s2078] ss:$2 sm:$0xff]
      %s2080 = scalar_lea.vmem [#allocation2], 32
      %v2081 = vld [vmem:[%s2080] ss:$2 sm:$0xff]
      %s2082 = scalar_lea.vmem [#allocation2], 48
      %v2083 = vld [vmem:[%s2082] ss:$2 sm:$0xff]
      %s2084 = scalar_lea.vmem [#allocation2], 64
      %v2085 = vld [vmem:[%s2084] ss:$2 sm:$0xff]
      %s2086 = scalar_lea.vmem [#allocation2], 80
      %v2087 = vld [vmem:[%s2086] ss:$2 sm:$0xff]
      %s2088 = scalar_lea.vmem [#allocation2], 96
      %v2089 = vld [vmem:[%s2088] ss:$2 sm:$0xff]
      %s2090 = scalar_lea.vmem [#allocation2], 112
      %v2091 = vld [vmem:[%s2090] ss:$2 sm:$0xff]
      %s2092 = scalar_lea.vmem [#allocation2], 1
      %v2093 = vld [vmem:[%s2092] ss:$2 sm:$0xff]
      %s2094 = scalar_lea.vmem [#allocation2], 17
      %v2095 = vld [vmem:[%s2094] ss:$2 sm:$0xff]
      %s2096 = scalar_lea.vmem [#allocation2], 33
      %v2097 = vld [vmem:[%s2096] ss:$2 sm:$0xff]
      %s2098 = scalar_lea.vmem [#allocation2], 49
      %v2099 = vld [vmem:[%s2098] ss:$2 sm:$0xff]
      %s2100 = scalar_lea.vmem [#allocation2], 65
      %v2101 = vld [vmem:[%s2100] ss:$2 sm:$0xff]
      %s2102 = scalar_lea.vmem [#allocation2], 81
      %v2103 = vld [vmem:[%s2102] ss:$2 sm:$0xff]
      %s2104 = scalar_lea.vmem [#allocation2], 97
      %v2105 = vld [vmem:[%s2104] ss:$2 sm:$0xff]
      %s2106 = scalar_lea.vmem [#allocation2], 113
      %v2107 = vld [vmem:[%s2106] ss:$2 sm:$0xff]
      %v2108 = vmax.f32 %v2077, %v2093
      %v2109 = vmax.f32 %v2079, %v2095
      %v2110 = vmax.f32 %v2081, %v2097
      %v2111 = vmax.f32 %v2083, %v2099
      %v2112 = vmax.f32 %v2085, %v2101
      %v2113 = vmax.f32 %v2087, %v2103
      %v2114 = vmax.f32 %v2089, %v2105
      %v2115 = vmax.f32 %v2091, %v2107
      %2116 = vst.msk [vmem:[%s170] sm:$0xff] %vm1262, %v2108
      %2117 = vst.msk [vmem:[%s170 + $0x8] sm:$0xff] %vm1262, %v2109
      %2118 = vst.msk [vmem:[%s170 + $0x10] sm:$0xff] %vm1262, %v2110
      %2119 = vst.msk [vmem:[%s170 + $0x18] sm:$0xff] %vm1262, %v2111
      %2120 = vst.msk [vmem:[%s170 + $0x20] sm:$0xff] %vm1262, %v2112
      %2121 = vst.msk [vmem:[%s170 + $0x28] sm:$0xff] %vm1262, %v2113
      %2122 = vst.msk [vmem:[%s170 + $0x30] sm:$0xff] %vm1262, %v2114
      %2123 = vst.msk [vmem:[%s170 + $0x38] sm:$0xff] %vm1262, %v2115
      %p2124 = scmp.lt.s32.totalorder %s14, 1
      %s2125 = scalar_select %p2124, %s14, 1
      %s2126 = smul.addr %s2125, 8
      %s2127 = smul.addr %s2126, 8
      %s2128 = scalar_lea.vmem %s3, %s2127
      // Predicated region
      $region33: #{net_forward.5} parent=31 // pred_check
        %p2129 = pneg %p100
      $region34: #{net_forward.5} parent=31 // pred_check_branch
        %2131 = sbr.rel (%p2129) target = $region36
      $region35: #{net_forward.5} parent=31 // pred_region
        _
      $region36: #{net_forward.5} parent=31 // pred_fallthru
        _
    $region32: #{net_forward.5} parent=5 // pred_fallthru
      _
    %p2132 = scmp.le.s32.totalorder 2, %s9
    // Predicated region
    $region37: #{net_forward.5} parent=5 // pred_check
      %p2133 = pneg %p2132
    $region38: #{net_forward.5} parent=5 // pred_check_branch
      %2135 = sbr.rel (%p2133) target = $region40
    $region39: #{net_forward.5} parent=5 // pred_region
      %s2136 = ssub.s32 %s9, 2
      // Predicated region
      $region41: #{net_forward.5} parent=39 // pred_check
        %p2137 = pneg %p106
      $region42: #{net_forward.5} parent=39 // pred_check_branch
        %2139 = sbr.rel (%p2137) target = $region44
      $region43: #{net_forward.5} parent=39 // pred_region
        %p2140 = scmp.lt.s32.totalorder %s15, 1
        %s2141 = scalar_select %p2140, %s15, 1
        %s2142 = smul.addr %s2141, 8
        %s2143 = smul.addr %s2142, 8
        %s2144 = scalar_lea.vmem %s3, %s2143
      $region44: #{net_forward.5} parent=39 // pred_fallthru
        _
    $region40: #{net_forward.5} parent=5 // pred_fallthru
      _
  $region6: #{net_forward.5} parent=0 // loop_footer
    %s13 = sadd.s32 1, %s9
  $region7: #{net_forward.5} parent=0 // loop_footer_branch
    %8 = sbr.rel target = $region3
  $region8: #{net_forward.5} parent=0 // loop_exit
    _

// kernel: net_forward.7
$region0: #{net_forward.7}
  #allocation0 [shape = 'u32[]', space=smem, size = 0x4, offset = 0x4, fixed_abs, tag = 'smem constant byte address 0x4 - core index']
  #allocation1 [shape = 'u32[144,128]{1,0:T(1,128)}', space=vmem, size = 0x12000, scoped, tag = 'internal scratch']
  #allocation2 [shape = 'f32[2,512]{1,0:T(2,128)}', space=vmem, size = 0x1000, scoped, tag = 'scratch operand']
  %s0 = inlined_call_operand.vmem [shape: f32[2,2048], index: 0, kind: input, shape index: {}]
  %s1 = inlined_call_operand.vmem [shape: f32[2048,512], index: 1, kind: input, shape index: {}]
  %s2 = inlined_call_operand.vmem [shape: f32[1,512], index: 2, kind: input, shape index: {}]
  %s3 = inlined_call_operand.vmem [shape: f32[512,136], index: 3, kind: input, shape index: {}]
  %s4 = inlined_call_operand.vmem [shape: f32[1,136], index: 4, kind: input, shape index: {}]
  %s5 = inlined_call_operand.hbm [shape: f32[2,136], index: 5, kind: output, shape index: {}]
  %s6 = sld [smem:[#allocation0]]
  $region61: #{net_forward.7} parent=0
    _
  %s8 = ssub.s32 1, %s6
  %s9 = scalar_select 0, %s8, %s6
  $region1: #{net_forward.7} parent=0
    #allocation3 [shape = 'u8[2048]{0}', space=vmem, size = 0x800, scoped, tag = 'output window, operand 0, single buffered']
    #allocation4 [shape = 's32[2]{0}', space=sflag, size = 0x8, scoped, tag = 'scoped memory for net_forward.7']
    %10 = vsyncpa [#allocation4], 0
    loop: start=0, step=1, limit=4
    $region2: #{net_forward.7} parent=1 // loop_pre_header
      _
    $region3: #{net_forward.7} parent=1 // loop_header
      %s12 = sphi 0, %s16
      %p13 = scmp.ge.s32.totalorder %s12, 4
      %s22 = sphi 0, %s24
      %s25 = sphi 0, %s22
      %s26 = sphi 0, %s25
      %s42 = sphi 0, %s26
      %s48 = sphi 0, %s50
      %s51 = sphi 0, %s48
      %s52 = sphi 0, %s51
      %s68 = sphi 0, %s52
      %s72 = sphi 0, %s72
      %s74 = sphi 0, %s72
      %s75 = sphi 0, %s74
      %s89 = sphi 0, %s75
      %s93 = sphi 0, %s93
      %s95 = sphi 0, %s93
      %s96 = sphi 0, %s95
      %s110 = sphi 0, %s96
      %s114 = sphi 0, %s114
      %s116 = sphi 0, %s114
      %s117 = sphi 0, %s116
      %s131 = sphi 0, %s117
      %s135 = sphi 0, %s135
      %s137 = sphi 0, %s135
      %s138 = sphi 0, %s137
      %s152 = sphi 0, %s138
    $region4: #{net_forward.7} parent=1 // loop_header_branch
      %15 = sbr.rel (%p13) target = $region8
    $region5: #{net_forward.7} parent=1 // loop_body
      %s17 = ssub.s32 %s12, 1
      %s18 = ssub.s32 %s12, 2
      %s19 = sadd.s32 %s12, 1
      %s20 = ssub.s32 %s12, %s19
      %p21 = scmp.eq.s32.totalorder %s20, 0
      %s23 = sadd.s32 %s22, 1
      %s24 = scalar_select %p21, %s22, %s23
      %p27 = pneg %p21
      %p28 = scmp.eq.s32.totalorder %s12, 1
      %p29 = por %p27, %p28
      %p30 = scmp.ne.s32.totalorder %s22, %s25
      %p31 = scmp.eq.s32.totalorder %s12, 0
      %p32 = por %p30, %p31
      %p33 = scmp.ne.s32.totalorder %s22, %s25
      %p34 = scmp.eq.s32.totalorder %s17, 1
      %p35 = por %p33, %p34
      %p36 = scmp.ne.s32.totalorder %s25, %s26
      %p37 = scmp.eq.s32.totalorder %s17, 0
      %p38 = por %p36, %p37
      %p39 = scmp.ne.s32.totalorder %s25, %s26
      %p40 = scmp.eq.s32.totalorder %s18, 1
      %p41 = por %p39, %p40
      %p43 = scmp.ne.s32.totalorder %s26, %s42
      %p44 = scmp.eq.s32.totalorder %s18, 0
      %p45 = por %p43, %p44
      %s46 = ssub.s32 %s12, %s19
      %p47 = scmp.eq.s32.totalorder %s46, 0
      %s49 = sadd.s32 %s48, 1
      %s50 = scalar_select %p47, %s48, %s49
      %p53 = pneg %p47
      %p54 = scmp.eq.s32.totalorder %s12, 1
      %p55 = por %p53, %p54
      %p56 = scmp.ne.s32.totalorder %s48, %s51
      %p57 = scmp.eq.s32.totalorder %s12, 0
      %p58 = por %p56, %p57
      %p59 = scmp.ne.s32.totalorder %s48, %s51
      %p60 = scmp.eq.s32.totalorder %s17, 1
      %p61 = por %p59, %p60
      %p62 = scmp.ne.s32.totalorder %s51, %s52
      %p63 = scmp.eq.s32.totalorder %s17, 0
      %p64 = por %p62, %p63
      %p65 = scmp.ne.s32.totalorder %s51, %s52
      %p66 = scmp.eq.s32.totalorder %s18, 1
      %p67 = por %p65, %p66
      %p69 = scmp.ne.s32.totalorder %s52, %s68
      %p70 = scmp.eq.s32.totalorder %s18, 0
      %p71 = por %p69, %p70
      %s73 = sadd.s32 %s72, 1
      %p76 = scmp.eq.s32.totalorder %s12, 1
      %p77 = scmp.ne.s32.totalorder %s72, %s74
      %p78 = scmp.eq.s32.totalorder %s12, 0
      %p79 = por %p77, %p78
      %p80 = scmp.ne.s32.totalorder %s72, %s74
      %p81 = scmp.eq.s32.totalorder %s17, 1
      %p82 = por %p80, %p81
      %p83 = scmp.ne.s32.totalorder %s74, %s75
      %p84 = scmp.eq.s32.totalorder %s17, 0
      %p85 = por %p83, %p84
      %p86 = scmp.ne.s32.totalorder %s74, %s75
      %p87 = scmp.eq.s32.totalorder %s18, 1
      %p88 = por %p86, %p87
      %p90 = scmp.ne.s32.totalorder %s75, %s89
      %p91 = scmp.eq.s32.totalorder %s18, 0
      %p92 = por %p90, %p91
      %s94 = sadd.s32 %s93, 1
      %p97 = scmp.eq.s32.totalorder %s12, 1
      %p98 = scmp.ne.s32.totalorder %s93, %s95
      %p99 = scmp.eq.s32.totalorder %s12, 0
      %p100 = por %p98, %p99
      %p101 = scmp.ne.s32.totalorder %s93, %s95
      %p102 = scmp.eq.s32.totalorder %s17, 1
      %p103 = por %p101, %p102
      %p104 = scmp.ne.s32.totalorder %s95, %s96
      %p105 = scmp.eq.s32.totalorder %s17, 0
      %p106 = por %p104, %p105
      %p107 = scmp.ne.s32.totalorder %s95, %s96
      %p108 = scmp.eq.s32.totalorder %s18, 1
      %p109 = por %p107, %p108
      %p111 = scmp.ne.s32.totalorder %s96, %s110
      %p112 = scmp.eq.s32.totalorder %s18, 0
      %p113 = por %p111, %p112
      %s115 = sadd.s32 %s114, 1
      %p118 = scmp.eq.s32.totalorder %s12, 1
      %p119 = scmp.ne.s32.totalorder %s114, %s116
      %p120 = scmp.eq.s32.totalorder %s12, 0
      %p121 = por %p119, %p120
      %p122 = scmp.ne.s32.totalorder %s114, %s116
      %p123 = scmp.eq.s32.totalorder %s17, 1
      %p124 = por %p122, %p123
      %p125 = scmp.ne.s32.totalorder %s116, %s117
      %p126 = scmp.eq.s32.totalorder %s17, 0
      %p127 = por %p125, %p126
      %p128 = scmp.ne.s32.totalorder %s116, %s117
      %p129 = scmp.eq.s32.totalorder %s18, 1
      %p130 = por %p128, %p129
      %p132 = scmp.ne.s32.totalorder %s117, %s131
      %p133 = scmp.eq.s32.totalorder %s18, 0
      %p134 = por %p132, %p133
      %s136 = sadd.s32 %s135, 1
      %p139 = scmp.eq.s32.totalorder %s12, 1
      %p140 = scmp.ne.s32.totalorder %s135, %s137
      %p141 = scmp.eq.s32.totalorder %s12, 0
      %p142 = por %p140, %p141
      %p143 = scmp.ne.s32.totalorder %s135, %s137
      %p144 = scmp.eq.s32.totalorder %s17, 1
      %p145 = por %p143, %p144
      %p146 = scmp.ne.s32.totalorder %s137, %s138
      %p147 = scmp.eq.s32.totalorder %s17, 0
      %p148 = por %p146, %p147
      %p149 = scmp.ne.s32.totalorder %s137, %s138
      %p150 = scmp.eq.s32.totalorder %s18, 1
      %p151 = por %p149, %p150
      %p153 = scmp.ne.s32.totalorder %s138, %s152
      %p154 = scmp.eq.s32.totalorder %s18, 0
      %p155 = por %p153, %p154
      %p156 = scmp.le.s32.totalorder 1, %s12
      %p157 = scmp.lt.s32.totalorder %s12, 3
      %p158 = pnand %p156, %p157
      %p159 = pneg %p158
      // Predicated region
      $region9: #{net_forward.7} parent=5 // pred_check
        _
      $region10: #{net_forward.7} parent=5 // pred_check_branch
        %161 = sbr.rel (%p158) target = $region12
      $region11: #{net_forward.7} parent=5 // pred_region
        %s162 = ssub.s32 %s12, 1
        // Predicated region
        $region13: #{net_forward.7} parent=11 // pred_check
          %p163 = pneg %p85
        $region14: #{net_forward.7} parent=11 // pred_check_branch
          %165 = sbr.rel (%p163) target = $region16
        $region15: #{net_forward.7} parent=11 // pred_region
          _
        $region16: #{net_forward.7} parent=11 // pred_fallthru
          _
        // Predicated region
        $region17: #{net_forward.7} parent=11 // pred_check
          %p166 = pneg %p106
        $region18: #{net_forward.7} parent=11 // pred_check_branch
          %168 = sbr.rel (%p166) target = $region20
        $region19: #{net_forward.7} parent=11 // pred_region
          _
        $region20: #{net_forward.7} parent=11 // pred_fallthru
          _
        // Predicated region
        $region21: #{net_forward.7} parent=11 // pred_check
          %p169 = pneg %p127
        $region22: #{net_forward.7} parent=11 // pred_check_branch
          %171 = sbr.rel (%p169) target = $region24
        $region23: #{net_forward.7} parent=11 // pred_region
          _
        $region24: #{net_forward.7} parent=11 // pred_fallthru
          _
      $region12: #{net_forward.7} parent=5 // pred_fallthru
        _
      %p172 = scmp.lt.s32.totalorder %s12, 2
      // Predicated region
      $region25: #{net_forward.7} parent=5 // pred_check
        %p173 = pneg %p172
      $region26: #{net_forward.7} parent=5 // pred_check_branch
        %175 = sbr.rel (%p173) target = $region28
      $region27: #{net_forward.7} parent=5 // pred_region
        // Predicated region
        $region29: #{net_forward.7} parent=27 // pred_check
          %p176 = pneg %p32
        $region30: #{net_forward.7} parent=27 // pred_check_branch
          %178 = sbr.rel (%p176) target = $region32
        $region31: #{net_forward.7} parent=27 // pred_region
          %s179 = smul.u32 8, %s12
          %p180 = scmp.lt.s32.totalorder %s179, 15
          %s181 = scalar_select %p180, %s179, 15
          %s182 = smul.addr %s181, 2
          %s183 = scalar_lea.vmem %s0, %s182
          %s184 = smul.u32 8, %s12
        $region32: #{net_forward.7} parent=27 // pred_fallthru
          _
        // Predicated region
        $region33: #{net_forward.7} parent=27 // pred_check
          %p185 = pneg %p58
        $region34: #{net_forward.7} parent=27 // pred_check_branch
          %187 = sbr.rel (%p185) target = $region36
        $region35: #{net_forward.7} parent=27 // pred_region
          %s188 = smul.u32 128, %s12
          %p189 = scmp.lt.s32.totalorder %s188, 255
          %s190 = scalar_select %p189, %s188, 255
          %s191 = smul.addr %s190, 4
          %s192 = smul.addr %s191, 8
          %s193 = scalar_lea.vmem %s1, %s192
          %s194 = smul.u32 128, %s12
        $region36: #{net_forward.7} parent=27 // pred_fallthru
          _
      $region28: #{net_forward.7} parent=5 // pred_fallthru
        _
      %p195 = scmp.le.s32.totalorder 1, %s12
      %p196 = scmp.lt.s32.totalorder %s12, 3
      %p197 = pnand %p195, %p196
      %p198 = pneg %p197
      // Predicated region
      $region37: #{net_forward.7} parent=5 // pred_check
        _
      $region38: #{net_forward.7} parent=5 // pred_check_branch
        %200 = sbr.rel (%p197) target = $region40
      $region39: #{net_forward.7} parent=5 // pred_region
        %s201 = ssub.s32 %s12, 1
        %s202 = smul.u32 8, %s17
        %p203 = scmp.lt.s32.totalorder %s202, 15
        %s204 = scalar_select %p203, %s202, 15
        %s205 = smul.addr %s204, 2
        %s206 = scalar_lea.vmem %s0, %s205
        %p207 = pneg %p38
        %p208 = pneg %p35
        %s209 = smul.u32 128, %s17
        %p210 = scmp.lt.s32.totalorder %s209, 255
        %s211 = scalar_select %p210, %s209, 255
        %s212 = smul.addr %s211, 4
        %s213 = smul.addr %s212, 8
        %s214 = scalar_lea.vmem %s1, %s213
        %p215 = pneg %p64
        %p216 = pneg %p61
        %p217 = pneg %p85
        %p218 = pneg %p82
        %p219 = pneg %p106
        %p220 = pneg %p103
        %p221 = pneg %p127
        %p222 = pneg %p124
        %p223 = pneg %p148
        %p224 = pneg %p145
        %s225 = smul.u32 8, %s17
        %p226 = scmp.lt.s32.totalorder %s225, 15
        %s227 = scalar_select %p226, %s225, 15
        %s228 = smul.addr %s227, 2
        %s229 = scalar_lea.vmem %s0, %s228
        %s230 = smul.u32 8, %s17
        %s231 = smul.u32 128, %s17
        %p232 = scmp.lt.s32.totalorder %s231, 255
        %s233 = scalar_select %p232, %s231, 255
        %s234 = smul.addr %s233, 4
        %s235 = smul.addr %s234, 8
        %s236 = scalar_lea.vmem %s1, %s235
        %s237 = smul.u32 128, %s17
        %p238 = scmp.eq.s32.totalorder %s17, 0
        // Predicated region
        $region41: #{net_forward.7} parent=39 // pred_check
          %p239 = pneg %p238
        $region42: #{net_forward.7} parent=39 // pred_check_branch
          %241 = sbr.rel (%p239) target = $region44
        $region43: #{net_forward.7} parent=39 // pred_region
          %242 = vst [vmem:[#allocation2] sm:$0xff] 0.0
        $region44: #{net_forward.7} parent=39 // pred_fallthru
          _
        %v243 = vld [vmem:[#allocation2] sm:$0xff]
        %v244 = vld [vmem:[%s229] sm:$0xff]
        %v245 = vld [vmem:[%s229 + $0x8] sm:$0xff]
        %v246 = vld [vmem:[%s236] sm:$0xff]
        %v247 = vld [vmem:[%s236 + $0x8] sm:$0xff]
        %v248 = vld [vmem:[%s236 + $0x10] sm:$0xff]
        %v249 = vld [vmem:[%s236 + $0x18] sm:$0xff]
        %v250 = vld [vmem:[%s236 + $0x20] sm:$0xff]
        %v251 = vld [vmem:[%s236 + $0x28] sm:$0xff]
        %v252 = vld [vmem:[%s236 + $0x30] sm:$0xff]
        %v253 = vld [vmem:[%s236 + $0x38] sm:$0xff]
        %v254 = vld [vmem:[%s236 + $0x40] sm:$0xff]
        %v255 = vld [vmem:[%s236 + $0x48] sm:$0xff]
        %v256 = vld [vmem:[%s236 + $0x50] sm:$0xff]
        %v257 = vld [vmem:[%s236 + $0x58] sm:$0xff]
        %v258 = vld [vmem:[%s236 + $0x60] sm:$0xff]
        %v259 = vld [vmem:[%s236 + $0x68] sm:$0xff]
        %v260 = vld [vmem:[%s236 + $0x70] sm:$0xff]
        %v261 = vld [vmem:[%s236 + $0x78] sm:$0xff]
        %v262 = vld [vmem:[%s236 + $0x80] sm:$0xff]
        %v263 = vld [vmem:[%s236 + $0x88] sm:$0xff]
        %v264 = vld [vmem:[%s236 + $0x90] sm:$0xff]
        %v265 = vld [vmem:[%s236 + $0x98] sm:$0xff]
        %v266 = vld [vmem:[%s236 + $0xa0] sm:$0xff]
        %v267 = vld [vmem:[%s236 + $0xa8] sm:$0xff]
        %v268 = vld [vmem:[%s236 + $0xb0] sm:$0xff]
        %v269 = vld [vmem:[%s236 + $0xb8] sm:$0xff]
        %v270 = vld [vmem:[%s236 + $0xc0] sm:$0xff]
        %v271 = vld [vmem:[%s236 + $0xc8] sm:$0xff]
        %v272 = vld [vmem:[%s236 + $0xd0] sm:$0xff]
        %v273 = vld [vmem:[%s236 + $0xd8] sm:$0xff]
        %v274 = vld [vmem:[%s236 + $0xe0] sm:$0xff]
        %v275 = vld [vmem:[%s236 + $0xe8] sm:$0xff]
        %v276 = vld [vmem:[%s236 + $0xf0] sm:$0xff]
        %v277 = vld [vmem:[%s236 + $0xf8] sm:$0xff]
        %v278 = vld [vmem:[%s236 + $0x100] sm:$0xff]
        %v279 = vld [vmem:[%s236 + $0x108] sm:$0xff]
        %v280 = vld [vmem:[%s236 + $0x110] sm:$0xff]
        %v281 = vld [vmem:[%s236 + $0x118] sm:$0xff]
        %v282 = vld [vmem:[%s236 + $0x120] sm:$0xff]
        %v283 = vld [vmem:[%s236 + $0x128] sm:$0xff]
        %v284 = vld [vmem:[%s236 + $0x130] sm:$0xff]
        %v285 = vld [vmem:[%s236 + $0x138] sm:$0xff]
        %v286 = vld [vmem:[%s236 + $0x140] sm:$0xff]
        %v287 = vld [vmem:[%s236 + $0x148] sm:$0xff]
        %v288 = vld [vmem:[%s236 + $0x150] sm:$0xff]
        %v289 = vld [vmem:[%s236 + $0x158] sm:$0xff]
        %v290 = vld [vmem:[%s236 + $0x160] sm:$0xff]
        %v291 = vld [vmem:[%s236 + $0x168] sm:$0xff]
        %v292 = vld [vmem:[%s236 + $0x170] sm:$0xff]
        %v293 = vld [vmem:[%s236 + $0x178] sm:$0xff]
        %v294 = vld [vmem:[%s236 + $0x180] sm:$0xff]
        %v295 = vld [vmem:[%s236 + $0x188] sm:$0xff]
        %v296 = vld [vmem:[%s236 + $0x190] sm:$0xff]
        %v297 = vld [vmem:[%s236 + $0x198] sm:$0xff]
        %v298 = vld [vmem:[%s236 + $0x1a0] sm:$0xff]
        %v299 = vld [vmem:[%s236 + $0x1a8] sm:$0xff]
        %v300 = vld [vmem:[%s236 + $0x1b0] sm:$0xff]
        %v301 = vld [vmem:[%s236 + $0x1b8] sm:$0xff]
        %v302 = vld [vmem:[%s236 + $0x1c0] sm:$0xff]
        %v303 = vld [vmem:[%s236 + $0x1c8] sm:$0xff]
        %v304 = vld [vmem:[%s236 + $0x1d0] sm:$0xff]
        %v305 = vld [vmem:[%s236 + $0x1d8] sm:$0xff]
        %v306 = vld [vmem:[%s236 + $0x1e0] sm:$0xff]
        %v307 = vld [vmem:[%s236 + $0x1e8] sm:$0xff]
        %v308 = vld [vmem:[%s236 + $0x1f0] sm:$0xff]
        %v309 = vld [vmem:[%s236 + $0x1f8] sm:$0xff]
        %v310 = vld [vmem:[%s236 + $0x200] sm:$0xff]
        %v311 = vld [vmem:[%s236 + $0x208] sm:$0xff]
        %v312 = vld [vmem:[%s236 + $0x210] sm:$0xff]
        %v313 = vld [vmem:[%s236 + $0x218] sm:$0xff]
        %v314 = vld [vmem:[%s236 + $0x220] sm:$0xff]
        %v315 = vld [vmem:[%s236 + $0x228] sm:$0xff]
        %v316 = vld [vmem:[%s236 + $0x230] sm:$0xff]
        %v317 = vld [vmem:[%s236 + $0x238] sm:$0xff]
        %v318 = vld [vmem:[%s236 + $0x240] sm:$0xff]
        %v319 = vld [vmem:[%s236 + $0x248] sm:$0xff]
        %v320 = vld [vmem:[%s236 + $0x250] sm:$0xff]
        %v321 = vld [vmem:[%s236 + $0x258] sm:$0xff]
        %v322 = vld [vmem:[%s236 + $0x260] sm:$0xff]
        %v323 = vld [vmem:[%s236 + $0x268] sm:$0xff]
        %v324 = vld [vmem:[%s236 + $0x270] sm:$0xff]
        %v325 = vld [vmem:[%s236 + $0x278] sm:$0xff]
        %v326 = vld [vmem:[%s236 + $0x280] sm:$0xff]
        %v327 = vld [vmem:[%s236 + $0x288] sm:$0xff]
        %v328 = vld [vmem:[%s236 + $0x290] sm:$0xff]
        %v329 = vld [vmem:[%s236 + $0x298] sm:$0xff]
        %v330 = vld [vmem:[%s236 + $0x2a0] sm:$0xff]
        %v331 = vld [vmem:[%s236 + $0x2a8] sm:$0xff]
        %v332 = vld [vmem:[%s236 + $0x2b0] sm:$0xff]
        %v333 = vld [vmem:[%s236 + $0x2b8] sm:$0xff]
        %v334 = vld [vmem:[%s236 + $0x2c0] sm:$0xff]
        %v335 = vld [vmem:[%s236 + $0x2c8] sm:$0xff]
        %v336 = vld [vmem:[%s236 + $0x2d0] sm:$0xff]
        %v337 = vld [vmem:[%s236 + $0x2d8] sm:$0xff]
        %v338 = vld [vmem:[%s236 + $0x2e0] sm:$0xff]
        %v339 = vld [vmem:[%s236 + $0x2e8] sm:$0xff]
        %v340 = vld [vmem:[%s236 + $0x2f0] sm:$0xff]
        %v341 = vld [vmem:[%s236 + $0x2f8] sm:$0xff]
        %v342 = vld [vmem:[%s236 + $0x300] sm:$0xff]
        %v343 = vld [vmem:[%s236 + $0x308] sm:$0xff]
        %v344 = vld [vmem:[%s236 + $0x310] sm:$0xff]
        %v345 = vld [vmem:[%s236 + $0x318] sm:$0xff]
        %v346 = vld [vmem:[%s236 + $0x320] sm:$0xff]
        %v347 = vld [vmem:[%s236 + $0x328] sm:$0xff]
        %v348 = vld [vmem:[%s236 + $0x330] sm:$0xff]
        %v349 = vld [vmem:[%s236 + $0x338] sm:$0xff]
        %v350 = vld [vmem:[%s236 + $0x340] sm:$0xff]
        %v351 = vld [vmem:[%s236 + $0x348] sm:$0xff]
        %v352 = vld [vmem:[%s236 + $0x350] sm:$0xff]
        %v353 = vld [vmem:[%s236 + $0x358] sm:$0xff]
        %v354 = vld [vmem:[%s236 + $0x360] sm:$0xff]
        %v355 = vld [vmem:[%s236 + $0x368] sm:$0xff]
        %v356 = vld [vmem:[%s236 + $0x370] sm:$0xff]
        %v357 = vld [vmem:[%s236 + $0x378] sm:$0xff]
        %v358 = vld [vmem:[%s236 + $0x380] sm:$0xff]
        %v359 = vld [vmem:[%s236 + $0x388] sm:$0xff]
        %v360 = vld [vmem:[%s236 + $0x390] sm:$0xff]
        %v361 = vld [vmem:[%s236 + $0x398] sm:$0xff]
        %v362 = vld [vmem:[%s236 + $0x3a0] sm:$0xff]
        %v363 = vld [vmem:[%s236 + $0x3a8] sm:$0xff]
        %v364 = vld [vmem:[%s236 + $0x3b0] sm:$0xff]
        %v365 = vld [vmem:[%s236 + $0x3b8] sm:$0xff]
        %v366 = vld [vmem:[%s236 + $0x3c0] sm:$0xff]
        %v367 = vld [vmem:[%s236 + $0x3c8] sm:$0xff]
        %v368 = vld [vmem:[%s236 + $0x3d0] sm:$0xff]
        %v369 = vld [vmem:[%s236 + $0x3d8] sm:$0xff]
        %v370 = vld [vmem:[%s236 + $0x3e0] sm:$0xff]
        %v371 = vld [vmem:[%s236 + $0x3e8] sm:$0xff]
        %v372 = vld [vmem:[%s236 + $0x3f0] sm:$0xff]
        %v373 = vld [vmem:[%s236 + $0x3f8] sm:$0xff]
        %v374 = vld [vmem:[%s236 + $0x400] sm:$0xff]
        %v375 = vld [vmem:[%s236 + $0x408] sm:$0xff]
        %v376 = vld [vmem:[%s236 + $0x410] sm:$0xff]
        %v377 = vld [vmem:[%s236 + $0x418] sm:$0xff]
        %v378 = vld [vmem:[%s236 + $0x420] sm:$0xff]
        %v379 = vld [vmem:[%s236 + $0x428] sm:$0xff]
        %v380 = vld [vmem:[%s236 + $0x430] sm:$0xff]
        %v381 = vld [vmem:[%s236 + $0x438] sm:$0xff]
        %v382 = vld [vmem:[%s236 + $0x440] sm:$0xff]
        %v383 = vld [vmem:[%s236 + $0x448] sm:$0xff]
        %v384 = vld [vmem:[%s236 + $0x450] sm:$0xff]
        %v385 = vld [vmem:[%s236 + $0x458] sm:$0xff]
        %v386 = vld [vmem:[%s236 + $0x460] sm:$0xff]
        %v387 = vld [vmem:[%s236 + $0x468] sm:$0xff]
        %v388 = vld [vmem:[%s236 + $0x470] sm:$0xff]
        %v389 = vld [vmem:[%s236 + $0x478] sm:$0xff]
        %v390 = vld [vmem:[%s236 + $0x480] sm:$0xff]
        %v391 = vld [vmem:[%s236 + $0x488] sm:$0xff]
        %v392 = vld [vmem:[%s236 + $0x490] sm:$0xff]
        %v393 = vld [vmem:[%s236 + $0x498] sm:$0xff]
        %v394 = vld [vmem:[%s236 + $0x4a0] sm:$0xff]
        %v395 = vld [vmem:[%s236 + $0x4a8] sm:$0xff]
        %v396 = vld [vmem:[%s236 + $0x4b0] sm:$0xff]
        %v397 = vld [vmem:[%s236 + $0x4b8] sm:$0xff]
        %v398 = vld [vmem:[%s236 + $0x4c0] sm:$0xff]
        %v399 = vld [vmem:[%s236 + $0x4c8] sm:$0xff]
        %v400 = vld [vmem:[%s236 + $0x4d0] sm:$0xff]
        %v401 = vld [vmem:[%s236 + $0x4d8] sm:$0xff]
        %v402 = vld [vmem:[%s236 + $0x4e0] sm:$0xff]
        %v403 = vld [vmem:[%s236 + $0x4e8] sm:$0xff]
        %v404 = vld [vmem:[%s236 + $0x4f0] sm:$0xff]
        %v405 = vld [vmem:[%s236 + $0x4f8] sm:$0xff]
        %v406 = vld [vmem:[%s236 + $0x500] sm:$0xff]
        %v407 = vld [vmem:[%s236 + $0x508] sm:$0xff]
        %v408 = vld [vmem:[%s236 + $0x510] sm:$0xff]
        %v409 = vld [vmem:[%s236 + $0x518] sm:$0xff]
        %v410 = vld [vmem:[%s236 + $0x520] sm:$0xff]
        %v411 = vld [vmem:[%s236 + $0x528] sm:$0xff]
        %v412 = vld [vmem:[%s236 + $0x530] sm:$0xff]
        %v413 = vld [vmem:[%s236 + $0x538] sm:$0xff]
        %v414 = vld [vmem:[%s236 + $0x540] sm:$0xff]
        %v415 = vld [vmem:[%s236 + $0x548] sm:$0xff]
        %v416 = vld [vmem:[%s236 + $0x550] sm:$0xff]
        %v417 = vld [vmem:[%s236 + $0x558] sm:$0xff]
        %v418 = vld [vmem:[%s236 + $0x560] sm:$0xff]
        %v419 = vld [vmem:[%s236 + $0x568] sm:$0xff]
        %v420 = vld [vmem:[%s236 + $0x570] sm:$0xff]
        %v421 = vld [vmem:[%s236 + $0x578] sm:$0xff]
        %v422 = vld [vmem:[%s236 + $0x580] sm:$0xff]
        %v423 = vld [vmem:[%s236 + $0x588] sm:$0xff]
        %v424 = vld [vmem:[%s236 + $0x590] sm:$0xff]
        %v425 = vld [vmem:[%s236 + $0x598] sm:$0xff]
        %v426 = vld [vmem:[%s236 + $0x5a0] sm:$0xff]
        %v427 = vld [vmem:[%s236 + $0x5a8] sm:$0xff]
        %v428 = vld [vmem:[%s236 + $0x5b0] sm:$0xff]
        %v429 = vld [vmem:[%s236 + $0x5b8] sm:$0xff]
        %v430 = vld [vmem:[%s236 + $0x5c0] sm:$0xff]
        %v431 = vld [vmem:[%s236 + $0x5c8] sm:$0xff]
        %v432 = vld [vmem:[%s236 + $0x5d0] sm:$0xff]
        %v433 = vld [vmem:[%s236 + $0x5d8] sm:$0xff]
        %v434 = vld [vmem:[%s236 + $0x5e0] sm:$0xff]
        %v435 = vld [vmem:[%s236 + $0x5e8] sm:$0xff]
        %v436 = vld [vmem:[%s236 + $0x5f0] sm:$0xff]
        %v437 = vld [vmem:[%s236 + $0x5f8] sm:$0xff]
        %v438 = vld [vmem:[%s236 + $0x600] sm:$0xff]
        %v439 = vld [vmem:[%s236 + $0x608] sm:$0xff]
        %v440 = vld [vmem:[%s236 + $0x610] sm:$0xff]
        %v441 = vld [vmem:[%s236 + $0x618] sm:$0xff]
        %v442 = vld [vmem:[%s236 + $0x620] sm:$0xff]
        %v443 = vld [vmem:[%s236 + $0x628] sm:$0xff]
        %v444 = vld [vmem:[%s236 + $0x630] sm:$0xff]
        %v445 = vld [vmem:[%s236 + $0x638] sm:$0xff]
        %v446 = vld [vmem:[%s236 + $0x640] sm:$0xff]
        %v447 = vld [vmem:[%s236 + $0x648] sm:$0xff]
        %v448 = vld [vmem:[%s236 + $0x650] sm:$0xff]
        %v449 = vld [vmem:[%s236 + $0x658] sm:$0xff]
        %v450 = vld [vmem:[%s236 + $0x660] sm:$0xff]
        %v451 = vld [vmem:[%s236 + $0x668] sm:$0xff]
        %v452 = vld [vmem:[%s236 + $0x670] sm:$0xff]
        %v453 = vld [vmem:[%s236 + $0x678] sm:$0xff]
        %v454 = vld [vmem:[%s236 + $0x680] sm:$0xff]
        %v455 = vld [vmem:[%s236 + $0x688] sm:$0xff]
        %v456 = vld [vmem:[%s236 + $0x690] sm:$0xff]
        %v457 = vld [vmem:[%s236 + $0x698] sm:$0xff]
        %v458 = vld [vmem:[%s236 + $0x6a0] sm:$0xff]
        %v459 = vld [vmem:[%s236 + $0x6a8] sm:$0xff]
        %v460 = vld [vmem:[%s236 + $0x6b0] sm:$0xff]
        %v461 = vld [vmem:[%s236 + $0x6b8] sm:$0xff]
        %v462 = vld [vmem:[%s236 + $0x6c0] sm:$0xff]
        %v463 = vld [vmem:[%s236 + $0x6c8] sm:$0xff]
        %v464 = vld [vmem:[%s236 + $0x6d0] sm:$0xff]
        %v465 = vld [vmem:[%s236 + $0x6d8] sm:$0xff]
        %v466 = vld [vmem:[%s236 + $0x6e0] sm:$0xff]
        %v467 = vld [vmem:[%s236 + $0x6e8] sm:$0xff]
        %v468 = vld [vmem:[%s236 + $0x6f0] sm:$0xff]
        %v469 = vld [vmem:[%s236 + $0x6f8] sm:$0xff]
        %v470 = vld [vmem:[%s236 + $0x700] sm:$0xff]
        %v471 = vld [vmem:[%s236 + $0x708] sm:$0xff]
        %v472 = vld [vmem:[%s236 + $0x710] sm:$0xff]
        %v473 = vld [vmem:[%s236 + $0x718] sm:$0xff]
        %v474 = vld [vmem:[%s236 + $0x720] sm:$0xff]
        %v475 = vld [vmem:[%s236 + $0x728] sm:$0xff]
        %v476 = vld [vmem:[%s236 + $0x730] sm:$0xff]
        %v477 = vld [vmem:[%s236 + $0x738] sm:$0xff]
        %v478 = vld [vmem:[%s236 + $0x740] sm:$0xff]
        %v479 = vld [vmem:[%s236 + $0x748] sm:$0xff]
        %v480 = vld [vmem:[%s236 + $0x750] sm:$0xff]
        %v481 = vld [vmem:[%s236 + $0x758] sm:$0xff]
        %v482 = vld [vmem:[%s236 + $0x760] sm:$0xff]
        %v483 = vld [vmem:[%s236 + $0x768] sm:$0xff]
        %v484 = vld [vmem:[%s236 + $0x770] sm:$0xff]
        %v485 = vld [vmem:[%s236 + $0x778] sm:$0xff]
        %v486 = vld [vmem:[%s236 + $0x780] sm:$0xff]
        %v487 = vld [vmem:[%s236 + $0x788] sm:$0xff]
        %v488 = vld [vmem:[%s236 + $0x790] sm:$0xff]
        %v489 = vld [vmem:[%s236 + $0x798] sm:$0xff]
        %v490 = vld [vmem:[%s236 + $0x7a0] sm:$0xff]
        %v491 = vld [vmem:[%s236 + $0x7a8] sm:$0xff]
        %v492 = vld [vmem:[%s236 + $0x7b0] sm:$0xff]
        %v493 = vld [vmem:[%s236 + $0x7b8] sm:$0xff]
        %v494 = vld [vmem:[%s236 + $0x7c0] sm:$0xff]
        %v495 = vld [vmem:[%s236 + $0x7c8] sm:$0xff]
        %v496 = vld [vmem:[%s236 + $0x7d0] sm:$0xff]
        %v497 = vld [vmem:[%s236 + $0x7d8] sm:$0xff]
        %v498 = vld [vmem:[%s236 + $0x7e0] sm:$0xff]
        %v499 = vld [vmem:[%s236 + $0x7e8] sm:$0xff]
        %v500 = vld [vmem:[%s236 + $0x7f0] sm:$0xff]
        %v501 = vld [vmem:[%s236 + $0x7f8] sm:$0xff]
        %v502 = vld [vmem:[%s236 + $0x800] sm:$0xff]
        %v503 = vld [vmem:[%s236 + $0x808] sm:$0xff]
        %v504 = vld [vmem:[%s236 + $0x810] sm:$0xff]
        %v505 = vld [vmem:[%s236 + $0x818] sm:$0xff]
        %v506 = vld [vmem:[%s236 + $0x820] sm:$0xff]
        %v507 = vld [vmem:[%s236 + $0x828] sm:$0xff]
        %v508 = vld [vmem:[%s236 + $0x830] sm:$0xff]
        %v509 = vld [vmem:[%s236 + $0x838] sm:$0xff]
        %v510 = vld [vmem:[%s236 + $0x840] sm:$0xff]
        %v511 = vld [vmem:[%s236 + $0x848] sm:$0xff]
        %v512 = vld [vmem:[%s236 + $0x850] sm:$0xff]
        %v513 = vld [vmem:[%s236 + $0x858] sm:$0xff]
        %v514 = vld [vmem:[%s236 + $0x860] sm:$0xff]
        %v515 = vld [vmem:[%s236 + $0x868] sm:$0xff]
        %v516 = vld [vmem:[%s236 + $0x870] sm:$0xff]
        %v517 = vld [vmem:[%s236 + $0x878] sm:$0xff]
        %v518 = vld [vmem:[%s236 + $0x880] sm:$0xff]
        %v519 = vld [vmem:[%s236 + $0x888] sm:$0xff]
        %v520 = vld [vmem:[%s236 + $0x890] sm:$0xff]
        %v521 = vld [vmem:[%s236 + $0x898] sm:$0xff]
        %v522 = vld [vmem:[%s236 + $0x8a0] sm:$0xff]
        %v523 = vld [vmem:[%s236 + $0x8a8] sm:$0xff]
        %v524 = vld [vmem:[%s236 + $0x8b0] sm:$0xff]
        %v525 = vld [vmem:[%s236 + $0x8b8] sm:$0xff]
        %v526 = vld [vmem:[%s236 + $0x8c0] sm:$0xff]
        %v527 = vld [vmem:[%s236 + $0x8c8] sm:$0xff]
        %v528 = vld [vmem:[%s236 + $0x8d0] sm:$0xff]
        %v529 = vld [vmem:[%s236 + $0x8d8] sm:$0xff]
        %v530 = vld [vmem:[%s236 + $0x8e0] sm:$0xff]
        %v531 = vld [vmem:[%s236 + $0x8e8] sm:$0xff]
        %v532 = vld [vmem:[%s236 + $0x8f0] sm:$0xff]
        %v533 = vld [vmem:[%s236 + $0x8f8] sm:$0xff]
        %v534 = vld [vmem:[%s236 + $0x900] sm:$0xff]
        %v535 = vld [vmem:[%s236 + $0x908] sm:$0xff]
        %v536 = vld [vmem:[%s236 + $0x910] sm:$0xff]
        %v537 = vld [vmem:[%s236 + $0x918] sm:$0xff]
        %v538 = vld [vmem:[%s236 + $0x920] sm:$0xff]
        %v539 = vld [vmem:[%s236 + $0x928] sm:$0xff]
        %v540 = vld [vmem:[%s236 + $0x930] sm:$0xff]
        %v541 = vld [vmem:[%s236 + $0x938] sm:$0xff]
        %v542 = vld [vmem:[%s236 + $0x940] sm:$0xff]
        %v543 = vld [vmem:[%s236 + $0x948] sm:$0xff]
        %v544 = vld [vmem:[%s236 + $0x950] sm:$0xff]
        %v545 = vld [vmem:[%s236 + $0x958] sm:$0xff]
        %v546 = vld [vmem:[%s236 + $0x960] sm:$0xff]
        %v547 = vld [vmem:[%s236 + $0x968] sm:$0xff]
        %v548 = vld [vmem:[%s236 + $0x970] sm:$0xff]
        %v549 = vld [vmem:[%s236 + $0x978] sm:$0xff]
        %v550 = vld [vmem:[%s236 + $0x980] sm:$0xff]
        %v551 = vld [vmem:[%s236 + $0x988] sm:$0xff]
        %v552 = vld [vmem:[%s236 + $0x990] sm:$0xff]
        %v553 = vld [vmem:[%s236 + $0x998] sm:$0xff]
        %v554 = vld [vmem:[%s236 + $0x9a0] sm:$0xff]
        %v555 = vld [vmem:[%s236 + $0x9a8] sm:$0xff]
        %v556 = vld [vmem:[%s236 + $0x9b0] sm:$0xff]
        %v557 = vld [vmem:[%s236 + $0x9b8] sm:$0xff]
        %v558 = vld [vmem:[%s236 + $0x9c0] sm:$0xff]
        %v559 = vld [vmem:[%s236 + $0x9c8] sm:$0xff]
        %v560 = vld [vmem:[%s236 + $0x9d0] sm:$0xff]
        %v561 = vld [vmem:[%s236 + $0x9d8] sm:$0xff]
        %v562 = vld [vmem:[%s236 + $0x9e0] sm:$0xff]
        %v563 = vld [vmem:[%s236 + $0x9e8] sm:$0xff]
        %v564 = vld [vmem:[%s236 + $0x9f0] sm:$0xff]
        %v565 = vld [vmem:[%s236 + $0x9f8] sm:$0xff]
        %v566 = vld [vmem:[%s236 + $0xa00] sm:$0xff]
        %v567 = vld [vmem:[%s236 + $0xa08] sm:$0xff]
        %v568 = vld [vmem:[%s236 + $0xa10] sm:$0xff]
        %v569 = vld [vmem:[%s236 + $0xa18] sm:$0xff]
        %v570 = vld [vmem:[%s236 + $0xa20] sm:$0xff]
        %v571 = vld [vmem:[%s236 + $0xa28] sm:$0xff]
        %v572 = vld [vmem:[%s236 + $0xa30] sm:$0xff]
        %v573 = vld [vmem:[%s236 + $0xa38] sm:$0xff]
        %v574 = vld [vmem:[%s236 + $0xa40] sm:$0xff]
        %v575 = vld [vmem:[%s236 + $0xa48] sm:$0xff]
        %v576 = vld [vmem:[%s236 + $0xa50] sm:$0xff]
        %v577 = vld [vmem:[%s236 + $0xa58] sm:$0xff]
        %v578 = vld [vmem:[%s236 + $0xa60] sm:$0xff]
        %v579 = vld [vmem:[%s236 + $0xa68] sm:$0xff]
        %v580 = vld [vmem:[%s236 + $0xa70] sm:$0xff]
        %v581 = vld [vmem:[%s236 + $0xa78] sm:$0xff]
        %v582 = vld [vmem:[%s236 + $0xa80] sm:$0xff]
        %v583 = vld [vmem:[%s236 + $0xa88] sm:$0xff]
        %v584 = vld [vmem:[%s236 + $0xa90] sm:$0xff]
        %v585 = vld [vmem:[%s236 + $0xa98] sm:$0xff]
        %v586 = vld [vmem:[%s236 + $0xaa0] sm:$0xff]
        %v587 = vld [vmem:[%s236 + $0xaa8] sm:$0xff]
        %v588 = vld [vmem:[%s236 + $0xab0] sm:$0xff]
        %v589 = vld [vmem:[%s236 + $0xab8] sm:$0xff]
        %v590 = vld [vmem:[%s236 + $0xac0] sm:$0xff]
        %v591 = vld [vmem:[%s236 + $0xac8] sm:$0xff]
        %v592 = vld [vmem:[%s236 + $0xad0] sm:$0xff]
        %v593 = vld [vmem:[%s236 + $0xad8] sm:$0xff]
        %v594 = vld [vmem:[%s236 + $0xae0] sm:$0xff]
        %v595 = vld [vmem:[%s236 + $0xae8] sm:$0xff]
        %v596 = vld [vmem:[%s236 + $0xaf0] sm:$0xff]
        %v597 = vld [vmem:[%s236 + $0xaf8] sm:$0xff]
        %v598 = vld [vmem:[%s236 + $0xb00] sm:$0xff]
        %v599 = vld [vmem:[%s236 + $0xb08] sm:$0xff]
        %v600 = vld [vmem:[%s236 + $0xb10] sm:$0xff]
        %v601 = vld [vmem:[%s236 + $0xb18] sm:$0xff]
        %v602 = vld [vmem:[%s236 + $0xb20] sm:$0xff]
        %v603 = vld [vmem:[%s236 + $0xb28] sm:$0xff]
        %v604 = vld [vmem:[%s236 + $0xb30] sm:$0xff]
        %v605 = vld [vmem:[%s236 + $0xb38] sm:$0xff]
        %v606 = vld [vmem:[%s236 + $0xb40] sm:$0xff]
        %v607 = vld [vmem:[%s236 + $0xb48] sm:$0xff]
        %v608 = vld [vmem:[%s236 + $0xb50] sm:$0xff]
        %v609 = vld [vmem:[%s236 + $0xb58] sm:$0xff]
        %v610 = vld [vmem:[%s236 + $0xb60] sm:$0xff]
        %v611 = vld [vmem:[%s236 + $0xb68] sm:$0xff]
        %v612 = vld [vmem:[%s236 + $0xb70] sm:$0xff]
        %v613 = vld [vmem:[%s236 + $0xb78] sm:$0xff]
        %v614 = vld [vmem:[%s236 + $0xb80] sm:$0xff]
        %v615 = vld [vmem:[%s236 + $0xb88] sm:$0xff]
        %v616 = vld [vmem:[%s236 + $0xb90] sm:$0xff]
        %v617 = vld [vmem:[%s236 + $0xb98] sm:$0xff]
        %v618 = vld [vmem:[%s236 + $0xba0] sm:$0xff]
        %v619 = vld [vmem:[%s236 + $0xba8] sm:$0xff]
        %v620 = vld [vmem:[%s236 + $0xbb0] sm:$0xff]
        %v621 = vld [vmem:[%s236 + $0xbb8] sm:$0xff]
        %v622 = vld [vmem:[%s236 + $0xbc0] sm:$0xff]
        %v623 = vld [vmem:[%s236 + $0xbc8] sm:$0xff]
        %v624 = vld [vmem:[%s236 + $0xbd0] sm:$0xff]
        %v625 = vld [vmem:[%s236 + $0xbd8] sm:$0xff]
        %v626 = vld [vmem:[%s236 + $0xbe0] sm:$0xff]
        %v627 = vld [vmem:[%s236 + $0xbe8] sm:$0xff]
        %v628 = vld [vmem:[%s236 + $0xbf0] sm:$0xff]
        %v629 = vld [vmem:[%s236 + $0xbf8] sm:$0xff]
        %v630 = vld [vmem:[%s236 + $0xc00] sm:$0xff]
        %v631 = vld [vmem:[%s236 + $0xc08] sm:$0xff]
        %v632 = vld [vmem:[%s236 + $0xc10] sm:$0xff]
        %v633 = vld [vmem:[%s236 + $0xc18] sm:$0xff]
        %v634 = vld [vmem:[%s236 + $0xc20] sm:$0xff]
        %v635 = vld [vmem:[%s236 + $0xc28] sm:$0xff]
        %v636 = vld [vmem:[%s236 + $0xc30] sm:$0xff]
        %v637 = vld [vmem:[%s236 + $0xc38] sm:$0xff]
        %v638 = vld [vmem:[%s236 + $0xc40] sm:$0xff]
        %v639 = vld [vmem:[%s236 + $0xc48] sm:$0xff]
        %v640 = vld [vmem:[%s236 + $0xc50] sm:$0xff]
        %v641 = vld [vmem:[%s236 + $0xc58] sm:$0xff]
        %v642 = vld [vmem:[%s236 + $0xc60] sm:$0xff]
        %v643 = vld [vmem:[%s236 + $0xc68] sm:$0xff]
        %v644 = vld [vmem:[%s236 + $0xc70] sm:$0xff]
        %v645 = vld [vmem:[%s236 + $0xc78] sm:$0xff]
        %v646 = vld [vmem:[%s236 + $0xc80] sm:$0xff]
        %v647 = vld [vmem:[%s236 + $0xc88] sm:$0xff]
        %v648 = vld [vmem:[%s236 + $0xc90] sm:$0xff]
        %v649 = vld [vmem:[%s236 + $0xc98] sm:$0xff]
        %v650 = vld [vmem:[%s236 + $0xca0] sm:$0xff]
        %v651 = vld [vmem:[%s236 + $0xca8] sm:$0xff]
        %v652 = vld [vmem:[%s236 + $0xcb0] sm:$0xff]
        %v653 = vld [vmem:[%s236 + $0xcb8] sm:$0xff]
        %v654 = vld [vmem:[%s236 + $0xcc0] sm:$0xff]
        %v655 = vld [vmem:[%s236 + $0xcc8] sm:$0xff]
        %v656 = vld [vmem:[%s236 + $0xcd0] sm:$0xff]
        %v657 = vld [vmem:[%s236 + $0xcd8] sm:$0xff]
        %v658 = vld [vmem:[%s236 + $0xce0] sm:$0xff]
        %v659 = vld [vmem:[%s236 + $0xce8] sm:$0xff]
        %v660 = vld [vmem:[%s236 + $0xcf0] sm:$0xff]
        %v661 = vld [vmem:[%s236 + $0xcf8] sm:$0xff]
        %v662 = vld [vmem:[%s236 + $0xd00] sm:$0xff]
        %v663 = vld [vmem:[%s236 + $0xd08] sm:$0xff]
        %v664 = vld [vmem:[%s236 + $0xd10] sm:$0xff]
        %v665 = vld [vmem:[%s236 + $0xd18] sm:$0xff]
        %v666 = vld [vmem:[%s236 + $0xd20] sm:$0xff]
        %v667 = vld [vmem:[%s236 + $0xd28] sm:$0xff]
        %v668 = vld [vmem:[%s236 + $0xd30] sm:$0xff]
        %v669 = vld [vmem:[%s236 + $0xd38] sm:$0xff]
        %v670 = vld [vmem:[%s236 + $0xd40] sm:$0xff]
        %v671 = vld [vmem:[%s236 + $0xd48] sm:$0xff]
        %v672 = vld [vmem:[%s236 + $0xd50] sm:$0xff]
        %v673 = vld [vmem:[%s236 + $0xd58] sm:$0xff]
        %v674 = vld [vmem:[%s236 + $0xd60] sm:$0xff]
        %v675 = vld [vmem:[%s236 + $0xd68] sm:$0xff]
        %v676 = vld [vmem:[%s236 + $0xd70] sm:$0xff]
        %v677 = vld [vmem:[%s236 + $0xd78] sm:$0xff]
        %v678 = vld [vmem:[%s236 + $0xd80] sm:$0xff]
        %v679 = vld [vmem:[%s236 + $0xd88] sm:$0xff]
        %v680 = vld [vmem:[%s236 + $0xd90] sm:$0xff]
        %v681 = vld [vmem:[%s236 + $0xd98] sm:$0xff]
        %v682 = vld [vmem:[%s236 + $0xda0] sm:$0xff]
        %v683 = vld [vmem:[%s236 + $0xda8] sm:$0xff]
        %v684 = vld [vmem:[%s236 + $0xdb0] sm:$0xff]
        %v685 = vld [vmem:[%s236 + $0xdb8] sm:$0xff]
        %v686 = vld [vmem:[%s236 + $0xdc0] sm:$0xff]
        %v687 = vld [vmem:[%s236 + $0xdc8] sm:$0xff]
        %v688 = vld [vmem:[%s236 + $0xdd0] sm:$0xff]
        %v689 = vld [vmem:[%s236 + $0xdd8] sm:$0xff]
        %v690 = vld [vmem:[%s236 + $0xde0] sm:$0xff]
        %v691 = vld [vmem:[%s236 + $0xde8] sm:$0xff]
        %v692 = vld [vmem:[%s236 + $0xdf0] sm:$0xff]
        %v693 = vld [vmem:[%s236 + $0xdf8] sm:$0xff]
        %v694 = vld [vmem:[%s236 + $0xe00] sm:$0xff]
        %v695 = vld [vmem:[%s236 + $0xe08] sm:$0xff]
        %v696 = vld [vmem:[%s236 + $0xe10] sm:$0xff]
        %v697 = vld [vmem:[%s236 + $0xe18] sm:$0xff]
        %v698 = vld [vmem:[%s236 + $0xe20] sm:$0xff]
        %v699 = vld [vmem:[%s236 + $0xe28] sm:$0xff]
        %v700 = vld [vmem:[%s236 + $0xe30] sm:$0xff]
        %v701 = vld [vmem:[%s236 + $0xe38] sm:$0xff]
        %v702 = vld [vmem:[%s236 + $0xe40] sm:$0xff]
        %v703 = vld [vmem:[%s236 + $0xe48] sm:$0xff]
        %v704 = vld [vmem:[%s236 + $0xe50] sm:$0xff]
        %v705 = vld [vmem:[%s236 + $0xe58] sm:$0xff]
        %v706 = vld [vmem:[%s236 + $0xe60] sm:$0xff]
        %v707 = vld [vmem:[%s236 + $0xe68] sm:$0xff]
        %v708 = vld [vmem:[%s236 + $0xe70] sm:$0xff]
        %v709 = vld [vmem:[%s236 + $0xe78] sm:$0xff]
        %v710 = vld [vmem:[%s236 + $0xe80] sm:$0xff]
        %v711 = vld [vmem:[%s236 + $0xe88] sm:$0xff]
        %v712 = vld [vmem:[%s236 + $0xe90] sm:$0xff]
        %v713 = vld [vmem:[%s236 + $0xe98] sm:$0xff]
        %v714 = vld [vmem:[%s236 + $0xea0] sm:$0xff]
        %v715 = vld [vmem:[%s236 + $0xea8] sm:$0xff]
        %v716 = vld [vmem:[%s236 + $0xeb0] sm:$0xff]
        %v717 = vld [vmem:[%s236 + $0xeb8] sm:$0xff]
        %v718 = vld [vmem:[%s236 + $0xec0] sm:$0xff]
        %v719 = vld [vmem:[%s236 + $0xec8] sm:$0xff]
        %v720 = vld [vmem:[%s236 + $0xed0] sm:$0xff]
        %v721 = vld [vmem:[%s236 + $0xed8] sm:$0xff]
        %v722 = vld [vmem:[%s236 + $0xee0] sm:$0xff]
        %v723 = vld [vmem:[%s236 + $0xee8] sm:$0xff]
        %v724 = vld [vmem:[%s236 + $0xef0] sm:$0xff]
        %v725 = vld [vmem:[%s236 + $0xef8] sm:$0xff]
        %v726 = vld [vmem:[%s236 + $0xf00] sm:$0xff]
        %v727 = vld [vmem:[%s236 + $0xf08] sm:$0xff]
        %v728 = vld [vmem:[%s236 + $0xf10] sm:$0xff]
        %v729 = vld [vmem:[%s236 + $0xf18] sm:$0xff]
        %v730 = vld [vmem:[%s236 + $0xf20] sm:$0xff]
        %v731 = vld [vmem:[%s236 + $0xf28] sm:$0xff]
        %v732 = vld [vmem:[%s236 + $0xf30] sm:$0xff]
        %v733 = vld [vmem:[%s236 + $0xf38] sm:$0xff]
        %v734 = vld [vmem:[%s236 + $0xf40] sm:$0xff]
        %v735 = vld [vmem:[%s236 + $0xf48] sm:$0xff]
        %v736 = vld [vmem:[%s236 + $0xf50] sm:$0xff]
        %v737 = vld [vmem:[%s236 + $0xf58] sm:$0xff]
        %v738 = vld [vmem:[%s236 + $0xf60] sm:$0xff]
        %v739 = vld [vmem:[%s236 + $0xf68] sm:$0xff]
        %v740 = vld [vmem:[%s236 + $0xf70] sm:$0xff]
        %v741 = vld [vmem:[%s236 + $0xf78] sm:$0xff]
        %v742 = vld [vmem:[%s236 + $0xf80] sm:$0xff]
        %v743 = vld [vmem:[%s236 + $0xf88] sm:$0xff]
        %v744 = vld [vmem:[%s236 + $0xf90] sm:$0xff]
        %v745 = vld [vmem:[%s236 + $0xf98] sm:$0xff]
        %v746 = vld [vmem:[%s236 + $0xfa0] sm:$0xff]
        %v747 = vld [vmem:[%s236 + $0xfa8] sm:$0xff]
        %v748 = vld [vmem:[%s236 + $0xfb0] sm:$0xff]
        %v749 = vld [vmem:[%s236 + $0xfb8] sm:$0xff]
        %v750 = vld [vmem:[%s236 + $0xfc0] sm:$0xff]
        %v751 = vld [vmem:[%s236 + $0xfc8] sm:$0xff]
        %v752 = vld [vmem:[%s236 + $0xfd0] sm:$0xff]
        %v753 = vld [vmem:[%s236 + $0xfd8] sm:$0xff]
        %v754 = vld [vmem:[%s236 + $0xfe0] sm:$0xff]
        %v755 = vld [vmem:[%s236 + $0xfe8] sm:$0xff]
        %v756 = vld [vmem:[%s236 + $0xff0] sm:$0xff]
        %v757 = vld [vmem:[%s236 + $0xff8] sm:$0xff]
        %v760 = vcombine.high %v244, %v244
        %v762 = vunpack.c.l.s4 1983009808
        %v763 = vunpack.c.0.s8 %v762
        %v764 = vlaneseq
        %v765 = vshrl.u32 %v764, 7
        %v766 = vsub.s32 %v763, %v765
        %v767 = vrot.slane %v244, %v766
        %v769 = vunpack.c.l.s4 1983009808
        %v770 = vunpack.c.0.s8 %v769
        %v771 = vlaneseq
        %v772 = vshrl.u32 %v771, 7
        %v773 = vsub.s32 %v770, %v772
        %v774 = vrot.slane %v760, %v773
        %v775 = vcombine.high %v767, %v767
        %v776 = vcombine.high %v774, %v774
        %v777 = vcombine.high %v245, %v245
        %v779 = vunpack.c.l.s4 1983009808
        %v780 = vunpack.c.0.s8 %v779
        %v781 = vlaneseq
        %v782 = vshrl.u32 %v781, 7
        %v783 = vsub.s32 %v780, %v782
        %v784 = vrot.slane %v245, %v783
        %v786 = vunpack.c.l.s4 1983009808
        %v787 = vunpack.c.0.s8 %v786
        %v788 = vlaneseq
        %v789 = vshrl.u32 %v788, 7
        %v790 = vsub.s32 %v787, %v789
        %v791 = vrot.slane %v777, %v790
        %v792 = vcombine.high %v784, %v784
        %v793 = vcombine.high %v791, %v791
        %802 = vmatprep.subr.mxu0 %v247
        %803 = vmatpush1.msra.mxu0 %v246
        %804 = vmatprep.subr.mxu0 %v251
        %805 = vmatpush1.msra.mxu0 %v250
        %806 = vmatprep.subr.mxu0 %v255
        %807 = vmatpush1.msra.mxu0 %v254
        %808 = vmatprep.subr.mxu0 %v259
        %809 = vmatpush1.msra.mxu0 %v258
        %810 = vmatprep.subr.mxu0 %v263
        %811 = vmatpush1.msra.mxu0 %v262
        %812 = vmatprep.subr.mxu0 %v267
        %813 = vmatpush1.msra.mxu0 %v266
        %814 = vmatprep.subr.mxu0 %v271
        %815 = vmatpush1.msra.mxu0 %v270
        %816 = vmatprep.subr.mxu0 %v275
        %817 = vmatpush1.msra.mxu0 %v274
        %818 = vmatprep.subr.mxu0 %v279
        %819 = vmatpush1.msra.mxu0 %v278
        %820 = vmatprep.subr.mxu0 %v283
        %821 = vmatpush1.msra.mxu0 %v282
        %822 = vmatprep.subr.mxu0 %v287
        %823 = vmatpush1.msra.mxu0 %v286
        %824 = vmatprep.subr.mxu0 %v291
        %825 = vmatpush1.msra.mxu0 %v290
        %826 = vmatprep.subr.mxu0 %v295
        %827 = vmatpush1.msra.mxu0 %v294
        %828 = vmatprep.subr.mxu0 %v299
        %829 = vmatpush1.msra.mxu0 %v298
        %830 = vmatprep.subr.mxu0 %v303
        %831 = vmatpush1.msra.mxu0 %v302
        %832 = vmatprep.subr.mxu0 %v307
        %833 = vmatpush1.msra.mxu0 %v306
        %834 = vmatprep.subr.mxu0 %v311
        %835 = vmatpush1.msra.mxu0 %v310
        %836 = vmatprep.subr.mxu0 %v315
        %837 = vmatpush1.msra.mxu0 %v314
        %838 = vmatprep.subr.mxu0 %v319
        %839 = vmatpush1.msra.mxu0 %v318
        %840 = vmatprep.subr.mxu0 %v323
        %841 = vmatpush1.msra.mxu0 %v322
        %842 = vmatprep.subr.mxu0 %v327
        %843 = vmatpush1.msra.mxu0 %v326
        %844 = vmatprep.subr.mxu0 %v331
        %845 = vmatpush1.msra.mxu0 %v330
        %846 = vmatprep.subr.mxu0 %v335
        %847 = vmatpush1.msra.mxu0 %v334
        %848 = vmatprep.subr.mxu0 %v339
        %849 = vmatpush1.msra.mxu0 %v338
        %850 = vmatprep.subr.mxu0 %v343
        %851 = vmatpush1.msra.mxu0 %v342
        %852 = vmatprep.subr.mxu0 %v347
        %853 = vmatpush1.msra.mxu0 %v346
        %854 = vmatprep.subr.mxu0 %v351
        %855 = vmatpush1.msra.mxu0 %v350
        %856 = vmatprep.subr.mxu0 %v355
        %857 = vmatpush1.msra.mxu0 %v354
        %858 = vmatprep.subr.mxu0 %v359
        %859 = vmatpush1.msra.mxu0 %v358
        %860 = vmatprep.subr.mxu0 %v363
        %861 = vmatpush1.msra.mxu0 %v362
        %862 = vmatprep.subr.mxu0 %v367
        %863 = vmatpush1.msra.mxu0 %v366
        %864 = vmatprep.subr.mxu0 %v371
        %865 = vmatpush1.msra.mxu0 %v370
        %866 = vmatprep.mubr.f32.mxu0 %v775
        %867 = vmatmul.mubr.f32.gmra.mrb[0].mxu0 %v767
        %v868 = vpop.f32.mrb[0].mxu0
        %v869 = vadd.f32 0.0, %v868
        %v870 = vpop.f32.mrb[0].mxu0
        %v871 = vadd.f32 0.0, %v870
        %872 = vdwg.mxu0
        %873 = vmatprep.subr.mxu0 %v375
        %874 = vmatpush1.msra.mxu0 %v374
        %875 = vmatprep.subr.mxu0 %v379
        %876 = vmatpush1.msra.mxu0 %v378
        %877 = vmatprep.subr.mxu0 %v383
        %878 = vmatpush1.msra.mxu0 %v382
        %879 = vmatprep.subr.mxu0 %v387
        %880 = vmatpush1.msra.mxu0 %v386
        %881 = vmatprep.subr.mxu0 %v391
        %882 = vmatpush1.msra.mxu0 %v390
        %883 = vmatprep.subr.mxu0 %v395
        %884 = vmatpush1.msra.mxu0 %v394
        %885 = vmatprep.subr.mxu0 %v399
        %886 = vmatpush1.msra.mxu0 %v398
        %887 = vmatprep.subr.mxu0 %v403
        %888 = vmatpush1.msra.mxu0 %v402
        %889 = vmatprep.subr.mxu0 %v407
        %890 = vmatpush1.msra.mxu0 %v406
        %891 = vmatprep.subr.mxu0 %v411
        %892 = vmatpush1.msra.mxu0 %v410
        %893 = vmatprep.subr.mxu0 %v415
        %894 = vmatpush1.msra.mxu0 %v414
        %895 = vmatprep.subr.mxu0 %v419
        %896 = vmatpush1.msra.mxu0 %v418
        %897 = vmatprep.subr.mxu0 %v423
        %898 = vmatpush1.msra.mxu0 %v422
        %899 = vmatprep.subr.mxu0 %v427
        %900 = vmatpush1.msra.mxu0 %v426
        %901 = vmatprep.subr.mxu0 %v431
        %902 = vmatpush1.msra.mxu0 %v430
        %903 = vmatprep.subr.mxu0 %v435
        %904 = vmatpush1.msra.mxu0 %v434
        %905 = vmatprep.subr.mxu0 %v439
        %906 = vmatpush1.msra.mxu0 %v438
        %907 = vmatprep.subr.mxu0 %v443
        %908 = vmatpush1.msra.mxu0 %v442
        %909 = vmatprep.subr.mxu0 %v447
        %910 = vmatpush1.msra.mxu0 %v446
        %911 = vmatprep.subr.mxu0 %v451
        %912 = vmatpush1.msra.mxu0 %v450
        %913 = vmatprep.subr.mxu0 %v455
        %914 = vmatpush1.msra.mxu0 %v454
        %915 = vmatprep.subr.mxu0 %v459
        %916 = vmatpush1.msra.mxu0 %v458
        %917 = vmatprep.subr.mxu0 %v463
        %918 = vmatpush1.msra.mxu0 %v462
        %919 = vmatprep.subr.mxu0 %v467
        %920 = vmatpush1.msra.mxu0 %v466
        %921 = vmatprep.subr.mxu0 %v471
        %922 = vmatpush1.msra.mxu0 %v470
        %923 = vmatprep.subr.mxu0 %v475
        %924 = vmatpush1.msra.mxu0 %v474
        %925 = vmatprep.subr.mxu0 %v479
        %926 = vmatpush1.msra.mxu0 %v478
        %927 = vmatprep.subr.mxu0 %v483
        %928 = vmatpush1.msra.mxu0 %v482
        %929 = vmatprep.subr.mxu0 %v487
        %930 = vmatpush1.msra.mxu0 %v486
        %931 = vmatprep.subr.mxu0 %v491
        %932 = vmatpush1.msra.mxu0 %v490
        %933 = vmatprep.subr.mxu0 %v495
        %934 = vmatpush1.msra.mxu0 %v494
        %935 = vmatprep.subr.mxu0 %v499
        %936 = vmatpush1.msra.mxu0 %v498
        %937 = vmatprep.mubr.f32.mxu0 %v776
        %938 = vmatmul.mubr.f32.gmra.mrb[0].mxu0 %v774
        %v939 = vpop.f32.mrb[0].mxu0
        %v940 = vadd.f32 %v869, %v939
        %v941 = vpop.f32.mrb[0].mxu0
        %v942 = vadd.f32 %v871, %v941
        %943 = vdwg.mxu0
        %944 = vmatprep.subr.mxu0 %v503
        %945 = vmatpush1.msra.mxu0 %v502
        %946 = vmatprep.subr.mxu0 %v507
        %947 = vmatpush1.msra.mxu0 %v506
        %948 = vmatprep.subr.mxu0 %v511
        %949 = vmatpush1.msra.mxu0 %v510
        %950 = vmatprep.subr.mxu0 %v515
        %951 = vmatpush1.msra.mxu0 %v514
        %952 = vmatprep.subr.mxu0 %v519
        %953 = vmatpush1.msra.mxu0 %v518
        %954 = vmatprep.subr.mxu0 %v523
        %955 = vmatpush1.msra.mxu0 %v522
        %956 = vmatprep.subr.mxu0 %v527
        %957 = vmatpush1.msra.mxu0 %v526
        %958 = vmatprep.subr.mxu0 %v531
        %959 = vmatpush1.msra.mxu0 %v530
        %960 = vmatprep.subr.mxu0 %v535
        %961 = vmatpush1.msra.mxu0 %v534
        %962 = vmatprep.subr.mxu0 %v539
        %963 = vmatpush1.msra.mxu0 %v538
        %964 = vmatprep.subr.mxu0 %v543
        %965 = vmatpush1.msra.mxu0 %v542
        %966 = vmatprep.subr.mxu0 %v547
        %967 = vmatpush1.msra.mxu0 %v546
        %968 = vmatprep.subr.mxu0 %v551
        %969 = vmatpush1.msra.mxu0 %v550
        %970 = vmatprep.subr.mxu0 %v555
        %971 = vmatpush1.msra.mxu0 %v554
        %972 = vmatprep.subr.mxu0 %v559
        %973 = vmatpush1.msra.mxu0 %v558
        %974 = vmatprep.subr.mxu0 %v563
        %975 = vmatpush1.msra.mxu0 %v562
        %976 = vmatprep.subr.mxu0 %v567
        %977 = vmatpush1.msra.mxu0 %v566
        %978 = vmatprep.subr.mxu0 %v571
        %979 = vmatpush1.msra.mxu0 %v570
        %980 = vmatprep.subr.mxu0 %v575
        %981 = vmatpush1.msra.mxu0 %v574
        %982 = vmatprep.subr.mxu0 %v579
        %983 = vmatpush1.msra.mxu0 %v578
        %984 = vmatprep.subr.mxu0 %v583
        %985 = vmatpush1.msra.mxu0 %v582
        %986 = vmatprep.subr.mxu0 %v587
        %987 = vmatpush1.msra.mxu0 %v586
        %988 = vmatprep.subr.mxu0 %v591
        %989 = vmatpush1.msra.mxu0 %v590
        %990 = vmatprep.subr.mxu0 %v595
        %991 = vmatpush1.msra.mxu0 %v594
        %992 = vmatprep.subr.mxu0 %v599
        %993 = vmatpush1.msra.mxu0 %v598
        %994 = vmatprep.subr.mxu0 %v603
        %995 = vmatpush1.msra.mxu0 %v602
        %996 = vmatprep.subr.mxu0 %v607
        %997 = vmatpush1.msra.mxu0 %v606
        %998 = vmatprep.subr.mxu0 %v611
        %999 = vmatpush1.msra.mxu0 %v610
        %1000 = vmatprep.subr.mxu0 %v615
        %1001 = vmatpush1.msra.mxu0 %v614
        %1002 = vmatprep.subr.mxu0 %v619
        %1003 = vmatpush1.msra.mxu0 %v618
        %1004 = vmatprep.subr.mxu0 %v623
        %1005 = vmatpush1.msra.mxu0 %v622
        %1006 = vmatprep.subr.mxu0 %v627
        %1007 = vmatpush1.msra.mxu0 %v626
        %1008 = vmatprep.mubr.f32.mxu0 %v792
        %1009 = vmatmul.mubr.f32.gmra.mrb[0].mxu0 %v784
        %v1010 = vpop.f32.mrb[0].mxu0
        %v1011 = vadd.f32 %v940, %v1010
        %v1012 = vpop.f32.mrb[0].mxu0
        %v1013 = vadd.f32 %v942, %v1012
        %1014 = vdwg.mxu0
        %1015 = vmatprep.subr.mxu0 %v631
        %1016 = vmatpush1.msra.mxu0 %v630
        %1017 = vmatprep.subr.mxu0 %v635
        %1018 = vmatpush1.msra.mxu0 %v634
        %1019 = vmatprep.subr.mxu0 %v639
        %1020 = vmatpush1.msra.mxu0 %v638
        %1021 = vmatprep.subr.mxu0 %v643
        %1022 = vmatpush1.msra.mxu0 %v642
        %1023 = vmatprep.subr.mxu0 %v647
        %1024 = vmatpush1.msra.mxu0 %v646
        %1025 = vmatprep.subr.mxu0 %v651
        %1026 = vmatpush1.msra.mxu0 %v650
        %1027 = vmatprep.subr.mxu0 %v655
        %1028 = vmatpush1.msra.mxu0 %v654
        %1029 = vmatprep.subr.mxu0 %v659
        %1030 = vmatpush1.msra.mxu0 %v658
        %1031 = vmatprep.subr.mxu0 %v663
        %1032 = vmatpush1.msra.mxu0 %v662
        %1033 = vmatprep.subr.mxu0 %v667
        %1034 = vmatpush1.msra.mxu0 %v666
        %1035 = vmatprep.subr.mxu0 %v671
        %1036 = vmatpush1.msra.mxu0 %v670
        %1037 = vmatprep.subr.mxu0 %v675
        %1038 = vmatpush1.msra.mxu0 %v674
        %1039 = vmatprep.subr.mxu0 %v679
        %1040 = vmatpush1.msra.mxu0 %v678
        %1041 = vmatprep.subr.mxu0 %v683
        %1042 = vmatpush1.msra.mxu0 %v682
        %1043 = vmatprep.subr.mxu0 %v687
        %1044 = vmatpush1.msra.mxu0 %v686
        %1045 = vmatprep.subr.mxu0 %v691
        %1046 = vmatpush1.msra.mxu0 %v690
        %1047 = vmatprep.subr.mxu0 %v695
        %1048 = vmatpush1.msra.mxu0 %v694
        %1049 = vmatprep.subr.mxu0 %v699
        %1050 = vmatpush1.msra.mxu0 %v698
        %1051 = vmatprep.subr.mxu0 %v703
        %1052 = vmatpush1.msra.mxu0 %v702
        %1053 = vmatprep.subr.mxu0 %v707
        %1054 = vmatpush1.msra.mxu0 %v706
        %1055 = vmatprep.subr.mxu0 %v711
        %1056 = vmatpush1.msra.mxu0 %v710
        %1057 = vmatprep.subr.mxu0 %v715
        %1058 = vmatpush1.msra.mxu0 %v714
        %1059 = vmatprep.subr.mxu0 %v719
        %1060 = vmatpush1.msra.mxu0 %v718
        %1061 = vmatprep.subr.mxu0 %v723
        %1062 = vmatpush1.msra.mxu0 %v722
        %1063 = vmatprep.subr.mxu0 %v727
        %1064 = vmatpush1.msra.mxu0 %v726
        %1065 = vmatprep.subr.mxu0 %v731
        %1066 = vmatpush1.msra.mxu0 %v730
        %1067 = vmatprep.subr.mxu0 %v735
        %1068 = vmatpush1.msra.mxu0 %v734
        %1069 = vmatprep.subr.mxu0 %v739
        %1070 = vmatpush1.msra.mxu0 %v738
        %1071 = vmatprep.subr.mxu0 %v743
        %1072 = vmatpush1.msra.mxu0 %v742
        %1073 = vmatprep.subr.mxu0 %v747
        %1074 = vmatpush1.msra.mxu0 %v746
        %1075 = vmatprep.subr.mxu0 %v751
        %1076 = vmatpush1.msra.mxu0 %v750
        %1077 = vmatprep.subr.mxu0 %v755
        %1078 = vmatpush1.msra.mxu0 %v754
        %1079 = vmatprep.mubr.f32.mxu0 %v793
        %1080 = vmatmul.mubr.f32.gmra.mrb[0].mxu0 %v791
        %v1081 = vpop.f32.mrb[0].mxu0
        %v1082 = vadd.f32 %v1011, %v1081
        %v1083 = vpop.f32.mrb[0].mxu0
        %v1084 = vadd.f32 %v1013, %v1083
        %1085 = vdwg.mxu0
        %1086 = vmatprep.subr.mxu0 %v249
        %1087 = vmatpush1.msra.mxu0 %v248
        %1088 = vmatprep.subr.mxu0 %v253
        %1089 = vmatpush1.msra.mxu0 %v252
        %1090 = vmatprep.subr.mxu0 %v257
        %1091 = vmatpush1.msra.mxu0 %v256
        %1092 = vmatprep.subr.mxu0 %v261
        %1093 = vmatpush1.msra.mxu0 %v260
        %1094 = vmatprep.subr.mxu0 %v265
        %1095 = vmatpush1.msra.mxu0 %v264
        %1096 = vmatprep.subr.mxu0 %v269
        %1097 = vmatpush1.msra.mxu0 %v268
        %1098 = vmatprep.subr.mxu0 %v273
        %1099 = vmatpush1.msra.mxu0 %v272
        %1100 = vmatprep.subr.mxu0 %v277
        %1101 = vmatpush1.msra.mxu0 %v276
        %1102 = vmatprep.subr.mxu0 %v281
        %1103 = vmatpush1.msra.mxu0 %v280
        %1104 = vmatprep.subr.mxu0 %v285
        %1105 = vmatpush1.msra.mxu0 %v284
        %1106 = vmatprep.subr.mxu0 %v289
        %1107 = vmatpush1.msra.mxu0 %v288
        %1108 = vmatprep.subr.mxu0 %v293
        %1109 = vmatpush1.msra.mxu0 %v292
        %1110 = vmatprep.subr.mxu0 %v297
        %1111 = vmatpush1.msra.mxu0 %v296
        %1112 = vmatprep.subr.mxu0 %v301
        %1113 = vmatpush1.msra.mxu0 %v300
        %1114 = vmatprep.subr.mxu0 %v305
        %1115 = vmatpush1.msra.mxu0 %v304
        %1116 = vmatprep.subr.mxu0 %v309
        %1117 = vmatpush1.msra.mxu0 %v308
        %1118 = vmatprep.subr.mxu0 %v313
        %1119 = vmatpush1.msra.mxu0 %v312
        %1120 = vmatprep.subr.mxu0 %v317
        %1121 = vmatpush1.msra.mxu0 %v316
        %1122 = vmatprep.subr.mxu0 %v321
        %1123 = vmatpush1.msra.mxu0 %v320
        %1124 = vmatprep.subr.mxu0 %v325
        %1125 = vmatpush1.msra.mxu0 %v324
        %1126 = vmatprep.subr.mxu0 %v329
        %1127 = vmatpush1.msra.mxu0 %v328
        %1128 = vmatprep.subr.mxu0 %v333
        %1129 = vmatpush1.msra.mxu0 %v332
        %1130 = vmatprep.subr.mxu0 %v337
        %1131 = vmatpush1.msra.mxu0 %v336
        %1132 = vmatprep.subr.mxu0 %v341
        %1133 = vmatpush1.msra.mxu0 %v340
        %1134 = vmatprep.subr.mxu0 %v345
        %1135 = vmatpush1.msra.mxu0 %v344
        %1136 = vmatprep.subr.mxu0 %v349
        %1137 = vmatpush1.msra.mxu0 %v348
        %1138 = vmatprep.subr.mxu0 %v353
        %1139 = vmatpush1.msra.mxu0 %v352
        %1140 = vmatprep.subr.mxu0 %v357
        %1141 = vmatpush1.msra.mxu0 %v356
        %1142 = vmatprep.subr.mxu0 %v361
        %1143 = vmatpush1.msra.mxu0 %v360
        %1144 = vmatprep.subr.mxu0 %v365
        %1145 = vmatpush1.msra.mxu0 %v364
        %1146 = vmatprep.subr.mxu0 %v369
        %1147 = vmatpush1.msra.mxu0 %v368
        %1148 = vmatprep.subr.mxu0 %v373
        %1149 = vmatpush1.msra.mxu0 %v372
        %1150 = vmatprep.mubr.f32.mxu0 %v775
        %1151 = vmatmul.mubr.f32.gmra.mrb[0].mxu0 %v767
        %v1152 = vpop.f32.mrb[0].mxu0
        %v1153 = vadd.f32 0.0, %v1152
        %v1154 = vpop.f32.mrb[0].mxu0
        %v1155 = vadd.f32 0.0, %v1154
        %1156 = vdwg.mxu0
        %1157 = vmatprep.subr.mxu0 %v377
        %1158 = vmatpush1.msra.mxu0 %v376
        %1159 = vmatprep.subr.mxu0 %v381
        %1160 = vmatpush1.msra.mxu0 %v380
        %1161 = vmatprep.subr.mxu0 %v385
        %1162 = vmatpush1.msra.mxu0 %v384
        %1163 = vmatprep.subr.mxu0 %v389
        %1164 = vmatpush1.msra.mxu0 %v388
        %1165 = vmatprep.subr.mxu0 %v393
        %1166 = vmatpush1.msra.mxu0 %v392
        %1167 = vmatprep.subr.mxu0 %v397
        %1168 = vmatpush1.msra.mxu0 %v396
        %1169 = vmatprep.subr.mxu0 %v401
        %1170 = vmatpush1.msra.mxu0 %v400
        %1171 = vmatprep.subr.mxu0 %v405
        %1172 = vmatpush1.msra.mxu0 %v404
        %1173 = vmatprep.subr.mxu0 %v409
        %1174 = vmatpush1.msra.mxu0 %v408
        %1175 = vmatprep.subr.mxu0 %v413
        %1176 = vmatpush1.msra.mxu0 %v412
        %1177 = vmatprep.subr.mxu0 %v417
        %1178 = vmatpush1.msra.mxu0 %v416
        %1179 = vmatprep.subr.mxu0 %v421
        %1180 = vmatpush1.msra.mxu0 %v420
        %1181 = vmatprep.subr.mxu0 %v425
        %1182 = vmatpush1.msra.mxu0 %v424
        %1183 = vmatprep.subr.mxu0 %v429
        %1184 = vmatpush1.msra.mxu0 %v428
        %1185 = vmatprep.subr.mxu0 %v433
        %1186 = vmatpush1.msra.mxu0 %v432
        %1187 = vmatprep.subr.mxu0 %v437
        %1188 = vmatpush1.msra.mxu0 %v436
        %1189 = vmatprep.subr.mxu0 %v441
        %1190 = vmatpush1.msra.mxu0 %v440
        %1191 = vmatprep.subr.mxu0 %v445
        %1192 = vmatpush1.msra.mxu0 %v444
        %1193 = vmatprep.subr.mxu0 %v449
        %1194 = vmatpush1.msra.mxu0 %v448
        %1195 = vmatprep.subr.mxu0 %v453
        %1196 = vmatpush1.msra.mxu0 %v452
        %1197 = vmatprep.subr.mxu0 %v457
        %1198 = vmatpush1.msra.mxu0 %v456
        %1199 = vmatprep.subr.mxu0 %v461
        %1200 = vmatpush1.msra.mxu0 %v460
        %1201 = vmatprep.subr.mxu0 %v465
        %1202 = vmatpush1.msra.mxu0 %v464
        %1203 = vmatprep.subr.mxu0 %v469
        %1204 = vmatpush1.msra.mxu0 %v468
        %1205 = vmatprep.subr.mxu0 %v473
        %1206 = vmatpush1.msra.mxu0 %v472
        %1207 = vmatprep.subr.mxu0 %v477
        %1208 = vmatpush1.msra.mxu0 %v476
        %1209 = vmatprep.subr.mxu0 %v481
        %1210 = vmatpush1.msra.mxu0 %v480
        %1211 = vmatprep.subr.mxu0 %v485
        %1212 = vmatpush1.msra.mxu0 %v484
        %1213 = vmatprep.subr.mxu0 %v489
        %1214 = vmatpush1.msra.mxu0 %v488
        %1215 = vmatprep.subr.mxu0 %v493
        %1216 = vmatpush1.msra.mxu0 %v492
        %1217 = vmatprep.subr.mxu0 %v497
        %1218 = vmatpush1.msra.mxu0 %v496
        %1219 = vmatprep.subr.mxu0 %v501
        %1220 = vmatpush1.msra.mxu0 %v500
        %1221 = vmatprep.mubr.f32.mxu0 %v776
        %1222 = vmatmul.mubr.f32.gmra.mrb[0].mxu0 %v774
        %v1223 = vpop.f32.mrb[0].mxu0
        %v1224 = vadd.f32 %v1153, %v1223
        %v1225 = vpop.f32.mrb[0].mxu0
        %v1226 = vadd.f32 %v1155, %v1225
        %1227 = vdwg.mxu0
        %1228 = vmatprep.subr.mxu0 %v505
        %1229 = vmatpush1.msra.mxu0 %v504
        %1230 = vmatprep.subr.mxu0 %v509
        %1231 = vmatpush1.msra.mxu0 %v508
        %1232 = vmatprep.subr.mxu0 %v513
        %1233 = vmatpush1.msra.mxu0 %v512
        %1234 = vmatprep.subr.mxu0 %v517
        %1235 = vmatpush1.msra.mxu0 %v516
        %1236 = vmatprep.subr.mxu0 %v521
        %1237 = vmatpush1.msra.mxu0 %v520
        %1238 = vmatprep.subr.mxu0 %v525
        %1239 = vmatpush1.msra.mxu0 %v524
        %1240 = vmatprep.subr.mxu0 %v529
        %1241 = vmatpush1.msra.mxu0 %v528
        %1242 = vmatprep.subr.mxu0 %v533
        %1243 = vmatpush1.msra.mxu0 %v532
        %1244 = vmatprep.subr.mxu0 %v537
        %1245 = vmatpush1.msra.mxu0 %v536
        %1246 = vmatprep.subr.mxu0 %v541
        %1247 = vmatpush1.msra.mxu0 %v540
        %1248 = vmatprep.subr.mxu0 %v545
        %1249 = vmatpush1.msra.mxu0 %v544
        %1250 = vmatprep.subr.mxu0 %v549
        %1251 = vmatpush1.msra.mxu0 %v548
        %1252 = vmatprep.subr.mxu0 %v553
        %1253 = vmatpush1.msra.mxu0 %v552
        %1254 = vmatprep.subr.mxu0 %v557
        %1255 = vmatpush1.msra.mxu0 %v556
        %1256 = vmatprep.subr.mxu0 %v561
        %1257 = vmatpush1.msra.mxu0 %v560
        %1258 = vmatprep.subr.mxu0 %v565
        %1259 = vmatpush1.msra.mxu0 %v564
        %1260 = vmatprep.subr.mxu0 %v569
        %1261 = vmatpush1.msra.mxu0 %v568
        %1262 = vmatprep.subr.mxu0 %v573
        %1263 = vmatpush1.msra.mxu0 %v572
        %1264 = vmatprep.subr.mxu0 %v577
        %1265 = vmatpush1.msra.mxu0 %v576
        %1266 = vmatprep.subr.mxu0 %v581
        %1267 = vmatpush1.msra.mxu0 %v580
        %1268 = vmatprep.subr.mxu0 %v585
        %1269 = vmatpush1.msra.mxu0 %v584
        %1270 = vmatprep.subr.mxu0 %v589
        %1271 = vmatpush1.msra.mxu0 %v588
        %1272 = vmatprep.subr.mxu0 %v593
        %1273 = vmatpush1.msra.mxu0 %v592
        %1274 = vmatprep.subr.mxu0 %v597
        %1275 = vmatpush1.msra.mxu0 %v596
        %1276 = vmatprep.subr.mxu0 %v601
        %1277 = vmatpush1.msra.mxu0 %v600
        %1278 = vmatprep.subr.mxu0 %v605
        %1279 = vmatpush1.msra.mxu0 %v604
        %1280 = vmatprep.subr.mxu0 %v609
        %1281 = vmatpush1.msra.mxu0 %v608
        %1282 = vmatprep.subr.mxu0 %v613
        %1283 = vmatpush1.msra.mxu0 %v612
        %1284 = vmatprep.subr.mxu0 %v617
        %1285 = vmatpush1.msra.mxu0 %v616
        %1286 = vmatprep.subr.mxu0 %v621
        %1287 = vmatpush1.msra.mxu0 %v620
        %1288 = vmatprep.subr.mxu0 %v625
        %1289 = vmatpush1.msra.mxu0 %v624
        %1290 = vmatprep.subr.mxu0 %v629
        %1291 = vmatpush1.msra.mxu0 %v628
        %1292 = vmatprep.mubr.f32.mxu0 %v792
        %1293 = vmatmul.mubr.f32.gmra.mrb[0].mxu0 %v784
        %v1294 = vpop.f32.mrb[0].mxu0
        %v1295 = vadd.f32 %v1224, %v1294
        %v1296 = vpop.f32.mrb[0].mxu0
        %v1297 = vadd.f32 %v1226, %v1296
        %1298 = vdwg.mxu0
        %1299 = vmatprep.subr.mxu0 %v633
        %1300 = vmatpush1.msra.mxu0 %v632
        %1301 = vmatprep.subr.mxu0 %v637
        %1302 = vmatpush1.msra.mxu0 %v636
        %1303 = vmatprep.subr.mxu0 %v641
        %1304 = vmatpush1.msra.mxu0 %v640
        %1305 = vmatprep.subr.mxu0 %v645
        %1306 = vmatpush1.msra.mxu0 %v644
        %1307 = vmatprep.subr.mxu0 %v649
        %1308 = vmatpush1.msra.mxu0 %v648
        %1309 = vmatprep.subr.mxu0 %v653
        %1310 = vmatpush1.msra.mxu0 %v652
        %1311 = vmatprep.subr.mxu0 %v657
        %1312 = vmatpush1.msra.mxu0 %v656
        %1313 = vmatprep.subr.mxu0 %v661
        %1314 = vmatpush1.msra.mxu0 %v660
        %1315 = vmatprep.subr.mxu0 %v665
        %1316 = vmatpush1.msra.mxu0 %v664
        %1317 = vmatprep.subr.mxu0 %v669
        %1318 = vmatpush1.msra.mxu0 %v668
        %1319 = vmatprep.subr.mxu0 %v673
        %1320 = vmatpush1.msra.mxu0 %v672
        %1321 = vmatprep.subr.mxu0 %v677
        %1322 = vmatpush1.msra.mxu0 %v676
        %1323 = vmatprep.subr.mxu0 %v681
        %1324 = vmatpush1.msra.mxu0 %v680
        %1325 = vmatprep.subr.mxu0 %v685
        %1326 = vmatpush1.msra.mxu0 %v684
        %1327 = vmatprep.subr.mxu0 %v689
        %1328 = vmatpush1.msra.mxu0 %v688
        %1329 = vmatprep.subr.mxu0 %v693
        %1330 = vmatpush1.msra.mxu0 %v692
        %1331 = vmatprep.subr.mxu0 %v697
        %1332 = vmatpush1.msra.mxu0 %v696
        %1333 = vmatprep.subr.mxu0 %v701
        %1334 = vmatpush1.msra.mxu0 %v700
        %1335 = vmatprep.subr.mxu0 %v705
        %1336 = vmatpush1.msra.mxu0 %v704
        %1337 = vmatprep.subr.mxu0 %v709
        %1338 = vmatpush1.msra.mxu0 %v708
        %1339 = vmatprep.subr.mxu0 %v713
        %1340 = vmatpush1.msra.mxu0 %v712
        %1341 = vmatprep.subr.mxu0 %v717
        %1342 = vmatpush1.msra.mxu0 %v716
        %1343 = vmatprep.subr.mxu0 %v721
        %1344 = vmatpush1.msra.mxu0 %v720
        %1345 = vmatprep.subr.mxu0 %v725
        %1346 = vmatpush1.msra.mxu0 %v724
        %1347 = vmatprep.subr.mxu0 %v729
        %1348 = vmatpush1.msra.mxu0 %v728
        %1349 = vmatprep.subr.mxu0 %v733
        %1350 = vmatpush1.msra.mxu0 %v732
        %1351 = vmatprep.subr.mxu0 %v737
        %1352 = vmatpush1.msra.mxu0 %v736
        %1353 = vmatprep.subr.mxu0 %v741
        %1354 = vmatpush1.msra.mxu0 %v740
        %1355 = vmatprep.subr.mxu0 %v745
        %1356 = vmatpush1.msra.mxu0 %v744
        %1357 = vmatprep.subr.mxu0 %v749
        %1358 = vmatpush1.msra.mxu0 %v748
        %1359 = vmatprep.subr.mxu0 %v753
        %1360 = vmatpush1.msra.mxu0 %v752
        %1361 = vmatprep.subr.mxu0 %v757
        %1362 = vmatpush1.msra.mxu0 %v756
        %1363 = vmatprep.mubr.f32.mxu0 %v793
        %1364 = vmatmul.mubr.f32.gmra.mrb[0].mxu0 %v791
        %v1365 = vpop.f32.mrb[0].mxu0
        %v1366 = vadd.f32 %v1295, %v1365
        %v1367 = vpop.f32.mrb[0].mxu0
        %v1368 = vadd.f32 %v1297, %v1367
        %1369 = vdwg.mxu0
        %v1374 = vcombine.low %v1082, %v1084
        %v1375 = vcombine.low %v1366, %v1368
        %v1377 = vunpack.c.l.s4 1983009808
        %v1378 = vunpack.c.0.s8 %v1377
        %v1379 = vlaneseq
        %v1380 = vshrl.u32 %v1379, 7
        %v1381 = vsub.s32 %v1378, %v1380
        %v1382 = vrot.slane %v1374, %v1381
        %v1384 = vunpack.c.l.s4 1983009808
        %v1385 = vunpack.c.0.s8 %v1384
        %v1386 = vlaneseq
        %v1387 = vshrl.u32 %v1386, 7
        %v1388 = vsub.s32 %v1385, %v1387
        %v1389 = vrot.slane %v1375, %v1388
        %v1390 = vcombine.low %v1382, %v1389
        %v1392 = vadd.f32 %v243, %v1390
        %1393 = vst [vmem:[#allocation2] sm:$0xff] %v1392
        %p1394 = scmp.eq.s32.totalorder %s17, 1
        // Predicated region
        $region45: #{net_forward.7} parent=39 // pred_check
          %p1395 = pneg %p1394
        $region46: #{net_forward.7} parent=39 // pred_check_branch
          %1397 = sbr.rel (%p1395) target = $region48
        $region47: #{net_forward.7} parent=39 // pred_region
          %v1398 = vld [vmem:[#allocation2] sm:$0xff]
          %v1399 = vld [vmem:[%s2] sm:$0xf]
          %v1401 = vlaneseq
          %v1402 = vshrl.u32 %v1401, 7
          %v1403 = vsub.s32 0, %v1402
          %v1404 = vrot.slane %v1399, %v1403
          %v1405 = vlaneseq
          %v1406 = vshrl.u32 %v1405, 7
          %v1407 = vsub.s32 1, %v1406
          %v1408 = vrot.slane %v1399, %v1407
          %v1409 = vlaneseq
          %v1410 = vshrl.u32 %v1409, 7
          %v1411 = vsub.s32 2, %v1410
          %v1412 = vrot.slane %v1399, %v1411
          %v1413 = vlaneseq
          %v1414 = vshrl.u32 %v1413, 7
          %v1415 = vsub.s32 3, %v1414
          %v1416 = vrot.slane %v1399, %v1415
          %v1417 = vcombine.low %v1404, %v1408
          %v1418 = vcombine.low %v1412, %v1416
          %v1420 = vunpack.c.l.s4 1983009808
          %v1421 = vunpack.c.0.s8 %v1420
          %v1422 = vlaneseq
          %v1423 = vshrl.u32 %v1422, 7
          %v1424 = vsub.s32 %v1421, %v1423
          %v1425 = vrot.slane %v1417, %v1424
          %v1427 = vunpack.c.l.s4 1983009808
          %v1428 = vunpack.c.0.s8 %v1427
          %v1429 = vlaneseq
          %v1430 = vshrl.u32 %v1429, 7
          %v1431 = vsub.s32 %v1428, %v1430
          %v1432 = vrot.slane %v1418, %v1431
          %v1433 = vcombine.low %v1425, %v1432
          %v1435 = vadd.f32 %v1398, %v1433
          %v1436 = vmax.f32 %v1435, 0.0
          %v1437 = vld [vmem:[%s3] sm:$0xff]
          %v1438 = vld [vmem:[%s3 + $0x8] sm:$0xff]
          %v1439 = vld [vmem:[%s3 + $0x10] sm:$0xff]
          %v1440 = vld [vmem:[%s3 + $0x18] sm:$0xff]
          %v1441 = vld [vmem:[%s3 + $0x20] sm:$0xff]
          %v1442 = vld [vmem:[%s3 + $0x28] sm:$0xff]
          %v1443 = vld [vmem:[%s3 + $0x30] sm:$0xff]
          %v1444 = vld [vmem:[%s3 + $0x38] sm:$0xff]
          %v1445 = vld [vmem:[%s3 + $0x40] sm:$0xff]
          %v1446 = vld [vmem:[%s3 + $0x48] sm:$0xff]
          %v1447 = vld [vmem:[%s3 + $0x50] sm:$0xff]
          %v1448 = vld [vmem:[%s3 + $0x58] sm:$0xff]
          %v1449 = vld [vmem:[%s3 + $0x60] sm:$0xff]
          %v1450 = vld [vmem:[%s3 + $0x68] sm:$0xff]
          %v1451 = vld [vmem:[%s3 + $0x70] sm:$0xff]
          %v1452 = vld [vmem:[%s3 + $0x78] sm:$0xff]
          %v1453 = vld [vmem:[%s3 + $0x80] sm:$0xff]
          %v1454 = vld [vmem:[%s3 + $0x88] sm:$0xff]
          %v1455 = vld [vmem:[%s3 + $0x90] sm:$0xff]
          %v1456 = vld [vmem:[%s3 + $0x98] sm:$0xff]
          %v1457 = vld [vmem:[%s3 + $0xa0] sm:$0xff]
          %v1458 = vld [vmem:[%s3 + $0xa8] sm:$0xff]
          %v1459 = vld [vmem:[%s3 + $0xb0] sm:$0xff]
          %v1460 = vld [vmem:[%s3 + $0xb8] sm:$0xff]
          %v1461 = vld [vmem:[%s3 + $0xc0] sm:$0xff]
          %v1462 = vld [vmem:[%s3 + $0xc8] sm:$0xff]
          %v1463 = vld [vmem:[%s3 + $0xd0] sm:$0xff]
          %v1464 = vld [vmem:[%s3 + $0xd8] sm:$0xff]
          %v1465 = vld [vmem:[%s3 + $0xe0] sm:$0xff]
          %v1466 = vld [vmem:[%s3 + $0xe8] sm:$0xff]
          %v1467 = vld [vmem:[%s3 + $0xf0] sm:$0xff]
          %v1468 = vld [vmem:[%s3 + $0xf8] sm:$0xff]
          %v1469 = vld [vmem:[%s3 + $0x100] sm:$0xff]
          %v1470 = vld [vmem:[%s3 + $0x108] sm:$0xff]
          %v1471 = vld [vmem:[%s3 + $0x110] sm:$0xff]
          %v1472 = vld [vmem:[%s3 + $0x118] sm:$0xff]
          %v1473 = vld [vmem:[%s3 + $0x120] sm:$0xff]
          %v1474 = vld [vmem:[%s3 + $0x128] sm:$0xff]
          %v1475 = vld [vmem:[%s3 + $0x130] sm:$0xff]
          %v1476 = vld [vmem:[%s3 + $0x138] sm:$0xff]
          %v1477 = vld [vmem:[%s3 + $0x140] sm:$0xff]
          %v1478 = vld [vmem:[%s3 + $0x148] sm:$0xff]
          %v1479 = vld [vmem:[%s3 + $0x150] sm:$0xff]
          %v1480 = vld [vmem:[%s3 + $0x158] sm:$0xff]
          %v1481 = vld [vmem:[%s3 + $0x160] sm:$0xff]
          %v1482 = vld [vmem:[%s3 + $0x168] sm:$0xff]
          %v1483 = vld [vmem:[%s3 + $0x170] sm:$0xff]
          %v1484 = vld [vmem:[%s3 + $0x178] sm:$0xff]
          %v1485 = vld [vmem:[%s3 + $0x180] sm:$0xff]
          %v1486 = vld [vmem:[%s3 + $0x188] sm:$0xff]
          %v1487 = vld [vmem:[%s3 + $0x190] sm:$0xff]
          %v1488 = vld [vmem:[%s3 + $0x198] sm:$0xff]
          %v1489 = vld [vmem:[%s3 + $0x1a0] sm:$0xff]
          %v1490 = vld [vmem:[%s3 + $0x1a8] sm:$0xff]
          %v1491 = vld [vmem:[%s3 + $0x1b0] sm:$0xff]
          %v1492 = vld [vmem:[%s3 + $0x1b8] sm:$0xff]
          %v1493 = vld [vmem:[%s3 + $0x1c0] sm:$0xff]
          %v1494 = vld [vmem:[%s3 + $0x1c8] sm:$0xff]
          %v1495 = vld [vmem:[%s3 + $0x1d0] sm:$0xff]
          %v1496 = vld [vmem:[%s3 + $0x1d8] sm:$0xff]
          %v1497 = vld [vmem:[%s3 + $0x1e0] sm:$0xff]
          %v1498 = vld [vmem:[%s3 + $0x1e8] sm:$0xff]
          %v1499 = vld [vmem:[%s3 + $0x1f0] sm:$0xff]
          %v1500 = vld [vmem:[%s3 + $0x1f8] sm:$0xff]
          %v1501 = vld [vmem:[%s3 + $0x200] sm:$0xff]
          %v1502 = vld [vmem:[%s3 + $0x208] sm:$0xff]
          %v1503 = vld [vmem:[%s3 + $0x210] sm:$0xff]
          %v1504 = vld [vmem:[%s3 + $0x218] sm:$0xff]
          %v1505 = vld [vmem:[%s3 + $0x220] sm:$0xff]
          %v1506 = vld [vmem:[%s3 + $0x228] sm:$0xff]
          %v1507 = vld [vmem:[%s3 + $0x230] sm:$0xff]
          %v1508 = vld [vmem:[%s3 + $0x238] sm:$0xff]
          %v1509 = vld [vmem:[%s3 + $0x240] sm:$0xff]
          %v1510 = vld [vmem:[%s3 + $0x248] sm:$0xff]
          %v1511 = vld [vmem:[%s3 + $0x250] sm:$0xff]
          %v1512 = vld [vmem:[%s3 + $0x258] sm:$0xff]
          %v1513 = vld [vmem:[%s3 + $0x260] sm:$0xff]
          %v1514 = vld [vmem:[%s3 + $0x268] sm:$0xff]
          %v1515 = vld [vmem:[%s3 + $0x270] sm:$0xff]
          %v1516 = vld [vmem:[%s3 + $0x278] sm:$0xff]
          %v1517 = vld [vmem:[%s3 + $0x280] sm:$0xff]
          %v1518 = vld [vmem:[%s3 + $0x288] sm:$0xff]
          %v1519 = vld [vmem:[%s3 + $0x290] sm:$0xff]
          %v1520 = vld [vmem:[%s3 + $0x298] sm:$0xff]
          %v1521 = vld [vmem:[%s3 + $0x2a0] sm:$0xff]
          %v1522 = vld [vmem:[%s3 + $0x2a8] sm:$0xff]
          %v1523 = vld [vmem:[%s3 + $0x2b0] sm:$0xff]
          %v1524 = vld [vmem:[%s3 + $0x2b8] sm:$0xff]
          %v1525 = vld [vmem:[%s3 + $0x2c0] sm:$0xff]
          %v1526 = vld [vmem:[%s3 + $0x2c8] sm:$0xff]
          %v1527 = vld [vmem:[%s3 + $0x2d0] sm:$0xff]
          %v1528 = vld [vmem:[%s3 + $0x2d8] sm:$0xff]
          %v1529 = vld [vmem:[%s3 + $0x2e0] sm:$0xff]
          %v1530 = vld [vmem:[%s3 + $0x2e8] sm:$0xff]
          %v1531 = vld [vmem:[%s3 + $0x2f0] sm:$0xff]
          %v1532 = vld [vmem:[%s3 + $0x2f8] sm:$0xff]
          %v1533 = vld [vmem:[%s3 + $0x300] sm:$0xff]
          %v1534 = vld [vmem:[%s3 + $0x308] sm:$0xff]
          %v1535 = vld [vmem:[%s3 + $0x310] sm:$0xff]
          %v1536 = vld [vmem:[%s3 + $0x318] sm:$0xff]
          %v1537 = vld [vmem:[%s3 + $0x320] sm:$0xff]
          %v1538 = vld [vmem:[%s3 + $0x328] sm:$0xff]
          %v1539 = vld [vmem:[%s3 + $0x330] sm:$0xff]
          %v1540 = vld [vmem:[%s3 + $0x338] sm:$0xff]
          %v1541 = vld [vmem:[%s3 + $0x340] sm:$0xff]
          %v1542 = vld [vmem:[%s3 + $0x348] sm:$0xff]
          %v1543 = vld [vmem:[%s3 + $0x350] sm:$0xff]
          %v1544 = vld [vmem:[%s3 + $0x358] sm:$0xff]
          %v1545 = vld [vmem:[%s3 + $0x360] sm:$0xff]
          %v1546 = vld [vmem:[%s3 + $0x368] sm:$0xff]
          %v1547 = vld [vmem:[%s3 + $0x370] sm:$0xff]
          %v1548 = vld [vmem:[%s3 + $0x378] sm:$0xff]
          %v1549 = vld [vmem:[%s3 + $0x380] sm:$0xff]
          %v1550 = vld [vmem:[%s3 + $0x388] sm:$0xff]
          %v1551 = vld [vmem:[%s3 + $0x390] sm:$0xff]
          %v1552 = vld [vmem:[%s3 + $0x398] sm:$0xff]
          %v1553 = vld [vmem:[%s3 + $0x3a0] sm:$0xff]
          %v1554 = vld [vmem:[%s3 + $0x3a8] sm:$0xff]
          %v1555 = vld [vmem:[%s3 + $0x3b0] sm:$0xff]
          %v1556 = vld [vmem:[%s3 + $0x3b8] sm:$0xff]
          %v1557 = vld [vmem:[%s3 + $0x3c0] sm:$0xff]
          %v1558 = vld [vmem:[%s3 + $0x3c8] sm:$0xff]
          %v1559 = vld [vmem:[%s3 + $0x3d0] sm:$0xff]
          %v1560 = vld [vmem:[%s3 + $0x3d8] sm:$0xff]
          %v1561 = vld [vmem:[%s3 + $0x3e0] sm:$0xff]
          %v1562 = vld [vmem:[%s3 + $0x3e8] sm:$0xff]
          %v1563 = vld [vmem:[%s3 + $0x3f0] sm:$0xff]
          %v1564 = vld [vmem:[%s3 + $0x3f8] sm:$0xff]
          %v1565 = vld [vmem:[%s4] sm:$0x3]
          %v1567 = vlaneseq
          %v1568 = vshrl.u32 %v1567, 7
          %v1569 = vsub.s32 0, %v1568
          %v1570 = vrot.slane %v1565, %v1569
          %v1571 = vlaneseq
          %v1572 = vshrl.u32 %v1571, 7
          %v1573 = vsub.s32 1, %v1572
          %v1574 = vrot.slane %v1565, %v1573
          %v1578 = vcombine.high %v1436, %v1436
          %v1580 = vunpack.c.l.s4 1983009808
          %v1581 = vunpack.c.0.s8 %v1580
          %v1582 = vlaneseq
          %v1583 = vshrl.u32 %v1582, 7
          %v1584 = vsub.s32 %v1581, %v1583
          %v1585 = vrot.slane %v1436, %v1584
          %v1587 = vunpack.c.l.s4 1983009808
          %v1588 = vunpack.c.0.s8 %v1587
          %v1589 = vlaneseq
          %v1590 = vshrl.u32 %v1589, 7
          %v1591 = vsub.s32 %v1588, %v1590
          %v1592 = vrot.slane %v1578, %v1591
          %v1593 = vcombine.high %v1585, %v1585
          %v1594 = vcombine.high %v1592, %v1592
          %1599 = vmatprep.subr.mxu0 %v1438
          %1600 = vmatpush1.msra.mxu0 %v1437
          %1601 = vmatprep.subr.mxu0 %v1440
          %1602 = vmatpush1.msra.mxu0 %v1439
          %1603 = vmatprep.subr.mxu0 %v1442
          %1604 = vmatpush1.msra.mxu0 %v1441
          %1605 = vmatprep.subr.mxu0 %v1444
          %1606 = vmatpush1.msra.mxu0 %v1443
          %1607 = vmatprep.subr.mxu0 %v1446
          %1608 = vmatpush1.msra.mxu0 %v1445
          %1609 = vmatprep.subr.mxu0 %v1448
          %1610 = vmatpush1.msra.mxu0 %v1447
          %1611 = vmatprep.subr.mxu0 %v1450
          %1612 = vmatpush1.msra.mxu0 %v1449
          %1613 = vmatprep.subr.mxu0 %v1452
          %1614 = vmatpush1.msra.mxu0 %v1451
          %1615 = vmatprep.subr.mxu0 %v1454
          %1616 = vmatpush1.msra.mxu0 %v1453
          %1617 = vmatprep.subr.mxu0 %v1456
          %1618 = vmatpush1.msra.mxu0 %v1455
          %1619 = vmatprep.subr.mxu0 %v1458
          %1620 = vmatpush1.msra.mxu0 %v1457
          %1621 = vmatprep.subr.mxu0 %v1460
          %1622 = vmatpush1.msra.mxu0 %v1459
          %1623 = vmatprep.subr.mxu0 %v1462
          %1624 = vmatpush1.msra.mxu0 %v1461
          %1625 = vmatprep.subr.mxu0 %v1464
          %1626 = vmatpush1.msra.mxu0 %v1463
          %1627 = vmatprep.subr.mxu0 %v1466
          %1628 = vmatpush1.msra.mxu0 %v1465
          %1629 = vmatprep.subr.mxu0 %v1468
          %1630 = vmatpush1.msra.mxu0 %v1467
          %1631 = vmatprep.subr.mxu0 %v1470
          %1632 = vmatpush1.msra.mxu0 %v1469
          %1633 = vmatprep.subr.mxu0 %v1472
          %1634 = vmatpush1.msra.mxu0 %v1471
          %1635 = vmatprep.subr.mxu0 %v1474
          %1636 = vmatpush1.msra.mxu0 %v1473
          %1637 = vmatprep.subr.mxu0 %v1476
          %1638 = vmatpush1.msra.mxu0 %v1475
          %1639 = vmatprep.subr.mxu0 %v1478
          %1640 = vmatpush1.msra.mxu0 %v1477
          %1641 = vmatprep.subr.mxu0 %v1480
          %1642 = vmatpush1.msra.mxu0 %v1479
          %1643 = vmatprep.subr.mxu0 %v1482
          %1644 = vmatpush1.msra.mxu0 %v1481
          %1645 = vmatprep.subr.mxu0 %v1484
          %1646 = vmatpush1.msra.mxu0 %v1483
          %1647 = vmatprep.subr.mxu0 %v1486
          %1648 = vmatpush1.msra.mxu0 %v1485
          %1649 = vmatprep.subr.mxu0 %v1488
          %1650 = vmatpush1.msra.mxu0 %v1487
          %1651 = vmatprep.subr.mxu0 %v1490
          %1652 = vmatpush1.msra.mxu0 %v1489
          %1653 = vmatprep.subr.mxu0 %v1492
          %1654 = vmatpush1.msra.mxu0 %v1491
          %1655 = vmatprep.subr.mxu0 %v1494
          %1656 = vmatpush1.msra.mxu0 %v1493
          %1657 = vmatprep.subr.mxu0 %v1496
          %1658 = vmatpush1.msra.mxu0 %v1495
          %1659 = vmatprep.subr.mxu0 %v1498
          %1660 = vmatpush1.msra.mxu0 %v1497
          %1661 = vmatprep.subr.mxu0 %v1500
          %1662 = vmatpush1.msra.mxu0 %v1499
          %1663 = vmatprep.mubr.f32.mxu0 %v1593
          %1664 = vmatmul.mubr.f32.gmra.mrb[0].mxu0 %v1585
          %v1665 = vpop.f32.mrb[0].mxu0
          %v1666 = vadd.f32 %v1570, %v1665
          %v1667 = vpop.f32.mrb[0].mxu0
          %v1668 = vadd.f32 %v1574, %v1667
          %1669 = vdwg.mxu0
          %1670 = vmatprep.subr.mxu0 %v1502
          %1671 = vmatpush1.msra.mxu0 %v1501
          %1672 = vmatprep.subr.mxu0 %v1504
          %1673 = vmatpush1.msra.mxu0 %v1503
          %1674 = vmatprep.subr.mxu0 %v1506
          %1675 = vmatpush1.msra.mxu0 %v1505
          %1676 = vmatprep.subr.mxu0 %v1508
          %1677 = vmatpush1.msra.mxu0 %v1507
          %1678 = vmatprep.subr.mxu0 %v1510
          %1679 = vmatpush1.msra.mxu0 %v1509
          %1680 = vmatprep.subr.mxu0 %v1512
          %1681 = vmatpush1.msra.mxu0 %v1511
          %1682 = vmatprep.subr.mxu0 %v1514
          %1683 = vmatpush1.msra.mxu0 %v1513
          %1684 = vmatprep.subr.mxu0 %v1516
          %1685 = vmatpush1.msra.mxu0 %v1515
          %1686 = vmatprep.subr.mxu0 %v1518
          %1687 = vmatpush1.msra.mxu0 %v1517
          %1688 = vmatprep.subr.mxu0 %v1520
          %1689 = vmatpush1.msra.mxu0 %v1519
          %1690 = vmatprep.subr.mxu0 %v1522
          %1691 = vmatpush1.msra.mxu0 %v1521
          %1692 = vmatprep.subr.mxu0 %v1524
          %1693 = vmatpush1.msra.mxu0 %v1523
          %1694 = vmatprep.subr.mxu0 %v1526
          %1695 = vmatpush1.msra.mxu0 %v1525
          %1696 = vmatprep.subr.mxu0 %v1528
          %1697 = vmatpush1.msra.mxu0 %v1527
          %1698 = vmatprep.subr.mxu0 %v1530
          %1699 = vmatpush1.msra.mxu0 %v1529
          %1700 = vmatprep.subr.mxu0 %v1532
          %1701 = vmatpush1.msra.mxu0 %v1531
          %1702 = vmatprep.subr.mxu0 %v1534
          %1703 = vmatpush1.msra.mxu0 %v1533
          %1704 = vmatprep.subr.mxu0 %v1536
          %1705 = vmatpush1.msra.mxu0 %v1535
          %1706 = vmatprep.subr.mxu0 %v1538
          %1707 = vmatpush1.msra.mxu0 %v1537
          %1708 = vmatprep.subr.mxu0 %v1540
          %1709 = vmatpush1.msra.mxu0 %v1539
          %1710 = vmatprep.subr.mxu0 %v1542
          %1711 = vmatpush1.msra.mxu0 %v1541
          %1712 = vmatprep.subr.mxu0 %v1544
          %1713 = vmatpush1.msra.mxu0 %v1543
          %1714 = vmatprep.subr.mxu0 %v1546
          %1715 = vmatpush1.msra.mxu0 %v1545
          %1716 = vmatprep.subr.mxu0 %v1548
          %1717 = vmatpush1.msra.mxu0 %v1547
          %1718 = vmatprep.subr.mxu0 %v1550
          %1719 = vmatpush1.msra.mxu0 %v1549
          %1720 = vmatprep.subr.mxu0 %v1552
          %1721 = vmatpush1.msra.mxu0 %v1551
          %1722 = vmatprep.subr.mxu0 %v1554
          %1723 = vmatpush1.msra.mxu0 %v1553
          %1724 = vmatprep.subr.mxu0 %v1556
          %1725 = vmatpush1.msra.mxu0 %v1555
          %1726 = vmatprep.subr.mxu0 %v1558
          %1727 = vmatpush1.msra.mxu0 %v1557
          %1728 = vmatprep.subr.mxu0 %v1560
          %1729 = vmatpush1.msra.mxu0 %v1559
          %1730 = vmatprep.subr.mxu0 %v1562
          %1731 = vmatpush1.msra.mxu0 %v1561
          %1732 = vmatprep.subr.mxu0 %v1564
          %1733 = vmatpush1.msra.mxu0 %v1563
          %1734 = vmatprep.mubr.f32.mxu0 %v1594
          %1735 = vmatmul.mubr.f32.gmra.mrb[0].mxu0 %v1592
          %v1736 = vpop.f32.mrb[0].mxu0
          %v1737 = vadd.f32 %v1666, %v1736
          %v1738 = vpop.f32.mrb[0].mxu0
          %v1739 = vadd.f32 %v1668, %v1738
          %1740 = vdwg.mxu0
          %v1743 = vcombine.low %v1737, %v1739
          %v1745 = vunpack.c.l.s4 1983009808
          %v1746 = vunpack.c.0.s8 %v1745
          %v1747 = vlaneseq
          %v1748 = vshrl.u32 %v1747, 7
          %v1749 = vsub.s32 %v1746, %v1748
          %v1750 = vrot.slane %v1743, %v1749
          %vm1752 = vcmask 1041408
          %vm1753 = vcmask 60418
          %vm1754 = vmor %vm1753, %vm1752
          %1755 = vst.msk [vmem:[#allocation3] sm:$0xf] %vm1754, %v1750
        $region48: #{net_forward.7} parent=39 // pred_fallthru
          _
        // Predicated region
        $region49: #{net_forward.7} parent=39 // pred_check
          %p1756 = pneg %p145
        $region50: #{net_forward.7} parent=39 // pred_check_branch
          %1758 = sbr.rel (%p1756) target = $region52
        $region51: #{net_forward.7} parent=39 // pred_region
          %s1760 = ssub.s32 64, 64
          %1761 = vsyncadd [#allocation4], %s1760
          %s1763 = sshll.u32 [#allocation3], 4
          %s1764 = int_to_ptr.vmem [resolvable:$true] %s1763
          %1766 = dma.vmem_to_hbm [thread:$0]  %s1764, 64, %s5, [#allocation4]
        $region52: #{net_forward.7} parent=39 // pred_fallthru
          _
        // Predicated region
        $region53: #{net_forward.7} parent=39 // pred_check
          %p1767 = pneg %p145
        $region54: #{net_forward.7} parent=39 // pred_check_branch
          %1769 = sbr.rel (%p1767) target = $region56
        $region55: #{net_forward.7} parent=39 // pred_region
          %1770 = dma.done [#allocation4], 64
        $region56: #{net_forward.7} parent=39 // pred_fallthru
          _
      $region40: #{net_forward.7} parent=5 // pred_fallthru
        _
      %p1771 = scmp.le.s32.totalorder 2, %s12
      // Predicated region
      $region57: #{net_forward.7} parent=5 // pred_check
        %p1772 = pneg %p1771
      $region58: #{net_forward.7} parent=5 // pred_check_branch
        %1774 = sbr.rel (%p1772) target = $region60
      $region59: #{net_forward.7} parent=5 // pred_region
        %s1775 = ssub.s32 %s12, 2
      $region60: #{net_forward.7} parent=5 // pred_fallthru
        _
    $region6: #{net_forward.7} parent=1 // loop_footer
      %s16 = sadd.s32 1, %s12
    $region7: #{net_forward.7} parent=1 // loop_footer_branch
      %11 = sbr.rel target = $region3
    $region8: #{net_forward.7} parent=1 // loop_exit
      _
    %1776 = vsyncpa [#allocation4], 1
    %s1777 = scalar_lea.sflag [#allocation4], 1
    %1778 = vsyncpa %s1777, 1

</llo_original>
